<compile_context>
chip_gen: v6e
topology: v6e:2x2x1
jax: 0.10.0
libtpu: 0.0.40
codegen_flags: <defaults>
</compile_context>

<pallas_src>
import functools
import math

import jax
import jax.numpy as jnp
from jax import lax
from jax.experimental import pallas as pl
from jax.experimental.pallas import tpu as pltpu

# MXU operand dtype: bf16 operands + f32 accumulation is the fast path on
# v5e / v6e / v7x.  Set to jnp.float32 for closer parity with PyTorch f32.
_MXU_DTYPE = jnp.bfloat16

# Scoped-VMEM budget for the fused kernels: 32 MiB is the v6e/v7x default and
# a 2x raise over v5e's 16 MiB default; safe on every generation.
_VMEM_LIMIT = 32 * 1024 * 1024


# --------------------------------------------------------------- helpers ----
def _const_spec(shape):
    """BlockSpec for an operand that is identical for every grid step."""
    return pl.BlockSpec(shape, lambda *_: (0,) * len(shape))


def _layernorm(x, g, b, eps=1e-5):
    mu = jnp.mean(x, axis=-1, keepdims=True)
    xc = x - mu
    var = jnp.mean(xc * xc, axis=-1, keepdims=True)
    return xc * lax.rsqrt(var + eps) * g + b


def _mha_heads(qkv, *, n, seq, num_heads):
    """Multi-head self-attention over packed QKV activations.

    qkv: (n*seq, 3E) f32, rows ordered n-major / seq-minor.  All n*num_heads
    (seq, head_dim) sequences are attended with ONE batched scores dot_general
    and ONE batched context dot_general (no per-head matmul loop, no H live
    per-head context tensors).  Returns the head-concatenated context
    (n*seq, E) in f32.
    """
    m, three_e = qkv.shape
    e = three_e // 3
    h = num_heads
    d = e // h
    scale = 1.0 / math.sqrt(d)
    qkv_bf = qkv.astype(_MXU_DTYPE)          # cast once, not per head/slice

    def split_heads(base):
        # static lane windows stacked into one (h*n, seq, d) batched operand;
        # reshape keeps the minor (d) dim fixed so it is a cheap row regroup.
        parts = [qkv_bf[:, base + i * d: base + (i + 1) * d] for i in range(h)]
        return jnp.stack(parts, axis=0).reshape(h * n, seq, d)

    q = split_heads(0)
    k = split_heads(e)
    v = split_heads(2 * e)

    s = jnp.einsum("bqd,bkd->bqk", q, k,
                   preferred_element_type=jnp.float32) * scale
    s = s - jnp.max(s, axis=-1, keepdims=True)
    p = jnp.exp(s)                                            # f32 softmax
    p = p * pl.reciprocal(jnp.sum(p, axis=-1, keepdims=True), approx=True)
    ctx = jnp.einsum("bqk,bkd->bqd", p.astype(_MXU_DTYPE), v,
                     preferred_element_type=jnp.float32)      # (h*n, seq, d)

    ctx = ctx.reshape(h, n * seq, d)
    # single head merge back onto lanes; feeds one (E, E) output projection
    return jnp.concatenate([ctx[i] for i in range(h)], axis=-1)   # (n*seq, E)


# -------------------------------- stage 1: embed + pos + stock attention ----
def _stock_attn_kernel(x_ref, wemb_ref, bemb_ref, pos_ref,
                       wqkv_ref, bqkv_ref, wo_ref, bo_ref,
                       o_ref, *, num_heads, num_stocks):
    M, F = x_ref.shape[1:]                     # M = T * S (already flattened)
    S = num_stocks
    T = M // S
    E = wemb_ref.shape[1]

    # embedding (one (T*S, F) @ (F, E) matmul) + pre-tiled positional encoding
    x = x_ref[0].astype(_MXU_DTYPE)
    h = jnp.dot(x, wemb_ref[...], preferred_element_type=jnp.float32)
    h = h + bemb_ref[...] + pos_ref[...]

    # packed QKV projection + attention across stocks (batch dim = T)
    qkv = jnp.dot(h.astype(_MXU_DTYPE), wqkv_ref[...],
                  preferred_element_type=jnp.float32) + bqkv_ref[...]
    ctx = _mha_heads(qkv, n=T, seq=S, num_heads=num_heads)       # (T*S, E)
    attn = jnp.dot(ctx.astype(_MXU_DTYPE), wo_ref[...],
                   preferred_element_type=jnp.float32) + bo_ref[...]

    # fold the (B,T,S,E) -> (B,S,T,E) permute into one transposed, lane-dense,
    # full-block store (no per-stock masked store loop).
    o_ref[0] = jnp.transpose(attn.reshape(T, S, E), (1, 0, 2))


def stock_attention(x2, pos_full, params, *, num_heads, num_stocks, time_steps):
    B, M, F = x2.shape                          # M = T * S
    E = params["embed_w"].shape[1]
    T, S = time_steps, num_stocks
    tsa = params["tsa"]
    kern = functools.partial(_stock_attn_kernel,
                             num_heads=num_heads, num_stocks=S)
    return pl.pallas_call(
        kern,
        out_shape=jax.ShapeDtypeStruct((B, S, T, E), jnp.float32),
        grid=(B,),
        in_specs=[
            pl.BlockSpec((1, M, F), lambda b: (b, 0, 0)),
            _const_spec((F, E)),
            _const_spec((1, E)),
            _const_spec((M, E)),
            _const_spec((E, 3 * E)),
            _const_spec((1, 3 * E)),
            _const_spec((E, E)),
            _const_spec((1, E)),
        ],
        out_specs=pl.BlockSpec((1, S, T, E), lambda b: (b, 0, 0, 0)),
        compiler_params=pltpu.CompilerParams(
            dimension_semantics=("parallel",),
            vmem_limit_bytes=_VMEM_LIMIT),
    )(x2, params["embed_w"], params["embed_b"], pos_full,
      tsa["w_qkv"], tsa["b_qkv"], tsa["wo"], tsa["bo"])


# ------------ stage 2: fused encoder stack + time-mean pool + projection ----
def _encoder_stack_kernel(h_ref,
                          wqkv_ref, bqkv_ref, wo_ref, bo_ref,
                          g1_ref, bn1_ref, w1_ref, b1_ref, w2_ref, b2_ref,
                          g2_ref, bn2_ref,
                          wout_ref, bout_ref,
                          o_ref, act_ref, *, num_heads, num_stocks):
    M, E = act_ref.shape                        # M = S * T
    S = num_stocks
    T = M // S
    layer = pl.program_id(1)

    @pl.when(layer == 0)
    def _():
        act_ref[...] = h_ref[0]                 # activation becomes resident

    x = act_ref[...]                            # (S*T, E) f32 residual path
    x_bf = x.astype(_MXU_DTYPE)

    # self-attention over time (batch dim = S stocks), packed QKV
    qkv = jnp.dot(x_bf, wqkv_ref[0],
                  preferred_element_type=jnp.float32) + bqkv_ref[0]
    ctx = _mha_heads(qkv, n=S, seq=T, num_heads=num_heads)       # (S*T, E)
    attn = jnp.dot(ctx.astype(_MXU_DTYPE), wo_ref[0],
                   preferred_element_type=jnp.float32) + bo_ref[0]

    # post-LN residual blocks (nn.TransformerEncoderLayer defaults, ReLU FFN)
    h1 = _layernorm(x + attn, g1_ref[0], bn1_ref[0])
    ff = jnp.maximum(jnp.dot(h1.astype(_MXU_DTYPE), w1_ref[0],
                             preferred_element_type=jnp.float32) + b1_ref[0],
                     0.0)
    ff = jnp.dot(ff.astype(_MXU_DTYPE), w2_ref[0],
                 preferred_element_type=jnp.float32) + b2_ref[0]
    h2 = _layernorm(h1 + ff, g2_ref[0], bn2_ref[0])

    act_ref[...] = h2                           # carry to the next layer

    @pl.when(layer == pl.num_programs(1) - 1)
    def _():
        # time-mean pool fused with the final projection; the (1, S) result is
        # produced directly (trans-B contraction) so the store is lane-dense
        # (no size-1 trailing dim, no masked (S, 1) store).
        pooled = jnp.mean(h2.reshape(S, T, E), axis=1)            # (S, E)
        proj = lax.dot_general(wout_ref[...], pooled,
                               dimension_numbers=(((1,), (1,)), ((), ())),
                               preferred_element_type=jnp.float32)  # (1, S)
        o_ref[0] = proj + bout_ref[...]


def encoder_stack(h, params, *, num_heads, num_stocks):
    B, M, E = h.shape                           # M = S * T
    S = num_stocks
    enc = params["enc"]
    NL = enc["w_qkv"].shape[0]
    kern = functools.partial(_encoder_stack_kernel,
                             num_heads=num_heads, num_stocks=S)

    def lyr(shape):
        # per-layer stacked weight: block (1, *shape) picked by the layer axis
        return pl.BlockSpec((1,) + shape,
                            lambda b, l, _s=shape: (l,) + (0,) * len(_s))

    return pl.pallas_call(
        kern,
        out_shape=jax.ShapeDtypeStruct((B, 1, S), jnp.float32),
        grid=(B, NL),
        in_specs=[
            pl.BlockSpec((1, M, E), lambda b, l: (b, 0, 0)),
            lyr((E, 3 * E)), lyr((1, 3 * E)), lyr((E, E)), lyr((1, E)),
            lyr((1, E)), lyr((1, E)),
            lyr((E, 4 * E)), lyr((1, 4 * E)), lyr((4 * E, E)), lyr((1, E)),
            lyr((1, E)), lyr((1, E)),
            _const_spec((1, E)),
            _const_spec((1, 1)),
        ],
        out_specs=pl.BlockSpec((1, 1, S), lambda b, l: (b, 0, 0)),
        scratch_shapes=[pltpu.VMEM((M, E), jnp.float32)],
        compiler_params=pltpu.CompilerParams(
            dimension_semantics=("parallel", "arbitrary"),
            vmem_limit_bytes=_VMEM_LIMIT),
    )(h,
      enc["w_qkv"], enc["b_qkv"], enc["wo"], enc["bo"],
      enc["ln1_g"], enc["ln1_b"],
      enc["w1"], enc["b1"], enc["w2"], enc["b2"],
      enc["ln2_g"], enc["ln2_b"],
      params["out_w"], params["out_b"])


# ----------------------------------------------------------------- forward --
def forward(params, x_real, *, num_heads):
    x = x_real.astype(jnp.float32)
    B, T, S, F = x.shape
    E = params["embed_w"].shape[1]
    # free layout plumbing in the wrapper: flatten (T,S) and pre-tile pos-enc
    x2 = x.reshape(B, T * S, F)
    pos_full = jnp.tile(params["pos_enc"], (T, 1))        # row t*S+s -> pos[s]
    # embed + pos-enc + cross-stock attention; output already (B, S, T, E)
    h = stock_attention(x2, pos_full, params, num_heads=num_heads,
                        num_stocks=S, time_steps=T)
    h = h.reshape(B, S * T, E)                             # free dim merge
    # all encoder layers + time-mean pool + output projection, one kernel
    out = encoder_stack(h, params, num_heads=num_heads, num_stocks=S)
    return out.reshape(B, S)


# ------------------------------------------------------------------ params --
def init_params(key, input_dim, embed_dim, num_stocks, num_layers):
    E = embed_dim
    keys = iter(jax.random.split(key, 16 + 8 * num_layers))

    def w(fin, fout, dtype=_MXU_DTYPE):
        return (jax.random.normal(next(keys), (fin, fout), jnp.float32)
                / math.sqrt(fin)).astype(dtype)

    def b(fout):
        return 0.01 * jax.random.normal(next(keys), (1, fout), jnp.float32)

    # w_qkv corresponds to nn.MultiheadAttention's in_proj_weight.T packed
    # [q | k | v] with heads laid out consecutively inside each block.
    tsa = dict(w_qkv=w(E, 3 * E), b_qkv=b(3 * E), wo=w(E, E), bo=b(E))

    def stacked(make):
        return jnp.stack([make() for _ in range(num_layers)], axis=0)

    enc = dict(
        w_qkv=stacked(lambda: w(E, 3 * E)), b_qkv=stacked(lambda: b(3 * E)),
        wo=stacked(lambda: w(E, E)), bo=stacked(lambda: b(E)),
        ln1_g=jnp.ones((num_layers, 1, E), jnp.float32),
        ln1_b=jnp.zeros((num_layers, 1, E), jnp.float32),
        w1=stacked(lambda: w(E, 4 * E)), b1=stacked(lambda: b(4 * E)),
        w2=stacked(lambda: w(4 * E, E)), b2=stacked(lambda: b(E)),
        ln2_g=jnp.ones((num_layers, 1, E), jnp.float32),
        ln2_b=jnp.zeros((num_layers, 1, E), jnp.float32),
    )

    return dict(
        embed_w=w(input_dim, E),
        embed_b=b(E),
        pos_enc=0.02 * jax.random.normal(next(keys), (num_stocks, E),
                                         jnp.float32),
        tsa=tsa,
        enc=enc,
        # fc_out weight stored as (1, E) f32 (PyTorch layout, contracted over E)
        out_w=(jax.random.normal(next(keys), (1, E), jnp.float32)
               / math.sqrt(E)),
        out_b=b(1),
    )


if __name__ == "__main__":
    # small shapes consistent with the module's forward
    B, T, S, F = 2, 8, 4, 4          # batch, time steps, num_stocks, features
    E, H, NL = 32, 4, 2              # embed_dim, num_heads, num_layers

    key = jax.random.PRNGKey(0)
    pkey, xkey = jax.random.split(key)
    params = init_params(pkey, F, E, S, NL)
    x_real = jax.random.normal(xkey, (B, T, S, F), jnp.float32)

    fwd = jax.jit(functools.partial(forward, num_heads=H))
    y = fwd(params, x_real)
    jax.block_until_ready(y)
    assert y.shape == (B, S) and y.dtype == jnp.float32
    assert bool(jnp.all(jnp.isfinite(y)))
    print("KERNEL_OK")
</pallas_src>

<mosaic_0001>
module attributes {stable_mosaic.version = 11 : i64} {
  func.func @_stock_attn_kernel(%arg0: i32, %arg1: memref<1x32x4xf32, #tpu.memory_space<vmem>>, %arg2: memref<4x32xbf16, #tpu.memory_space<vmem>>, %arg3: memref<1x32xf32, #tpu.memory_space<vmem>>, %arg4: memref<32x32xf32, #tpu.memory_space<vmem>>, %arg5: memref<32x96xbf16, #tpu.memory_space<vmem>>, %arg6: memref<1x96xf32, #tpu.memory_space<vmem>>, %arg7: memref<32x32xbf16, #tpu.memory_space<vmem>>, %arg8: memref<1x32xf32, #tpu.memory_space<vmem>>, %arg9: memref<1x4x8x32xf32, #tpu.memory_space<vmem>>) attributes {dimension_semantics = [#tpu.dimension_semantics<parallel>], iteration_bounds = array<i64: 2>, scalar_prefetch = 0 : i64, scratch_operands = 0 : i64, tpu.core_type = #tpu.core_type<tc>, window_params = [{transform_indices = @transform_0, window_bounds = array<i64: 1, 32, 4>}, {pipeline_mode = #tpu.pipeline_mode<synchronous>, transform_indices = @transform_1, window_bounds = array<i64: 4, 32>}, {pipeline_mode = #tpu.pipeline_mode<synchronous>, transform_indices = @transform_2, window_bounds = array<i64: 1, 32>}, {pipeline_mode = #tpu.pipeline_mode<synchronous>, transform_indices = @transform_3, window_bounds = array<i64: 32, 32>}, {pipeline_mode = #tpu.pipeline_mode<synchronous>, transform_indices = @transform_4, window_bounds = array<i64: 32, 96>}, {pipeline_mode = #tpu.pipeline_mode<synchronous>, transform_indices = @transform_5, window_bounds = array<i64: 1, 96>}, {pipeline_mode = #tpu.pipeline_mode<synchronous>, transform_indices = @transform_6, window_bounds = array<i64: 32, 32>}, {pipeline_mode = #tpu.pipeline_mode<synchronous>, transform_indices = @transform_7, window_bounds = array<i64: 1, 32>}, {transform_indices = @transform_8, window_bounds = array<i64: 1, 4, 8, 32>}]} {
    %c0 = arith.constant 0 : index
    %c0_0 = arith.constant 0 : index
    %c0_1 = arith.constant 0 : index
    %0 = vector.load %arg1[%c0, %c0_0, %c0_1] : memref<1x32x4xf32, #tpu.memory_space<vmem>>, vector<1x32x4xf32>
    %1 = vector.shape_cast %0 : vector<1x32x4xf32> to vector<32x4xf32>
    %2 = arith.truncf %1 : vector<32x4xf32> to vector<32x4xbf16>
    %c0_2 = arith.constant 0 : index
    %c0_3 = arith.constant 0 : index
    %3 = vector.load %arg2[%c0_2, %c0_3] : memref<4x32xbf16, #tpu.memory_space<vmem>>, vector<4x32xbf16>
    %cst = arith.constant dense<0.000000e+00> : vector<32x32xf32>
    %4 = tpu.matmul %2, %3, %cst {dimension_numbers = #tpu.dot_dimension_numbers<[1], [0], [0], [1], [0, 0, 1, 1], [], []>} : vector<32x4xbf16>, vector<4x32xbf16>, vector<32x32xf32> -> vector<32x32xf32>
    %c0_4 = arith.constant 0 : index
    %c0_5 = arith.constant 0 : index
    %5 = vector.load %arg3[%c0_4, %c0_5] : memref<1x32xf32, #tpu.memory_space<vmem>>, vector<1x32xf32>
    %6 = vector.broadcast %5 : vector<1x32xf32> to vector<32x32xf32>
    %7 = arith.addf %4, %6 : vector<32x32xf32>
    %c0_6 = arith.constant 0 : index
    %c0_7 = arith.constant 0 : index
    %8 = vector.load %arg4[%c0_6, %c0_7] : memref<32x32xf32, #tpu.memory_space<vmem>>, vector<32x32xf32>
    %9 = arith.addf %7, %8 : vector<32x32xf32>
    %10 = arith.truncf %9 : vector<32x32xf32> to vector<32x32xbf16>
    %c0_8 = arith.constant 0 : index
    %c0_9 = arith.constant 0 : index
    %11 = vector.load %arg5[%c0_8, %c0_9] : memref<32x96xbf16, #tpu.memory_space<vmem>>, vector<32x96xbf16>
    %cst_10 = arith.constant dense<0.000000e+00> : vector<32x96xf32>
    %12 = tpu.matmul %10, %11, %cst_10 {dimension_numbers = #tpu.dot_dimension_numbers<[1], [0], [0], [1], [0, 0, 1, 1], [], []>} : vector<32x32xbf16>, vector<32x96xbf16>, vector<32x96xf32> -> vector<32x96xf32>
    %c0_11 = arith.constant 0 : index
    %c0_12 = arith.constant 0 : index
    %13 = vector.load %arg6[%c0_11, %c0_12] : memref<1x96xf32, #tpu.memory_space<vmem>>, vector<1x96xf32>
    %14 = vector.broadcast %13 : vector<1x96xf32> to vector<32x96xf32>
    %15 = arith.addf %12, %14 : vector<32x96xf32>
    %16 = arith.truncf %15 : vector<32x96xf32> to vector<32x96xbf16>
    %17 = vector.extract_strided_slice %16 {offsets = [0, 0], sizes = [32, 8], strides = [1, 1]} : vector<32x96xbf16> to vector<32x8xbf16>
    %18 = vector.extract_strided_slice %16 {offsets = [0, 8], sizes = [32, 8], strides = [1, 1]} : vector<32x96xbf16> to vector<32x8xbf16>
    %19 = vector.extract_strided_slice %16 {offsets = [0, 16], sizes = [32, 8], strides = [1, 1]} : vector<32x96xbf16> to vector<32x8xbf16>
    %20 = vector.extract_strided_slice %16 {offsets = [0, 24], sizes = [32, 8], strides = [1, 1]} : vector<32x96xbf16> to vector<32x8xbf16>
    %21 = vector.shape_cast %17 : vector<32x8xbf16> to vector<1x32x8xbf16>
    %22 = vector.shape_cast %18 : vector<32x8xbf16> to vector<1x32x8xbf16>
    %23 = vector.shape_cast %19 : vector<32x8xbf16> to vector<1x32x8xbf16>
    %24 = vector.shape_cast %20 : vector<32x8xbf16> to vector<1x32x8xbf16>
    %25 = tpu.concatenate %21, %22, %23, %24 in 0 : vector<1x32x8xbf16>, vector<1x32x8xbf16>, vector<1x32x8xbf16>, vector<1x32x8xbf16> -> vector<4x32x8xbf16>
    %26 = vector.shape_cast %25 : vector<4x32x8xbf16> to vector<32x4x8xbf16>
    %27 = vector.extract_strided_slice %16 {offsets = [0, 32], sizes = [32, 8], strides = [1, 1]} : vector<32x96xbf16> to vector<32x8xbf16>
    %28 = vector.extract_strided_slice %16 {offsets = [0, 40], sizes = [32, 8], strides = [1, 1]} : vector<32x96xbf16> to vector<32x8xbf16>
    %29 = vector.extract_strided_slice %16 {offsets = [0, 48], sizes = [32, 8], strides = [1, 1]} : vector<32x96xbf16> to vector<32x8xbf16>
    %30 = vector.extract_strided_slice %16 {offsets = [0, 56], sizes = [32, 8], strides = [1, 1]} : vector<32x96xbf16> to vector<32x8xbf16>
    %31 = vector.shape_cast %27 : vector<32x8xbf16> to vector<1x32x8xbf16>
    %32 = vector.shape_cast %28 : vector<32x8xbf16> to vector<1x32x8xbf16>
    %33 = vector.shape_cast %29 : vector<32x8xbf16> to vector<1x32x8xbf16>
    %34 = vector.shape_cast %30 : vector<32x8xbf16> to vector<1x32x8xbf16>
    %35 = tpu.concatenate %31, %32, %33, %34 in 0 : vector<1x32x8xbf16>, vector<1x32x8xbf16>, vector<1x32x8xbf16>, vector<1x32x8xbf16> -> vector<4x32x8xbf16>
    %36 = vector.shape_cast %35 : vector<4x32x8xbf16> to vector<32x4x8xbf16>
    %37 = vector.extract_strided_slice %16 {offsets = [0, 64], sizes = [32, 8], strides = [1, 1]} : vector<32x96xbf16> to vector<32x8xbf16>
    %38 = vector.extract_strided_slice %16 {offsets = [0, 72], sizes = [32, 8], strides = [1, 1]} : vector<32x96xbf16> to vector<32x8xbf16>
    %39 = vector.extract_strided_slice %16 {offsets = [0, 80], sizes = [32, 8], strides = [1, 1]} : vector<32x96xbf16> to vector<32x8xbf16>
    %40 = vector.extract_strided_slice %16 {offsets = [0, 88], sizes = [32, 8], strides = [1, 1]} : vector<32x96xbf16> to vector<32x8xbf16>
    %41 = vector.shape_cast %37 : vector<32x8xbf16> to vector<1x32x8xbf16>
    %42 = vector.shape_cast %38 : vector<32x8xbf16> to vector<1x32x8xbf16>
    %43 = vector.shape_cast %39 : vector<32x8xbf16> to vector<1x32x8xbf16>
    %44 = vector.shape_cast %40 : vector<32x8xbf16> to vector<1x32x8xbf16>
    %45 = tpu.concatenate %41, %42, %43, %44 in 0 : vector<1x32x8xbf16>, vector<1x32x8xbf16>, vector<1x32x8xbf16>, vector<1x32x8xbf16> -> vector<4x32x8xbf16>
    %46 = vector.shape_cast %45 : vector<4x32x8xbf16> to vector<32x4x8xbf16>
    "tpu.trace_start"() <{level = 10 : i32, message = "bqd,bkd->bqk"}> : () -> ()
    %cst_13 = arith.constant dense<0.000000e+00> : vector<32x4x4xf32>
    %47 = tpu.matmul %26, %36, %cst_13 {dimension_numbers = #tpu.dot_dimension_numbers<[2], [2], [1], [1], [0, 0, 0, 1, 1, 1], [0], [0]>} : vector<32x4x8xbf16>, vector<32x4x8xbf16>, vector<32x4x4xf32> -> vector<32x4x4xf32>
    "tpu.trace_stop"() : () -> ()
    %cst_14 = arith.constant 0.353553385 : f32
    %48 = vector.broadcast %cst_14 : f32 to vector<32x4x4xf32>
    %49 = arith.mulf %47, %48 : vector<32x4x4xf32>
    %cst_15 = arith.constant dense<0xFF800000> : vector<32x4xf32>
    %50 = vector.multi_reduction <maximumf>, %49, %cst_15 [2] : vector<32x4x4xf32> to vector<32x4xf32>
    %51 = vector.shape_cast %50 : vector<32x4xf32> to vector<32x4x1xf32>
    %52 = vector.broadcast %51 : vector<32x4x1xf32> to vector<32x4x4xf32>
    %53 = arith.subf %49, %52 : vector<32x4x4xf32>
    %54 = math.exp %53 : vector<32x4x4xf32>
    %cst_16 = arith.constant dense<0.000000e+00> : vector<32x4xf32>
    %55 = vector.multi_reduction <add>, %54, %cst_16 [2] : vector<32x4x4xf32> to vector<32x4xf32>
    %56 = vector.shape_cast %55 : vector<32x4xf32> to vector<32x4x1xf32>
    %57 = tpu.reciprocal %56 {approx = true} : vector<32x4x1xf32> -> vector<32x4x1xf32>
    %58 = vector.broadcast %57 : vector<32x4x1xf32> to vector<32x4x4xf32>
    %59 = arith.mulf %54, %58 : vector<32x4x4xf32>
    %60 = arith.truncf %59 : vector<32x4x4xf32> to vector<32x4x4xbf16>
    "tpu.trace_start"() <{level = 10 : i32, message = "bqk,bkd->bqd"}> : () -> ()
    %cst_17 = arith.constant dense<0.000000e+00> : vector<32x4x8xf32>
    %61 = tpu.matmul %60, %46, %cst_17 {dimension_numbers = #tpu.dot_dimension_numbers<[2], [1], [1], [2], [0, 0, 0, 1, 1, 2], [0], [0]>} : vector<32x4x4xbf16>, vector<32x4x8xbf16>, vector<32x4x8xf32> -> vector<32x4x8xf32>
    "tpu.trace_stop"() : () -> ()
    %62 = vector.shape_cast %61 : vector<32x4x8xf32> to vector<4x32x8xf32>
    %63 = vector.extract_strided_slice %62 {offsets = [0, 0, 0], sizes = [1, 32, 8], strides = [1, 1, 1]} : vector<4x32x8xf32> to vector<1x32x8xf32>
    %64 = vector.shape_cast %63 : vector<1x32x8xf32> to vector<32x8xf32>
    %65 = vector.extract_strided_slice %62 {offsets = [1, 0, 0], sizes = [1, 32, 8], strides = [1, 1, 1]} : vector<4x32x8xf32> to vector<1x32x8xf32>
    %66 = vector.shape_cast %65 : vector<1x32x8xf32> to vector<32x8xf32>
    %67 = vector.extract_strided_slice %62 {offsets = [2, 0, 0], sizes = [1, 32, 8], strides = [1, 1, 1]} : vector<4x32x8xf32> to vector<1x32x8xf32>
    %68 = vector.shape_cast %67 : vector<1x32x8xf32> to vector<32x8xf32>
    %69 = vector.extract_strided_slice %62 {offsets = [3, 0, 0], sizes = [1, 32, 8], strides = [1, 1, 1]} : vector<4x32x8xf32> to vector<1x32x8xf32>
    %70 = vector.shape_cast %69 : vector<1x32x8xf32> to vector<32x8xf32>
    %71 = tpu.concatenate %64, %66, %68, %70 in 1 : vector<32x8xf32>, vector<32x8xf32>, vector<32x8xf32>, vector<32x8xf32> -> vector<32x32xf32>
    %72 = arith.truncf %71 : vector<32x32xf32> to vector<32x32xbf16>
    %c0_18 = arith.constant 0 : index
    %c0_19 = arith.constant 0 : index
    %73 = vector.load %arg7[%c0_18, %c0_19] : memref<32x32xbf16, #tpu.memory_space<vmem>>, vector<32x32xbf16>
    %cst_20 = arith.constant dense<0.000000e+00> : vector<32x32xf32>
    %74 = tpu.matmul %72, %73, %cst_20 {dimension_numbers = #tpu.dot_dimension_numbers<[1], [0], [0], [1], [0, 0, 1, 1], [], []>} : vector<32x32xbf16>, vector<32x32xbf16>, vector<32x32xf32> -> vector<32x32xf32>
    %c0_21 = arith.constant 0 : index
    %c0_22 = arith.constant 0 : index
    %75 = vector.load %arg8[%c0_21, %c0_22] : memref<1x32xf32, #tpu.memory_space<vmem>>, vector<1x32xf32>
    %76 = vector.broadcast %75 : vector<1x32xf32> to vector<32x32xf32>
    %77 = arith.addf %74, %76 : vector<32x32xf32>
    %78 = vector.shape_cast %77 : vector<32x32xf32> to vector<8x4x32xf32>
    %79 = tpu.transpose %78, [1, 0, 2] : vector<8x4x32xf32> -> vector<4x8x32xf32>
    %c0_23 = arith.constant 0 : index
    %c0_24 = arith.constant 0 : index
    %c0_25 = arith.constant 0 : index
    %c0_26 = arith.constant 0 : index
    %80 = vector.load %arg9[%c0_23, %c0_24, %c0_25, %c0_26] : memref<1x4x8x32xf32, #tpu.memory_space<vmem>>, vector<1x4x8x32xf32>
    %81 = vector.shape_cast %80 : vector<1x4x8x32xf32> to vector<4x8x32xf32>
    %82 = vector.shape_cast %79 : vector<4x8x32xf32> to vector<1x4x8x32xf32>
    tpu.vector_store %arg9[%c0_23, %c0_24, %c0_25, %c0_26], %82 {strides = array<i32>} : memref<1x4x8x32xf32, #tpu.memory_space<vmem>>, vector<1x4x8x32xf32>,
    return
  }
  func.func @transform_0(%arg0: i32) -> (i32, i32, i32) {
    %c0_i32 = arith.constant 0 : i32
    %c0_i32_0 = arith.constant 0 : i32
    %c0_i32_1 = arith.constant 0 : i32
    return %arg0, %c0_i32, %c0_i32_0 : i32, i32, i32
  }
  func.func @transform_1(%arg0: i32) -> (i32, i32) {
    %c0_i32 = arith.constant 0 : i32
    %c0_i32_0 = arith.constant 0 : i32
    %c0_i32_1 = arith.constant 0 : i32
    return %c0_i32, %c0_i32_0 : i32, i32
  }
  func.func @transform_2(%arg0: i32) -> (i32, i32) {
    %c0_i32 = arith.constant 0 : i32
    %c0_i32_0 = arith.constant 0 : i32
    %c0_i32_1 = arith.constant 0 : i32
    return %c0_i32, %c0_i32_0 : i32, i32
  }
  func.func @transform_3(%arg0: i32) -> (i32, i32) {
    %c0_i32 = arith.constant 0 : i32
    %c0_i32_0 = arith.constant 0 : i32
    %c0_i32_1 = arith.constant 0 : i32
    return %c0_i32, %c0_i32_0 : i32, i32
  }
  func.func @transform_4(%arg0: i32) -> (i32, i32) {
    %c0_i32 = arith.constant 0 : i32
    %c0_i32_0 = arith.constant 0 : i32
    %c0_i32_1 = arith.constant 0 : i32
    return %c0_i32, %c0_i32_0 : i32, i32
  }
  func.func @transform_5(%arg0: i32) -> (i32, i32) {
    %c0_i32 = arith.constant 0 : i32
    %c0_i32_0 = arith.constant 0 : i32
    %c0_i32_1 = arith.constant 0 : i32
    return %c0_i32, %c0_i32_0 : i32, i32
  }
  func.func @transform_6(%arg0: i32) -> (i32, i32) {
    %c0_i32 = arith.constant 0 : i32
    %c0_i32_0 = arith.constant 0 : i32
    %c0_i32_1 = arith.constant 0 : i32
    return %c0_i32, %c0_i32_0 : i32, i32
  }
  func.func @transform_7(%arg0: i32) -> (i32, i32) {
    %c0_i32 = arith.constant 0 : i32
    %c0_i32_0 = arith.constant 0 : i32
    %c0_i32_1 = arith.constant 0 : i32
    return %c0_i32, %c0_i32_0 : i32, i32
  }
  func.func @transform_8(%arg0: i32) -> (i32, i32, i32, i32) {
    %c0_i32 = arith.constant 0 : i32
    %c0_i32_0 = arith.constant 0 : i32
    %c0_i32_1 = arith.constant 0 : i32
    %c0_i32_2 = arith.constant 0 : i32
    return %arg0, %c0_i32, %c0_i32_0, %c0_i32_1 : i32, i32, i32, i32
  }
}

module attributes {stable_mosaic.version = 11 : i64} {
  func.func @_encoder_stack_kernel(%arg0: i32, %arg1: i32, %arg2: memref<1x32x32xf32, #tpu.memory_space<vmem>>, %arg3: memref<1x32x96xbf16, #tpu.memory_space<vmem>>, %arg4: memref<1x1x96xf32, #tpu.memory_space<vmem>>, %arg5: memref<1x32x32xbf16, #tpu.memory_space<vmem>>, %arg6: memref<1x1x32xf32, #tpu.memory_space<vmem>>, %arg7: memref<1x1x32xf32, #tpu.memory_space<vmem>>, %arg8: memref<1x1x32xf32, #tpu.memory_space<vmem>>, %arg9: memref<1x32x128xbf16, #tpu.memory_space<vmem>>, %arg10: memref<1x1x128xf32, #tpu.memory_space<vmem>>, %arg11: memref<1x128x32xbf16, #tpu.memory_space<vmem>>, %arg12: memref<1x1x32xf32, #tpu.memory_space<vmem>>, %arg13: memref<1x1x32xf32, #tpu.memory_space<vmem>>, %arg14: memref<1x1x32xf32, #tpu.memory_space<vmem>>, %arg15: memref<1x32xf32, #tpu.memory_space<vmem>>, %arg16: memref<1x1xf32, #tpu.memory_space<vmem>>, %arg17: memref<1x1x4xf32, #tpu.memory_space<vmem>>, %arg18: memref<32x32xf32, #tpu.memory_space<vmem>>) attributes {dimension_semantics = [#tpu.dimension_semantics<parallel>, #tpu.dimension_semantics<arbitrary>], iteration_bounds = array<i64: 2, 2>, scalar_prefetch = 0 : i64, scratch_operands = 1 : i64, tpu.core_type = #tpu.core_type<tc>, window_params = [{transform_indices = @transform_0, window_bounds = array<i64: 1, 32, 32>}, {transform_indices = @transform_1, window_bounds = array<i64: 1, 32, 96>}, {transform_indices = @transform_2, window_bounds = array<i64: 1, 1, 96>}, {transform_indices = @transform_3, window_bounds = array<i64: 1, 32, 32>}, {transform_indices = @transform_4, window_bounds = array<i64: 1, 1, 32>}, {transform_indices = @transform_5, window_bounds = array<i64: 1, 1, 32>}, {transform_indices = @transform_6, window_bounds = array<i64: 1, 1, 32>}, {transform_indices = @transform_7, window_bounds = array<i64: 1, 32, 128>}, {transform_indices = @transform_8, window_bounds = array<i64: 1, 1, 128>}, {transform_indices = @transform_9, window_bounds = array<i64: 1, 128, 32>}, {transform_indices = @transform_10, window_bounds = array<i64: 1, 1, 32>}, {transform_indices = @transform_11, window_bounds = array<i64: 1, 1, 32>}, {transform_indices = @transform_12, window_bounds = array<i64: 1, 1, 32>}, {pipeline_mode = #tpu.pipeline_mode<synchronous>, transform_indices = @transform_13, window_bounds = array<i64: 1, 32>}, {pipeline_mode = #tpu.pipeline_mode<synchronous>, transform_indices = @transform_14, window_bounds = array<i64: 1, 1>}, {transform_indices = @transform_15, window_bounds = array<i64: 1, 1, 4>}]} {
    %c0_i32 = arith.constant 0 : i32
    %0 = arith.cmpi eq, %arg1, %c0_i32 : i32
    %1 = arith.extui %0 : i1 to i32
    %c0_i32_0 = arith.constant 0 : i32
    %2 = arith.cmpi ne, %1, %c0_i32_0 : i32
    scf.if %2 {
      %c0_60 = arith.constant 0 : index
      %c0_61 = arith.constant 0 : index
      %c0_62 = arith.constant 0 : index
      %148 = vector.load %arg2[%c0_60, %c0_61, %c0_62] : memref<1x32x32xf32, #tpu.memory_space<vmem>>, vector<1x32x32xf32>
      %149 = vector.shape_cast %148 : vector<1x32x32xf32> to vector<32x32xf32>
      %c0_63 = arith.constant 0 : index
      %c0_64 = arith.constant 0 : index
      %150 = vector.load %arg18[%c0_63, %c0_64] : memref<32x32xf32, #tpu.memory_space<vmem>>, vector<32x32xf32>
      tpu.vector_store %arg18[%c0_63, %c0_64], %149 {strides = array<i32>} : memref<32x32xf32, #tpu.memory_space<vmem>>, vector<32x32xf32>,
    } else {
    }
    %c0 = arith.constant 0 : index
    %c0_1 = arith.constant 0 : index
    %3 = vector.load %arg18[%c0, %c0_1] : memref<32x32xf32, #tpu.memory_space<vmem>>, vector<32x32xf32>
    %4 = arith.truncf %3 : vector<32x32xf32> to vector<32x32xbf16>
    %c0_2 = arith.constant 0 : index
    %c0_3 = arith.constant 0 : index
    %c0_4 = arith.constant 0 : index
    %5 = vector.load %arg3[%c0_2, %c0_3, %c0_4] : memref<1x32x96xbf16, #tpu.memory_space<vmem>>, vector<1x32x96xbf16>
    %6 = vector.shape_cast %5 : vector<1x32x96xbf16> to vector<32x96xbf16>
    %cst = arith.constant dense<0.000000e+00> : vector<32x96xf32>
    %7 = tpu.matmul %4, %6, %cst {dimension_numbers = #tpu.dot_dimension_numbers<[1], [0], [0], [1], [0, 0, 1, 1], [], []>} : vector<32x32xbf16>, vector<32x96xbf16>, vector<32x96xf32> -> vector<32x96xf32>
    %c0_5 = arith.constant 0 : index
    %c0_6 = arith.constant 0 : index
    %c0_7 = arith.constant 0 : index
    %8 = vector.load %arg4[%c0_5, %c0_6, %c0_7] : memref<1x1x96xf32, #tpu.memory_space<vmem>>, vector<1x1x96xf32>
    %9 = vector.shape_cast %8 : vector<1x1x96xf32> to vector<1x96xf32>
    %10 = vector.broadcast %9 : vector<1x96xf32> to vector<32x96xf32>
    %11 = arith.addf %7, %10 : vector<32x96xf32>
    %12 = arith.truncf %11 : vector<32x96xf32> to vector<32x96xbf16>
    %13 = vector.extract_strided_slice %12 {offsets = [0, 0], sizes = [32, 8], strides = [1, 1]} : vector<32x96xbf16> to vector<32x8xbf16>
    %14 = vector.extract_strided_slice %12 {offsets = [0, 8], sizes = [32, 8], strides = [1, 1]} : vector<32x96xbf16> to vector<32x8xbf16>
    %15 = vector.extract_strided_slice %12 {offsets = [0, 16], sizes = [32, 8], strides = [1, 1]} : vector<32x96xbf16> to vector<32x8xbf16>
    %16 = vector.extract_strided_slice %12 {offsets = [0, 24], sizes = [32, 8], strides = [1, 1]} : vector<32x96xbf16> to vector<32x8xbf16>
    %17 = vector.shape_cast %13 : vector<32x8xbf16> to vector<1x32x8xbf16>
    %18 = vector.shape_cast %14 : vector<32x8xbf16> to vector<1x32x8xbf16>
    %19 = vector.shape_cast %15 : vector<32x8xbf16> to vector<1x32x8xbf16>
    %20 = vector.shape_cast %16 : vector<32x8xbf16> to vector<1x32x8xbf16>
    %21 = tpu.concatenate %17, %18, %19, %20 in 0 : vector<1x32x8xbf16>, vector<1x32x8xbf16>, vector<1x32x8xbf16>, vector<1x32x8xbf16> -> vector<4x32x8xbf16>
    %22 = vector.shape_cast %21 : vector<4x32x8xbf16> to vector<16x8x8xbf16>
    %23 = vector.extract_strided_slice %12 {offsets = [0, 32], sizes = [32, 8], strides = [1, 1]} : vector<32x96xbf16> to vector<32x8xbf16>
    %24 = vector.extract_strided_slice %12 {offsets = [0, 40], sizes = [32, 8], strides = [1, 1]} : vector<32x96xbf16> to vector<32x8xbf16>
    %25 = vector.extract_strided_slice %12 {offsets = [0, 48], sizes = [32, 8], strides = [1, 1]} : vector<32x96xbf16> to vector<32x8xbf16>
    %26 = vector.extract_strided_slice %12 {offsets = [0, 56], sizes = [32, 8], strides = [1, 1]} : vector<32x96xbf16> to vector<32x8xbf16>
    %27 = vector.shape_cast %23 : vector<32x8xbf16> to vector<1x32x8xbf16>
    %28 = vector.shape_cast %24 : vector<32x8xbf16> to vector<1x32x8xbf16>
    %29 = vector.shape_cast %25 : vector<32x8xbf16> to vector<1x32x8xbf16>
    %30 = vector.shape_cast %26 : vector<32x8xbf16> to vector<1x32x8xbf16>
    %31 = tpu.concatenate %27, %28, %29, %30 in 0 : vector<1x32x8xbf16>, vector<1x32x8xbf16>, vector<1x32x8xbf16>, vector<1x32x8xbf16> -> vector<4x32x8xbf16>
    %32 = vector.shape_cast %31 : vector<4x32x8xbf16> to vector<16x8x8xbf16>
    %33 = vector.extract_strided_slice %12 {offsets = [0, 64], sizes = [32, 8], strides = [1, 1]} : vector<32x96xbf16> to vector<32x8xbf16>
    %34 = vector.extract_strided_slice %12 {offsets = [0, 72], sizes = [32, 8], strides = [1, 1]} : vector<32x96xbf16> to vector<32x8xbf16>
    %35 = vector.extract_strided_slice %12 {offsets = [0, 80], sizes = [32, 8], strides = [1, 1]} : vector<32x96xbf16> to vector<32x8xbf16>
    %36 = vector.extract_strided_slice %12 {offsets = [0, 88], sizes = [32, 8], strides = [1, 1]} : vector<32x96xbf16> to vector<32x8xbf16>
    %37 = vector.shape_cast %33 : vector<32x8xbf16> to vector<1x32x8xbf16>
    %38 = vector.shape_cast %34 : vector<32x8xbf16> to vector<1x32x8xbf16>
    %39 = vector.shape_cast %35 : vector<32x8xbf16> to vector<1x32x8xbf16>
    %40 = vector.shape_cast %36 : vector<32x8xbf16> to vector<1x32x8xbf16>
    %41 = tpu.concatenate %37, %38, %39, %40 in 0 : vector<1x32x8xbf16>, vector<1x32x8xbf16>, vector<1x32x8xbf16>, vector<1x32x8xbf16> -> vector<4x32x8xbf16>
    %42 = vector.shape_cast %41 : vector<4x32x8xbf16> to vector<16x8x8xbf16>
    "tpu.trace_start"() <{level = 10 : i32, message = "bqd,bkd->bqk"}> : () -> ()
    %cst_8 = arith.constant dense<0.000000e+00> : vector<16x8x8xf32>
    %43 = tpu.matmul %22, %32, %cst_8 {dimension_numbers = #tpu.dot_dimension_numbers<[2], [2], [1], [1], [0, 0, 0, 1, 1, 1], [0], [0]>} : vector<16x8x8xbf16>, vector<16x8x8xbf16>, vector<16x8x8xf32> -> vector<16x8x8xf32>
    "tpu.trace_stop"() : () -> ()
    %cst_9 = arith.constant 0.353553385 : f32
    %44 = vector.broadcast %cst_9 : f32 to vector<16x8x8xf32>
    %45 = arith.mulf %43, %44 : vector<16x8x8xf32>
    %cst_10 = arith.constant dense<0xFF800000> : vector<16x8xf32>
    %46 = vector.multi_reduction <maximumf>, %45, %cst_10 [2] : vector<16x8x8xf32> to vector<16x8xf32>
    %47 = vector.shape_cast %46 : vector<16x8xf32> to vector<16x8x1xf32>
    %48 = vector.broadcast %47 : vector<16x8x1xf32> to vector<16x8x8xf32>
    %49 = arith.subf %45, %48 : vector<16x8x8xf32>
    %50 = math.exp %49 : vector<16x8x8xf32>
    %cst_11 = arith.constant dense<0.000000e+00> : vector<16x8xf32>
    %51 = vector.multi_reduction <add>, %50, %cst_11 [2] : vector<16x8x8xf32> to vector<16x8xf32>
    %52 = vector.shape_cast %51 : vector<16x8xf32> to vector<16x8x1xf32>
    %53 = tpu.reciprocal %52 {approx = true} : vector<16x8x1xf32> -> vector<16x8x1xf32>
    %54 = vector.broadcast %53 : vector<16x8x1xf32> to vector<16x8x8xf32>
    %55 = arith.mulf %50, %54 : vector<16x8x8xf32>
    %56 = arith.truncf %55 : vector<16x8x8xf32> to vector<16x8x8xbf16>
    "tpu.trace_start"() <{level = 10 : i32, message = "bqk,bkd->bqd"}> : () -> ()
    %cst_12 = arith.constant dense<0.000000e+00> : vector<16x8x8xf32>
    %57 = tpu.matmul %56, %42, %cst_12 {dimension_numbers = #tpu.dot_dimension_numbers<[2], [1], [1], [2], [0, 0, 0, 1, 1, 2], [0], [0]>} : vector<16x8x8xbf16>, vector<16x8x8xbf16>, vector<16x8x8xf32> -> vector<16x8x8xf32>
    "tpu.trace_stop"() : () -> ()
    %58 = vector.shape_cast %57 : vector<16x8x8xf32> to vector<4x32x8xf32>
    %59 = vector.extract_strided_slice %58 {offsets = [0, 0, 0], sizes = [1, 32, 8], strides = [1, 1, 1]} : vector<4x32x8xf32> to vector<1x32x8xf32>
    %60 = vector.shape_cast %59 : vector<1x32x8xf32> to vector<32x8xf32>
    %61 = vector.extract_strided_slice %58 {offsets = [1, 0, 0], sizes = [1, 32, 8], strides = [1, 1, 1]} : vector<4x32x8xf32> to vector<1x32x8xf32>
    %62 = vector.shape_cast %61 : vector<1x32x8xf32> to vector<32x8xf32>
    %63 = vector.extract_strided_slice %58 {offsets = [2, 0, 0], sizes = [1, 32, 8], strides = [1, 1, 1]} : vector<4x32x8xf32> to vector<1x32x8xf32>
    %64 = vector.shape_cast %63 : vector<1x32x8xf32> to vector<32x8xf32>
    %65 = vector.extract_strided_slice %58 {offsets = [3, 0, 0], sizes = [1, 32, 8], strides = [1, 1, 1]} : vector<4x32x8xf32> to vector<1x32x8xf32>
    %66 = vector.shape_cast %65 : vector<1x32x8xf32> to vector<32x8xf32>
    %67 = tpu.concatenate %60, %62, %64, %66 in 1 : vector<32x8xf32>, vector<32x8xf32>, vector<32x8xf32>, vector<32x8xf32> -> vector<32x32xf32>
    %68 = arith.truncf %67 : vector<32x32xf32> to vector<32x32xbf16>
    %c0_13 = arith.constant 0 : index
    %c0_14 = arith.constant 0 : index
    %c0_15 = arith.constant 0 : index
    %69 = vector.load %arg5[%c0_13, %c0_14, %c0_15] : memref<1x32x32xbf16, #tpu.memory_space<vmem>>, vector<1x32x32xbf16>
    %70 = vector.shape_cast %69 : vector<1x32x32xbf16> to vector<32x32xbf16>
    %cst_16 = arith.constant dense<0.000000e+00> : vector<32x32xf32>
    %71 = tpu.matmul %68, %70, %cst_16 {dimension_numbers = #tpu.dot_dimension_numbers<[1], [0], [0], [1], [0, 0, 1, 1], [], []>} : vector<32x32xbf16>, vector<32x32xbf16>, vector<32x32xf32> -> vector<32x32xf32>
    %c0_17 = arith.constant 0 : index
    %c0_18 = arith.constant 0 : index
    %c0_19 = arith.constant 0 : index
    %72 = vector.load %arg6[%c0_17, %c0_18, %c0_19] : memref<1x1x32xf32, #tpu.memory_space<vmem>>, vector<1x1x32xf32>
    %73 = vector.shape_cast %72 : vector<1x1x32xf32> to vector<1x32xf32>
    %74 = vector.broadcast %73 : vector<1x32xf32> to vector<32x32xf32>
    %75 = arith.addf %71, %74 : vector<32x32xf32>
    %76 = arith.addf %3, %75 : vector<32x32xf32>
    %c0_20 = arith.constant 0 : index
    %c0_21 = arith.constant 0 : index
    %c0_22 = arith.constant 0 : index
    %77 = vector.load %arg7[%c0_20, %c0_21, %c0_22] : memref<1x1x32xf32, #tpu.memory_space<vmem>>, vector<1x1x32xf32>
    %78 = vector.shape_cast %77 : vector<1x1x32xf32> to vector<1x32xf32>
    %c0_23 = arith.constant 0 : index
    %c0_24 = arith.constant 0 : index
    %c0_25 = arith.constant 0 : index
    %79 = vector.load %arg8[%c0_23, %c0_24, %c0_25] : memref<1x1x32xf32, #tpu.memory_space<vmem>>, vector<1x1x32xf32>
    %80 = vector.shape_cast %79 : vector<1x1x32xf32> to vector<1x32xf32>
    %cst_26 = arith.constant dense<0.000000e+00> : vector<32xf32>
    %81 = vector.multi_reduction <add>, %76, %cst_26 [1] : vector<32x32xf32> to vector<32xf32>
    %82 = vector.shape_cast %81 : vector<32xf32> to vector<32x1xf32>
    %cst_27 = arith.constant 3.200000e+01 : f32
    %83 = vector.broadcast %cst_27 : f32 to vector<32x1xf32>
    %84 = arith.divf %82, %83 : vector<32x1xf32>
    %85 = vector.broadcast %84 : vector<32x1xf32> to vector<32x32xf32>
    %86 = arith.subf %76, %85 : vector<32x32xf32>
    %87 = arith.mulf %86, %86 : vector<32x32xf32>
    %cst_28 = arith.constant dense<0.000000e+00> : vector<32xf32>
    %88 = vector.multi_reduction <add>, %87, %cst_28 [1] : vector<32x32xf32> to vector<32xf32>
    %89 = vector.shape_cast %88 : vector<32xf32> to vector<32x1xf32>
    %cst_29 = arith.constant 3.200000e+01 : f32
    %90 = vector.broadcast %cst_29 : f32 to vector<32x1xf32>
    %91 = arith.divf %89, %90 : vector<32x1xf32>
    %cst_30 = arith.constant 9.99999974E-6 : f32
    %92 = vector.broadcast %cst_30 : f32 to vector<32x1xf32>
    %93 = arith.addf %91, %92 : vector<32x1xf32>
    %94 = math.rsqrt %93 : vector<32x1xf32>
    %95 = vector.broadcast %94 : vector<32x1xf32> to vector<32x32xf32>
    %96 = arith.mulf %86, %95 : vector<32x32xf32>
    %97 = vector.broadcast %78 : vector<1x32xf32> to vector<32x32xf32>
    %98 = arith.mulf %96, %97 : vector<32x32xf32>
    %99 = vector.broadcast %80 : vector<1x32xf32> to vector<32x32xf32>
    %100 = arith.addf %98, %99 : vector<32x32xf32>
    %101 = arith.truncf %100 : vector<32x32xf32> to vector<32x32xbf16>
    %c0_31 = arith.constant 0 : index
    %c0_32 = arith.constant 0 : index
    %c0_33 = arith.constant 0 : index
    %102 = vector.load %arg9[%c0_31, %c0_32, %c0_33] : memref<1x32x128xbf16, #tpu.memory_space<vmem>>, vector<1x32x128xbf16>
    %103 = vector.shape_cast %102 : vector<1x32x128xbf16> to vector<32x128xbf16>
    %cst_34 = arith.constant dense<0.000000e+00> : vector<32x128xf32>
    %104 = tpu.matmul %101, %103, %cst_34 {dimension_numbers = #tpu.dot_dimension_numbers<[1], [0], [0], [1], [0, 0, 1, 1], [], []>} : vector<32x32xbf16>, vector<32x128xbf16>, vector<32x128xf32> -> vector<32x128xf32>
    %c0_35 = arith.constant 0 : index
    %c0_36 = arith.constant 0 : index
    %c0_37 = arith.constant 0 : index
    %105 = vector.load %arg10[%c0_35, %c0_36, %c0_37] : memref<1x1x128xf32, #tpu.memory_space<vmem>>, vector<1x1x128xf32>
    %106 = vector.shape_cast %105 : vector<1x1x128xf32> to vector<1x128xf32>
    %107 = vector.broadcast %106 : vector<1x128xf32> to vector<32x128xf32>
    %108 = arith.addf %104, %107 : vector<32x128xf32>
    %cst_38 = arith.constant 0.000000e+00 : f32
    %109 = vector.broadcast %cst_38 : f32 to vector<32x128xf32>
    %110 = arith.maximumf %108, %109 : vector<32x128xf32>
    %111 = arith.truncf %110 : vector<32x128xf32> to vector<32x128xbf16>
    %c0_39 = arith.constant 0 : index
    %c0_40 = arith.constant 0 : index
    %c0_41 = arith.constant 0 : index
    %112 = vector.load %arg11[%c0_39, %c0_40, %c0_41] : memref<1x128x32xbf16, #tpu.memory_space<vmem>>, vector<1x128x32xbf16>
    %113 = vector.shape_cast %112 : vector<1x128x32xbf16> to vector<128x32xbf16>
    %cst_42 = arith.constant dense<0.000000e+00> : vector<32x32xf32>
    %114 = tpu.matmul %111, %113, %cst_42 {dimension_numbers = #tpu.dot_dimension_numbers<[1], [0], [0], [1], [0, 0, 1, 1], [], []>} : vector<32x128xbf16>, vector<128x32xbf16>, vector<32x32xf32> -> vector<32x32xf32>
    %c0_43 = arith.constant 0 : index
    %c0_44 = arith.constant 0 : index
    %c0_45 = arith.constant 0 : index
    %115 = vector.load %arg12[%c0_43, %c0_44, %c0_45] : memref<1x1x32xf32, #tpu.memory_space<vmem>>, vector<1x1x32xf32>
    %116 = vector.shape_cast %115 : vector<1x1x32xf32> to vector<1x32xf32>
    %117 = vector.broadcast %116 : vector<1x32xf32> to vector<32x32xf32>
    %118 = arith.addf %114, %117 : vector<32x32xf32>
    %119 = arith.addf %100, %118 : vector<32x32xf32>
    %c0_46 = arith.constant 0 : index
    %c0_47 = arith.constant 0 : index
    %c0_48 = arith.constant 0 : index
    %120 = vector.load %arg13[%c0_46, %c0_47, %c0_48] : memref<1x1x32xf32, #tpu.memory_space<vmem>>, vector<1x1x32xf32>
    %121 = vector.shape_cast %120 : vector<1x1x32xf32> to vector<1x32xf32>
    %c0_49 = arith.constant 0 : index
    %c0_50 = arith.constant 0 : index
    %c0_51 = arith.constant 0 : index
    %122 = vector.load %arg14[%c0_49, %c0_50, %c0_51] : memref<1x1x32xf32, #tpu.memory_space<vmem>>, vector<1x1x32xf32>
    %123 = vector.shape_cast %122 : vector<1x1x32xf32> to vector<1x32xf32>
    %cst_52 = arith.constant dense<0.000000e+00> : vector<32xf32>
    %124 = vector.multi_reduction <add>, %119, %cst_52 [1] : vector<32x32xf32> to vector<32xf32>
    %125 = vector.shape_cast %124 : vector<32xf32> to vector<32x1xf32>
    %cst_53 = arith.constant 3.200000e+01 : f32
    %126 = vector.broadcast %cst_53 : f32 to vector<32x1xf32>
    %127 = arith.divf %125, %126 : vector<32x1xf32>
    %128 = vector.broadcast %127 : vector<32x1xf32> to vector<32x32xf32>
    %129 = arith.subf %119, %128 : vector<32x32xf32>
    %130 = arith.mulf %129, %129 : vector<32x32xf32>
    %cst_54 = arith.constant dense<0.000000e+00> : vector<32xf32>
    %131 = vector.multi_reduction <add>, %130, %cst_54 [1] : vector<32x32xf32> to vector<32xf32>
    %132 = vector.shape_cast %131 : vector<32xf32> to vector<32x1xf32>
    %cst_55 = arith.constant 3.200000e+01 : f32
    %133 = vector.broadcast %cst_55 : f32 to vector<32x1xf32>
    %134 = arith.divf %132, %133 : vector<32x1xf32>
    %cst_56 = arith.constant 9.99999974E-6 : f32
    %135 = vector.broadcast %cst_56 : f32 to vector<32x1xf32>
    %136 = arith.addf %134, %135 : vector<32x1xf32>
    %137 = math.rsqrt %136 : vector<32x1xf32>
    %138 = vector.broadcast %137 : vector<32x1xf32> to vector<32x32xf32>
    %139 = arith.mulf %129, %138 : vector<32x32xf32>
    %140 = vector.broadcast %121 : vector<1x32xf32> to vector<32x32xf32>
    %141 = arith.mulf %139, %140 : vector<32x32xf32>
    %142 = vector.broadcast %123 : vector<1x32xf32> to vector<32x32xf32>
    %143 = arith.addf %141, %142 : vector<32x32xf32>
    %c0_57 = arith.constant 0 : index
    %c0_58 = arith.constant 0 : index
    %144 = vector.load %arg18[%c0_57, %c0_58] : memref<32x32xf32, #tpu.memory_space<vmem>>, vector<32x32xf32>
    tpu.vector_store %arg18[%c0_57, %c0_58], %143 {strides = array<i32>} : memref<32x32xf32, #tpu.memory_space<vmem>>, vector<32x32xf32>,
    %c1_i32 = arith.constant 1 : i32
    %145 = arith.cmpi eq, %arg1, %c1_i32 : i32
    %146 = arith.extui %145 : i1 to i32
    %c0_i32_59 = arith.constant 0 : i32
    %147 = arith.cmpi ne, %146, %c0_i32_59 : i32
    scf.if %147 {
      %148 = vector.shape_cast %143 : vector<32x32xf32> to vector<4x8x32xf32>
      %cst_60 = arith.constant dense<0.000000e+00> : vector<4x32xf32>
      %149 = vector.multi_reduction <add>, %148, %cst_60 [1] : vector<4x8x32xf32> to vector<4x32xf32>
      %cst_61 = arith.constant 8.000000e+00 : f32
      %150 = vector.broadcast %cst_61 : f32 to vector<4x32xf32>
      %151 = arith.divf %149, %150 : vector<4x32xf32>
      %c0_62 = arith.constant 0 : index
      %c0_63 = arith.constant 0 : index
      %152 = vector.load %arg15[%c0_62, %c0_63] : memref<1x32xf32, #tpu.memory_space<vmem>>, vector<1x32xf32>
      %cst_64 = arith.constant dense<0.000000e+00> : vector<1x4xf32>
      %153 = tpu.matmul %152, %151, %cst_64 {dimension_numbers = #tpu.dot_dimension_numbers<[1], [1], [0], [0], [0, 0, 1, 0], [], []>} : vector<1x32xf32>, vector<4x32xf32>, vector<1x4xf32> -> vector<1x4xf32>
      %c0_65 = arith.constant 0 : index
      %c0_66 = arith.constant 0 : index
      %154 = vector.load %arg16[%c0_65, %c0_66] : memref<1x1xf32, #tpu.memory_space<vmem>>, vector<1x1xf32>
      %155 = vector.broadcast %154 : vector<1x1xf32> to vector<1x4xf32>
      %156 = arith.addf %153, %155 : vector<1x4xf32>
      %c0_67 = arith.constant 0 : index
      %c0_68 = arith.constant 0 : index
      %c0_69 = arith.constant 0 : index
      %157 = vector.load %arg17[%c0_67, %c0_68, %c0_69] : memref<1x1x4xf32, #tpu.memory_space<vmem>>, vector<1x1x4xf32>
      %158 = vector.shape_cast %157 : vector<1x1x4xf32> to vector<1x4xf32>
      %159 = vector.shape_cast %156 : vector<1x4xf32> to vector<1x1x4xf32>
      tpu.vector_store %arg17[%c0_67, %c0_68, %c0_69], %159 {strides = array<i32>} : memref<1x1x4xf32, #tpu.memory_space<vmem>>, vector<1x1x4xf32>,
    } else {
    }
    return
  }
  func.func @transform_0(%arg0: i32, %arg1: i32) -> (i32, i32, i32) {
    %c0_i32 = arith.constant 0 : i32
    %c0_i32_0 = arith.constant 0 : i32
    %c0_i32_1 = arith.constant 0 : i32
    return %arg0, %c0_i32, %c0_i32_0 : i32, i32, i32
  }
  func.func @transform_1(%arg0: i32, %arg1: i32) -> (i32, i32, i32) {
    %c0_i32 = arith.constant 0 : i32
    %c0_i32_0 = arith.constant 0 : i32
    %c0_i32_1 = arith.constant 0 : i32
    return %arg1, %c0_i32, %c0_i32_0 : i32, i32, i32
  }
  func.func @transform_2(%arg0: i32, %arg1: i32) -> (i32, i32, i32) {
    %c0_i32 = arith.constant 0 : i32
    %c0_i32_0 = arith.constant 0 : i32
    %c0_i32_1 = arith.constant 0 : i32
    return %arg1, %c0_i32, %c0_i32_0 : i32, i32, i32
  }
  func.func @transform_3(%arg0: i32, %arg1: i32) -> (i32, i32, i32) {
    %c0_i32 = arith.constant 0 : i32
    %c0_i32_0 = arith.constant 0 : i32
    %c0_i32_1 = arith.constant 0 : i32
    return %arg1, %c0_i32, %c0_i32_0 : i32, i32, i32
  }
  func.func @transform_4(%arg0: i32, %arg1: i32) -> (i32, i32, i32) {
    %c0_i32 = arith.constant 0 : i32
    %c0_i32_0 = arith.constant 0 : i32
    %c0_i32_1 = arith.constant 0 : i32
    return %arg1, %c0_i32, %c0_i32_0 : i32, i32, i32
  }
  func.func @transform_5(%arg0: i32, %arg1: i32) -> (i32, i32, i32) {
    %c0_i32 = arith.constant 0 : i32
    %c0_i32_0 = arith.constant 0 : i32
    %c0_i32_1 = arith.constant 0 : i32
    return %arg1, %c0_i32, %c0_i32_0 : i32, i32, i32
  }
  func.func @transform_6(%arg0: i32, %arg1: i32) -> (i32, i32, i32) {
    %c0_i32 = arith.constant 0 : i32
    %c0_i32_0 = arith.constant 0 : i32
    %c0_i32_1 = arith.constant 0 : i32
    return %arg1, %c0_i32, %c0_i32_0 : i32, i32, i32
  }
  func.func @transform_7(%arg0: i32, %arg1: i32) -> (i32, i32, i32) {
    %c0_i32 = arith.constant 0 : i32
    %c0_i32_0 = arith.constant 0 : i32
    %c0_i32_1 = arith.constant 0 : i32
    return %arg1, %c0_i32, %c0_i32_0 : i32, i32, i32
  }
  func.func @transform_8(%arg0: i32, %arg1: i32) -> (i32, i32, i32) {
    %c0_i32 = arith.constant 0 : i32
    %c0_i32_0 = arith.constant 0 : i32
    %c0_i32_1 = arith.constant 0 : i32
    return %arg1, %c0_i32, %c0_i32_0 : i32, i32, i32
  }
  func.func @transform_9(%arg0: i32, %arg1: i32) -> (i32, i32, i32) {
    %c0_i32 = arith.constant 0 : i32
    %c0_i32_0 = arith.constant 0 : i32
    %c0_i32_1 = arith.constant 0 : i32
    return %arg1, %c0_i32, %c0_i32_0 : i32, i32, i32
  }
  func.func @transform_10(%arg0: i32, %arg1: i32) -> (i32, i32, i32) {
    %c0_i32 = arith.constant 0 : i32
    %c0_i32_0 = arith.constant 0 : i32
    %c0_i32_1 = arith.constant 0 : i32
    return %arg1, %c0_i32, %c0_i32_0 : i32, i32, i32
  }
  func.func @transform_11(%arg0: i32, %arg1: i32) -> (i32, i32, i32) {
    %c0_i32 = arith.constant 0 : i32
    %c0_i32_0 = arith.constant 0 : i32
    %c0_i32_1 = arith.constant 0 : i32
    return %arg1, %c0_i32, %c0_i32_0 : i32, i32, i32
  }
  func.func @transform_12(%arg0: i32, %arg1: i32) -> (i32, i32, i32) {
    %c0_i32 = arith.constant 0 : i32
    %c0_i32_0 = arith.constant 0 : i32
    %c0_i32_1 = arith.constant 0 : i32
    return %arg1, %c0_i32, %c0_i32_0 : i32, i32, i32
  }
  func.func @transform_13(%arg0: i32, %arg1: i32) -> (i32, i32) {
    %c0_i32 = arith.constant 0 : i32
    %c0_i32_0 = arith.constant 0 : i32
    %c0_i32_1 = arith.constant 0 : i32
    return %c0_i32, %c0_i32_0 : i32, i32
  }
  func.func @transform_14(%arg0: i32, %arg1: i32) -> (i32, i32) {
    %c0_i32 = arith.constant 0 : i32
    %c0_i32_0 = arith.constant 0 : i32
    %c0_i32_1 = arith.constant 0 : i32
    return %c0_i32, %c0_i32_0 : i32, i32
  }
  func.func @transform_15(%arg0: i32, %arg1: i32) -> (i32, i32, i32) {
    %c0_i32 = arith.constant 0 : i32
    %c0_i32_0 = arith.constant 0 : i32
    %c0_i32_1 = arith.constant 0 : i32
    return %arg0, %c0_i32, %c0_i32_0 : i32, i32, i32
  }
}

</mosaic_0001>

<llo_original>
// kernel: forward.3
$region0: #{forward.3}
  #allocation0 [shape = 'u32[]', space=smem, size = 0x4, offset = 0x4, fixed_abs, tag = 'smem constant byte address 0x4 - core index']
  #allocation1 [shape = 'u32[144,128]{1,0:T(1,128)}', space=vmem, size = 0x12000, scoped, tag = 'internal scratch']
  #allocation2 [shape = 'f32[32,32]{1,0:T(8,128)}', space=vmem, size = 0x4000, scoped, tag = 'scratch operand']
  #allocation3 [shape = 'f32[1,1]{1,0:T(1,128)S(1)}', space=vmem, size = 0x200, scoped, tag = 'scoped memory for forward.3']
  %s0 = inlined_call_operand.vmem [shape: f32[2,32,32], index: 0, kind: input, shape index: {}]
  %s1 = inlined_call_operand.vmem [shape: bf16[2,32,96], index: 1, kind: input, shape index: {}]
  %s2 = inlined_call_operand.vmem [shape: f32[2,1,96], index: 2, kind: input, shape index: {}]
  %s3 = inlined_call_operand.vmem [shape: bf16[2,32,32], index: 3, kind: input, shape index: {}]
  %s4 = inlined_call_operand.vmem [shape: f32[2,1,32], index: 4, kind: input, shape index: {}]
  %s5 = inlined_call_operand.vmem [shape: f32[2,1,32], index: 5, kind: input, shape index: {}]
  %s6 = inlined_call_operand.vmem [shape: f32[2,1,32], index: 6, kind: input, shape index: {}]
  %s7 = inlined_call_operand.vmem [shape: bf16[2,32,128], index: 7, kind: input, shape index: {}]
  %s8 = inlined_call_operand.vmem [shape: f32[2,1,128], index: 8, kind: input, shape index: {}]
  %s9 = inlined_call_operand.vmem [shape: bf16[2,128,32], index: 9, kind: input, shape index: {}]
  %s10 = inlined_call_operand.vmem [shape: f32[2,1,32], index: 10, kind: input, shape index: {}]
  %s11 = inlined_call_operand.vmem [shape: f32[2,1,32], index: 11, kind: input, shape index: {}]
  %s12 = inlined_call_operand.vmem [shape: f32[2,1,32], index: 12, kind: input, shape index: {}]
  %s13 = inlined_call_operand.vmem [shape: f32[1,32], index: 13, kind: input, shape index: {}]
  %s14 = inlined_call_operand.<no memory space> [shape: f32[1,1], index: 14, kind: input, shape index: {}]
  %s15 = inlined_call_operand.hbm [shape: f32[2,1,4], index: 15, kind: output, shape index: {}]
  %s16 = sld [smem:[#allocation0]]
  $region101: #{forward.3} parent=0
    _
  %s18 = ssub.s32 1, %s16
  %s19 = scalar_select 0, %s18, %s16
  %v20 = vstv %s14
  %21 = vst [vmem:[#allocation3] sm:$0x1] %v20
  $region1: #{forward.3} parent=0
    #allocation4 [shape = 'u8[1024]{0}', space=vmem, size = 0x400, scoped, tag = 'output window, operand 0']
    #allocation5 [shape = 's32[2]{0}', space=sflag, size = 0x8, scoped, tag = 'scoped memory for forward.3']
    %22 = vsyncpa [#allocation5], 0
    %s23 = scalar_lea.sflag [#allocation5], 1
    %24 = vsyncpa %s23, 0
    loop: start=0, step=1, limit=6
    $region2: #{forward.3} parent=1 // loop_pre_header
      _
    $region3: #{forward.3} parent=1 // loop_header
      %s26 = sphi 0, %s30
      %p27 = scmp.ge.s32.totalorder %s26, 6
      %s33 = sphi 0, %s45
      %s34 = sphi 0, %s41
      %s35 = sphi 0, %s33
      %s36 = sphi 0, %s34
      %s37 = sphi 0, %s35
      %s38 = sphi 0, %s36
      %s48 = sphi 0, %s50
      %s51 = sphi 0, %s48
      %s52 = sphi 0, %s51
      %s68 = sphi 0, %s52
      %s74 = sphi 0, %s76
      %s77 = sphi 0, %s74
      %s78 = sphi 0, %s77
      %s94 = sphi 0, %s78
      %s100 = sphi 0, %s102
      %s103 = sphi 0, %s100
      %s104 = sphi 0, %s103
      %s120 = sphi 0, %s104
      %s126 = sphi 0, %s128
      %s129 = sphi 0, %s126
      %s130 = sphi 0, %s129
      %s146 = sphi 0, %s130
      %s152 = sphi 0, %s154
      %s155 = sphi 0, %s152
      %s156 = sphi 0, %s155
      %s172 = sphi 0, %s156
      %s178 = sphi 0, %s180
      %s181 = sphi 0, %s178
      %s182 = sphi 0, %s181
      %s198 = sphi 0, %s182
      %s204 = sphi 0, %s206
      %s207 = sphi 0, %s204
      %s208 = sphi 0, %s207
      %s224 = sphi 0, %s208
      %s230 = sphi 0, %s232
      %s233 = sphi 0, %s230
      %s234 = sphi 0, %s233
      %s250 = sphi 0, %s234
      %s256 = sphi 0, %s258
      %s259 = sphi 0, %s256
      %s260 = sphi 0, %s259
      %s276 = sphi 0, %s260
      %s282 = sphi 0, %s284
      %s285 = sphi 0, %s282
      %s286 = sphi 0, %s285
      %s302 = sphi 0, %s286
      %s308 = sphi 0, %s310
      %s311 = sphi 0, %s308
      %s312 = sphi 0, %s311
      %s328 = sphi 0, %s312
      %s334 = sphi 0, %s336
      %s337 = sphi 0, %s334
      %s338 = sphi 0, %s337
      %s354 = sphi 0, %s338
      %s360 = sphi 0, %s362
      %s363 = sphi 0, %s360
      %s364 = sphi 0, %s363
      %s380 = sphi 0, %s364
      %s384 = sphi 0, %s384
      %s386 = sphi 0, %s384
      %s387 = sphi 0, %s386
      %s401 = sphi 0, %s387
      %s405 = sphi 0, %s405
      %s407 = sphi 0, %s405
      %s408 = sphi 0, %s407
      %s422 = sphi 0, %s408
      %s428 = sphi 0, %s430
      %s431 = sphi 0, %s428
      %s432 = sphi 0, %s431
      %s448 = sphi 0, %s432
    $region4: #{forward.3} parent=1 // loop_header_branch
      %29 = sbr.rel (%p27) target = $region8
    $region5: #{forward.3} parent=1 // loop_body
      %s31 = ssub.s32 %s26, 1
      %s32 = ssub.s32 %s26, 2
      %s39 = sadd.s32 1, %s34
      %p40 = scmp.ge.s32.totalorder %s39, 2
      %s41 = scalar_select %p40, 0, %s39
      %s42 = sadd.s32 1, %s33
      %s43 = scalar_select %p40, %s42, %s33
      %p44 = scmp.ge.s32.totalorder %s43, 2
      %s45 = scalar_select %p44, 0, %s43
      %s46 = ssub.s32 %s33, %s45
      %p47 = scmp.eq.s32.totalorder %s46, 0
      %s49 = sadd.s32 %s48, 1
      %s50 = scalar_select %p47, %s48, %s49
      %p53 = pneg %p47
      %p54 = scmp.eq.s32.totalorder %s26, 3
      %p55 = por %p53, %p54
      %p56 = scmp.ne.s32.totalorder %s48, %s51
      %p57 = scmp.eq.s32.totalorder %s26, 0
      %p58 = por %p56, %p57
      %p59 = scmp.ne.s32.totalorder %s48, %s51
      %p60 = scmp.eq.s32.totalorder %s31, 3
      %p61 = por %p59, %p60
      %p62 = scmp.ne.s32.totalorder %s51, %s52
      %p63 = scmp.eq.s32.totalorder %s31, 0
      %p64 = por %p62, %p63
      %p65 = scmp.ne.s32.totalorder %s51, %s52
      %p66 = scmp.eq.s32.totalorder %s32, 3
      %p67 = por %p65, %p66
      %p69 = scmp.ne.s32.totalorder %s52, %s68
      %p70 = scmp.eq.s32.totalorder %s32, 0
      %p71 = por %p69, %p70
      %s72 = ssub.s32 %s34, %s41
      %p73 = scmp.eq.s32.totalorder %s72, 0
      %s75 = sadd.s32 %s74, 1
      %s76 = scalar_select %p73, %s74, %s75
      %p79 = pneg %p73
      %p80 = scmp.eq.s32.totalorder %s26, 3
      %p81 = por %p79, %p80
      %p82 = scmp.ne.s32.totalorder %s74, %s77
      %p83 = scmp.eq.s32.totalorder %s26, 0
      %p84 = por %p82, %p83
      %p85 = scmp.ne.s32.totalorder %s74, %s77
      %p86 = scmp.eq.s32.totalorder %s31, 3
      %p87 = por %p85, %p86
      %p88 = scmp.ne.s32.totalorder %s77, %s78
      %p89 = scmp.eq.s32.totalorder %s31, 0
      %p90 = por %p88, %p89
      %p91 = scmp.ne.s32.totalorder %s77, %s78
      %p92 = scmp.eq.s32.totalorder %s32, 3
      %p93 = por %p91, %p92
      %p95 = scmp.ne.s32.totalorder %s78, %s94
      %p96 = scmp.eq.s32.totalorder %s32, 0
      %p97 = por %p95, %p96
      %s98 = ssub.s32 %s34, %s41
      %p99 = scmp.eq.s32.totalorder %s98, 0
      %s101 = sadd.s32 %s100, 1
      %s102 = scalar_select %p99, %s100, %s101
      %p105 = pneg %p99
      %p106 = scmp.eq.s32.totalorder %s26, 3
      %p107 = por %p105, %p106
      %p108 = scmp.ne.s32.totalorder %s100, %s103
      %p109 = scmp.eq.s32.totalorder %s26, 0
      %p110 = por %p108, %p109
      %p111 = scmp.ne.s32.totalorder %s100, %s103
      %p112 = scmp.eq.s32.totalorder %s31, 3
      %p113 = por %p111, %p112
      %p114 = scmp.ne.s32.totalorder %s103, %s104
      %p115 = scmp.eq.s32.totalorder %s31, 0
      %p116 = por %p114, %p115
      %p117 = scmp.ne.s32.totalorder %s103, %s104
      %p118 = scmp.eq.s32.totalorder %s32, 3
      %p119 = por %p117, %p118
      %p121 = scmp.ne.s32.totalorder %s104, %s120
      %p122 = scmp.eq.s32.totalorder %s32, 0
      %p123 = por %p121, %p122
      %s124 = ssub.s32 %s34, %s41
      %p125 = scmp.eq.s32.totalorder %s124, 0
      %s127 = sadd.s32 %s126, 1
      %s128 = scalar_select %p125, %s126, %s127
      %p131 = pneg %p125
      %p132 = scmp.eq.s32.totalorder %s26, 3
      %p133 = por %p131, %p132
      %p134 = scmp.ne.s32.totalorder %s126, %s129
      %p135 = scmp.eq.s32.totalorder %s26, 0
      %p136 = por %p134, %p135
      %p137 = scmp.ne.s32.totalorder %s126, %s129
      %p138 = scmp.eq.s32.totalorder %s31, 3
      %p139 = por %p137, %p138
      %p140 = scmp.ne.s32.totalorder %s129, %s130
      %p141 = scmp.eq.s32.totalorder %s31, 0
      %p142 = por %p140, %p141
      %p143 = scmp.ne.s32.totalorder %s129, %s130
      %p144 = scmp.eq.s32.totalorder %s32, 3
      %p145 = por %p143, %p144
      %p147 = scmp.ne.s32.totalorder %s130, %s146
      %p148 = scmp.eq.s32.totalorder %s32, 0
      %p149 = por %p147, %p148
      %s150 = ssub.s32 %s34, %s41
      %p151 = scmp.eq.s32.totalorder %s150, 0
      %s153 = sadd.s32 %s152, 1
      %s154 = scalar_select %p151, %s152, %s153
      %p157 = pneg %p151
      %p158 = scmp.eq.s32.totalorder %s26, 3
      %p159 = por %p157, %p158
      %p160 = scmp.ne.s32.totalorder %s152, %s155
      %p161 = scmp.eq.s32.totalorder %s26, 0
      %p162 = por %p160, %p161
      %p163 = scmp.ne.s32.totalorder %s152, %s155
      %p164 = scmp.eq.s32.totalorder %s31, 3
      %p165 = por %p163, %p164
      %p166 = scmp.ne.s32.totalorder %s155, %s156
      %p167 = scmp.eq.s32.totalorder %s31, 0
      %p168 = por %p166, %p167
      %p169 = scmp.ne.s32.totalorder %s155, %s156
      %p170 = scmp.eq.s32.totalorder %s32, 3
      %p171 = por %p169, %p170
      %p173 = scmp.ne.s32.totalorder %s156, %s172
      %p174 = scmp.eq.s32.totalorder %s32, 0
      %p175 = por %p173, %p174
      %s176 = ssub.s32 %s34, %s41
      %p177 = scmp.eq.s32.totalorder %s176, 0
      %s179 = sadd.s32 %s178, 1
      %s180 = scalar_select %p177, %s178, %s179
      %p183 = pneg %p177
      %p184 = scmp.eq.s32.totalorder %s26, 3
      %p185 = por %p183, %p184
      %p186 = scmp.ne.s32.totalorder %s178, %s181
      %p187 = scmp.eq.s32.totalorder %s26, 0
      %p188 = por %p186, %p187
      %p189 = scmp.ne.s32.totalorder %s178, %s181
      %p190 = scmp.eq.s32.totalorder %s31, 3
      %p191 = por %p189, %p190
      %p192 = scmp.ne.s32.totalorder %s181, %s182
      %p193 = scmp.eq.s32.totalorder %s31, 0
      %p194 = por %p192, %p193
      %p195 = scmp.ne.s32.totalorder %s181, %s182
      %p196 = scmp.eq.s32.totalorder %s32, 3
      %p197 = por %p195, %p196
      %p199 = scmp.ne.s32.totalorder %s182, %s198
      %p200 = scmp.eq.s32.totalorder %s32, 0
      %p201 = por %p199, %p200
      %s202 = ssub.s32 %s34, %s41
      %p203 = scmp.eq.s32.totalorder %s202, 0
      %s205 = sadd.s32 %s204, 1
      %s206 = scalar_select %p203, %s204, %s205
      %p209 = pneg %p203
      %p210 = scmp.eq.s32.totalorder %s26, 3
      %p211 = por %p209, %p210
      %p212 = scmp.ne.s32.totalorder %s204, %s207
      %p213 = scmp.eq.s32.totalorder %s26, 0
      %p214 = por %p212, %p213
      %p215 = scmp.ne.s32.totalorder %s204, %s207
      %p216 = scmp.eq.s32.totalorder %s31, 3
      %p217 = por %p215, %p216
      %p218 = scmp.ne.s32.totalorder %s207, %s208
      %p219 = scmp.eq.s32.totalorder %s31, 0
      %p220 = por %p218, %p219
      %p221 = scmp.ne.s32.totalorder %s207, %s208
      %p222 = scmp.eq.s32.totalorder %s32, 3
      %p223 = por %p221, %p222
      %p225 = scmp.ne.s32.totalorder %s208, %s224
      %p226 = scmp.eq.s32.totalorder %s32, 0
      %p227 = por %p225, %p226
      %s228 = ssub.s32 %s34, %s41
      %p229 = scmp.eq.s32.totalorder %s228, 0
      %s231 = sadd.s32 %s230, 1
      %s232 = scalar_select %p229, %s230, %s231
      %p235 = pneg %p229
      %p236 = scmp.eq.s32.totalorder %s26, 3
      %p237 = por %p235, %p236
      %p238 = scmp.ne.s32.totalorder %s230, %s233
      %p239 = scmp.eq.s32.totalorder %s26, 0
      %p240 = por %p238, %p239
      %p241 = scmp.ne.s32.totalorder %s230, %s233
      %p242 = scmp.eq.s32.totalorder %s31, 3
      %p243 = por %p241, %p242
      %p244 = scmp.ne.s32.totalorder %s233, %s234
      %p245 = scmp.eq.s32.totalorder %s31, 0
      %p246 = por %p244, %p245
      %p247 = scmp.ne.s32.totalorder %s233, %s234
      %p248 = scmp.eq.s32.totalorder %s32, 3
      %p249 = por %p247, %p248
      %p251 = scmp.ne.s32.totalorder %s234, %s250
      %p252 = scmp.eq.s32.totalorder %s32, 0
      %p253 = por %p251, %p252
      %s254 = ssub.s32 %s34, %s41
      %p255 = scmp.eq.s32.totalorder %s254, 0
      %s257 = sadd.s32 %s256, 1
      %s258 = scalar_select %p255, %s256, %s257
      %p261 = pneg %p255
      %p262 = scmp.eq.s32.totalorder %s26, 3
      %p263 = por %p261, %p262
      %p264 = scmp.ne.s32.totalorder %s256, %s259
      %p265 = scmp.eq.s32.totalorder %s26, 0
      %p266 = por %p264, %p265
      %p267 = scmp.ne.s32.totalorder %s256, %s259
      %p268 = scmp.eq.s32.totalorder %s31, 3
      %p269 = por %p267, %p268
      %p270 = scmp.ne.s32.totalorder %s259, %s260
      %p271 = scmp.eq.s32.totalorder %s31, 0
      %p272 = por %p270, %p271
      %p273 = scmp.ne.s32.totalorder %s259, %s260
      %p274 = scmp.eq.s32.totalorder %s32, 3
      %p275 = por %p273, %p274
      %p277 = scmp.ne.s32.totalorder %s260, %s276
      %p278 = scmp.eq.s32.totalorder %s32, 0
      %p279 = por %p277, %p278
      %s280 = ssub.s32 %s34, %s41
      %p281 = scmp.eq.s32.totalorder %s280, 0
      %s283 = sadd.s32 %s282, 1
      %s284 = scalar_select %p281, %s282, %s283
      %p287 = pneg %p281
      %p288 = scmp.eq.s32.totalorder %s26, 3
      %p289 = por %p287, %p288
      %p290 = scmp.ne.s32.totalorder %s282, %s285
      %p291 = scmp.eq.s32.totalorder %s26, 0
      %p292 = por %p290, %p291
      %p293 = scmp.ne.s32.totalorder %s282, %s285
      %p294 = scmp.eq.s32.totalorder %s31, 3
      %p295 = por %p293, %p294
      %p296 = scmp.ne.s32.totalorder %s285, %s286
      %p297 = scmp.eq.s32.totalorder %s31, 0
      %p298 = por %p296, %p297
      %p299 = scmp.ne.s32.totalorder %s285, %s286
      %p300 = scmp.eq.s32.totalorder %s32, 3
      %p301 = por %p299, %p300
      %p303 = scmp.ne.s32.totalorder %s286, %s302
      %p304 = scmp.eq.s32.totalorder %s32, 0
      %p305 = por %p303, %p304
      %s306 = ssub.s32 %s34, %s41
      %p307 = scmp.eq.s32.totalorder %s306, 0
      %s309 = sadd.s32 %s308, 1
      %s310 = scalar_select %p307, %s308, %s309
      %p313 = pneg %p307
      %p314 = scmp.eq.s32.totalorder %s26, 3
      %p315 = por %p313, %p314
      %p316 = scmp.ne.s32.totalorder %s308, %s311
      %p317 = scmp.eq.s32.totalorder %s26, 0
      %p318 = por %p316, %p317
      %p319 = scmp.ne.s32.totalorder %s308, %s311
      %p320 = scmp.eq.s32.totalorder %s31, 3
      %p321 = por %p319, %p320
      %p322 = scmp.ne.s32.totalorder %s311, %s312
      %p323 = scmp.eq.s32.totalorder %s31, 0
      %p324 = por %p322, %p323
      %p325 = scmp.ne.s32.totalorder %s311, %s312
      %p326 = scmp.eq.s32.totalorder %s32, 3
      %p327 = por %p325, %p326
      %p329 = scmp.ne.s32.totalorder %s312, %s328
      %p330 = scmp.eq.s32.totalorder %s32, 0
      %p331 = por %p329, %p330
      %s332 = ssub.s32 %s34, %s41
      %p333 = scmp.eq.s32.totalorder %s332, 0
      %s335 = sadd.s32 %s334, 1
      %s336 = scalar_select %p333, %s334, %s335
      %p339 = pneg %p333
      %p340 = scmp.eq.s32.totalorder %s26, 3
      %p341 = por %p339, %p340
      %p342 = scmp.ne.s32.totalorder %s334, %s337
      %p343 = scmp.eq.s32.totalorder %s26, 0
      %p344 = por %p342, %p343
      %p345 = scmp.ne.s32.totalorder %s334, %s337
      %p346 = scmp.eq.s32.totalorder %s31, 3
      %p347 = por %p345, %p346
      %p348 = scmp.ne.s32.totalorder %s337, %s338
      %p349 = scmp.eq.s32.totalorder %s31, 0
      %p350 = por %p348, %p349
      %p351 = scmp.ne.s32.totalorder %s337, %s338
      %p352 = scmp.eq.s32.totalorder %s32, 3
      %p353 = por %p351, %p352
      %p355 = scmp.ne.s32.totalorder %s338, %s354
      %p356 = scmp.eq.s32.totalorder %s32, 0
      %p357 = por %p355, %p356
      %s358 = ssub.s32 %s34, %s41
      %p359 = scmp.eq.s32.totalorder %s358, 0
      %s361 = sadd.s32 %s360, 1
      %s362 = scalar_select %p359, %s360, %s361
      %p365 = pneg %p359
      %p366 = scmp.eq.s32.totalorder %s26, 3
      %p367 = por %p365, %p366
      %p368 = scmp.ne.s32.totalorder %s360, %s363
      %p369 = scmp.eq.s32.totalorder %s26, 0
      %p370 = por %p368, %p369
      %p371 = scmp.ne.s32.totalorder %s360, %s363
      %p372 = scmp.eq.s32.totalorder %s31, 3
      %p373 = por %p371, %p372
      %p374 = scmp.ne.s32.totalorder %s363, %s364
      %p375 = scmp.eq.s32.totalorder %s31, 0
      %p376 = por %p374, %p375
      %p377 = scmp.ne.s32.totalorder %s363, %s364
      %p378 = scmp.eq.s32.totalorder %s32, 3
      %p379 = por %p377, %p378
      %p381 = scmp.ne.s32.totalorder %s364, %s380
      %p382 = scmp.eq.s32.totalorder %s32, 0
      %p383 = por %p381, %p382
      %s385 = sadd.s32 %s384, 1
      %p388 = scmp.eq.s32.totalorder %s26, 3
      %p389 = scmp.ne.s32.totalorder %s384, %s386
      %p390 = scmp.eq.s32.totalorder %s26, 0
      %p391 = por %p389, %p390
      %p392 = scmp.ne.s32.totalorder %s384, %s386
      %p393 = scmp.eq.s32.totalorder %s31, 3
      %p394 = por %p392, %p393
      %p395 = scmp.ne.s32.totalorder %s386, %s387
      %p396 = scmp.eq.s32.totalorder %s31, 0
      %p397 = por %p395, %p396
      %p398 = scmp.ne.s32.totalorder %s386, %s387
      %p399 = scmp.eq.s32.totalorder %s32, 3
      %p400 = por %p398, %p399
      %p402 = scmp.ne.s32.totalorder %s387, %s401
      %p403 = scmp.eq.s32.totalorder %s32, 0
      %p404 = por %p402, %p403
      %s406 = sadd.s32 %s405, 1
      %p409 = scmp.eq.s32.totalorder %s26, 3
      %p410 = scmp.ne.s32.totalorder %s405, %s407
      %p411 = scmp.eq.s32.totalorder %s26, 0
      %p412 = por %p410, %p411
      %p413 = scmp.ne.s32.totalorder %s405, %s407
      %p414 = scmp.eq.s32.totalorder %s31, 3
      %p415 = por %p413, %p414
      %p416 = scmp.ne.s32.totalorder %s407, %s408
      %p417 = scmp.eq.s32.totalorder %s31, 0
      %p418 = por %p416, %p417
      %p419 = scmp.ne.s32.totalorder %s407, %s408
      %p420 = scmp.eq.s32.totalorder %s32, 3
      %p421 = por %p419, %p420
      %p423 = scmp.ne.s32.totalorder %s408, %s422
      %p424 = scmp.eq.s32.totalorder %s32, 0
      %p425 = por %p423, %p424
      %s426 = ssub.s32 %s33, %s45
      %p427 = scmp.eq.s32.totalorder %s426, 0
      %s429 = sadd.s32 %s428, 1
      %s430 = scalar_select %p427, %s428, %s429
      %p433 = pneg %p427
      %p434 = scmp.eq.s32.totalorder %s26, 3
      %p435 = por %p433, %p434
      %p436 = scmp.ne.s32.totalorder %s428, %s431
      %p437 = scmp.eq.s32.totalorder %s26, 0
      %p438 = por %p436, %p437
      %p439 = scmp.ne.s32.totalorder %s428, %s431
      %p440 = scmp.eq.s32.totalorder %s31, 3
      %p441 = por %p439, %p440
      %p442 = scmp.ne.s32.totalorder %s431, %s432
      %p443 = scmp.eq.s32.totalorder %s31, 0
      %p444 = por %p442, %p443
      %p445 = scmp.ne.s32.totalorder %s431, %s432
      %p446 = scmp.eq.s32.totalorder %s32, 3
      %p447 = por %p445, %p446
      %p449 = scmp.ne.s32.totalorder %s432, %s448
      %p450 = scmp.eq.s32.totalorder %s32, 0
      %p451 = por %p449, %p450
      %p452 = scmp.le.s32.totalorder 1, %s26
      %p453 = scmp.lt.s32.totalorder %s26, 5
      %p454 = pnand %p452, %p453
      %p455 = pneg %p454
      // Predicated region
      $region9: #{forward.3} parent=5 // pred_check
        _
      $region10: #{forward.3} parent=5 // pred_check_branch
        %457 = sbr.rel (%p454) target = $region12
      $region11: #{forward.3} parent=5 // pred_region
        %s458 = ssub.s32 %s26, 1
        // Predicated region
        $region13: #{forward.3} parent=11 // pred_check
          %p459 = pneg %p397
        $region14: #{forward.3} parent=11 // pred_check_branch
          %461 = sbr.rel (%p459) target = $region16
        $region15: #{forward.3} parent=11 // pred_region
          _
        $region16: #{forward.3} parent=11 // pred_fallthru
          _
        // Predicated region
        $region17: #{forward.3} parent=11 // pred_check
          %p462 = pneg %p418
        $region18: #{forward.3} parent=11 // pred_check_branch
          %464 = sbr.rel (%p462) target = $region20
        $region19: #{forward.3} parent=11 // pred_region
          _
        $region20: #{forward.3} parent=11 // pred_fallthru
          _
      $region12: #{forward.3} parent=5 // pred_fallthru
        _
      %p465 = scmp.lt.s32.totalorder %s26, 4
      // Predicated region
      $region21: #{forward.3} parent=5 // pred_check
        %p466 = pneg %p465
      $region22: #{forward.3} parent=5 // pred_check_branch
        %468 = sbr.rel (%p466) target = $region24
      $region23: #{forward.3} parent=5 // pred_region
        // Predicated region
        $region25: #{forward.3} parent=23 // pred_check
          %p469 = pneg %p58
        $region26: #{forward.3} parent=23 // pred_check_branch
          %471 = sbr.rel (%p469) target = $region28
        $region27: #{forward.3} parent=23 // pred_region
          %p472 = scmp.lt.s32.totalorder %s33, 1
          %s473 = scalar_select %p472, %s33, 1
          %s474 = smul.addr %s473, 4
          %s475 = smul.addr %s474, 8
          %s476 = scalar_lea.vmem %s0, %s475
        $region28: #{forward.3} parent=23 // pred_fallthru
          _
        // Predicated region
        $region29: #{forward.3} parent=23 // pred_check
          %p477 = pneg %p84
        $region30: #{forward.3} parent=23 // pred_check_branch
          %479 = sbr.rel (%p477) target = $region32
        $region31: #{forward.3} parent=23 // pred_region
          %p480 = scmp.lt.s32.totalorder %s34, 1
          %s481 = scalar_select %p480, %s34, 1
          %s482 = smul.addr %s481, 4
          %s483 = smul.addr %s482, 4
          %s484 = scalar_lea.vmem %s1, %s483
        $region32: #{forward.3} parent=23 // pred_fallthru
          _
        // Predicated region
        $region33: #{forward.3} parent=23 // pred_check
          %p485 = pneg %p110
        $region34: #{forward.3} parent=23 // pred_check_branch
          %487 = sbr.rel (%p485) target = $region36
        $region35: #{forward.3} parent=23 // pred_region
          %p488 = scmp.lt.s32.totalorder %s34, 1
          %s489 = scalar_select %p488, %s34, 1
          %s490 = scalar_lea.vmem %s2, %s489
        $region36: #{forward.3} parent=23 // pred_fallthru
          _
        // Predicated region
        $region37: #{forward.3} parent=23 // pred_check
          %p491 = pneg %p136
        $region38: #{forward.3} parent=23 // pred_check_branch
          %493 = sbr.rel (%p491) target = $region40
        $region39: #{forward.3} parent=23 // pred_region
          %p494 = scmp.lt.s32.totalorder %s34, 1
          %s495 = scalar_select %p494, %s34, 1
          %s496 = smul.addr %s495, 4
          %s497 = smul.addr %s496, 4
          %s498 = scalar_lea.vmem %s3, %s497
        $region40: #{forward.3} parent=23 // pred_fallthru
          _
        // Predicated region
        $region41: #{forward.3} parent=23 // pred_check
          %p499 = pneg %p162
        $region42: #{forward.3} parent=23 // pred_check_branch
          %501 = sbr.rel (%p499) target = $region44
        $region43: #{forward.3} parent=23 // pred_region
          %p502 = scmp.lt.s32.totalorder %s34, 1
          %s503 = scalar_select %p502, %s34, 1
          %s504 = scalar_lea.vmem %s4, %s503
        $region44: #{forward.3} parent=23 // pred_fallthru
          _
        // Predicated region
        $region45: #{forward.3} parent=23 // pred_check
          %p505 = pneg %p188
        $region46: #{forward.3} parent=23 // pred_check_branch
          %507 = sbr.rel (%p505) target = $region48
        $region47: #{forward.3} parent=23 // pred_region
          %p508 = scmp.lt.s32.totalorder %s34, 1
          %s509 = scalar_select %p508, %s34, 1
          %s510 = scalar_lea.vmem %s5, %s509
        $region48: #{forward.3} parent=23 // pred_fallthru
          _
        // Predicated region
        $region49: #{forward.3} parent=23 // pred_check
          %p511 = pneg %p214
        $region50: #{forward.3} parent=23 // pred_check_branch
          %513 = sbr.rel (%p511) target = $region52
        $region51: #{forward.3} parent=23 // pred_region
          %p514 = scmp.lt.s32.totalorder %s34, 1
          %s515 = scalar_select %p514, %s34, 1
          %s516 = scalar_lea.vmem %s6, %s515
        $region52: #{forward.3} parent=23 // pred_fallthru
          _
        // Predicated region
        $region53: #{forward.3} parent=23 // pred_check
          %p517 = pneg %p240
        $region54: #{forward.3} parent=23 // pred_check_branch
          %519 = sbr.rel (%p517) target = $region56
        $region55: #{forward.3} parent=23 // pred_region
          %p520 = scmp.lt.s32.totalorder %s34, 1
          %s521 = scalar_select %p520, %s34, 1
          %s522 = smul.addr %s521, 4
          %s523 = smul.addr %s522, 4
          %s524 = scalar_lea.vmem %s7, %s523
        $region56: #{forward.3} parent=23 // pred_fallthru
          _
        // Predicated region
        $region57: #{forward.3} parent=23 // pred_check
          %p525 = pneg %p266
        $region58: #{forward.3} parent=23 // pred_check_branch
          %527 = sbr.rel (%p525) target = $region60
        $region59: #{forward.3} parent=23 // pred_region
          %p528 = scmp.lt.s32.totalorder %s34, 1
          %s529 = scalar_select %p528, %s34, 1
          %s530 = scalar_lea.vmem %s8, %s529
        $region60: #{forward.3} parent=23 // pred_fallthru
          _
        // Predicated region
        $region61: #{forward.3} parent=23 // pred_check
          %p531 = pneg %p292
        $region62: #{forward.3} parent=23 // pred_check_branch
          %533 = sbr.rel (%p531) target = $region64
        $region63: #{forward.3} parent=23 // pred_region
          %p534 = scmp.lt.s32.totalorder %s34, 1
          %s535 = scalar_select %p534, %s34, 1
          %s536 = smul.addr %s535, 16
          %s537 = smul.addr %s536, 4
          %s538 = scalar_lea.vmem %s9, %s537
        $region64: #{forward.3} parent=23 // pred_fallthru
          _
        // Predicated region
        $region65: #{forward.3} parent=23 // pred_check
          %p539 = pneg %p318
        $region66: #{forward.3} parent=23 // pred_check_branch
          %541 = sbr.rel (%p539) target = $region68
        $region67: #{forward.3} parent=23 // pred_region
          %p542 = scmp.lt.s32.totalorder %s34, 1
          %s543 = scalar_select %p542, %s34, 1
          %s544 = scalar_lea.vmem %s10, %s543
        $region68: #{forward.3} parent=23 // pred_fallthru
          _
        // Predicated region
        $region69: #{forward.3} parent=23 // pred_check
          %p545 = pneg %p344
        $region70: #{forward.3} parent=23 // pred_check_branch
          %547 = sbr.rel (%p545) target = $region72
        $region71: #{forward.3} parent=23 // pred_region
          %p548 = scmp.lt.s32.totalorder %s34, 1
          %s549 = scalar_select %p548, %s34, 1
          %s550 = scalar_lea.vmem %s11, %s549
        $region72: #{forward.3} parent=23 // pred_fallthru
          _
        // Predicated region
        $region73: #{forward.3} parent=23 // pred_check
          %p551 = pneg %p370
        $region74: #{forward.3} parent=23 // pred_check_branch
          %553 = sbr.rel (%p551) target = $region76
        $region75: #{forward.3} parent=23 // pred_region
          %p554 = scmp.lt.s32.totalorder %s34, 1
          %s555 = scalar_select %p554, %s34, 1
          %s556 = scalar_lea.vmem %s12, %s555
        $region76: #{forward.3} parent=23 // pred_fallthru
          _
      $region24: #{forward.3} parent=5 // pred_fallthru
        _
      %p557 = scmp.le.s32.totalorder 1, %s26
      %p558 = scmp.lt.s32.totalorder %s26, 5
      %p559 = pnand %p557, %p558
      %p560 = pneg %p559
      // Predicated region
      $region77: #{forward.3} parent=5 // pred_check
        _
      $region78: #{forward.3} parent=5 // pred_check_branch
        %562 = sbr.rel (%p559) target = $region80
      $region79: #{forward.3} parent=5 // pred_region
        %s563 = ssub.s32 %s26, 1
        %p564 = scmp.lt.s32.totalorder %s35, 1
        %s565 = scalar_select %p564, %s35, 1
        %s566 = smul.addr %s565, 4
        %s567 = smul.addr %s566, 8
        %s568 = scalar_lea.vmem %s0, %s567
        %p569 = pneg %p64
        %p570 = pneg %p61
        %p571 = scmp.lt.s32.totalorder %s36, 1
        %s572 = scalar_select %p571, %s36, 1
        %s573 = smul.addr %s572, 4
        %s574 = smul.addr %s573, 4
        %s575 = scalar_lea.vmem %s1, %s574
        %p576 = pneg %p90
        %p577 = pneg %p87
        %p578 = scmp.lt.s32.totalorder %s36, 1
        %s579 = scalar_select %p578, %s36, 1
        %s580 = scalar_lea.vmem %s2, %s579
        %p581 = pneg %p116
        %p582 = pneg %p113
        %p583 = scmp.lt.s32.totalorder %s36, 1
        %s584 = scalar_select %p583, %s36, 1
        %s585 = smul.addr %s584, 4
        %s586 = smul.addr %s585, 4
        %s587 = scalar_lea.vmem %s3, %s586
        %p588 = pneg %p142
        %p589 = pneg %p139
        %p590 = scmp.lt.s32.totalorder %s36, 1
        %s591 = scalar_select %p590, %s36, 1
        %s592 = scalar_lea.vmem %s4, %s591
        %p593 = pneg %p168
        %p594 = pneg %p165
        %p595 = scmp.lt.s32.totalorder %s36, 1
        %s596 = scalar_select %p595, %s36, 1
        %s597 = scalar_lea.vmem %s5, %s596
        %p598 = pneg %p194
        %p599 = pneg %p191
        %p600 = scmp.lt.s32.totalorder %s36, 1
        %s601 = scalar_select %p600, %s36, 1
        %s602 = scalar_lea.vmem %s6, %s601
        %p603 = pneg %p220
        %p604 = pneg %p217
        %p605 = scmp.lt.s32.totalorder %s36, 1
        %s606 = scalar_select %p605, %s36, 1
        %s607 = smul.addr %s606, 4
        %s608 = smul.addr %s607, 4
        %s609 = scalar_lea.vmem %s7, %s608
        %p610 = pneg %p246
        %p611 = pneg %p243
        %p612 = scmp.lt.s32.totalorder %s36, 1
        %s613 = scalar_select %p612, %s36, 1
        %s614 = scalar_lea.vmem %s8, %s613
        %p615 = pneg %p272
        %p616 = pneg %p269
        %p617 = scmp.lt.s32.totalorder %s36, 1
        %s618 = scalar_select %p617, %s36, 1
        %s619 = smul.addr %s618, 16
        %s620 = smul.addr %s619, 4
        %s621 = scalar_lea.vmem %s9, %s620
        %p622 = pneg %p298
        %p623 = pneg %p295
        %p624 = scmp.lt.s32.totalorder %s36, 1
        %s625 = scalar_select %p624, %s36, 1
        %s626 = scalar_lea.vmem %s10, %s625
        %p627 = pneg %p324
        %p628 = pneg %p321
        %p629 = scmp.lt.s32.totalorder %s36, 1
        %s630 = scalar_select %p629, %s36, 1
        %s631 = scalar_lea.vmem %s11, %s630
        %p632 = pneg %p350
        %p633 = pneg %p347
        %p634 = scmp.lt.s32.totalorder %s36, 1
        %s635 = scalar_select %p634, %s36, 1
        %s636 = scalar_lea.vmem %s12, %s635
        %p637 = pneg %p376
        %p638 = pneg %p373
        %p639 = pneg %p397
        %p640 = pneg %p394
        %p641 = pneg %p418
        %p642 = pneg %p415
        %p643 = pneg %p444
        %p644 = pneg %p441
        %s645 = sand.u32 %s431, 1
        %s646 = scalar_lea.sflag [#allocation5], %s645
        %s647 = sand.u32 %s431, 1
        %s648 = scalar_lea.vmem [#allocation4], %s647
        %p649 = scmp.lt.s32.totalorder %s35, 1
        %s650 = scalar_select %p649, %s35, 1
        %s651 = smul.addr %s650, 4
        %s652 = smul.addr %s651, 8
        %s653 = scalar_lea.vmem %s0, %s652
        %p654 = scmp.lt.s32.totalorder %s36, 1
        %s655 = scalar_select %p654, %s36, 1
        %s656 = smul.addr %s655, 4
        %s657 = smul.addr %s656, 4
        %s658 = scalar_lea.vmem %s1, %s657
        %p659 = scmp.lt.s32.totalorder %s36, 1
        %s660 = scalar_select %p659, %s36, 1
        %s661 = scalar_lea.vmem %s2, %s660
        %p662 = scmp.lt.s32.totalorder %s36, 1
        %s663 = scalar_select %p662, %s36, 1
        %s664 = smul.addr %s663, 4
        %s665 = smul.addr %s664, 4
        %s666 = scalar_lea.vmem %s3, %s665
        %p667 = scmp.lt.s32.totalorder %s36, 1
        %s668 = scalar_select %p667, %s36, 1
        %s669 = scalar_lea.vmem %s4, %s668
        %p670 = scmp.lt.s32.totalorder %s36, 1
        %s671 = scalar_select %p670, %s36, 1
        %s672 = scalar_lea.vmem %s5, %s671
        %p673 = scmp.lt.s32.totalorder %s36, 1
        %s674 = scalar_select %p673, %s36, 1
        %s675 = scalar_lea.vmem %s6, %s674
        %p676 = scmp.lt.s32.totalorder %s36, 1
        %s677 = scalar_select %p676, %s36, 1
        %s678 = smul.addr %s677, 4
        %s679 = smul.addr %s678, 4
        %s680 = scalar_lea.vmem %s7, %s679
        %p681 = scmp.lt.s32.totalorder %s36, 1
        %s682 = scalar_select %p681, %s36, 1
        %s683 = scalar_lea.vmem %s8, %s682
        %p684 = scmp.lt.s32.totalorder %s36, 1
        %s685 = scalar_select %p684, %s36, 1
        %s686 = smul.addr %s685, 16
        %s687 = smul.addr %s686, 4
        %s688 = scalar_lea.vmem %s9, %s687
        %p689 = scmp.lt.s32.totalorder %s36, 1
        %s690 = scalar_select %p689, %s36, 1
        %s691 = scalar_lea.vmem %s10, %s690
        %p692 = scmp.lt.s32.totalorder %s36, 1
        %s693 = scalar_select %p692, %s36, 1
        %s694 = scalar_lea.vmem %s11, %s693
        %p695 = scmp.lt.s32.totalorder %s36, 1
        %s696 = scalar_select %p695, %s36, 1
        %s697 = scalar_lea.vmem %s12, %s696
        %p699 = scmp.eq.s32.totalorder %s36, 0
        // Predicated region
        $region81: #{forward.3} parent=79 // pred_check
          %p700 = pneg %p699
        $region82: #{forward.3} parent=79 // pred_check_branch
          %702 = sbr.rel (%p700) target = $region84
        $region83: #{forward.3} parent=79 // pred_region
          %v703 = vld [vmem:[%s653] sm:$0xff]
          %v704 = vld [vmem:[%s653 + $0x8] sm:$0xff]
          %v705 = vld [vmem:[%s653 + $0x10] sm:$0xff]
          %v706 = vld [vmem:[%s653 + $0x18] sm:$0xff]
          %vm707 = vcmask 261120
          %708 = vst.msk [vmem:[#allocation2] sm:$0xff] %vm707, %v703
          %709 = vst.msk [vmem:[#allocation2 + $0x8] sm:$0xff] %vm707, %v704
          %710 = vst.msk [vmem:[#allocation2 + $0x10] sm:$0xff] %vm707, %v705
          %711 = vst.msk [vmem:[#allocation2 + $0x18] sm:$0xff] %vm707, %v706
        $region84: #{forward.3} parent=79 // pred_fallthru
          _
        %v712 = vld [vmem:[#allocation2] sm:$0xff]
        %v713 = vld [vmem:[#allocation2 + $0x8] sm:$0xff]
        %v714 = vld [vmem:[#allocation2 + $0x10] sm:$0xff]
        %v715 = vld [vmem:[#allocation2 + $0x18] sm:$0xff]
        %v716 = vpack.c.bf16 %v713, %v712
        %v717 = vpack.c.bf16 %v715, %v714
        %v718 = vld [vmem:[%s658] sm:$0xf]
        %v719 = vld [vmem:[%s658 + $0x4] sm:$0xf]
        %v720 = vld [vmem:[%s658 + $0x8] sm:$0xf]
        %v721 = vld [vmem:[%s658 + $0xc] sm:$0xf]
        %v722 = vld [vmem:[%s661] sm:$0x1]
        %v724 = vlaneseq
        %v725 = vshrl.u32 %v724, 7
        %v726 = vsub.s32 0, %v725
        %v727 = vrot.slane %v722, %v726
        %v733 = vunpack.c.l.b16 %v718
        %v734 = vunpack.c.l.b16 %v719
        %v735 = vunpack.c.l.b16 %v720
        %v736 = vunpack.c.l.b16 %v721
        %v737 = vpack.c.b16 %v734, %v733
        %v738 = vpack.c.b16 %v736, %v735
        %vm741 = vcmask 261120
        %v743 = vsel %vm741, %v716, 0
        %v746 = vsel %vm741, %v717, 0
        %748 = vmatprep.subr.bf16.mxu0 0
        %749 = vmatpush1.bf16.msra.mxu0 0
        %750 = vmatprep.subr.bf16.mxu0 0
        %751 = vmatpush1.bf16.msra.mxu0 0
        %752 = vmatprep.subr.bf16.mxu0 0
        %753 = vmatpush1.bf16.msra.mxu0 0
        %754 = vmatprep.subr.bf16.mxu0 0
        %755 = vmatpush1.bf16.msra.mxu0 0
        %756 = vmatprep.subr.bf16.mxu0 0
        %757 = vmatpush1.bf16.msra.mxu0 0
        %758 = vmatprep.subr.bf16.mxu0 0
        %759 = vmatpush1.bf16.msra.mxu0 0
        %760 = vmatprep.subr.bf16.mxu0 0
        %761 = vmatpush1.bf16.msra.mxu0 %v738
        %762 = vmatprep.subr.bf16.mxu0 0
        %763 = vmatpush1.bf16.msra.mxu0 %v737
        %764 = vmatprep.subr.bf16.mxu0 0
        %765 = vmatpush2.bf16.msra.mxu0 0
        %766 = vmatprep.subr.bf16.mxu0 0
        %767 = vmatpush2.bf16.msra.mxu0 0
        %768 = vmatprep.subr.bf16.mxu0 0
        %769 = vmatpush2.bf16.msra.mxu0 0
        %770 = vmatprep.subr.bf16.mxu0 0
        %771 = vmatpush2.bf16.msra.mxu0 0
        %772 = vmatprep.subr.bf16.mxu0 0
        %773 = vmatpush2.bf16.msra.mxu0 0
        %774 = vmatprep.subr.bf16.mxu0 0
        %775 = vmatpush2.bf16.msra.mxu0 0
        %776 = vmatprep.subr.bf16.mxu0 0
        %777 = vmatpush2.bf16.msra.mxu0 0
        %778 = vmatprep.subr.bf16.mxu0 0
        %779 = vmatpush2.bf16.msra.mxu0 0
        %780 = vmatprep.mubr.bf16.mxu0 0
        %781 = vmatmul.mubr.bf16.gmra.mxu0 %v743
        %v782 = vpop.f32.mrf.mxu0
        %v783 = vadd.f32 %v727, %v782
        %v784 = vpop.f32.mrf.mxu0
        %v785 = vpop.f32.mrf.mxu0
        %v786 = vadd.f32 %v727, %v785
        %v787 = vpop.f32.mrf.mxu0
        %788 = vmatprep.mubr.bf16.mxu0 0
        %789 = vmatmul.mubr.bf16.gmra.mxu0 %v746
        %v790 = vpop.f32.mrf.mxu0
        %v791 = vadd.f32 %v727, %v790
        %v792 = vpop.f32.mrf.mxu0
        %v793 = vpop.f32.mrf.mxu0
        %v794 = vadd.f32 %v727, %v793
        %v795 = vpop.f32.mrf.mxu0
        %796 = vdwg.mxu0
        %v797 = vpack.c.bf16 %v786, %v783
        %v798 = vpack.c.bf16 %v794, %v791
        %801 = vrot.lane.b32.xlu0 %v797, 120
        %v802 = vpop.permute.xlu0 %801
        %803 = vrot.lane.b32.xlu0 %v798, 120
        %v804 = vpop.permute.xlu0 %803
        %805 = vrot.lane.b32.xlu0 %v797, 112
        %v806 = vpop.permute.xlu0 %805
        %807 = vrot.lane.b32.xlu0 %v798, 112
        %v808 = vpop.permute.xlu0 %807
        %809 = vrot.lane.b32.xlu0 %v797, 104
        %v810 = vpop.permute.xlu0 %809
        %811 = vrot.lane.b32.xlu0 %v798, 104
        %v812 = vpop.permute.xlu0 %811
        %v813 = vunpack.c.l.b16 %v797
        %v814 = vunpack.c.h.b16 %v797
        %v815 = vunpack.c.l.b16 %v798
        %v816 = vunpack.c.h.b16 %v798
        %v817 = vunpack.c.l.b16 %v802
        %v818 = vunpack.c.h.b16 %v802
        %v819 = vunpack.c.l.b16 %v804
        %v820 = vunpack.c.h.b16 %v804
        %v821 = vunpack.c.l.b16 %v806
        %v822 = vunpack.c.h.b16 %v806
        %v823 = vunpack.c.l.b16 %v808
        %v824 = vunpack.c.h.b16 %v808
        %v825 = vunpack.c.l.b16 %v810
        %v826 = vunpack.c.h.b16 %v810
        %v827 = vunpack.c.l.b16 %v812
        %v828 = vunpack.c.h.b16 %v812
        %v829 = vpack.c.b16 %v813, %v813
        %v830 = vpack.c.b16 %v814, %v814
        %v831 = vpack.c.b16 %v815, %v815
        %v832 = vpack.c.b16 %v816, %v816
        %v833 = vpack.c.b16 %v817, %v817
        %v834 = vpack.c.b16 %v818, %v818
        %v835 = vpack.c.b16 %v819, %v819
        %v836 = vpack.c.b16 %v820, %v820
        %v837 = vpack.c.b16 %v821, %v821
        %v838 = vpack.c.b16 %v822, %v822
        %v839 = vpack.c.b16 %v823, %v823
        %v840 = vpack.c.b16 %v824, %v824
        %v841 = vpack.c.b16 %v825, %v825
        %v842 = vpack.c.b16 %v826, %v826
        %v843 = vpack.c.b16 %v827, %v827
        %v844 = vpack.c.b16 %v828, %v828
        %845 = vrot.lane.b32.xlu0 %v829, 96
        %v846 = vpop.permute.xlu0 %845
        %vm847 = vcmask 64512
        %v849 = vsel %vm847, %v829, 0
        %v852 = vsel %vm847, %v846, 0
        %854 = vmatprep.subr.bf16.mxu0 0
        %855 = vmatpush1.bf16.xpose.msra.mxu0 0
        %856 = vmatprep.subr.bf16.mxu0 0
        %857 = vmatpush1.bf16.xpose.msra.mxu0 0
        %858 = vmatprep.subr.bf16.mxu0 0
        %859 = vmatpush1.bf16.xpose.msra.mxu0 0
        %860 = vmatprep.subr.bf16.mxu0 0
        %861 = vmatpush1.bf16.xpose.msra.mxu0 0
        %862 = vmatprep.subr.bf16.mxu0 0
        %863 = vmatpush1.bf16.xpose.msra.mxu0 0
        %864 = vmatprep.subr.bf16.mxu0 0
        %865 = vmatpush1.bf16.xpose.msra.mxu0 0
        %866 = vmatprep.subr.bf16.mxu0 0
        %867 = vmatpush1.bf16.xpose.msra.mxu0 0
        %868 = vmatprep.subr.bf16.mxu0 0
        %869 = vmatpush1.bf16.xpose.msra.mxu0 %v852
        %870 = vmatprep.subr.bf16.mxu0 0
        %871 = vmatpush2.bf16.xpose.msra.mxu0 0
        %872 = vmatprep.subr.bf16.mxu0 0
        %873 = vmatpush2.bf16.xpose.msra.mxu0 0
        %874 = vmatprep.subr.bf16.mxu0 0
        %875 = vmatpush2.bf16.xpose.msra.mxu0 0
        %876 = vmatprep.subr.bf16.mxu0 0
        %877 = vmatpush2.bf16.xpose.msra.mxu0 0
        %878 = vmatprep.subr.bf16.mxu0 0
        %879 = vmatpush2.bf16.xpose.msra.mxu0 0
        %880 = vmatprep.subr.bf16.mxu0 0
        %881 = vmatpush2.bf16.xpose.msra.mxu0 0
        %882 = vmatprep.subr.bf16.mxu0 0
        %883 = vmatpush2.bf16.xpose.msra.mxu0 0
        %884 = vmatprep.subr.bf16.mxu0 0
        %885 = vmatpush2.bf16.xpose.msra.mxu0 0
        %886 = vmatprep.mubr.bf16.mxu0 0
        %887 = vmatmul.mubr.bf16.gmra.mxu0 %v849
        %v888 = vpop.f32.mrf.mxu0
        %v889 = vadd.f32 0.0, %v888
        %v890 = vpop.f32.mrf.mxu0
        %v891 = vpop.f32.mrf.mxu0
        %v892 = vpop.f32.mrf.mxu0
        %893 = vdwg.mxu0
        %894 = vrot.lane.b32.xlu0 %v830, 96
        %v895 = vpop.permute.xlu0 %894
        %v897 = vsel %vm847, %v830, 0
        %v900 = vsel %vm847, %v895, 0
        %902 = vmatprep.subr.bf16.mxu0 0
        %903 = vmatpush1.bf16.xpose.msra.mxu0 0
        %904 = vmatprep.subr.bf16.mxu0 0
        %905 = vmatpush1.bf16.xpose.msra.mxu0 0
        %906 = vmatprep.subr.bf16.mxu0 0
        %907 = vmatpush1.bf16.xpose.msra.mxu0 0
        %908 = vmatprep.subr.bf16.mxu0 0
        %909 = vmatpush1.bf16.xpose.msra.mxu0 0
        %910 = vmatprep.subr.bf16.mxu0 0
        %911 = vmatpush1.bf16.xpose.msra.mxu0 0
        %912 = vmatprep.subr.bf16.mxu0 0
        %913 = vmatpush1.bf16.xpose.msra.mxu0 0
        %914 = vmatprep.subr.bf16.mxu0 0
        %915 = vmatpush1.bf16.xpose.msra.mxu0 0
        %916 = vmatprep.subr.bf16.mxu0 0
        %917 = vmatpush1.bf16.xpose.msra.mxu0 %v900
        %918 = vmatprep.subr.bf16.mxu0 0
        %919 = vmatpush2.bf16.xpose.msra.mxu0 0
        %920 = vmatprep.subr.bf16.mxu0 0
        %921 = vmatpush2.bf16.xpose.msra.mxu0 0
        %922 = vmatprep.subr.bf16.mxu0 0
        %923 = vmatpush2.bf16.xpose.msra.mxu0 0
        %924 = vmatprep.subr.bf16.mxu0 0
        %925 = vmatpush2.bf16.xpose.msra.mxu0 0
        %926 = vmatprep.subr.bf16.mxu0 0
        %927 = vmatpush2.bf16.xpose.msra.mxu0 0
        %928 = vmatprep.subr.bf16.mxu0 0
        %929 = vmatpush2.bf16.xpose.msra.mxu0 0
        %930 = vmatprep.subr.bf16.mxu0 0
        %931 = vmatpush2.bf16.xpose.msra.mxu0 0
        %932 = vmatprep.subr.bf16.mxu0 0
        %933 = vmatpush2.bf16.xpose.msra.mxu0 0
        %934 = vmatprep.mubr.bf16.mxu0 0
        %935 = vmatmul.mubr.bf16.gmra.mxu0 %v897
        %v936 = vpop.f32.mrf.mxu0
        %v937 = vadd.f32 0.0, %v936
        %v938 = vpop.f32.mrf.mxu0
        %v939 = vpop.f32.mrf.mxu0
        %v940 = vpop.f32.mrf.mxu0
        %941 = vdwg.mxu0
        %942 = vrot.lane.b32.xlu0 %v831, 96
        %v943 = vpop.permute.xlu0 %942
        %v945 = vsel %vm847, %v831, 0
        %v948 = vsel %vm847, %v943, 0
        %950 = vmatprep.subr.bf16.mxu0 0
        %951 = vmatpush1.bf16.xpose.msra.mxu0 0
        %952 = vmatprep.subr.bf16.mxu0 0
        %953 = vmatpush1.bf16.xpose.msra.mxu0 0
        %954 = vmatprep.subr.bf16.mxu0 0
        %955 = vmatpush1.bf16.xpose.msra.mxu0 0
        %956 = vmatprep.subr.bf16.mxu0 0
        %957 = vmatpush1.bf16.xpose.msra.mxu0 0
        %958 = vmatprep.subr.bf16.mxu0 0
        %959 = vmatpush1.bf16.xpose.msra.mxu0 0
        %960 = vmatprep.subr.bf16.mxu0 0
        %961 = vmatpush1.bf16.xpose.msra.mxu0 0
        %962 = vmatprep.subr.bf16.mxu0 0
        %963 = vmatpush1.bf16.xpose.msra.mxu0 0
        %964 = vmatprep.subr.bf16.mxu0 0
        %965 = vmatpush1.bf16.xpose.msra.mxu0 %v948
        %966 = vmatprep.subr.bf16.mxu0 0
        %967 = vmatpush2.bf16.xpose.msra.mxu0 0
        %968 = vmatprep.subr.bf16.mxu0 0
        %969 = vmatpush2.bf16.xpose.msra.mxu0 0
        %970 = vmatprep.subr.bf16.mxu0 0
        %971 = vmatpush2.bf16.xpose.msra.mxu0 0
        %972 = vmatprep.subr.bf16.mxu0 0
        %973 = vmatpush2.bf16.xpose.msra.mxu0 0
        %974 = vmatprep.subr.bf16.mxu0 0
        %975 = vmatpush2.bf16.xpose.msra.mxu0 0
        %976 = vmatprep.subr.bf16.mxu0 0
        %977 = vmatpush2.bf16.xpose.msra.mxu0 0
        %978 = vmatprep.subr.bf16.mxu0 0
        %979 = vmatpush2.bf16.xpose.msra.mxu0 0
        %980 = vmatprep.subr.bf16.mxu0 0
        %981 = vmatpush2.bf16.xpose.msra.mxu0 0
        %982 = vmatprep.mubr.bf16.mxu0 0
        %983 = vmatmul.mubr.bf16.gmra.mxu0 %v945
        %v984 = vpop.f32.mrf.mxu0
        %v985 = vadd.f32 0.0, %v984
        %v986 = vpop.f32.mrf.mxu0
        %v987 = vpop.f32.mrf.mxu0
        %v988 = vpop.f32.mrf.mxu0
        %989 = vdwg.mxu0
        %990 = vrot.lane.b32.xlu0 %v832, 96
        %v991 = vpop.permute.xlu0 %990
        %v993 = vsel %vm847, %v832, 0
        %v996 = vsel %vm847, %v991, 0
        %998 = vmatprep.subr.bf16.mxu0 0
        %999 = vmatpush1.bf16.xpose.msra.mxu0 0
        %1000 = vmatprep.subr.bf16.mxu0 0
        %1001 = vmatpush1.bf16.xpose.msra.mxu0 0
        %1002 = vmatprep.subr.bf16.mxu0 0
        %1003 = vmatpush1.bf16.xpose.msra.mxu0 0
        %1004 = vmatprep.subr.bf16.mxu0 0
        %1005 = vmatpush1.bf16.xpose.msra.mxu0 0
        %1006 = vmatprep.subr.bf16.mxu0 0
        %1007 = vmatpush1.bf16.xpose.msra.mxu0 0
        %1008 = vmatprep.subr.bf16.mxu0 0
        %1009 = vmatpush1.bf16.xpose.msra.mxu0 0
        %1010 = vmatprep.subr.bf16.mxu0 0
        %1011 = vmatpush1.bf16.xpose.msra.mxu0 0
        %1012 = vmatprep.subr.bf16.mxu0 0
        %1013 = vmatpush1.bf16.xpose.msra.mxu0 %v996
        %1014 = vmatprep.subr.bf16.mxu0 0
        %1015 = vmatpush2.bf16.xpose.msra.mxu0 0
        %1016 = vmatprep.subr.bf16.mxu0 0
        %1017 = vmatpush2.bf16.xpose.msra.mxu0 0
        %1018 = vmatprep.subr.bf16.mxu0 0
        %1019 = vmatpush2.bf16.xpose.msra.mxu0 0
        %1020 = vmatprep.subr.bf16.mxu0 0
        %1021 = vmatpush2.bf16.xpose.msra.mxu0 0
        %1022 = vmatprep.subr.bf16.mxu0 0
        %1023 = vmatpush2.bf16.xpose.msra.mxu0 0
        %1024 = vmatprep.subr.bf16.mxu0 0
        %1025 = vmatpush2.bf16.xpose.msra.mxu0 0
        %1026 = vmatprep.subr.bf16.mxu0 0
        %1027 = vmatpush2.bf16.xpose.msra.mxu0 0
        %1028 = vmatprep.subr.bf16.mxu0 0
        %1029 = vmatpush2.bf16.xpose.msra.mxu0 0
        %1030 = vmatprep.mubr.bf16.mxu0 0
        %1031 = vmatmul.mubr.bf16.gmra.mxu0 %v993
        %v1032 = vpop.f32.mrf.mxu0
        %v1033 = vadd.f32 0.0, %v1032
        %v1034 = vpop.f32.mrf.mxu0
        %v1035 = vpop.f32.mrf.mxu0
        %v1036 = vpop.f32.mrf.mxu0
        %1037 = vdwg.mxu0
        %1038 = vrot.lane.b32.xlu0 %v833, 96
        %v1039 = vpop.permute.xlu0 %1038
        %v1041 = vsel %vm847, %v833, 0
        %v1044 = vsel %vm847, %v1039, 0
        %1046 = vmatprep.subr.bf16.mxu0 0
        %1047 = vmatpush1.bf16.xpose.msra.mxu0 0
        %1048 = vmatprep.subr.bf16.mxu0 0
        %1049 = vmatpush1.bf16.xpose.msra.mxu0 0
        %1050 = vmatprep.subr.bf16.mxu0 0
        %1051 = vmatpush1.bf16.xpose.msra.mxu0 0
        %1052 = vmatprep.subr.bf16.mxu0 0
        %1053 = vmatpush1.bf16.xpose.msra.mxu0 0
        %1054 = vmatprep.subr.bf16.mxu0 0
        %1055 = vmatpush1.bf16.xpose.msra.mxu0 0
        %1056 = vmatprep.subr.bf16.mxu0 0
        %1057 = vmatpush1.bf16.xpose.msra.mxu0 0
        %1058 = vmatprep.subr.bf16.mxu0 0
        %1059 = vmatpush1.bf16.xpose.msra.mxu0 0
        %1060 = vmatprep.subr.bf16.mxu0 0
        %1061 = vmatpush1.bf16.xpose.msra.mxu0 %v1044
        %1062 = vmatprep.subr.bf16.mxu0 0
        %1063 = vmatpush2.bf16.xpose.msra.mxu0 0
        %1064 = vmatprep.subr.bf16.mxu0 0
        %1065 = vmatpush2.bf16.xpose.msra.mxu0 0
        %1066 = vmatprep.subr.bf16.mxu0 0
        %1067 = vmatpush2.bf16.xpose.msra.mxu0 0
        %1068 = vmatprep.subr.bf16.mxu0 0
        %1069 = vmatpush2.bf16.xpose.msra.mxu0 0
        %1070 = vmatprep.subr.bf16.mxu0 0
        %1071 = vmatpush2.bf16.xpose.msra.mxu0 0
        %1072 = vmatprep.subr.bf16.mxu0 0
        %1073 = vmatpush2.bf16.xpose.msra.mxu0 0
        %1074 = vmatprep.subr.bf16.mxu0 0
        %1075 = vmatpush2.bf16.xpose.msra.mxu0 0
        %1076 = vmatprep.subr.bf16.mxu0 0
        %1077 = vmatpush2.bf16.xpose.msra.mxu0 0
        %1078 = vmatprep.mubr.bf16.mxu0 0
        %1079 = vmatmul.mubr.bf16.gmra.mxu0 %v1041
        %v1080 = vpop.f32.mrf.mxu0
        %v1081 = vadd.f32 0.0, %v1080
        %v1082 = vpop.f32.mrf.mxu0
        %v1083 = vpop.f32.mrf.mxu0
        %v1084 = vpop.f32.mrf.mxu0
        %1085 = vdwg.mxu0
        %1086 = vrot.lane.b32.xlu0 %v834, 96
        %v1087 = vpop.permute.xlu0 %1086
        %v1089 = vsel %vm847, %v834, 0
        %v1092 = vsel %vm847, %v1087, 0
        %1094 = vmatprep.subr.bf16.mxu0 0
        %1095 = vmatpush1.bf16.xpose.msra.mxu0 0
        %1096 = vmatprep.subr.bf16.mxu0 0
        %1097 = vmatpush1.bf16.xpose.msra.mxu0 0
        %1098 = vmatprep.subr.bf16.mxu0 0
        %1099 = vmatpush1.bf16.xpose.msra.mxu0 0
        %1100 = vmatprep.subr.bf16.mxu0 0
        %1101 = vmatpush1.bf16.xpose.msra.mxu0 0
        %1102 = vmatprep.subr.bf16.mxu0 0
        %1103 = vmatpush1.bf16.xpose.msra.mxu0 0
        %1104 = vmatprep.subr.bf16.mxu0 0
        %1105 = vmatpush1.bf16.xpose.msra.mxu0 0
        %1106 = vmatprep.subr.bf16.mxu0 0
        %1107 = vmatpush1.bf16.xpose.msra.mxu0 0
        %1108 = vmatprep.subr.bf16.mxu0 0
        %1109 = vmatpush1.bf16.xpose.msra.mxu0 %v1092
        %1110 = vmatprep.subr.bf16.mxu0 0
        %1111 = vmatpush2.bf16.xpose.msra.mxu0 0
        %1112 = vmatprep.subr.bf16.mxu0 0
        %1113 = vmatpush2.bf16.xpose.msra.mxu0 0
        %1114 = vmatprep.subr.bf16.mxu0 0
        %1115 = vmatpush2.bf16.xpose.msra.mxu0 0
        %1116 = vmatprep.subr.bf16.mxu0 0
        %1117 = vmatpush2.bf16.xpose.msra.mxu0 0
        %1118 = vmatprep.subr.bf16.mxu0 0
        %1119 = vmatpush2.bf16.xpose.msra.mxu0 0
        %1120 = vmatprep.subr.bf16.mxu0 0
        %1121 = vmatpush2.bf16.xpose.msra.mxu0 0
        %1122 = vmatprep.subr.bf16.mxu0 0
        %1123 = vmatpush2.bf16.xpose.msra.mxu0 0
        %1124 = vmatprep.subr.bf16.mxu0 0
        %1125 = vmatpush2.bf16.xpose.msra.mxu0 0
        %1126 = vmatprep.mubr.bf16.mxu0 0
        %1127 = vmatmul.mubr.bf16.gmra.mxu0 %v1089
        %v1128 = vpop.f32.mrf.mxu0
        %v1129 = vadd.f32 0.0, %v1128
        %v1130 = vpop.f32.mrf.mxu0
        %v1131 = vpop.f32.mrf.mxu0
        %v1132 = vpop.f32.mrf.mxu0
        %1133 = vdwg.mxu0
        %1134 = vrot.lane.b32.xlu0 %v835, 96
        %v1135 = vpop.permute.xlu0 %1134
        %v1137 = vsel %vm847, %v835, 0
        %v1140 = vsel %vm847, %v1135, 0
        %1142 = vmatprep.subr.bf16.mxu0 0
        %1143 = vmatpush1.bf16.xpose.msra.mxu0 0
        %1144 = vmatprep.subr.bf16.mxu0 0
        %1145 = vmatpush1.bf16.xpose.msra.mxu0 0
        %1146 = vmatprep.subr.bf16.mxu0 0
        %1147 = vmatpush1.bf16.xpose.msra.mxu0 0
        %1148 = vmatprep.subr.bf16.mxu0 0
        %1149 = vmatpush1.bf16.xpose.msra.mxu0 0
        %1150 = vmatprep.subr.bf16.mxu0 0
        %1151 = vmatpush1.bf16.xpose.msra.mxu0 0
        %1152 = vmatprep.subr.bf16.mxu0 0
        %1153 = vmatpush1.bf16.xpose.msra.mxu0 0
        %1154 = vmatprep.subr.bf16.mxu0 0
        %1155 = vmatpush1.bf16.xpose.msra.mxu0 0
        %1156 = vmatprep.subr.bf16.mxu0 0
        %1157 = vmatpush1.bf16.xpose.msra.mxu0 %v1140
        %1158 = vmatprep.subr.bf16.mxu0 0
        %1159 = vmatpush2.bf16.xpose.msra.mxu0 0
        %1160 = vmatprep.subr.bf16.mxu0 0
        %1161 = vmatpush2.bf16.xpose.msra.mxu0 0
        %1162 = vmatprep.subr.bf16.mxu0 0
        %1163 = vmatpush2.bf16.xpose.msra.mxu0 0
        %1164 = vmatprep.subr.bf16.mxu0 0
        %1165 = vmatpush2.bf16.xpose.msra.mxu0 0
        %1166 = vmatprep.subr.bf16.mxu0 0
        %1167 = vmatpush2.bf16.xpose.msra.mxu0 0
        %1168 = vmatprep.subr.bf16.mxu0 0
        %1169 = vmatpush2.bf16.xpose.msra.mxu0 0
        %1170 = vmatprep.subr.bf16.mxu0 0
        %1171 = vmatpush2.bf16.xpose.msra.mxu0 0
        %1172 = vmatprep.subr.bf16.mxu0 0
        %1173 = vmatpush2.bf16.xpose.msra.mxu0 0
        %1174 = vmatprep.mubr.bf16.mxu0 0
        %1175 = vmatmul.mubr.bf16.gmra.mxu0 %v1137
        %v1176 = vpop.f32.mrf.mxu0
        %v1177 = vadd.f32 0.0, %v1176
        %v1178 = vpop.f32.mrf.mxu0
        %v1179 = vpop.f32.mrf.mxu0
        %v1180 = vpop.f32.mrf.mxu0
        %1181 = vdwg.mxu0
        %1182 = vrot.lane.b32.xlu0 %v836, 96
        %v1183 = vpop.permute.xlu0 %1182
        %v1185 = vsel %vm847, %v836, 0
        %v1188 = vsel %vm847, %v1183, 0
        %1190 = vmatprep.subr.bf16.mxu0 0
        %1191 = vmatpush1.bf16.xpose.msra.mxu0 0
        %1192 = vmatprep.subr.bf16.mxu0 0
        %1193 = vmatpush1.bf16.xpose.msra.mxu0 0
        %1194 = vmatprep.subr.bf16.mxu0 0
        %1195 = vmatpush1.bf16.xpose.msra.mxu0 0
        %1196 = vmatprep.subr.bf16.mxu0 0
        %1197 = vmatpush1.bf16.xpose.msra.mxu0 0
        %1198 = vmatprep.subr.bf16.mxu0 0
        %1199 = vmatpush1.bf16.xpose.msra.mxu0 0
        %1200 = vmatprep.subr.bf16.mxu0 0
        %1201 = vmatpush1.bf16.xpose.msra.mxu0 0
        %1202 = vmatprep.subr.bf16.mxu0 0
        %1203 = vmatpush1.bf16.xpose.msra.mxu0 0
        %1204 = vmatprep.subr.bf16.mxu0 0
        %1205 = vmatpush1.bf16.xpose.msra.mxu0 %v1188
        %1206 = vmatprep.subr.bf16.mxu0 0
        %1207 = vmatpush2.bf16.xpose.msra.mxu0 0
        %1208 = vmatprep.subr.bf16.mxu0 0
        %1209 = vmatpush2.bf16.xpose.msra.mxu0 0
        %1210 = vmatprep.subr.bf16.mxu0 0
        %1211 = vmatpush2.bf16.xpose.msra.mxu0 0
        %1212 = vmatprep.subr.bf16.mxu0 0
        %1213 = vmatpush2.bf16.xpose.msra.mxu0 0
        %1214 = vmatprep.subr.bf16.mxu0 0
        %1215 = vmatpush2.bf16.xpose.msra.mxu0 0
        %1216 = vmatprep.subr.bf16.mxu0 0
        %1217 = vmatpush2.bf16.xpose.msra.mxu0 0
        %1218 = vmatprep.subr.bf16.mxu0 0
        %1219 = vmatpush2.bf16.xpose.msra.mxu0 0
        %1220 = vmatprep.subr.bf16.mxu0 0
        %1221 = vmatpush2.bf16.xpose.msra.mxu0 0
        %1222 = vmatprep.mubr.bf16.mxu0 0
        %1223 = vmatmul.mubr.bf16.gmra.mxu0 %v1185
        %v1224 = vpop.f32.mrf.mxu0
        %v1225 = vadd.f32 0.0, %v1224
        %v1226 = vpop.f32.mrf.mxu0
        %v1227 = vpop.f32.mrf.mxu0
        %v1228 = vpop.f32.mrf.mxu0
        %1229 = vdwg.mxu0
        %1230 = vrot.lane.b32.xlu0 %v837, 96
        %v1231 = vpop.permute.xlu0 %1230
        %v1233 = vsel %vm847, %v837, 0
        %v1236 = vsel %vm847, %v1231, 0
        %1238 = vmatprep.subr.bf16.mxu0 0
        %1239 = vmatpush1.bf16.xpose.msra.mxu0 0
        %1240 = vmatprep.subr.bf16.mxu0 0
        %1241 = vmatpush1.bf16.xpose.msra.mxu0 0
        %1242 = vmatprep.subr.bf16.mxu0 0
        %1243 = vmatpush1.bf16.xpose.msra.mxu0 0
        %1244 = vmatprep.subr.bf16.mxu0 0
        %1245 = vmatpush1.bf16.xpose.msra.mxu0 0
        %1246 = vmatprep.subr.bf16.mxu0 0
        %1247 = vmatpush1.bf16.xpose.msra.mxu0 0
        %1248 = vmatprep.subr.bf16.mxu0 0
        %1249 = vmatpush1.bf16.xpose.msra.mxu0 0
        %1250 = vmatprep.subr.bf16.mxu0 0
        %1251 = vmatpush1.bf16.xpose.msra.mxu0 0
        %1252 = vmatprep.subr.bf16.mxu0 0
        %1253 = vmatpush1.bf16.xpose.msra.mxu0 %v1236
        %1254 = vmatprep.subr.bf16.mxu0 0
        %1255 = vmatpush2.bf16.xpose.msra.mxu0 0
        %1256 = vmatprep.subr.bf16.mxu0 0
        %1257 = vmatpush2.bf16.xpose.msra.mxu0 0
        %1258 = vmatprep.subr.bf16.mxu0 0
        %1259 = vmatpush2.bf16.xpose.msra.mxu0 0
        %1260 = vmatprep.subr.bf16.mxu0 0
        %1261 = vmatpush2.bf16.xpose.msra.mxu0 0
        %1262 = vmatprep.subr.bf16.mxu0 0
        %1263 = vmatpush2.bf16.xpose.msra.mxu0 0
        %1264 = vmatprep.subr.bf16.mxu0 0
        %1265 = vmatpush2.bf16.xpose.msra.mxu0 0
        %1266 = vmatprep.subr.bf16.mxu0 0
        %1267 = vmatpush2.bf16.xpose.msra.mxu0 0
        %1268 = vmatprep.subr.bf16.mxu0 0
        %1269 = vmatpush2.bf16.xpose.msra.mxu0 0
        %1270 = vmatprep.mubr.bf16.mxu0 0
        %1271 = vmatmul.mubr.bf16.gmra.mxu0 %v1233
        %v1272 = vpop.f32.mrf.mxu0
        %v1273 = vadd.f32 0.0, %v1272
        %v1274 = vpop.f32.mrf.mxu0
        %v1275 = vpop.f32.mrf.mxu0
        %v1276 = vpop.f32.mrf.mxu0
        %1277 = vdwg.mxu0
        %1278 = vrot.lane.b32.xlu0 %v838, 96
        %v1279 = vpop.permute.xlu0 %1278
        %v1281 = vsel %vm847, %v838, 0
        %v1284 = vsel %vm847, %v1279, 0
        %1286 = vmatprep.subr.bf16.mxu0 0
        %1287 = vmatpush1.bf16.xpose.msra.mxu0 0
        %1288 = vmatprep.subr.bf16.mxu0 0
        %1289 = vmatpush1.bf16.xpose.msra.mxu0 0
        %1290 = vmatprep.subr.bf16.mxu0 0
        %1291 = vmatpush1.bf16.xpose.msra.mxu0 0
        %1292 = vmatprep.subr.bf16.mxu0 0
        %1293 = vmatpush1.bf16.xpose.msra.mxu0 0
        %1294 = vmatprep.subr.bf16.mxu0 0
        %1295 = vmatpush1.bf16.xpose.msra.mxu0 0
        %1296 = vmatprep.subr.bf16.mxu0 0
        %1297 = vmatpush1.bf16.xpose.msra.mxu0 0
        %1298 = vmatprep.subr.bf16.mxu0 0
        %1299 = vmatpush1.bf16.xpose.msra.mxu0 0
        %1300 = vmatprep.subr.bf16.mxu0 0
        %1301 = vmatpush1.bf16.xpose.msra.mxu0 %v1284
        %1302 = vmatprep.subr.bf16.mxu0 0
        %1303 = vmatpush2.bf16.xpose.msra.mxu0 0
        %1304 = vmatprep.subr.bf16.mxu0 0
        %1305 = vmatpush2.bf16.xpose.msra.mxu0 0
        %1306 = vmatprep.subr.bf16.mxu0 0
        %1307 = vmatpush2.bf16.xpose.msra.mxu0 0
        %1308 = vmatprep.subr.bf16.mxu0 0
        %1309 = vmatpush2.bf16.xpose.msra.mxu0 0
        %1310 = vmatprep.subr.bf16.mxu0 0
        %1311 = vmatpush2.bf16.xpose.msra.mxu0 0
        %1312 = vmatprep.subr.bf16.mxu0 0
        %1313 = vmatpush2.bf16.xpose.msra.mxu0 0
        %1314 = vmatprep.subr.bf16.mxu0 0
        %1315 = vmatpush2.bf16.xpose.msra.mxu0 0
        %1316 = vmatprep.subr.bf16.mxu0 0
        %1317 = vmatpush2.bf16.xpose.msra.mxu0 0
        %1318 = vmatprep.mubr.bf16.mxu0 0
        %1319 = vmatmul.mubr.bf16.gmra.mxu0 %v1281
        %v1320 = vpop.f32.mrf.mxu0
        %v1321 = vadd.f32 0.0, %v1320
        %v1322 = vpop.f32.mrf.mxu0
        %v1323 = vpop.f32.mrf.mxu0
        %v1324 = vpop.f32.mrf.mxu0
        %1325 = vdwg.mxu0
        %1326 = vrot.lane.b32.xlu0 %v839, 96
        %v1327 = vpop.permute.xlu0 %1326
        %v1329 = vsel %vm847, %v839, 0
        %v1332 = vsel %vm847, %v1327, 0
        %1334 = vmatprep.subr.bf16.mxu0 0
        %1335 = vmatpush1.bf16.xpose.msra.mxu0 0
        %1336 = vmatprep.subr.bf16.mxu0 0
        %1337 = vmatpush1.bf16.xpose.msra.mxu0 0
        %1338 = vmatprep.subr.bf16.mxu0 0
        %1339 = vmatpush1.bf16.xpose.msra.mxu0 0
        %1340 = vmatprep.subr.bf16.mxu0 0
        %1341 = vmatpush1.bf16.xpose.msra.mxu0 0
        %1342 = vmatprep.subr.bf16.mxu0 0
        %1343 = vmatpush1.bf16.xpose.msra.mxu0 0
        %1344 = vmatprep.subr.bf16.mxu0 0
        %1345 = vmatpush1.bf16.xpose.msra.mxu0 0
        %1346 = vmatprep.subr.bf16.mxu0 0
        %1347 = vmatpush1.bf16.xpose.msra.mxu0 0
        %1348 = vmatprep.subr.bf16.mxu0 0
        %1349 = vmatpush1.bf16.xpose.msra.mxu0 %v1332
        %1350 = vmatprep.subr.bf16.mxu0 0
        %1351 = vmatpush2.bf16.xpose.msra.mxu0 0
        %1352 = vmatprep.subr.bf16.mxu0 0
        %1353 = vmatpush2.bf16.xpose.msra.mxu0 0
        %1354 = vmatprep.subr.bf16.mxu0 0
        %1355 = vmatpush2.bf16.xpose.msra.mxu0 0
        %1356 = vmatprep.subr.bf16.mxu0 0
        %1357 = vmatpush2.bf16.xpose.msra.mxu0 0
        %1358 = vmatprep.subr.bf16.mxu0 0
        %1359 = vmatpush2.bf16.xpose.msra.mxu0 0
        %1360 = vmatprep.subr.bf16.mxu0 0
        %1361 = vmatpush2.bf16.xpose.msra.mxu0 0
        %1362 = vmatprep.subr.bf16.mxu0 0
        %1363 = vmatpush2.bf16.xpose.msra.mxu0 0
        %1364 = vmatprep.subr.bf16.mxu0 0
        %1365 = vmatpush2.bf16.xpose.msra.mxu0 0
        %1366 = vmatprep.mubr.bf16.mxu0 0
        %1367 = vmatmul.mubr.bf16.gmra.mxu0 %v1329
        %v1368 = vpop.f32.mrf.mxu0
        %v1369 = vadd.f32 0.0, %v1368
        %v1370 = vpop.f32.mrf.mxu0
        %v1371 = vpop.f32.mrf.mxu0
        %v1372 = vpop.f32.mrf.mxu0
        %1373 = vdwg.mxu0
        %1374 = vrot.lane.b32.xlu0 %v840, 96
        %v1375 = vpop.permute.xlu0 %1374
        %v1377 = vsel %vm847, %v840, 0
        %v1380 = vsel %vm847, %v1375, 0
        %1382 = vmatprep.subr.bf16.mxu0 0
        %1383 = vmatpush1.bf16.xpose.msra.mxu0 0
        %1384 = vmatprep.subr.bf16.mxu0 0
        %1385 = vmatpush1.bf16.xpose.msra.mxu0 0
        %1386 = vmatprep.subr.bf16.mxu0 0
        %1387 = vmatpush1.bf16.xpose.msra.mxu0 0
        %1388 = vmatprep.subr.bf16.mxu0 0
        %1389 = vmatpush1.bf16.xpose.msra.mxu0 0
        %1390 = vmatprep.subr.bf16.mxu0 0
        %1391 = vmatpush1.bf16.xpose.msra.mxu0 0
        %1392 = vmatprep.subr.bf16.mxu0 0
        %1393 = vmatpush1.bf16.xpose.msra.mxu0 0
        %1394 = vmatprep.subr.bf16.mxu0 0
        %1395 = vmatpush1.bf16.xpose.msra.mxu0 0
        %1396 = vmatprep.subr.bf16.mxu0 0
        %1397 = vmatpush1.bf16.xpose.msra.mxu0 %v1380
        %1398 = vmatprep.subr.bf16.mxu0 0
        %1399 = vmatpush2.bf16.xpose.msra.mxu0 0
        %1400 = vmatprep.subr.bf16.mxu0 0
        %1401 = vmatpush2.bf16.xpose.msra.mxu0 0
        %1402 = vmatprep.subr.bf16.mxu0 0
        %1403 = vmatpush2.bf16.xpose.msra.mxu0 0
        %1404 = vmatprep.subr.bf16.mxu0 0
        %1405 = vmatpush2.bf16.xpose.msra.mxu0 0
        %1406 = vmatprep.subr.bf16.mxu0 0
        %1407 = vmatpush2.bf16.xpose.msra.mxu0 0
        %1408 = vmatprep.subr.bf16.mxu0 0
        %1409 = vmatpush2.bf16.xpose.msra.mxu0 0
        %1410 = vmatprep.subr.bf16.mxu0 0
        %1411 = vmatpush2.bf16.xpose.msra.mxu0 0
        %1412 = vmatprep.subr.bf16.mxu0 0
        %1413 = vmatpush2.bf16.xpose.msra.mxu0 0
        %1414 = vmatprep.mubr.bf16.mxu0 0
        %1415 = vmatmul.mubr.bf16.gmra.mxu0 %v1377
        %v1416 = vpop.f32.mrf.mxu0
        %v1417 = vadd.f32 0.0, %v1416
        %v1418 = vpop.f32.mrf.mxu0
        %v1419 = vpop.f32.mrf.mxu0
        %v1420 = vpop.f32.mrf.mxu0
        %1421 = vdwg.mxu0
        %1422 = vrot.lane.b32.xlu0 %v841, 96
        %v1423 = vpop.permute.xlu0 %1422
        %v1425 = vsel %vm847, %v841, 0
        %v1428 = vsel %vm847, %v1423, 0
        %1430 = vmatprep.subr.bf16.mxu0 0
        %1431 = vmatpush1.bf16.xpose.msra.mxu0 0
        %1432 = vmatprep.subr.bf16.mxu0 0
        %1433 = vmatpush1.bf16.xpose.msra.mxu0 0
        %1434 = vmatprep.subr.bf16.mxu0 0
        %1435 = vmatpush1.bf16.xpose.msra.mxu0 0
        %1436 = vmatprep.subr.bf16.mxu0 0
        %1437 = vmatpush1.bf16.xpose.msra.mxu0 0
        %1438 = vmatprep.subr.bf16.mxu0 0
        %1439 = vmatpush1.bf16.xpose.msra.mxu0 0
        %1440 = vmatprep.subr.bf16.mxu0 0
        %1441 = vmatpush1.bf16.xpose.msra.mxu0 0
        %1442 = vmatprep.subr.bf16.mxu0 0
        %1443 = vmatpush1.bf16.xpose.msra.mxu0 0
        %1444 = vmatprep.subr.bf16.mxu0 0
        %1445 = vmatpush1.bf16.xpose.msra.mxu0 %v1428
        %1446 = vmatprep.subr.bf16.mxu0 0
        %1447 = vmatpush2.bf16.xpose.msra.mxu0 0
        %1448 = vmatprep.subr.bf16.mxu0 0
        %1449 = vmatpush2.bf16.xpose.msra.mxu0 0
        %1450 = vmatprep.subr.bf16.mxu0 0
        %1451 = vmatpush2.bf16.xpose.msra.mxu0 0
        %1452 = vmatprep.subr.bf16.mxu0 0
        %1453 = vmatpush2.bf16.xpose.msra.mxu0 0
        %1454 = vmatprep.subr.bf16.mxu0 0
        %1455 = vmatpush2.bf16.xpose.msra.mxu0 0
        %1456 = vmatprep.subr.bf16.mxu0 0
        %1457 = vmatpush2.bf16.xpose.msra.mxu0 0
        %1458 = vmatprep.subr.bf16.mxu0 0
        %1459 = vmatpush2.bf16.xpose.msra.mxu0 0
        %1460 = vmatprep.subr.bf16.mxu0 0
        %1461 = vmatpush2.bf16.xpose.msra.mxu0 0
        %1462 = vmatprep.mubr.bf16.mxu0 0
        %1463 = vmatmul.mubr.bf16.gmra.mxu0 %v1425
        %v1464 = vpop.f32.mrf.mxu0
        %v1465 = vadd.f32 0.0, %v1464
        %v1466 = vpop.f32.mrf.mxu0
        %v1467 = vpop.f32.mrf.mxu0
        %v1468 = vpop.f32.mrf.mxu0
        %1469 = vdwg.mxu0
        %1470 = vrot.lane.b32.xlu0 %v842, 96
        %v1471 = vpop.permute.xlu0 %1470
        %v1473 = vsel %vm847, %v842, 0
        %v1476 = vsel %vm847, %v1471, 0
        %1478 = vmatprep.subr.bf16.mxu0 0
        %1479 = vmatpush1.bf16.xpose.msra.mxu0 0
        %1480 = vmatprep.subr.bf16.mxu0 0
        %1481 = vmatpush1.bf16.xpose.msra.mxu0 0
        %1482 = vmatprep.subr.bf16.mxu0 0
        %1483 = vmatpush1.bf16.xpose.msra.mxu0 0
        %1484 = vmatprep.subr.bf16.mxu0 0
        %1485 = vmatpush1.bf16.xpose.msra.mxu0 0
        %1486 = vmatprep.subr.bf16.mxu0 0
        %1487 = vmatpush1.bf16.xpose.msra.mxu0 0
        %1488 = vmatprep.subr.bf16.mxu0 0
        %1489 = vmatpush1.bf16.xpose.msra.mxu0 0
        %1490 = vmatprep.subr.bf16.mxu0 0
        %1491 = vmatpush1.bf16.xpose.msra.mxu0 0
        %1492 = vmatprep.subr.bf16.mxu0 0
        %1493 = vmatpush1.bf16.xpose.msra.mxu0 %v1476
        %1494 = vmatprep.subr.bf16.mxu0 0
        %1495 = vmatpush2.bf16.xpose.msra.mxu0 0
        %1496 = vmatprep.subr.bf16.mxu0 0
        %1497 = vmatpush2.bf16.xpose.msra.mxu0 0
        %1498 = vmatprep.subr.bf16.mxu0 0
        %1499 = vmatpush2.bf16.xpose.msra.mxu0 0
        %1500 = vmatprep.subr.bf16.mxu0 0
        %1501 = vmatpush2.bf16.xpose.msra.mxu0 0
        %1502 = vmatprep.subr.bf16.mxu0 0
        %1503 = vmatpush2.bf16.xpose.msra.mxu0 0
        %1504 = vmatprep.subr.bf16.mxu0 0
        %1505 = vmatpush2.bf16.xpose.msra.mxu0 0
        %1506 = vmatprep.subr.bf16.mxu0 0
        %1507 = vmatpush2.bf16.xpose.msra.mxu0 0
        %1508 = vmatprep.subr.bf16.mxu0 0
        %1509 = vmatpush2.bf16.xpose.msra.mxu0 0
        %1510 = vmatprep.mubr.bf16.mxu0 0
        %1511 = vmatmul.mubr.bf16.gmra.mxu0 %v1473
        %v1512 = vpop.f32.mrf.mxu0
        %v1513 = vadd.f32 0.0, %v1512
        %v1514 = vpop.f32.mrf.mxu0
        %v1515 = vpop.f32.mrf.mxu0
        %v1516 = vpop.f32.mrf.mxu0
        %1517 = vdwg.mxu0
        %1518 = vrot.lane.b32.xlu0 %v843, 96
        %v1519 = vpop.permute.xlu0 %1518
        %v1521 = vsel %vm847, %v843, 0
        %v1524 = vsel %vm847, %v1519, 0
        %1526 = vmatprep.subr.bf16.mxu0 0
        %1527 = vmatpush1.bf16.xpose.msra.mxu0 0
        %1528 = vmatprep.subr.bf16.mxu0 0
        %1529 = vmatpush1.bf16.xpose.msra.mxu0 0
        %1530 = vmatprep.subr.bf16.mxu0 0
        %1531 = vmatpush1.bf16.xpose.msra.mxu0 0
        %1532 = vmatprep.subr.bf16.mxu0 0
        %1533 = vmatpush1.bf16.xpose.msra.mxu0 0
        %1534 = vmatprep.subr.bf16.mxu0 0
        %1535 = vmatpush1.bf16.xpose.msra.mxu0 0
        %1536 = vmatprep.subr.bf16.mxu0 0
        %1537 = vmatpush1.bf16.xpose.msra.mxu0 0
        %1538 = vmatprep.subr.bf16.mxu0 0
        %1539 = vmatpush1.bf16.xpose.msra.mxu0 0
        %1540 = vmatprep.subr.bf16.mxu0 0
        %1541 = vmatpush1.bf16.xpose.msra.mxu0 %v1524
        %1542 = vmatprep.subr.bf16.mxu0 0
        %1543 = vmatpush2.bf16.xpose.msra.mxu0 0
        %1544 = vmatprep.subr.bf16.mxu0 0
        %1545 = vmatpush2.bf16.xpose.msra.mxu0 0
        %1546 = vmatprep.subr.bf16.mxu0 0
        %1547 = vmatpush2.bf16.xpose.msra.mxu0 0
        %1548 = vmatprep.subr.bf16.mxu0 0
        %1549 = vmatpush2.bf16.xpose.msra.mxu0 0
        %1550 = vmatprep.subr.bf16.mxu0 0
        %1551 = vmatpush2.bf16.xpose.msra.mxu0 0
        %1552 = vmatprep.subr.bf16.mxu0 0
        %1553 = vmatpush2.bf16.xpose.msra.mxu0 0
        %1554 = vmatprep.subr.bf16.mxu0 0
        %1555 = vmatpush2.bf16.xpose.msra.mxu0 0
        %1556 = vmatprep.subr.bf16.mxu0 0
        %1557 = vmatpush2.bf16.xpose.msra.mxu0 0
        %1558 = vmatprep.mubr.bf16.mxu0 0
        %1559 = vmatmul.mubr.bf16.gmra.mxu0 %v1521
        %v1560 = vpop.f32.mrf.mxu0
        %v1561 = vadd.f32 0.0, %v1560
        %v1562 = vpop.f32.mrf.mxu0
        %v1563 = vpop.f32.mrf.mxu0
        %v1564 = vpop.f32.mrf.mxu0
        %1565 = vdwg.mxu0
        %1566 = vrot.lane.b32.xlu0 %v844, 96
        %v1567 = vpop.permute.xlu0 %1566
        %v1569 = vsel %vm847, %v844, 0
        %v1572 = vsel %vm847, %v1567, 0
        %1574 = vmatprep.subr.bf16.mxu0 0
        %1575 = vmatpush1.bf16.xpose.msra.mxu0 0
        %1576 = vmatprep.subr.bf16.mxu0 0
        %1577 = vmatpush1.bf16.xpose.msra.mxu0 0
        %1578 = vmatprep.subr.bf16.mxu0 0
        %1579 = vmatpush1.bf16.xpose.msra.mxu0 0
        %1580 = vmatprep.subr.bf16.mxu0 0
        %1581 = vmatpush1.bf16.xpose.msra.mxu0 0
        %1582 = vmatprep.subr.bf16.mxu0 0
        %1583 = vmatpush1.bf16.xpose.msra.mxu0 0
        %1584 = vmatprep.subr.bf16.mxu0 0
        %1585 = vmatpush1.bf16.xpose.msra.mxu0 0
        %1586 = vmatprep.subr.bf16.mxu0 0
        %1587 = vmatpush1.bf16.xpose.msra.mxu0 0
        %1588 = vmatprep.subr.bf16.mxu0 0
        %1589 = vmatpush1.bf16.xpose.msra.mxu0 %v1572
        %1590 = vmatprep.subr.bf16.mxu0 0
        %1591 = vmatpush2.bf16.xpose.msra.mxu0 0
        %1592 = vmatprep.subr.bf16.mxu0 0
        %1593 = vmatpush2.bf16.xpose.msra.mxu0 0
        %1594 = vmatprep.subr.bf16.mxu0 0
        %1595 = vmatpush2.bf16.xpose.msra.mxu0 0
        %1596 = vmatprep.subr.bf16.mxu0 0
        %1597 = vmatpush2.bf16.xpose.msra.mxu0 0
        %1598 = vmatprep.subr.bf16.mxu0 0
        %1599 = vmatpush2.bf16.xpose.msra.mxu0 0
        %1600 = vmatprep.subr.bf16.mxu0 0
        %1601 = vmatpush2.bf16.xpose.msra.mxu0 0
        %1602 = vmatprep.subr.bf16.mxu0 0
        %1603 = vmatpush2.bf16.xpose.msra.mxu0 0
        %1604 = vmatprep.subr.bf16.mxu0 0
        %1605 = vmatpush2.bf16.xpose.msra.mxu0 0
        %1606 = vmatprep.mubr.bf16.mxu0 0
        %1607 = vmatmul.mubr.bf16.gmra.mxu0 %v1569
        %v1608 = vpop.f32.mrf.mxu0
        %v1609 = vadd.f32 0.0, %v1608
        %v1610 = vpop.f32.mrf.mxu0
        %v1611 = vpop.f32.mrf.mxu0
        %v1612 = vpop.f32.mrf.mxu0
        %1613 = vdwg.mxu0
        %v1614 = vmul.f32 %v889, 0.35355338
        %v1615 = vmul.f32 %v937, 0.35355338
        %v1616 = vmul.f32 %v985, 0.35355338
        %v1617 = vmul.f32 %v1033, 0.35355338
        %v1618 = vmul.f32 %v1081, 0.35355338
        %v1619 = vmul.f32 %v1129, 0.35355338
        %v1620 = vmul.f32 %v1177, 0.35355338
        %v1621 = vmul.f32 %v1225, 0.35355338
        %v1622 = vmul.f32 %v1273, 0.35355338
        %v1623 = vmul.f32 %v1321, 0.35355338
        %v1624 = vmul.f32 %v1369, 0.35355338
        %v1625 = vmul.f32 %v1417, 0.35355338
        %v1626 = vmul.f32 %v1465, 0.35355338
        %v1627 = vmul.f32 %v1513, 0.35355338
        %v1628 = vmul.f32 %v1561, 0.35355338
        %v1629 = vmul.f32 %v1609, 0.35355338
        %v1630 = vsel %vm847, %v1614, -inf
        %1631 = vmax.xlane.f32.xlu0 %v1630
        %v1632 = vpop.xlane.xlu0 %1631
        %v1633 = vsel %vm847, %v1615, -inf
        %1634 = vmax.xlane.f32.xlu0 %v1633
        %v1635 = vpop.xlane.xlu0 %1634
        %v1636 = vsel %vm847, %v1616, -inf
        %1637 = vmax.xlane.f32.xlu0 %v1636
        %v1638 = vpop.xlane.xlu0 %1637
        %v1639 = vsel %vm847, %v1617, -inf
        %1640 = vmax.xlane.f32.xlu0 %v1639
        %v1641 = vpop.xlane.xlu0 %1640
        %v1642 = vsel %vm847, %v1618, -inf
        %1643 = vmax.xlane.f32.xlu0 %v1642
        %v1644 = vpop.xlane.xlu0 %1643
        %v1645 = vsel %vm847, %v1619, -inf
        %1646 = vmax.xlane.f32.xlu0 %v1645
        %v1647 = vpop.xlane.xlu0 %1646
        %v1648 = vsel %vm847, %v1620, -inf
        %1649 = vmax.xlane.f32.xlu0 %v1648
        %v1650 = vpop.xlane.xlu0 %1649
        %v1651 = vsel %vm847, %v1621, -inf
        %1652 = vmax.xlane.f32.xlu0 %v1651
        %v1653 = vpop.xlane.xlu0 %1652
        %v1654 = vsel %vm847, %v1622, -inf
        %1655 = vmax.xlane.f32.xlu0 %v1654
        %v1656 = vpop.xlane.xlu0 %1655
        %v1657 = vsel %vm847, %v1623, -inf
        %1658 = vmax.xlane.f32.xlu0 %v1657
        %v1659 = vpop.xlane.xlu0 %1658
        %v1660 = vsel %vm847, %v1624, -inf
        %1661 = vmax.xlane.f32.xlu0 %v1660
        %v1662 = vpop.xlane.xlu0 %1661
        %v1663 = vsel %vm847, %v1625, -inf
        %1664 = vmax.xlane.f32.xlu0 %v1663
        %v1665 = vpop.xlane.xlu0 %1664
        %v1666 = vsel %vm847, %v1626, -inf
        %1667 = vmax.xlane.f32.xlu0 %v1666
        %v1668 = vpop.xlane.xlu0 %1667
        %v1669 = vsel %vm847, %v1627, -inf
        %1670 = vmax.xlane.f32.xlu0 %v1669
        %v1671 = vpop.xlane.xlu0 %1670
        %v1672 = vsel %vm847, %v1628, -inf
        %1673 = vmax.xlane.f32.xlu0 %v1672
        %v1674 = vpop.xlane.xlu0 %1673
        %v1675 = vsel %vm847, %v1629, -inf
        %1676 = vmax.xlane.f32.xlu0 %v1675
        %v1677 = vpop.xlane.xlu0 %1676
        %v1678 = vsub.f32 %v1614, %v1632
        %v1679 = vsub.f32 %v1615, %v1635
        %v1680 = vsub.f32 %v1616, %v1638
        %v1681 = vsub.f32 %v1617, %v1641
        %v1682 = vsub.f32 %v1618, %v1644
        %v1683 = vsub.f32 %v1619, %v1647
        %v1684 = vsub.f32 %v1620, %v1650
        %v1685 = vsub.f32 %v1621, %v1653
        %v1686 = vsub.f32 %v1622, %v1656
        %v1687 = vsub.f32 %v1623, %v1659
        %v1688 = vsub.f32 %v1624, %v1662
        %v1689 = vsub.f32 %v1625, %v1665
        %v1690 = vsub.f32 %v1626, %v1668
        %v1691 = vsub.f32 %v1627, %v1671
        %v1692 = vsub.f32 %v1628, %v1674
        %v1693 = vsub.f32 %v1629, %v1677
        %v1694 = vmul.f32 %v1678, 1.442695
        %v1695 = vpow.pop %v1694
        %v1696 = vmul.f32 %v1679, 1.442695
        %v1697 = vpow.pop %v1696
        %v1698 = vmul.f32 %v1680, 1.442695
        %v1699 = vpow.pop %v1698
        %v1700 = vmul.f32 %v1681, 1.442695
        %v1701 = vpow.pop %v1700
        %v1702 = vmul.f32 %v1682, 1.442695
        %v1703 = vpow.pop %v1702
        %v1704 = vmul.f32 %v1683, 1.442695
        %v1705 = vpow.pop %v1704
        %v1706 = vmul.f32 %v1684, 1.442695
        %v1707 = vpow.pop %v1706
        %v1708 = vmul.f32 %v1685, 1.442695
        %v1709 = vpow.pop %v1708
        %v1710 = vmul.f32 %v1686, 1.442695
        %v1711 = vpow.pop %v1710
        %v1712 = vmul.f32 %v1687, 1.442695
        %v1713 = vpow.pop %v1712
        %v1714 = vmul.f32 %v1688, 1.442695
        %v1715 = vpow.pop %v1714
        %v1716 = vmul.f32 %v1689, 1.442695
        %v1717 = vpow.pop %v1716
        %v1718 = vmul.f32 %v1690, 1.442695
        %v1719 = vpow.pop %v1718
        %v1720 = vmul.f32 %v1691, 1.442695
        %v1721 = vpow.pop %v1720
        %v1722 = vmul.f32 %v1692, 1.442695
        %v1723 = vpow.pop %v1722
        %v1724 = vmul.f32 %v1693, 1.442695
        %v1725 = vpow.pop %v1724
        %v1726 = vsel %vm847, %v1695, 0.0
        %1727 = vadd.xlane.f32.xlu0 %v1726
        %v1728 = vpop.xlane.xlu0 %1727
        %v1729 = vsel %vm847, %v1697, 0.0
        %1730 = vadd.xlane.f32.xlu0 %v1729
        %v1731 = vpop.xlane.xlu0 %1730
        %v1732 = vsel %vm847, %v1699, 0.0
        %1733 = vadd.xlane.f32.xlu0 %v1732
        %v1734 = vpop.xlane.xlu0 %1733
        %v1735 = vsel %vm847, %v1701, 0.0
        %1736 = vadd.xlane.f32.xlu0 %v1735
        %v1737 = vpop.xlane.xlu0 %1736
        %v1738 = vsel %vm847, %v1703, 0.0
        %1739 = vadd.xlane.f32.xlu0 %v1738
        %v1740 = vpop.xlane.xlu0 %1739
        %v1741 = vsel %vm847, %v1705, 0.0
        %1742 = vadd.xlane.f32.xlu0 %v1741
        %v1743 = vpop.xlane.xlu0 %1742
        %v1744 = vsel %vm847, %v1707, 0.0
        %1745 = vadd.xlane.f32.xlu0 %v1744
        %v1746 = vpop.xlane.xlu0 %1745
        %v1747 = vsel %vm847, %v1709, 0.0
        %1748 = vadd.xlane.f32.xlu0 %v1747
        %v1749 = vpop.xlane.xlu0 %1748
        %v1750 = vsel %vm847, %v1711, 0.0
        %1751 = vadd.xlane.f32.xlu0 %v1750
        %v1752 = vpop.xlane.xlu0 %1751
        %v1753 = vsel %vm847, %v1713, 0.0
        %1754 = vadd.xlane.f32.xlu0 %v1753
        %v1755 = vpop.xlane.xlu0 %1754
        %v1756 = vsel %vm847, %v1715, 0.0
        %1757 = vadd.xlane.f32.xlu0 %v1756
        %v1758 = vpop.xlane.xlu0 %1757
        %v1759 = vsel %vm847, %v1717, 0.0
        %1760 = vadd.xlane.f32.xlu0 %v1759
        %v1761 = vpop.xlane.xlu0 %1760
        %v1762 = vsel %vm847, %v1719, 0.0
        %1763 = vadd.xlane.f32.xlu0 %v1762
        %v1764 = vpop.xlane.xlu0 %1763
        %v1765 = vsel %vm847, %v1721, 0.0
        %1766 = vadd.xlane.f32.xlu0 %v1765
        %v1767 = vpop.xlane.xlu0 %1766
        %v1768 = vsel %vm847, %v1723, 0.0
        %1769 = vadd.xlane.f32.xlu0 %v1768
        %v1770 = vpop.xlane.xlu0 %1769
        %v1771 = vsel %vm847, %v1725, 0.0
        %1772 = vadd.xlane.f32.xlu0 %v1771
        %v1773 = vpop.xlane.xlu0 %1772
        %v1774 = vrcp.pop %v1728
        %v1775 = vrcp.pop %v1731
        %v1776 = vrcp.pop %v1734
        %v1777 = vrcp.pop %v1737
        %v1778 = vrcp.pop %v1740
        %v1779 = vrcp.pop %v1743
        %v1780 = vrcp.pop %v1746
        %v1781 = vrcp.pop %v1749
        %v1782 = vrcp.pop %v1752
        %v1783 = vrcp.pop %v1755
        %v1784 = vrcp.pop %v1758
        %v1785 = vrcp.pop %v1761
        %v1786 = vrcp.pop %v1764
        %v1787 = vrcp.pop %v1767
        %v1788 = vrcp.pop %v1770
        %v1789 = vrcp.pop %v1773
        %v1790 = vmul.f32 %v1695, %v1774
        %v1791 = vmul.f32 %v1697, %v1775
        %v1792 = vmul.f32 %v1699, %v1776
        %v1793 = vmul.f32 %v1701, %v1777
        %v1794 = vmul.f32 %v1703, %v1778
        %v1795 = vmul.f32 %v1705, %v1779
        %v1796 = vmul.f32 %v1707, %v1780
        %v1797 = vmul.f32 %v1709, %v1781
        %v1798 = vmul.f32 %v1711, %v1782
        %v1799 = vmul.f32 %v1713, %v1783
        %v1800 = vmul.f32 %v1715, %v1784
        %v1801 = vmul.f32 %v1717, %v1785
        %v1802 = vmul.f32 %v1719, %v1786
        %v1803 = vmul.f32 %v1721, %v1787
        %v1804 = vmul.f32 %v1723, %v1788
        %v1805 = vmul.f32 %v1725, %v1789
        %v1806 = vpack.c.bf16 %v1790, %v1790
        %v1807 = vpack.c.bf16 %v1791, %v1791
        %v1808 = vpack.c.bf16 %v1792, %v1792
        %v1809 = vpack.c.bf16 %v1793, %v1793
        %v1810 = vpack.c.bf16 %v1794, %v1794
        %v1811 = vpack.c.bf16 %v1795, %v1795
        %v1812 = vpack.c.bf16 %v1796, %v1796
        %v1813 = vpack.c.bf16 %v1797, %v1797
        %v1814 = vpack.c.bf16 %v1798, %v1798
        %v1815 = vpack.c.bf16 %v1799, %v1799
        %v1816 = vpack.c.bf16 %v1800, %v1800
        %v1817 = vpack.c.bf16 %v1801, %v1801
        %v1818 = vpack.c.bf16 %v1802, %v1802
        %v1819 = vpack.c.bf16 %v1803, %v1803
        %v1820 = vpack.c.bf16 %v1804, %v1804
        %v1821 = vpack.c.bf16 %v1805, %v1805
        %1822 = vrot.lane.b32.xlu0 %v829, 64
        %v1823 = vpop.permute.xlu0 %1822
        %v1825 = vsel %vm847, %v1806, 0
        %vm1827 = vcmask 1043456
        %v1829 = vsel %vm1827, %v1823, 0
        %1831 = vmatprep.subr.bf16.mxu0 0
        %1832 = vmatpush1.bf16.msra.mxu0 0
        %1833 = vmatprep.subr.bf16.mxu0 0
        %1834 = vmatpush1.bf16.msra.mxu0 0
        %1835 = vmatprep.subr.bf16.mxu0 0
        %1836 = vmatpush1.bf16.msra.mxu0 0
        %1837 = vmatprep.subr.bf16.mxu0 0
        %1838 = vmatpush1.bf16.msra.mxu0 0
        %1839 = vmatprep.subr.bf16.mxu0 0
        %1840 = vmatpush1.bf16.msra.mxu0 0
        %1841 = vmatprep.subr.bf16.mxu0 0
        %1842 = vmatpush1.bf16.msra.mxu0 0
        %1843 = vmatprep.subr.bf16.mxu0 0
        %1844 = vmatpush1.bf16.msra.mxu0 0
        %1845 = vmatprep.subr.bf16.mxu0 0
        %1846 = vmatpush1.bf16.msra.mxu0 %v1829
        %1847 = vmatprep.subr.bf16.mxu0 0
        %1848 = vmatpush2.bf16.msra.mxu0 0
        %1849 = vmatprep.subr.bf16.mxu0 0
        %1850 = vmatpush2.bf16.msra.mxu0 0
        %1851 = vmatprep.subr.bf16.mxu0 0
        %1852 = vmatpush2.bf16.msra.mxu0 0
        %1853 = vmatprep.subr.bf16.mxu0 0
        %1854 = vmatpush2.bf16.msra.mxu0 0
        %1855 = vmatprep.subr.bf16.mxu0 0
        %1856 = vmatpush2.bf16.msra.mxu0 0
        %1857 = vmatprep.subr.bf16.mxu0 0
        %1858 = vmatpush2.bf16.msra.mxu0 0
        %1859 = vmatprep.subr.bf16.mxu0 0
        %1860 = vmatpush2.bf16.msra.mxu0 0
        %1861 = vmatprep.subr.bf16.mxu0 0
        %1862 = vmatpush2.bf16.msra.mxu0 0
        %1863 = vmatprep.mubr.bf16.mxu0 0
        %1864 = vmatmul.mubr.bf16.gmra.mxu0 %v1825
        %v1865 = vpop.f32.mrf.mxu0
        %v1866 = vadd.f32 0.0, %v1865
        %v1867 = vpop.f32.mrf.mxu0
        %v1868 = vpop.f32.mrf.mxu0
        %v1869 = vpop.f32.mrf.mxu0
        %1870 = vdwg.mxu0
        %1871 = vrot.lane.b32.xlu0 %v830, 64
        %v1872 = vpop.permute.xlu0 %1871
        %v1874 = vsel %vm847, %v1807, 0
        %v1877 = vsel %vm1827, %v1872, 0
        %1879 = vmatprep.subr.bf16.mxu0 0
        %1880 = vmatpush1.bf16.msra.mxu0 0
        %1881 = vmatprep.subr.bf16.mxu0 0
        %1882 = vmatpush1.bf16.msra.mxu0 0
        %1883 = vmatprep.subr.bf16.mxu0 0
        %1884 = vmatpush1.bf16.msra.mxu0 0
        %1885 = vmatprep.subr.bf16.mxu0 0
        %1886 = vmatpush1.bf16.msra.mxu0 0
        %1887 = vmatprep.subr.bf16.mxu0 0
        %1888 = vmatpush1.bf16.msra.mxu0 0
        %1889 = vmatprep.subr.bf16.mxu0 0
        %1890 = vmatpush1.bf16.msra.mxu0 0
        %1891 = vmatprep.subr.bf16.mxu0 0
        %1892 = vmatpush1.bf16.msra.mxu0 0
        %1893 = vmatprep.subr.bf16.mxu0 0
        %1894 = vmatpush1.bf16.msra.mxu0 %v1877
        %1895 = vmatprep.subr.bf16.mxu0 0
        %1896 = vmatpush2.bf16.msra.mxu0 0
        %1897 = vmatprep.subr.bf16.mxu0 0
        %1898 = vmatpush2.bf16.msra.mxu0 0
        %1899 = vmatprep.subr.bf16.mxu0 0
        %1900 = vmatpush2.bf16.msra.mxu0 0
        %1901 = vmatprep.subr.bf16.mxu0 0
        %1902 = vmatpush2.bf16.msra.mxu0 0
        %1903 = vmatprep.subr.bf16.mxu0 0
        %1904 = vmatpush2.bf16.msra.mxu0 0
        %1905 = vmatprep.subr.bf16.mxu0 0
        %1906 = vmatpush2.bf16.msra.mxu0 0
        %1907 = vmatprep.subr.bf16.mxu0 0
        %1908 = vmatpush2.bf16.msra.mxu0 0
        %1909 = vmatprep.subr.bf16.mxu0 0
        %1910 = vmatpush2.bf16.msra.mxu0 0
        %1911 = vmatprep.mubr.bf16.mxu0 0
        %1912 = vmatmul.mubr.bf16.gmra.mxu0 %v1874
        %v1913 = vpop.f32.mrf.mxu0
        %v1914 = vadd.f32 0.0, %v1913
        %v1915 = vpop.f32.mrf.mxu0
        %v1916 = vpop.f32.mrf.mxu0
        %v1917 = vpop.f32.mrf.mxu0
        %1918 = vdwg.mxu0
        %1919 = vrot.lane.b32.xlu0 %v831, 64
        %v1920 = vpop.permute.xlu0 %1919
        %v1922 = vsel %vm847, %v1808, 0
        %v1925 = vsel %vm1827, %v1920, 0
        %1927 = vmatprep.subr.bf16.mxu0 0
        %1928 = vmatpush1.bf16.msra.mxu0 0
        %1929 = vmatprep.subr.bf16.mxu0 0
        %1930 = vmatpush1.bf16.msra.mxu0 0
        %1931 = vmatprep.subr.bf16.mxu0 0
        %1932 = vmatpush1.bf16.msra.mxu0 0
        %1933 = vmatprep.subr.bf16.mxu0 0
        %1934 = vmatpush1.bf16.msra.mxu0 0
        %1935 = vmatprep.subr.bf16.mxu0 0
        %1936 = vmatpush1.bf16.msra.mxu0 0
        %1937 = vmatprep.subr.bf16.mxu0 0
        %1938 = vmatpush1.bf16.msra.mxu0 0
        %1939 = vmatprep.subr.bf16.mxu0 0
        %1940 = vmatpush1.bf16.msra.mxu0 0
        %1941 = vmatprep.subr.bf16.mxu0 0
        %1942 = vmatpush1.bf16.msra.mxu0 %v1925
        %1943 = vmatprep.subr.bf16.mxu0 0
        %1944 = vmatpush2.bf16.msra.mxu0 0
        %1945 = vmatprep.subr.bf16.mxu0 0
        %1946 = vmatpush2.bf16.msra.mxu0 0
        %1947 = vmatprep.subr.bf16.mxu0 0
        %1948 = vmatpush2.bf16.msra.mxu0 0
        %1949 = vmatprep.subr.bf16.mxu0 0
        %1950 = vmatpush2.bf16.msra.mxu0 0
        %1951 = vmatprep.subr.bf16.mxu0 0
        %1952 = vmatpush2.bf16.msra.mxu0 0
        %1953 = vmatprep.subr.bf16.mxu0 0
        %1954 = vmatpush2.bf16.msra.mxu0 0
        %1955 = vmatprep.subr.bf16.mxu0 0
        %1956 = vmatpush2.bf16.msra.mxu0 0
        %1957 = vmatprep.subr.bf16.mxu0 0
        %1958 = vmatpush2.bf16.msra.mxu0 0
        %1959 = vmatprep.mubr.bf16.mxu0 0
        %1960 = vmatmul.mubr.bf16.gmra.mxu0 %v1922
        %v1961 = vpop.f32.mrf.mxu0
        %v1962 = vadd.f32 0.0, %v1961
        %v1963 = vpop.f32.mrf.mxu0
        %v1964 = vpop.f32.mrf.mxu0
        %v1965 = vpop.f32.mrf.mxu0
        %1966 = vdwg.mxu0
        %1967 = vrot.lane.b32.xlu0 %v832, 64
        %v1968 = vpop.permute.xlu0 %1967
        %v1970 = vsel %vm847, %v1809, 0
        %v1973 = vsel %vm1827, %v1968, 0
        %1975 = vmatprep.subr.bf16.mxu0 0
        %1976 = vmatpush1.bf16.msra.mxu0 0
        %1977 = vmatprep.subr.bf16.mxu0 0
        %1978 = vmatpush1.bf16.msra.mxu0 0
        %1979 = vmatprep.subr.bf16.mxu0 0
        %1980 = vmatpush1.bf16.msra.mxu0 0
        %1981 = vmatprep.subr.bf16.mxu0 0
        %1982 = vmatpush1.bf16.msra.mxu0 0
        %1983 = vmatprep.subr.bf16.mxu0 0
        %1984 = vmatpush1.bf16.msra.mxu0 0
        %1985 = vmatprep.subr.bf16.mxu0 0
        %1986 = vmatpush1.bf16.msra.mxu0 0
        %1987 = vmatprep.subr.bf16.mxu0 0
        %1988 = vmatpush1.bf16.msra.mxu0 0
        %1989 = vmatprep.subr.bf16.mxu0 0
        %1990 = vmatpush1.bf16.msra.mxu0 %v1973
        %1991 = vmatprep.subr.bf16.mxu0 0
        %1992 = vmatpush2.bf16.msra.mxu0 0
        %1993 = vmatprep.subr.bf16.mxu0 0
        %1994 = vmatpush2.bf16.msra.mxu0 0
        %1995 = vmatprep.subr.bf16.mxu0 0
        %1996 = vmatpush2.bf16.msra.mxu0 0
        %1997 = vmatprep.subr.bf16.mxu0 0
        %1998 = vmatpush2.bf16.msra.mxu0 0
        %1999 = vmatprep.subr.bf16.mxu0 0
        %2000 = vmatpush2.bf16.msra.mxu0 0
        %2001 = vmatprep.subr.bf16.mxu0 0
        %2002 = vmatpush2.bf16.msra.mxu0 0
        %2003 = vmatprep.subr.bf16.mxu0 0
        %2004 = vmatpush2.bf16.msra.mxu0 0
        %2005 = vmatprep.subr.bf16.mxu0 0
        %2006 = vmatpush2.bf16.msra.mxu0 0
        %2007 = vmatprep.mubr.bf16.mxu0 0
        %2008 = vmatmul.mubr.bf16.gmra.mxu0 %v1970
        %v2009 = vpop.f32.mrf.mxu0
        %v2010 = vadd.f32 0.0, %v2009
        %v2011 = vpop.f32.mrf.mxu0
        %v2012 = vpop.f32.mrf.mxu0
        %v2013 = vpop.f32.mrf.mxu0
        %2014 = vdwg.mxu0
        %2015 = vrot.lane.b32.xlu0 %v833, 64
        %v2016 = vpop.permute.xlu0 %2015
        %v2018 = vsel %vm847, %v1810, 0
        %v2021 = vsel %vm1827, %v2016, 0
        %2023 = vmatprep.subr.bf16.mxu0 0
        %2024 = vmatpush1.bf16.msra.mxu0 0
        %2025 = vmatprep.subr.bf16.mxu0 0
        %2026 = vmatpush1.bf16.msra.mxu0 0
        %2027 = vmatprep.subr.bf16.mxu0 0
        %2028 = vmatpush1.bf16.msra.mxu0 0
        %2029 = vmatprep.subr.bf16.mxu0 0
        %2030 = vmatpush1.bf16.msra.mxu0 0
        %2031 = vmatprep.subr.bf16.mxu0 0
        %2032 = vmatpush1.bf16.msra.mxu0 0
        %2033 = vmatprep.subr.bf16.mxu0 0
        %2034 = vmatpush1.bf16.msra.mxu0 0
        %2035 = vmatprep.subr.bf16.mxu0 0
        %2036 = vmatpush1.bf16.msra.mxu0 0
        %2037 = vmatprep.subr.bf16.mxu0 0
        %2038 = vmatpush1.bf16.msra.mxu0 %v2021
        %2039 = vmatprep.subr.bf16.mxu0 0
        %2040 = vmatpush2.bf16.msra.mxu0 0
        %2041 = vmatprep.subr.bf16.mxu0 0
        %2042 = vmatpush2.bf16.msra.mxu0 0
        %2043 = vmatprep.subr.bf16.mxu0 0
        %2044 = vmatpush2.bf16.msra.mxu0 0
        %2045 = vmatprep.subr.bf16.mxu0 0
        %2046 = vmatpush2.bf16.msra.mxu0 0
        %2047 = vmatprep.subr.bf16.mxu0 0
        %2048 = vmatpush2.bf16.msra.mxu0 0
        %2049 = vmatprep.subr.bf16.mxu0 0
        %2050 = vmatpush2.bf16.msra.mxu0 0
        %2051 = vmatprep.subr.bf16.mxu0 0
        %2052 = vmatpush2.bf16.msra.mxu0 0
        %2053 = vmatprep.subr.bf16.mxu0 0
        %2054 = vmatpush2.bf16.msra.mxu0 0
        %2055 = vmatprep.mubr.bf16.mxu0 0
        %2056 = vmatmul.mubr.bf16.gmra.mxu0 %v2018
        %v2057 = vpop.f32.mrf.mxu0
        %v2058 = vadd.f32 0.0, %v2057
        %v2059 = vpop.f32.mrf.mxu0
        %v2060 = vpop.f32.mrf.mxu0
        %v2061 = vpop.f32.mrf.mxu0
        %2062 = vdwg.mxu0
        %2063 = vrot.lane.b32.xlu0 %v834, 64
        %v2064 = vpop.permute.xlu0 %2063
        %v2066 = vsel %vm847, %v1811, 0
        %v2069 = vsel %vm1827, %v2064, 0
        %2071 = vmatprep.subr.bf16.mxu0 0
        %2072 = vmatpush1.bf16.msra.mxu0 0
        %2073 = vmatprep.subr.bf16.mxu0 0
        %2074 = vmatpush1.bf16.msra.mxu0 0
        %2075 = vmatprep.subr.bf16.mxu0 0
        %2076 = vmatpush1.bf16.msra.mxu0 0
        %2077 = vmatprep.subr.bf16.mxu0 0
        %2078 = vmatpush1.bf16.msra.mxu0 0
        %2079 = vmatprep.subr.bf16.mxu0 0
        %2080 = vmatpush1.bf16.msra.mxu0 0
        %2081 = vmatprep.subr.bf16.mxu0 0
        %2082 = vmatpush1.bf16.msra.mxu0 0
        %2083 = vmatprep.subr.bf16.mxu0 0
        %2084 = vmatpush1.bf16.msra.mxu0 0
        %2085 = vmatprep.subr.bf16.mxu0 0
        %2086 = vmatpush1.bf16.msra.mxu0 %v2069
        %2087 = vmatprep.subr.bf16.mxu0 0
        %2088 = vmatpush2.bf16.msra.mxu0 0
        %2089 = vmatprep.subr.bf16.mxu0 0
        %2090 = vmatpush2.bf16.msra.mxu0 0
        %2091 = vmatprep.subr.bf16.mxu0 0
        %2092 = vmatpush2.bf16.msra.mxu0 0
        %2093 = vmatprep.subr.bf16.mxu0 0
        %2094 = vmatpush2.bf16.msra.mxu0 0
        %2095 = vmatprep.subr.bf16.mxu0 0
        %2096 = vmatpush2.bf16.msra.mxu0 0
        %2097 = vmatprep.subr.bf16.mxu0 0
        %2098 = vmatpush2.bf16.msra.mxu0 0
        %2099 = vmatprep.subr.bf16.mxu0 0
        %2100 = vmatpush2.bf16.msra.mxu0 0
        %2101 = vmatprep.subr.bf16.mxu0 0
        %2102 = vmatpush2.bf16.msra.mxu0 0
        %2103 = vmatprep.mubr.bf16.mxu0 0
        %2104 = vmatmul.mubr.bf16.gmra.mxu0 %v2066
        %v2105 = vpop.f32.mrf.mxu0
        %v2106 = vadd.f32 0.0, %v2105
        %v2107 = vpop.f32.mrf.mxu0
        %v2108 = vpop.f32.mrf.mxu0
        %v2109 = vpop.f32.mrf.mxu0
        %2110 = vdwg.mxu0
        %2111 = vrot.lane.b32.xlu0 %v835, 64
        %v2112 = vpop.permute.xlu0 %2111
        %v2114 = vsel %vm847, %v1812, 0
        %v2117 = vsel %vm1827, %v2112, 0
        %2119 = vmatprep.subr.bf16.mxu0 0
        %2120 = vmatpush1.bf16.msra.mxu0 0
        %2121 = vmatprep.subr.bf16.mxu0 0
        %2122 = vmatpush1.bf16.msra.mxu0 0
        %2123 = vmatprep.subr.bf16.mxu0 0
        %2124 = vmatpush1.bf16.msra.mxu0 0
        %2125 = vmatprep.subr.bf16.mxu0 0
        %2126 = vmatpush1.bf16.msra.mxu0 0
        %2127 = vmatprep.subr.bf16.mxu0 0
        %2128 = vmatpush1.bf16.msra.mxu0 0
        %2129 = vmatprep.subr.bf16.mxu0 0
        %2130 = vmatpush1.bf16.msra.mxu0 0
        %2131 = vmatprep.subr.bf16.mxu0 0
        %2132 = vmatpush1.bf16.msra.mxu0 0
        %2133 = vmatprep.subr.bf16.mxu0 0
        %2134 = vmatpush1.bf16.msra.mxu0 %v2117
        %2135 = vmatprep.subr.bf16.mxu0 0
        %2136 = vmatpush2.bf16.msra.mxu0 0
        %2137 = vmatprep.subr.bf16.mxu0 0
        %2138 = vmatpush2.bf16.msra.mxu0 0
        %2139 = vmatprep.subr.bf16.mxu0 0
        %2140 = vmatpush2.bf16.msra.mxu0 0
        %2141 = vmatprep.subr.bf16.mxu0 0
        %2142 = vmatpush2.bf16.msra.mxu0 0
        %2143 = vmatprep.subr.bf16.mxu0 0
        %2144 = vmatpush2.bf16.msra.mxu0 0
        %2145 = vmatprep.subr.bf16.mxu0 0
        %2146 = vmatpush2.bf16.msra.mxu0 0
        %2147 = vmatprep.subr.bf16.mxu0 0
        %2148 = vmatpush2.bf16.msra.mxu0 0
        %2149 = vmatprep.subr.bf16.mxu0 0
        %2150 = vmatpush2.bf16.msra.mxu0 0
        %2151 = vmatprep.mubr.bf16.mxu0 0
        %2152 = vmatmul.mubr.bf16.gmra.mxu0 %v2114
        %v2153 = vpop.f32.mrf.mxu0
        %v2154 = vadd.f32 0.0, %v2153
        %v2155 = vpop.f32.mrf.mxu0
        %v2156 = vpop.f32.mrf.mxu0
        %v2157 = vpop.f32.mrf.mxu0
        %2158 = vdwg.mxu0
        %2159 = vrot.lane.b32.xlu0 %v836, 64
        %v2160 = vpop.permute.xlu0 %2159
        %v2162 = vsel %vm847, %v1813, 0
        %v2165 = vsel %vm1827, %v2160, 0
        %2167 = vmatprep.subr.bf16.mxu0 0
        %2168 = vmatpush1.bf16.msra.mxu0 0
        %2169 = vmatprep.subr.bf16.mxu0 0
        %2170 = vmatpush1.bf16.msra.mxu0 0
        %2171 = vmatprep.subr.bf16.mxu0 0
        %2172 = vmatpush1.bf16.msra.mxu0 0
        %2173 = vmatprep.subr.bf16.mxu0 0
        %2174 = vmatpush1.bf16.msra.mxu0 0
        %2175 = vmatprep.subr.bf16.mxu0 0
        %2176 = vmatpush1.bf16.msra.mxu0 0
        %2177 = vmatprep.subr.bf16.mxu0 0
        %2178 = vmatpush1.bf16.msra.mxu0 0
        %2179 = vmatprep.subr.bf16.mxu0 0
        %2180 = vmatpush1.bf16.msra.mxu0 0
        %2181 = vmatprep.subr.bf16.mxu0 0
        %2182 = vmatpush1.bf16.msra.mxu0 %v2165
        %2183 = vmatprep.subr.bf16.mxu0 0
        %2184 = vmatpush2.bf16.msra.mxu0 0
        %2185 = vmatprep.subr.bf16.mxu0 0
        %2186 = vmatpush2.bf16.msra.mxu0 0
        %2187 = vmatprep.subr.bf16.mxu0 0
        %2188 = vmatpush2.bf16.msra.mxu0 0
        %2189 = vmatprep.subr.bf16.mxu0 0
        %2190 = vmatpush2.bf16.msra.mxu0 0
        %2191 = vmatprep.subr.bf16.mxu0 0
        %2192 = vmatpush2.bf16.msra.mxu0 0
        %2193 = vmatprep.subr.bf16.mxu0 0
        %2194 = vmatpush2.bf16.msra.mxu0 0
        %2195 = vmatprep.subr.bf16.mxu0 0
        %2196 = vmatpush2.bf16.msra.mxu0 0
        %2197 = vmatprep.subr.bf16.mxu0 0
        %2198 = vmatpush2.bf16.msra.mxu0 0
        %2199 = vmatprep.mubr.bf16.mxu0 0
        %2200 = vmatmul.mubr.bf16.gmra.mxu0 %v2162
        %v2201 = vpop.f32.mrf.mxu0
        %v2202 = vadd.f32 0.0, %v2201
        %v2203 = vpop.f32.mrf.mxu0
        %v2204 = vpop.f32.mrf.mxu0
        %v2205 = vpop.f32.mrf.mxu0
        %2206 = vdwg.mxu0
        %2207 = vrot.lane.b32.xlu0 %v837, 64
        %v2208 = vpop.permute.xlu0 %2207
        %v2210 = vsel %vm847, %v1814, 0
        %v2213 = vsel %vm1827, %v2208, 0
        %2215 = vmatprep.subr.bf16.mxu0 0
        %2216 = vmatpush1.bf16.msra.mxu0 0
        %2217 = vmatprep.subr.bf16.mxu0 0
        %2218 = vmatpush1.bf16.msra.mxu0 0
        %2219 = vmatprep.subr.bf16.mxu0 0
        %2220 = vmatpush1.bf16.msra.mxu0 0
        %2221 = vmatprep.subr.bf16.mxu0 0
        %2222 = vmatpush1.bf16.msra.mxu0 0
        %2223 = vmatprep.subr.bf16.mxu0 0
        %2224 = vmatpush1.bf16.msra.mxu0 0
        %2225 = vmatprep.subr.bf16.mxu0 0
        %2226 = vmatpush1.bf16.msra.mxu0 0
        %2227 = vmatprep.subr.bf16.mxu0 0
        %2228 = vmatpush1.bf16.msra.mxu0 0
        %2229 = vmatprep.subr.bf16.mxu0 0
        %2230 = vmatpush1.bf16.msra.mxu0 %v2213
        %2231 = vmatprep.subr.bf16.mxu0 0
        %2232 = vmatpush2.bf16.msra.mxu0 0
        %2233 = vmatprep.subr.bf16.mxu0 0
        %2234 = vmatpush2.bf16.msra.mxu0 0
        %2235 = vmatprep.subr.bf16.mxu0 0
        %2236 = vmatpush2.bf16.msra.mxu0 0
        %2237 = vmatprep.subr.bf16.mxu0 0
        %2238 = vmatpush2.bf16.msra.mxu0 0
        %2239 = vmatprep.subr.bf16.mxu0 0
        %2240 = vmatpush2.bf16.msra.mxu0 0
        %2241 = vmatprep.subr.bf16.mxu0 0
        %2242 = vmatpush2.bf16.msra.mxu0 0
        %2243 = vmatprep.subr.bf16.mxu0 0
        %2244 = vmatpush2.bf16.msra.mxu0 0
        %2245 = vmatprep.subr.bf16.mxu0 0
        %2246 = vmatpush2.bf16.msra.mxu0 0
        %2247 = vmatprep.mubr.bf16.mxu0 0
        %2248 = vmatmul.mubr.bf16.gmra.mxu0 %v2210
        %v2249 = vpop.f32.mrf.mxu0
        %v2250 = vadd.f32 0.0, %v2249
        %v2251 = vpop.f32.mrf.mxu0
        %v2252 = vpop.f32.mrf.mxu0
        %v2253 = vpop.f32.mrf.mxu0
        %2254 = vdwg.mxu0
        %2255 = vrot.lane.b32.xlu0 %v838, 64
        %v2256 = vpop.permute.xlu0 %2255
        %v2258 = vsel %vm847, %v1815, 0
        %v2261 = vsel %vm1827, %v2256, 0
        %2263 = vmatprep.subr.bf16.mxu0 0
        %2264 = vmatpush1.bf16.msra.mxu0 0
        %2265 = vmatprep.subr.bf16.mxu0 0
        %2266 = vmatpush1.bf16.msra.mxu0 0
        %2267 = vmatprep.subr.bf16.mxu0 0
        %2268 = vmatpush1.bf16.msra.mxu0 0
        %2269 = vmatprep.subr.bf16.mxu0 0
        %2270 = vmatpush1.bf16.msra.mxu0 0
        %2271 = vmatprep.subr.bf16.mxu0 0
        %2272 = vmatpush1.bf16.msra.mxu0 0
        %2273 = vmatprep.subr.bf16.mxu0 0
        %2274 = vmatpush1.bf16.msra.mxu0 0
        %2275 = vmatprep.subr.bf16.mxu0 0
        %2276 = vmatpush1.bf16.msra.mxu0 0
        %2277 = vmatprep.subr.bf16.mxu0 0
        %2278 = vmatpush1.bf16.msra.mxu0 %v2261
        %2279 = vmatprep.subr.bf16.mxu0 0
        %2280 = vmatpush2.bf16.msra.mxu0 0
        %2281 = vmatprep.subr.bf16.mxu0 0
        %2282 = vmatpush2.bf16.msra.mxu0 0
        %2283 = vmatprep.subr.bf16.mxu0 0
        %2284 = vmatpush2.bf16.msra.mxu0 0
        %2285 = vmatprep.subr.bf16.mxu0 0
        %2286 = vmatpush2.bf16.msra.mxu0 0
        %2287 = vmatprep.subr.bf16.mxu0 0
        %2288 = vmatpush2.bf16.msra.mxu0 0
        %2289 = vmatprep.subr.bf16.mxu0 0
        %2290 = vmatpush2.bf16.msra.mxu0 0
        %2291 = vmatprep.subr.bf16.mxu0 0
        %2292 = vmatpush2.bf16.msra.mxu0 0
        %2293 = vmatprep.subr.bf16.mxu0 0
        %2294 = vmatpush2.bf16.msra.mxu0 0
        %2295 = vmatprep.mubr.bf16.mxu0 0
        %2296 = vmatmul.mubr.bf16.gmra.mxu0 %v2258
        %v2297 = vpop.f32.mrf.mxu0
        %v2298 = vadd.f32 0.0, %v2297
        %v2299 = vpop.f32.mrf.mxu0
        %v2300 = vpop.f32.mrf.mxu0
        %v2301 = vpop.f32.mrf.mxu0
        %2302 = vdwg.mxu0
        %2303 = vrot.lane.b32.xlu0 %v839, 64
        %v2304 = vpop.permute.xlu0 %2303
        %v2306 = vsel %vm847, %v1816, 0
        %v2309 = vsel %vm1827, %v2304, 0
        %2311 = vmatprep.subr.bf16.mxu0 0
        %2312 = vmatpush1.bf16.msra.mxu0 0
        %2313 = vmatprep.subr.bf16.mxu0 0
        %2314 = vmatpush1.bf16.msra.mxu0 0
        %2315 = vmatprep.subr.bf16.mxu0 0
        %2316 = vmatpush1.bf16.msra.mxu0 0
        %2317 = vmatprep.subr.bf16.mxu0 0
        %2318 = vmatpush1.bf16.msra.mxu0 0
        %2319 = vmatprep.subr.bf16.mxu0 0
        %2320 = vmatpush1.bf16.msra.mxu0 0
        %2321 = vmatprep.subr.bf16.mxu0 0
        %2322 = vmatpush1.bf16.msra.mxu0 0
        %2323 = vmatprep.subr.bf16.mxu0 0
        %2324 = vmatpush1.bf16.msra.mxu0 0
        %2325 = vmatprep.subr.bf16.mxu0 0
        %2326 = vmatpush1.bf16.msra.mxu0 %v2309
        %2327 = vmatprep.subr.bf16.mxu0 0
        %2328 = vmatpush2.bf16.msra.mxu0 0
        %2329 = vmatprep.subr.bf16.mxu0 0
        %2330 = vmatpush2.bf16.msra.mxu0 0
        %2331 = vmatprep.subr.bf16.mxu0 0
        %2332 = vmatpush2.bf16.msra.mxu0 0
        %2333 = vmatprep.subr.bf16.mxu0 0
        %2334 = vmatpush2.bf16.msra.mxu0 0
        %2335 = vmatprep.subr.bf16.mxu0 0
        %2336 = vmatpush2.bf16.msra.mxu0 0
        %2337 = vmatprep.subr.bf16.mxu0 0
        %2338 = vmatpush2.bf16.msra.mxu0 0
        %2339 = vmatprep.subr.bf16.mxu0 0
        %2340 = vmatpush2.bf16.msra.mxu0 0
        %2341 = vmatprep.subr.bf16.mxu0 0
        %2342 = vmatpush2.bf16.msra.mxu0 0
        %2343 = vmatprep.mubr.bf16.mxu0 0
        %2344 = vmatmul.mubr.bf16.gmra.mxu0 %v2306
        %v2345 = vpop.f32.mrf.mxu0
        %v2346 = vadd.f32 0.0, %v2345
        %v2347 = vpop.f32.mrf.mxu0
        %v2348 = vpop.f32.mrf.mxu0
        %v2349 = vpop.f32.mrf.mxu0
        %2350 = vdwg.mxu0
        %2351 = vrot.lane.b32.xlu0 %v840, 64
        %v2352 = vpop.permute.xlu0 %2351
        %v2354 = vsel %vm847, %v1817, 0
        %v2357 = vsel %vm1827, %v2352, 0
        %2359 = vmatprep.subr.bf16.mxu0 0
        %2360 = vmatpush1.bf16.msra.mxu0 0
        %2361 = vmatprep.subr.bf16.mxu0 0
        %2362 = vmatpush1.bf16.msra.mxu0 0
        %2363 = vmatprep.subr.bf16.mxu0 0
        %2364 = vmatpush1.bf16.msra.mxu0 0
        %2365 = vmatprep.subr.bf16.mxu0 0
        %2366 = vmatpush1.bf16.msra.mxu0 0
        %2367 = vmatprep.subr.bf16.mxu0 0
        %2368 = vmatpush1.bf16.msra.mxu0 0
        %2369 = vmatprep.subr.bf16.mxu0 0
        %2370 = vmatpush1.bf16.msra.mxu0 0
        %2371 = vmatprep.subr.bf16.mxu0 0
        %2372 = vmatpush1.bf16.msra.mxu0 0
        %2373 = vmatprep.subr.bf16.mxu0 0
        %2374 = vmatpush1.bf16.msra.mxu0 %v2357
        %2375 = vmatprep.subr.bf16.mxu0 0
        %2376 = vmatpush2.bf16.msra.mxu0 0
        %2377 = vmatprep.subr.bf16.mxu0 0
        %2378 = vmatpush2.bf16.msra.mxu0 0
        %2379 = vmatprep.subr.bf16.mxu0 0
        %2380 = vmatpush2.bf16.msra.mxu0 0
        %2381 = vmatprep.subr.bf16.mxu0 0
        %2382 = vmatpush2.bf16.msra.mxu0 0
        %2383 = vmatprep.subr.bf16.mxu0 0
        %2384 = vmatpush2.bf16.msra.mxu0 0
        %2385 = vmatprep.subr.bf16.mxu0 0
        %2386 = vmatpush2.bf16.msra.mxu0 0
        %2387 = vmatprep.subr.bf16.mxu0 0
        %2388 = vmatpush2.bf16.msra.mxu0 0
        %2389 = vmatprep.subr.bf16.mxu0 0
        %2390 = vmatpush2.bf16.msra.mxu0 0
        %2391 = vmatprep.mubr.bf16.mxu0 0
        %2392 = vmatmul.mubr.bf16.gmra.mxu0 %v2354
        %v2393 = vpop.f32.mrf.mxu0
        %v2394 = vadd.f32 0.0, %v2393
        %v2395 = vpop.f32.mrf.mxu0
        %v2396 = vpop.f32.mrf.mxu0
        %v2397 = vpop.f32.mrf.mxu0
        %2398 = vdwg.mxu0
        %2399 = vrot.lane.b32.xlu0 %v841, 64
        %v2400 = vpop.permute.xlu0 %2399
        %v2402 = vsel %vm847, %v1818, 0
        %v2405 = vsel %vm1827, %v2400, 0
        %2407 = vmatprep.subr.bf16.mxu0 0
        %2408 = vmatpush1.bf16.msra.mxu0 0
        %2409 = vmatprep.subr.bf16.mxu0 0
        %2410 = vmatpush1.bf16.msra.mxu0 0
        %2411 = vmatprep.subr.bf16.mxu0 0
        %2412 = vmatpush1.bf16.msra.mxu0 0
        %2413 = vmatprep.subr.bf16.mxu0 0
        %2414 = vmatpush1.bf16.msra.mxu0 0
        %2415 = vmatprep.subr.bf16.mxu0 0
        %2416 = vmatpush1.bf16.msra.mxu0 0
        %2417 = vmatprep.subr.bf16.mxu0 0
        %2418 = vmatpush1.bf16.msra.mxu0 0
        %2419 = vmatprep.subr.bf16.mxu0 0
        %2420 = vmatpush1.bf16.msra.mxu0 0
        %2421 = vmatprep.subr.bf16.mxu0 0
        %2422 = vmatpush1.bf16.msra.mxu0 %v2405
        %2423 = vmatprep.subr.bf16.mxu0 0
        %2424 = vmatpush2.bf16.msra.mxu0 0
        %2425 = vmatprep.subr.bf16.mxu0 0
        %2426 = vmatpush2.bf16.msra.mxu0 0
        %2427 = vmatprep.subr.bf16.mxu0 0
        %2428 = vmatpush2.bf16.msra.mxu0 0
        %2429 = vmatprep.subr.bf16.mxu0 0
        %2430 = vmatpush2.bf16.msra.mxu0 0
        %2431 = vmatprep.subr.bf16.mxu0 0
        %2432 = vmatpush2.bf16.msra.mxu0 0
        %2433 = vmatprep.subr.bf16.mxu0 0
        %2434 = vmatpush2.bf16.msra.mxu0 0
        %2435 = vmatprep.subr.bf16.mxu0 0
        %2436 = vmatpush2.bf16.msra.mxu0 0
        %2437 = vmatprep.subr.bf16.mxu0 0
        %2438 = vmatpush2.bf16.msra.mxu0 0
        %2439 = vmatprep.mubr.bf16.mxu0 0
        %2440 = vmatmul.mubr.bf16.gmra.mxu0 %v2402
        %v2441 = vpop.f32.mrf.mxu0
        %v2442 = vadd.f32 0.0, %v2441
        %v2443 = vpop.f32.mrf.mxu0
        %v2444 = vpop.f32.mrf.mxu0
        %v2445 = vpop.f32.mrf.mxu0
        %2446 = vdwg.mxu0
        %2447 = vrot.lane.b32.xlu0 %v842, 64
        %v2448 = vpop.permute.xlu0 %2447
        %v2450 = vsel %vm847, %v1819, 0
        %v2453 = vsel %vm1827, %v2448, 0
        %2455 = vmatprep.subr.bf16.mxu0 0
        %2456 = vmatpush1.bf16.msra.mxu0 0
        %2457 = vmatprep.subr.bf16.mxu0 0
        %2458 = vmatpush1.bf16.msra.mxu0 0
        %2459 = vmatprep.subr.bf16.mxu0 0
        %2460 = vmatpush1.bf16.msra.mxu0 0
        %2461 = vmatprep.subr.bf16.mxu0 0
        %2462 = vmatpush1.bf16.msra.mxu0 0
        %2463 = vmatprep.subr.bf16.mxu0 0
        %2464 = vmatpush1.bf16.msra.mxu0 0
        %2465 = vmatprep.subr.bf16.mxu0 0
        %2466 = vmatpush1.bf16.msra.mxu0 0
        %2467 = vmatprep.subr.bf16.mxu0 0
        %2468 = vmatpush1.bf16.msra.mxu0 0
        %2469 = vmatprep.subr.bf16.mxu0 0
        %2470 = vmatpush1.bf16.msra.mxu0 %v2453
        %2471 = vmatprep.subr.bf16.mxu0 0
        %2472 = vmatpush2.bf16.msra.mxu0 0
        %2473 = vmatprep.subr.bf16.mxu0 0
        %2474 = vmatpush2.bf16.msra.mxu0 0
        %2475 = vmatprep.subr.bf16.mxu0 0
        %2476 = vmatpush2.bf16.msra.mxu0 0
        %2477 = vmatprep.subr.bf16.mxu0 0
        %2478 = vmatpush2.bf16.msra.mxu0 0
        %2479 = vmatprep.subr.bf16.mxu0 0
        %2480 = vmatpush2.bf16.msra.mxu0 0
        %2481 = vmatprep.subr.bf16.mxu0 0
        %2482 = vmatpush2.bf16.msra.mxu0 0
        %2483 = vmatprep.subr.bf16.mxu0 0
        %2484 = vmatpush2.bf16.msra.mxu0 0
        %2485 = vmatprep.subr.bf16.mxu0 0
        %2486 = vmatpush2.bf16.msra.mxu0 0
        %2487 = vmatprep.mubr.bf16.mxu0 0
        %2488 = vmatmul.mubr.bf16.gmra.mxu0 %v2450
        %v2489 = vpop.f32.mrf.mxu0
        %v2490 = vadd.f32 0.0, %v2489
        %v2491 = vpop.f32.mrf.mxu0
        %v2492 = vpop.f32.mrf.mxu0
        %v2493 = vpop.f32.mrf.mxu0
        %2494 = vdwg.mxu0
        %2495 = vrot.lane.b32.xlu0 %v843, 64
        %v2496 = vpop.permute.xlu0 %2495
        %v2498 = vsel %vm847, %v1820, 0
        %v2501 = vsel %vm1827, %v2496, 0
        %2503 = vmatprep.subr.bf16.mxu0 0
        %2504 = vmatpush1.bf16.msra.mxu0 0
        %2505 = vmatprep.subr.bf16.mxu0 0
        %2506 = vmatpush1.bf16.msra.mxu0 0
        %2507 = vmatprep.subr.bf16.mxu0 0
        %2508 = vmatpush1.bf16.msra.mxu0 0
        %2509 = vmatprep.subr.bf16.mxu0 0
        %2510 = vmatpush1.bf16.msra.mxu0 0
        %2511 = vmatprep.subr.bf16.mxu0 0
        %2512 = vmatpush1.bf16.msra.mxu0 0
        %2513 = vmatprep.subr.bf16.mxu0 0
        %2514 = vmatpush1.bf16.msra.mxu0 0
        %2515 = vmatprep.subr.bf16.mxu0 0
        %2516 = vmatpush1.bf16.msra.mxu0 0
        %2517 = vmatprep.subr.bf16.mxu0 0
        %2518 = vmatpush1.bf16.msra.mxu0 %v2501
        %2519 = vmatprep.subr.bf16.mxu0 0
        %2520 = vmatpush2.bf16.msra.mxu0 0
        %2521 = vmatprep.subr.bf16.mxu0 0
        %2522 = vmatpush2.bf16.msra.mxu0 0
        %2523 = vmatprep.subr.bf16.mxu0 0
        %2524 = vmatpush2.bf16.msra.mxu0 0
        %2525 = vmatprep.subr.bf16.mxu0 0
        %2526 = vmatpush2.bf16.msra.mxu0 0
        %2527 = vmatprep.subr.bf16.mxu0 0
        %2528 = vmatpush2.bf16.msra.mxu0 0
        %2529 = vmatprep.subr.bf16.mxu0 0
        %2530 = vmatpush2.bf16.msra.mxu0 0
        %2531 = vmatprep.subr.bf16.mxu0 0
        %2532 = vmatpush2.bf16.msra.mxu0 0
        %2533 = vmatprep.subr.bf16.mxu0 0
        %2534 = vmatpush2.bf16.msra.mxu0 0
        %2535 = vmatprep.mubr.bf16.mxu0 0
        %2536 = vmatmul.mubr.bf16.gmra.mxu0 %v2498
        %v2537 = vpop.f32.mrf.mxu0
        %v2538 = vadd.f32 0.0, %v2537
        %v2539 = vpop.f32.mrf.mxu0
        %v2540 = vpop.f32.mrf.mxu0
        %v2541 = vpop.f32.mrf.mxu0
        %2542 = vdwg.mxu0
        %2543 = vrot.lane.b32.xlu0 %v844, 64
        %v2544 = vpop.permute.xlu0 %2543
        %v2546 = vsel %vm847, %v1821, 0
        %v2549 = vsel %vm1827, %v2544, 0
        %2551 = vmatprep.subr.bf16.mxu0 0
        %2552 = vmatpush1.bf16.msra.mxu0 0
        %2553 = vmatprep.subr.bf16.mxu0 0
        %2554 = vmatpush1.bf16.msra.mxu0 0
        %2555 = vmatprep.subr.bf16.mxu0 0
        %2556 = vmatpush1.bf16.msra.mxu0 0
        %2557 = vmatprep.subr.bf16.mxu0 0
        %2558 = vmatpush1.bf16.msra.mxu0 0
        %2559 = vmatprep.subr.bf16.mxu0 0
        %2560 = vmatpush1.bf16.msra.mxu0 0
        %2561 = vmatprep.subr.bf16.mxu0 0
        %2562 = vmatpush1.bf16.msra.mxu0 0
        %2563 = vmatprep.subr.bf16.mxu0 0
        %2564 = vmatpush1.bf16.msra.mxu0 0
        %2565 = vmatprep.subr.bf16.mxu0 0
        %2566 = vmatpush1.bf16.msra.mxu0 %v2549
        %2567 = vmatprep.subr.bf16.mxu0 0
        %2568 = vmatpush2.bf16.msra.mxu0 0
        %2569 = vmatprep.subr.bf16.mxu0 0
        %2570 = vmatpush2.bf16.msra.mxu0 0
        %2571 = vmatprep.subr.bf16.mxu0 0
        %2572 = vmatpush2.bf16.msra.mxu0 0
        %2573 = vmatprep.subr.bf16.mxu0 0
        %2574 = vmatpush2.bf16.msra.mxu0 0
        %2575 = vmatprep.subr.bf16.mxu0 0
        %2576 = vmatpush2.bf16.msra.mxu0 0
        %2577 = vmatprep.subr.bf16.mxu0 0
        %2578 = vmatpush2.bf16.msra.mxu0 0
        %2579 = vmatprep.subr.bf16.mxu0 0
        %2580 = vmatpush2.bf16.msra.mxu0 0
        %2581 = vmatprep.subr.bf16.mxu0 0
        %2582 = vmatpush2.bf16.msra.mxu0 0
        %2583 = vmatprep.mubr.bf16.mxu0 0
        %2584 = vmatmul.mubr.bf16.gmra.mxu0 %v2546
        %v2585 = vpop.f32.mrf.mxu0
        %v2586 = vadd.f32 0.0, %v2585
        %v2587 = vpop.f32.mrf.mxu0
        %v2588 = vpop.f32.mrf.mxu0
        %v2589 = vpop.f32.mrf.mxu0
        %2590 = vdwg.mxu0
        %2595 = vrot.lane.b32.xlu0 %v2058, 8
        %v2596 = vpop.permute.xlu0 %2595
        %2597 = vrot.lane.b32.xlu0 %v2106, 8
        %v2598 = vpop.permute.xlu0 %2597
        %2599 = vrot.lane.b32.xlu0 %v2154, 8
        %v2600 = vpop.permute.xlu0 %2599
        %2601 = vrot.lane.b32.xlu0 %v2202, 8
        %v2602 = vpop.permute.xlu0 %2601
        %2611 = vrot.lane.b32.xlu0 %v2250, 16
        %v2612 = vpop.permute.xlu0 %2611
        %2613 = vrot.lane.b32.xlu0 %v2298, 16
        %v2614 = vpop.permute.xlu0 %2613
        %2615 = vrot.lane.b32.xlu0 %v2346, 16
        %v2616 = vpop.permute.xlu0 %2615
        %2617 = vrot.lane.b32.xlu0 %v2394, 16
        %v2618 = vpop.permute.xlu0 %2617
        %2627 = vrot.lane.b32.xlu0 %v2442, 24
        %v2628 = vpop.permute.xlu0 %2627
        %2629 = vrot.lane.b32.xlu0 %v2490, 24
        %v2630 = vpop.permute.xlu0 %2629
        %2631 = vrot.lane.b32.xlu0 %v2538, 24
        %v2632 = vpop.permute.xlu0 %2631
        %2633 = vrot.lane.b32.xlu0 %v2586, 24
        %v2634 = vpop.permute.xlu0 %2633
        %v2639 = vsel %vm847, %v1866, %v2596
        %v2640 = vsel %vm847, %v1914, %v2598
        %v2641 = vsel %vm847, %v1962, %v2600
        %v2642 = vsel %vm847, %v2010, %v2602
        %vm2643 = vcmask 130048
        %v2644 = vsel %vm2643, %v2639, %v2612
        %v2645 = vsel %vm2643, %v2640, %v2614
        %v2646 = vsel %vm2643, %v2641, %v2616
        %v2647 = vsel %vm2643, %v2642, %v2618
        %vm2648 = vcmask 195584
        %v2649 = vsel %vm2648, %v2644, %v2628
        %v2650 = vsel %vm2648, %v2645, %v2630
        %v2651 = vsel %vm2648, %v2646, %v2632
        %v2652 = vsel %vm2648, %v2647, %v2634
        %v2653 = vpack.c.bf16 %v2650, %v2649
        %v2654 = vpack.c.bf16 %v2652, %v2651
        %v2655 = vld [vmem:[%s666] sm:$0xf]
        %v2656 = vld [vmem:[%s666 + $0x4] sm:$0xf]
        %v2657 = vld [vmem:[%s666 + $0x8] sm:$0xf]
        %v2658 = vld [vmem:[%s666 + $0xc] sm:$0xf]
        %v2659 = vld [vmem:[%s669] sm:$0x1]
        %v2661 = vlaneseq
        %v2662 = vshrl.u32 %v2661, 7
        %v2663 = vsub.s32 0, %v2662
        %v2664 = vrot.slane %v2659, %v2663
        %v2670 = vunpack.c.l.b16 %v2655
        %v2671 = vunpack.c.l.b16 %v2656
        %v2672 = vunpack.c.l.b16 %v2657
        %v2673 = vunpack.c.l.b16 %v2658
        %v2674 = vpack.c.b16 %v2671, %v2670
        %v2675 = vpack.c.b16 %v2673, %v2672
        %v2679 = vsel %vm741, %v2653, 0
        %v2682 = vsel %vm741, %v2654, 0
        %2684 = vmatprep.subr.bf16.mxu0 0
        %2685 = vmatpush1.bf16.msra.mxu0 0
        %2686 = vmatprep.subr.bf16.mxu0 0
        %2687 = vmatpush1.bf16.msra.mxu0 0
        %2688 = vmatprep.subr.bf16.mxu0 0
        %2689 = vmatpush1.bf16.msra.mxu0 0
        %2690 = vmatprep.subr.bf16.mxu0 0
        %2691 = vmatpush1.bf16.msra.mxu0 0
        %2692 = vmatprep.subr.bf16.mxu0 0
        %2693 = vmatpush1.bf16.msra.mxu0 0
        %2694 = vmatprep.subr.bf16.mxu0 0
        %2695 = vmatpush1.bf16.msra.mxu0 0
        %2696 = vmatprep.subr.bf16.mxu0 0
        %2697 = vmatpush1.bf16.msra.mxu0 %v2675
        %2698 = vmatprep.subr.bf16.mxu0 0
        %2699 = vmatpush1.bf16.msra.mxu0 %v2674
        %2700 = vmatprep.subr.bf16.mxu0 0
        %2701 = vmatpush2.bf16.msra.mxu0 0
        %2702 = vmatprep.subr.bf16.mxu0 0
        %2703 = vmatpush2.bf16.msra.mxu0 0
        %2704 = vmatprep.subr.bf16.mxu0 0
        %2705 = vmatpush2.bf16.msra.mxu0 0
        %2706 = vmatprep.subr.bf16.mxu0 0
        %2707 = vmatpush2.bf16.msra.mxu0 0
        %2708 = vmatprep.subr.bf16.mxu0 0
        %2709 = vmatpush2.bf16.msra.mxu0 0
        %2710 = vmatprep.subr.bf16.mxu0 0
        %2711 = vmatpush2.bf16.msra.mxu0 0
        %2712 = vmatprep.subr.bf16.mxu0 0
        %2713 = vmatpush2.bf16.msra.mxu0 0
        %2714 = vmatprep.subr.bf16.mxu0 0
        %2715 = vmatpush2.bf16.msra.mxu0 0
        %2716 = vmatprep.mubr.bf16.mxu0 0
        %2717 = vmatmul.mubr.bf16.gmra.mxu0 %v2679
        %v2718 = vpop.f32.mrf.mxu0
        %v2719 = vadd.f32 %v2664, %v2718
        %v2720 = vpop.f32.mrf.mxu0
        %v2721 = vpop.f32.mrf.mxu0
        %v2722 = vadd.f32 %v2664, %v2721
        %v2723 = vpop.f32.mrf.mxu0
        %2724 = vmatprep.mubr.bf16.mxu0 0
        %2725 = vmatmul.mubr.bf16.gmra.mxu0 %v2682
        %v2726 = vpop.f32.mrf.mxu0
        %v2727 = vadd.f32 %v2664, %v2726
        %v2728 = vpop.f32.mrf.mxu0
        %v2729 = vpop.f32.mrf.mxu0
        %v2730 = vadd.f32 %v2664, %v2729
        %v2731 = vpop.f32.mrf.mxu0
        %2732 = vdwg.mxu0
        %v2733 = vadd.f32 %v712, %v2719
        %v2734 = vadd.f32 %v713, %v2722
        %v2735 = vadd.f32 %v714, %v2727
        %v2736 = vadd.f32 %v715, %v2730
        %v2737 = vld [vmem:[%s672] sm:$0x1]
        %v2738 = vld [vmem:[%s675] sm:$0x1]
        %v2739 = vsel %vm741, %v2733, 0.0
        %2740 = vadd.xlane.f32.xlu0 %v2739
        %v2741 = vpop.xlane.xlu0 %2740
        %v2742 = vsel %vm741, %v2734, 0.0
        %2743 = vadd.xlane.f32.xlu0 %v2742
        %v2744 = vpop.xlane.xlu0 %2743
        %v2745 = vsel %vm741, %v2735, 0.0
        %2746 = vadd.xlane.f32.xlu0 %v2745
        %v2747 = vpop.xlane.xlu0 %2746
        %v2748 = vsel %vm741, %v2736, 0.0
        %2749 = vadd.xlane.f32.xlu0 %v2748
        %v2750 = vpop.xlane.xlu0 %2749
        %v2751 = vrcp.pop 32.0
        %v2752 = vmul.f32 %v2741, %v2751
        %v2753 = vmul.f32 %v2744, %v2751
        %v2754 = vmul.f32 %v2747, %v2751
        %v2755 = vmul.f32 %v2750, %v2751
        %v2756 = vsub.f32 %v2733, %v2752
        %v2757 = vsub.f32 %v2734, %v2753
        %v2758 = vsub.f32 %v2735, %v2754
        %v2759 = vsub.f32 %v2736, %v2755
        %v2760 = vmul.f32 %v2756, %v2756
        %v2761 = vmul.f32 %v2757, %v2757
        %v2762 = vmul.f32 %v2758, %v2758
        %v2763 = vmul.f32 %v2759, %v2759
        %v2764 = vsel %vm741, %v2760, 0.0
        %2765 = vadd.xlane.f32.xlu0 %v2764
        %v2766 = vpop.xlane.xlu0 %2765
        %v2767 = vsel %vm741, %v2761, 0.0
        %2768 = vadd.xlane.f32.xlu0 %v2767
        %v2769 = vpop.xlane.xlu0 %2768
        %v2770 = vsel %vm741, %v2762, 0.0
        %2771 = vadd.xlane.f32.xlu0 %v2770
        %v2772 = vpop.xlane.xlu0 %2771
        %v2773 = vsel %vm741, %v2763, 0.0
        %2774 = vadd.xlane.f32.xlu0 %v2773
        %v2775 = vpop.xlane.xlu0 %2774
        %v2776 = vmul.f32 %v2766, %v2751
        %v2777 = vmul.f32 %v2769, %v2751
        %v2778 = vmul.f32 %v2772, %v2751
        %v2779 = vmul.f32 %v2775, %v2751
        %v2780 = vadd.f32 %v2776, 1e-05
        %v2781 = vadd.f32 %v2777, 1e-05
        %v2782 = vadd.f32 %v2778, 1e-05
        %v2783 = vadd.f32 %v2779, 1e-05
        %v2784 = vrsqrt.pop %v2780
        %v2785 = vrsqrt.pop %v2781
        %v2786 = vrsqrt.pop %v2782
        %v2787 = vrsqrt.pop %v2783
        %v2788 = vmul.f32 %v2756, %v2784
        %v2789 = vmul.f32 %v2757, %v2785
        %v2790 = vmul.f32 %v2758, %v2786
        %v2791 = vmul.f32 %v2759, %v2787
        %v2793 = vlaneseq
        %v2794 = vshrl.u32 %v2793, 7
        %v2795 = vsub.s32 0, %v2794
        %v2796 = vrot.slane %v2737, %v2795
        %v2798 = vmul.f32 %v2788, %v2796
        %v2799 = vmul.f32 %v2789, %v2796
        %v2800 = vmul.f32 %v2790, %v2796
        %v2801 = vmul.f32 %v2791, %v2796
        %v2803 = vlaneseq
        %v2804 = vshrl.u32 %v2803, 7
        %v2805 = vsub.s32 0, %v2804
        %v2806 = vrot.slane %v2738, %v2805
        %v2808 = vadd.f32 %v2798, %v2806
        %v2809 = vadd.f32 %v2799, %v2806
        %v2810 = vadd.f32 %v2800, %v2806
        %v2811 = vadd.f32 %v2801, %v2806
        %v2812 = vpack.c.bf16 %v2809, %v2808
        %v2813 = vpack.c.bf16 %v2811, %v2810
        %v2814 = vld [vmem:[%s680] sm:$0xf]
        %v2815 = vld [vmem:[%s680 + $0x4] sm:$0xf]
        %v2816 = vld [vmem:[%s680 + $0x8] sm:$0xf]
        %v2817 = vld [vmem:[%s680 + $0xc] sm:$0xf]
        %v2818 = vld [vmem:[%s683] sm:$0x1]
        %v2820 = vlaneseq
        %v2821 = vshrl.u32 %v2820, 7
        %v2822 = vsub.s32 0, %v2821
        %v2823 = vrot.slane %v2818, %v2822
        %v2829 = vunpack.c.l.b16 %v2814
        %v2830 = vunpack.c.l.b16 %v2815
        %v2831 = vunpack.c.l.b16 %v2816
        %v2832 = vunpack.c.l.b16 %v2817
        %v2833 = vpack.c.b16 %v2830, %v2829
        %v2834 = vpack.c.b16 %v2832, %v2831
        %v2838 = vsel %vm741, %v2812, 0
        %v2841 = vsel %vm741, %v2813, 0
        %2843 = vmatprep.subr.bf16.mxu0 0
        %2844 = vmatpush1.bf16.msra.mxu0 0
        %2845 = vmatprep.subr.bf16.mxu0 0
        %2846 = vmatpush1.bf16.msra.mxu0 0
        %2847 = vmatprep.subr.bf16.mxu0 0
        %2848 = vmatpush1.bf16.msra.mxu0 0
        %2849 = vmatprep.subr.bf16.mxu0 0
        %2850 = vmatpush1.bf16.msra.mxu0 0
        %2851 = vmatprep.subr.bf16.mxu0 0
        %2852 = vmatpush1.bf16.msra.mxu0 0
        %2853 = vmatprep.subr.bf16.mxu0 0
        %2854 = vmatpush1.bf16.msra.mxu0 0
        %2855 = vmatprep.subr.bf16.mxu0 0
        %2856 = vmatpush1.bf16.msra.mxu0 %v2834
        %2857 = vmatprep.subr.bf16.mxu0 0
        %2858 = vmatpush1.bf16.msra.mxu0 %v2833
        %2859 = vmatprep.subr.bf16.mxu0 0
        %2860 = vmatpush2.bf16.msra.mxu0 0
        %2861 = vmatprep.subr.bf16.mxu0 0
        %2862 = vmatpush2.bf16.msra.mxu0 0
        %2863 = vmatprep.subr.bf16.mxu0 0
        %2864 = vmatpush2.bf16.msra.mxu0 0
        %2865 = vmatprep.subr.bf16.mxu0 0
        %2866 = vmatpush2.bf16.msra.mxu0 0
        %2867 = vmatprep.subr.bf16.mxu0 0
        %2868 = vmatpush2.bf16.msra.mxu0 0
        %2869 = vmatprep.subr.bf16.mxu0 0
        %2870 = vmatpush2.bf16.msra.mxu0 0
        %2871 = vmatprep.subr.bf16.mxu0 0
        %2872 = vmatpush2.bf16.msra.mxu0 0
        %2873 = vmatprep.subr.bf16.mxu0 0
        %2874 = vmatpush2.bf16.msra.mxu0 0
        %2875 = vmatprep.mubr.bf16.mxu0 0
        %2876 = vmatmul.mubr.bf16.gmra.mxu0 %v2838
        %v2877 = vpop.f32.mrf.mxu0
        %v2878 = vadd.f32 %v2823, %v2877
        %v2879 = vpop.f32.mrf.mxu0
        %v2880 = vpop.f32.mrf.mxu0
        %v2881 = vadd.f32 %v2823, %v2880
        %v2882 = vpop.f32.mrf.mxu0
        %2883 = vmatprep.mubr.bf16.mxu0 0
        %2884 = vmatmul.mubr.bf16.gmra.mxu0 %v2841
        %v2885 = vpop.f32.mrf.mxu0
        %v2886 = vadd.f32 %v2823, %v2885
        %v2887 = vpop.f32.mrf.mxu0
        %v2888 = vpop.f32.mrf.mxu0
        %v2889 = vadd.f32 %v2823, %v2888
        %v2890 = vpop.f32.mrf.mxu0
        %2891 = vdwg.mxu0
        %v2892 = vmax.f32 %v2878, 0.0
        %v2893 = vmax.f32 %v2881, 0.0
        %v2894 = vmax.f32 %v2886, 0.0
        %v2895 = vmax.f32 %v2889, 0.0
        %v2896 = vpack.c.bf16 %v2893, %v2892
        %v2897 = vpack.c.bf16 %v2895, %v2894
        %v2898 = vld [vmem:[%s688] sm:$0xf]
        %v2899 = vld [vmem:[%s688 + $0x4] sm:$0xf]
        %v2900 = vld [vmem:[%s688 + $0x8] sm:$0xf]
        %v2901 = vld [vmem:[%s688 + $0xc] sm:$0xf]
        %v2902 = vld [vmem:[%s688 + $0x10] sm:$0xf]
        %v2903 = vld [vmem:[%s688 + $0x14] sm:$0xf]
        %v2904 = vld [vmem:[%s688 + $0x18] sm:$0xf]
        %v2905 = vld [vmem:[%s688 + $0x1c] sm:$0xf]
        %v2906 = vld [vmem:[%s688 + $0x20] sm:$0xf]
        %v2907 = vld [vmem:[%s688 + $0x24] sm:$0xf]
        %v2908 = vld [vmem:[%s688 + $0x28] sm:$0xf]
        %v2909 = vld [vmem:[%s688 + $0x2c] sm:$0xf]
        %v2910 = vld [vmem:[%s688 + $0x30] sm:$0xf]
        %v2911 = vld [vmem:[%s688 + $0x34] sm:$0xf]
        %v2912 = vld [vmem:[%s688 + $0x38] sm:$0xf]
        %v2913 = vld [vmem:[%s688 + $0x3c] sm:$0xf]
        %v2914 = vld [vmem:[%s691] sm:$0x1]
        %v2916 = vlaneseq
        %v2917 = vshrl.u32 %v2916, 7
        %v2918 = vsub.s32 0, %v2917
        %v2919 = vrot.slane %v2914, %v2918
        %v2937 = vunpack.c.l.b16 %v2898
        %v2938 = vunpack.c.l.b16 %v2899
        %v2939 = vunpack.c.l.b16 %v2900
        %v2940 = vunpack.c.l.b16 %v2901
        %v2941 = vunpack.c.l.b16 %v2902
        %v2942 = vunpack.c.l.b16 %v2903
        %v2943 = vunpack.c.l.b16 %v2904
        %v2944 = vunpack.c.l.b16 %v2905
        %v2945 = vunpack.c.l.b16 %v2906
        %v2946 = vunpack.c.l.b16 %v2907
        %v2947 = vunpack.c.l.b16 %v2908
        %v2948 = vunpack.c.l.b16 %v2909
        %v2949 = vunpack.c.l.b16 %v2910
        %v2950 = vunpack.c.l.b16 %v2911
        %v2951 = vunpack.c.l.b16 %v2912
        %v2952 = vunpack.c.l.b16 %v2913
        %v2953 = vpack.c.b16 %v2938, %v2937
        %v2954 = vpack.c.b16 %v2940, %v2939
        %v2955 = vpack.c.b16 %v2942, %v2941
        %v2956 = vpack.c.b16 %v2944, %v2943
        %v2957 = vpack.c.b16 %v2946, %v2945
        %v2958 = vpack.c.b16 %v2948, %v2947
        %v2959 = vpack.c.b16 %v2950, %v2949
        %v2960 = vpack.c.b16 %v2952, %v2951
        %2969 = vmatprep.subr.bf16.mxu0 0
        %2970 = vmatpush1.bf16.msra.mxu0 %v2960
        %2971 = vmatprep.subr.bf16.mxu0 0
        %2972 = vmatpush1.bf16.msra.mxu0 %v2959
        %2973 = vmatprep.subr.bf16.mxu0 0
        %2974 = vmatpush1.bf16.msra.mxu0 %v2958
        %2975 = vmatprep.subr.bf16.mxu0 0
        %2976 = vmatpush1.bf16.msra.mxu0 %v2957
        %2977 = vmatprep.subr.bf16.mxu0 0
        %2978 = vmatpush1.bf16.msra.mxu0 %v2956
        %2979 = vmatprep.subr.bf16.mxu0 0
        %2980 = vmatpush1.bf16.msra.mxu0 %v2955
        %2981 = vmatprep.subr.bf16.mxu0 0
        %2982 = vmatpush1.bf16.msra.mxu0 %v2954
        %2983 = vmatprep.subr.bf16.mxu0 0
        %2984 = vmatpush1.bf16.msra.mxu0 %v2953
        %2985 = vmatprep.subr.bf16.mxu0 0
        %2986 = vmatpush2.bf16.msra.mxu0 0
        %2987 = vmatprep.subr.bf16.mxu0 0
        %2988 = vmatpush2.bf16.msra.mxu0 0
        %2989 = vmatprep.subr.bf16.mxu0 0
        %2990 = vmatpush2.bf16.msra.mxu0 0
        %2991 = vmatprep.subr.bf16.mxu0 0
        %2992 = vmatpush2.bf16.msra.mxu0 0
        %2993 = vmatprep.subr.bf16.mxu0 0
        %2994 = vmatpush2.bf16.msra.mxu0 0
        %2995 = vmatprep.subr.bf16.mxu0 0
        %2996 = vmatpush2.bf16.msra.mxu0 0
        %2997 = vmatprep.subr.bf16.mxu0 0
        %2998 = vmatpush2.bf16.msra.mxu0 0
        %2999 = vmatprep.subr.bf16.mxu0 0
        %3000 = vmatpush2.bf16.msra.mxu0 0
        %3001 = vmatprep.mubr.bf16.mxu0 0
        %3002 = vmatmul.mubr.bf16.gmra.mxu0 %v2896
        %v3003 = vpop.f32.mrf.mxu0
        %v3004 = vadd.f32 %v2919, %v3003
        %v3005 = vpop.f32.mrf.mxu0
        %v3006 = vpop.f32.mrf.mxu0
        %v3007 = vadd.f32 %v2919, %v3006
        %v3008 = vpop.f32.mrf.mxu0
        %3009 = vmatprep.mubr.bf16.mxu0 0
        %3010 = vmatmul.mubr.bf16.gmra.mxu0 %v2897
        %v3011 = vpop.f32.mrf.mxu0
        %v3012 = vadd.f32 %v2919, %v3011
        %v3013 = vpop.f32.mrf.mxu0
        %v3014 = vpop.f32.mrf.mxu0
        %v3015 = vadd.f32 %v2919, %v3014
        %v3016 = vpop.f32.mrf.mxu0
        %3017 = vdwg.mxu0
        %v3018 = vadd.f32 %v2808, %v3004
        %v3019 = vadd.f32 %v2809, %v3007
        %v3020 = vadd.f32 %v2810, %v3012
        %v3021 = vadd.f32 %v2811, %v3015
        %v3022 = vld [vmem:[%s694] sm:$0x1]
        %v3023 = vld [vmem:[%s697] sm:$0x1]
        %v3024 = vsel %vm741, %v3018, 0.0
        %3025 = vadd.xlane.f32.xlu0 %v3024
        %v3026 = vpop.xlane.xlu0 %3025
        %v3027 = vsel %vm741, %v3019, 0.0
        %3028 = vadd.xlane.f32.xlu0 %v3027
        %v3029 = vpop.xlane.xlu0 %3028
        %v3030 = vsel %vm741, %v3020, 0.0
        %3031 = vadd.xlane.f32.xlu0 %v3030
        %v3032 = vpop.xlane.xlu0 %3031
        %v3033 = vsel %vm741, %v3021, 0.0
        %3034 = vadd.xlane.f32.xlu0 %v3033
        %v3035 = vpop.xlane.xlu0 %3034
        %v3036 = vmul.f32 %v3026, %v2751
        %v3037 = vmul.f32 %v3029, %v2751
        %v3038 = vmul.f32 %v3032, %v2751
        %v3039 = vmul.f32 %v3035, %v2751
        %v3040 = vsub.f32 %v3018, %v3036
        %v3041 = vsub.f32 %v3019, %v3037
        %v3042 = vsub.f32 %v3020, %v3038
        %v3043 = vsub.f32 %v3021, %v3039
        %v3044 = vmul.f32 %v3040, %v3040
        %v3045 = vmul.f32 %v3041, %v3041
        %v3046 = vmul.f32 %v3042, %v3042
        %v3047 = vmul.f32 %v3043, %v3043
        %v3048 = vsel %vm741, %v3044, 0.0
        %3049 = vadd.xlane.f32.xlu0 %v3048
        %v3050 = vpop.xlane.xlu0 %3049
        %v3051 = vsel %vm741, %v3045, 0.0
        %3052 = vadd.xlane.f32.xlu0 %v3051
        %v3053 = vpop.xlane.xlu0 %3052
        %v3054 = vsel %vm741, %v3046, 0.0
        %3055 = vadd.xlane.f32.xlu0 %v3054
        %v3056 = vpop.xlane.xlu0 %3055
        %v3057 = vsel %vm741, %v3047, 0.0
        %3058 = vadd.xlane.f32.xlu0 %v3057
        %v3059 = vpop.xlane.xlu0 %3058
        %v3060 = vmul.f32 %v3050, %v2751
        %v3061 = vmul.f32 %v3053, %v2751
        %v3062 = vmul.f32 %v3056, %v2751
        %v3063 = vmul.f32 %v3059, %v2751
        %v3064 = vadd.f32 %v3060, 1e-05
        %v3065 = vadd.f32 %v3061, 1e-05
        %v3066 = vadd.f32 %v3062, 1e-05
        %v3067 = vadd.f32 %v3063, 1e-05
        %v3068 = vrsqrt.pop %v3064
        %v3069 = vrsqrt.pop %v3065
        %v3070 = vrsqrt.pop %v3066
        %v3071 = vrsqrt.pop %v3067
        %v3072 = vmul.f32 %v3040, %v3068
        %v3073 = vmul.f32 %v3041, %v3069
        %v3074 = vmul.f32 %v3042, %v3070
        %v3075 = vmul.f32 %v3043, %v3071
        %v3077 = vlaneseq
        %v3078 = vshrl.u32 %v3077, 7
        %v3079 = vsub.s32 0, %v3078
        %v3080 = vrot.slane %v3022, %v3079
        %v3082 = vmul.f32 %v3072, %v3080
        %v3083 = vmul.f32 %v3073, %v3080
        %v3084 = vmul.f32 %v3074, %v3080
        %v3085 = vmul.f32 %v3075, %v3080
        %v3087 = vlaneseq
        %v3088 = vshrl.u32 %v3087, 7
        %v3089 = vsub.s32 0, %v3088
        %v3090 = vrot.slane %v3023, %v3089
        %v3092 = vadd.f32 %v3082, %v3090
        %v3093 = vadd.f32 %v3083, %v3090
        %v3094 = vadd.f32 %v3084, %v3090
        %v3095 = vadd.f32 %v3085, %v3090
        %3096 = vst.msk [vmem:[#allocation2] sm:$0xff] %vm741, %v3092
        %3097 = vst.msk [vmem:[#allocation2 + $0x8] sm:$0xff] %vm741, %v3093
        %3098 = vst.msk [vmem:[#allocation2 + $0x10] sm:$0xff] %vm741, %v3094
        %3099 = vst.msk [vmem:[#allocation2 + $0x18] sm:$0xff] %vm741, %v3095
        %p3100 = scmp.eq.s32.totalorder %s36, 1
        // Predicated region
        $region85: #{forward.3} parent=79 // pred_check
          %p3101 = pneg %p3100
        $region86: #{forward.3} parent=79 // pred_check_branch
          %3103 = sbr.rel (%p3101) target = $region88
        $region87: #{forward.3} parent=79 // pred_region
          %v3104 = vsel %vm741, %v3092, 0.0
          %v3105 = vrot.slane %v3104, 4
          %v3106 = vadd.f32 %v3104, %v3105
          %v3107 = vrot.slane %v3106, 2
          %v3108 = vadd.f32 %v3106, %v3107
          %v3109 = vrot.slane %v3108, 1
          %v3110 = vadd.f32 %v3108, %v3109
          %v3111 = vsel %vm741, %v3093, 0.0
          %v3112 = vrot.slane %v3111, 4
          %v3113 = vadd.f32 %v3111, %v3112
          %v3114 = vrot.slane %v3113, 2
          %v3115 = vadd.f32 %v3113, %v3114
          %v3116 = vrot.slane %v3115, 1
          %v3117 = vadd.f32 %v3115, %v3116
          %v3118 = vsel %vm741, %v3094, 0.0
          %v3119 = vrot.slane %v3118, 4
          %v3120 = vadd.f32 %v3118, %v3119
          %v3121 = vrot.slane %v3120, 2
          %v3122 = vadd.f32 %v3120, %v3121
          %v3123 = vrot.slane %v3122, 1
          %v3124 = vadd.f32 %v3122, %v3123
          %v3125 = vsel %vm741, %v3095, 0.0
          %v3126 = vrot.slane %v3125, 4
          %v3127 = vadd.f32 %v3125, %v3126
          %v3128 = vrot.slane %v3127, 2
          %v3129 = vadd.f32 %v3127, %v3128
          %v3130 = vrot.slane %v3129, 1
          %v3131 = vadd.f32 %v3129, %v3130
          %v3132 = vrcp.pop 8.0
          %v3133 = vmul.f32 %v3110, %v3132
          %v3134 = vmul.f32 %v3117, %v3132
          %v3135 = vmul.f32 %v3124, %v3132
          %v3136 = vmul.f32 %v3131, %v3132
          %v3137 = vld [vmem:[%s13] sm:$0x1]
          %v3138 = vld [vmem:[#allocation3] sm:$0x1]
          %3140 = vset.pattern.permute.xlu0 0
          %3141 = vperm.xlu0 %3140, %v3138
          %v3142 = vpop.permute.xlu0 %3141
          %v3144 = vlaneseq
          %v3145 = vshrl.u32 %v3144, 7
          %v3146 = vsub.s32 0, %v3145
          %v3147 = vrot.slane %v3142, %v3146
          %vm3152 = vcmask 1041409
          %v3153 = vsel %vm3152, %v3134, %v3133
          %vm3154 = vcmask 1042434
          %v3155 = vsel %vm3154, %v3135, %v3153
          %vm3156 = vcmask 1043459
          %v3157 = vsel %vm3156, %v3136, %v3155
          %v3159 = vsel %vm741, %v3137, 0
          %v3161 = vsel %vm741, %v3157, 0
          %3163 = vmatprep.subr.mxu0 0.0
          %3164 = vmatpush1.xpose.msra.mxu0 0.0
          %3165 = vmatprep.subr.mxu0 0.0
          %3166 = vmatpush1.xpose.msra.mxu0 0.0
          %3167 = vmatprep.subr.mxu0 0.0
          %3168 = vmatpush1.xpose.msra.mxu0 0.0
          %3169 = vmatprep.subr.mxu0 0.0
          %3170 = vmatpush1.xpose.msra.mxu0 0.0
          %3171 = vmatprep.subr.mxu0 0.0
          %3172 = vmatpush1.xpose.msra.mxu0 0.0
          %3173 = vmatprep.subr.mxu0 0.0
          %3174 = vmatpush1.xpose.msra.mxu0 0.0
          %3175 = vmatprep.subr.mxu0 0.0
          %3176 = vmatpush1.xpose.msra.mxu0 0.0
          %3177 = vmatprep.subr.mxu0 0.0
          %3178 = vmatpush1.xpose.msra.mxu0 0.0
          %3179 = vmatprep.subr.mxu0 0.0
          %3180 = vmatpush1.xpose.msra.mxu0 0.0
          %3181 = vmatprep.subr.mxu0 0.0
          %3182 = vmatpush1.xpose.msra.mxu0 0.0
          %3183 = vmatprep.subr.mxu0 0.0
          %3184 = vmatpush1.xpose.msra.mxu0 0.0
          %3185 = vmatprep.subr.mxu0 0.0
          %3186 = vmatpush1.xpose.msra.mxu0 0.0
          %3187 = vmatprep.subr.mxu0 0.0
          %3188 = vmatpush1.xpose.msra.mxu0 0.0
          %3189 = vmatprep.subr.mxu0 0.0
          %3190 = vmatpush1.xpose.msra.mxu0 0.0
          %3191 = vmatprep.subr.mxu0 0.0
          %3192 = vmatpush1.xpose.msra.mxu0 0.0
          %3193 = vmatprep.subr.mxu0 0.0
          %3194 = vmatpush1.xpose.msra.mxu0 %v3161
          %3195 = vmatprep.subr.mxu0 0.0
          %3196 = vmatpush2.xpose.msra.mxu0 0.0
          %3197 = vmatprep.subr.mxu0 0.0
          %3198 = vmatpush2.xpose.msra.mxu0 0.0
          %3199 = vmatprep.subr.mxu0 0.0
          %3200 = vmatpush2.xpose.msra.mxu0 0.0
          %3201 = vmatprep.subr.mxu0 0.0
          %3202 = vmatpush2.xpose.msra.mxu0 0.0
          %3203 = vmatprep.subr.mxu0 0.0
          %3204 = vmatpush2.xpose.msra.mxu0 0.0
          %3205 = vmatprep.subr.mxu0 0.0
          %3206 = vmatpush2.xpose.msra.mxu0 0.0
          %3207 = vmatprep.subr.mxu0 0.0
          %3208 = vmatpush2.xpose.msra.mxu0 0.0
          %3209 = vmatprep.subr.mxu0 0.0
          %3210 = vmatpush2.xpose.msra.mxu0 0.0
          %3211 = vmatprep.subr.mxu0 0.0
          %3212 = vmatpush2.xpose.msra.mxu0 0.0
          %3213 = vmatprep.subr.mxu0 0.0
          %3214 = vmatpush2.xpose.msra.mxu0 0.0
          %3215 = vmatprep.subr.mxu0 0.0
          %3216 = vmatpush2.xpose.msra.mxu0 0.0
          %3217 = vmatprep.subr.mxu0 0.0
          %3218 = vmatpush2.xpose.msra.mxu0 0.0
          %3219 = vmatprep.subr.mxu0 0.0
          %3220 = vmatpush2.xpose.msra.mxu0 0.0
          %3221 = vmatprep.subr.mxu0 0.0
          %3222 = vmatpush2.xpose.msra.mxu0 0.0
          %3223 = vmatprep.subr.mxu0 0.0
          %3224 = vmatpush2.xpose.msra.mxu0 0.0
          %3225 = vmatprep.subr.mxu0 0.0
          %3226 = vmatpush2.xpose.msra.mxu0 0.0
          %3227 = vmatprep.mubr.f32.mxu0 0.0
          %3228 = vmatmul.mubr.f32.gmra.mxu0 %v3159
          %v3229 = vpop.f32.mrf.mxu0
          %v3230 = vadd.f32 %v3147, %v3229
          %v3231 = vpop.f32.mrf.mxu0
          %3232 = vdwg.mxu0
          %vm3233 = vcmask 24576
          %3234 = vst.msk [vmem:[%s648] sm:$0x1] %vm3233, %v3230
        $region88: #{forward.3} parent=79 // pred_fallthru
          _
        %s3235 = sand.u32 %s431, 1
        %s3236 = scalar_lea.sflag [#allocation5], %s3235
        %s3237 = sand.u32 %s431, 1
        %s3238 = scalar_lea.vmem [#allocation4], %s3237
        // Predicated region
        $region89: #{forward.3} parent=79 // pred_check
          %p3239 = pneg %p441
        $region90: #{forward.3} parent=79 // pred_check_branch
          %3241 = sbr.rel (%p3239) target = $region92
        $region91: #{forward.3} parent=79 // pred_region
          %s3243 = ssub.s32 16, 16
          %3244 = vsyncadd %s3236, %s3243
          %s3245 = smul.addr %s35, 16
          %s3246 = scalar_lea.hbm %s15, %s3245
          %s3248 = sshll.u32 %s3238, 4
          %s3249 = int_to_ptr.vmem [resolvable:$true] %s3248
          %3251 = dma.vmem_to_hbm [thread:$0]  %s3249, 16, %s3246, %s3236
        $region92: #{forward.3} parent=79 // pred_fallthru
          _
      $region80: #{forward.3} parent=5 // pred_fallthru
        _
      %p3252 = scmp.le.s32.totalorder 2, %s26
      // Predicated region
      $region93: #{forward.3} parent=5 // pred_check
        %p3253 = pneg %p3252
      $region94: #{forward.3} parent=5 // pred_check_branch
        %3255 = sbr.rel (%p3253) target = $region96
      $region95: #{forward.3} parent=5 // pred_region
        %s3256 = ssub.s32 %s26, 2
        // Predicated region
        $region97: #{forward.3} parent=95 // pred_check
          %p3257 = pneg %p447
        $region98: #{forward.3} parent=95 // pred_check_branch
          %3259 = sbr.rel (%p3257) target = $region100
        $region99: #{forward.3} parent=95 // pred_region
          %s3260 = sand.u32 %s432, 1
          %s3261 = scalar_lea.sflag [#allocation5], %s3260
          %s3262 = sand.u32 %s432, 1
          %s3263 = scalar_lea.vmem [#allocation4], %s3262
          %3264 = dma.done %s3261, 16
        $region100: #{forward.3} parent=95 // pred_fallthru
          _
      $region96: #{forward.3} parent=5 // pred_fallthru
        _
    $region6: #{forward.3} parent=1 // loop_footer
      %s30 = sadd.s32 1, %s26
    $region7: #{forward.3} parent=1 // loop_footer_branch
      %25 = sbr.rel target = $region3
    $region8: #{forward.3} parent=1 // loop_exit
      _
    %3265 = vsyncpa [#allocation5], 1
    %s3266 = scalar_lea.sflag [#allocation5], 1
    %3267 = vsyncpa %s3266, 1

// kernel: forward.2
$region0: #{forward.2}
  #allocation0 [shape = 'u32[]', space=smem, size = 0x4, offset = 0x4, fixed_abs, tag = 'smem constant byte address 0x4 - core index']
  #allocation1 [shape = 'u32[144,128]{1,0:T(1,128)}', space=vmem, size = 0x12000, scoped, tag = 'internal scratch']
  %s0 = inlined_call_operand.vmem [shape: f32[2,32,4], index: 0, kind: input, shape index: {}]
  %s1 = inlined_call_operand.vmem [shape: bf16[4,32], index: 1, kind: input, shape index: {}]
  %s2 = inlined_call_operand.vmem [shape: f32[1,32], index: 2, kind: input, shape index: {}]
  %s3 = inlined_call_operand.vmem [shape: f32[32,32], index: 3, kind: input, shape index: {}]
  %s4 = inlined_call_operand.vmem [shape: bf16[32,96], index: 4, kind: input, shape index: {}]
  %s5 = inlined_call_operand.vmem [shape: f32[1,96], index: 5, kind: input, shape index: {}]
  %s6 = inlined_call_operand.vmem [shape: bf16[32,32], index: 6, kind: input, shape index: {}]
  %s7 = inlined_call_operand.vmem [shape: f32[1,32], index: 7, kind: input, shape index: {}]
  %s8 = inlined_call_operand.vmem [shape: f32[2,4,8,32], index: 8, kind: output, shape index: {}]
  %s9 = sld [smem:[#allocation0]]
  $region65: #{forward.2} parent=0
    _
  %s11 = ssub.s32 1, %s9
  %s12 = scalar_select 0, %s11, %s9
  loop: start=0, step=1, limit=4
  $region2: #{forward.2} parent=0 // loop_pre_header
    _
  $region3: #{forward.2} parent=0 // loop_header
    %s14 = sphi 0, %s18
    %p15 = scmp.ge.s32.totalorder %s14, 4
    %s24 = sphi 0, %s26
    %s27 = sphi 0, %s24
    %s28 = sphi 0, %s27
    %s44 = sphi 0, %s28
    %s48 = sphi 0, %s48
    %s50 = sphi 0, %s48
    %s51 = sphi 0, %s50
    %s65 = sphi 0, %s51
    %s69 = sphi 0, %s69
    %s71 = sphi 0, %s69
    %s72 = sphi 0, %s71
    %s86 = sphi 0, %s72
    %s90 = sphi 0, %s90
    %s92 = sphi 0, %s90
    %s93 = sphi 0, %s92
    %s107 = sphi 0, %s93
    %s111 = sphi 0, %s111
    %s113 = sphi 0, %s111
    %s114 = sphi 0, %s113
    %s128 = sphi 0, %s114
    %s132 = sphi 0, %s132
    %s134 = sphi 0, %s132
    %s135 = sphi 0, %s134
    %s149 = sphi 0, %s135
    %s153 = sphi 0, %s153
    %s155 = sphi 0, %s153
    %s156 = sphi 0, %s155
    %s170 = sphi 0, %s156
    %s174 = sphi 0, %s174
    %s176 = sphi 0, %s174
    %s177 = sphi 0, %s176
    %s191 = sphi 0, %s177
    %s197 = sphi 0, %s199
    %s200 = sphi 0, %s197
    %s201 = sphi 0, %s200
    %s217 = sphi 0, %s201
  $region4: #{forward.2} parent=0 // loop_header_branch
    %17 = sbr.rel (%p15) target = $region8
  $region5: #{forward.2} parent=0 // loop_body
    %s19 = ssub.s32 %s14, 1
    %s20 = ssub.s32 %s14, 2
    %s21 = sadd.s32 %s14, 1
    %s22 = ssub.s32 %s14, %s21
    %p23 = scmp.eq.s32.totalorder %s22, 0
    %s25 = sadd.s32 %s24, 1
    %s26 = scalar_select %p23, %s24, %s25
    %p29 = pneg %p23
    %p30 = scmp.eq.s32.totalorder %s14, 1
    %p31 = por %p29, %p30
    %p32 = scmp.ne.s32.totalorder %s24, %s27
    %p33 = scmp.eq.s32.totalorder %s14, 0
    %p34 = por %p32, %p33
    %p35 = scmp.ne.s32.totalorder %s24, %s27
    %p36 = scmp.eq.s32.totalorder %s19, 1
    %p37 = por %p35, %p36
    %p38 = scmp.ne.s32.totalorder %s27, %s28
    %p39 = scmp.eq.s32.totalorder %s19, 0
    %p40 = por %p38, %p39
    %p41 = scmp.ne.s32.totalorder %s27, %s28
    %p42 = scmp.eq.s32.totalorder %s20, 1
    %p43 = por %p41, %p42
    %p45 = scmp.ne.s32.totalorder %s28, %s44
    %p46 = scmp.eq.s32.totalorder %s20, 0
    %p47 = por %p45, %p46
    %s49 = sadd.s32 %s48, 1
    %p52 = scmp.eq.s32.totalorder %s14, 1
    %p53 = scmp.ne.s32.totalorder %s48, %s50
    %p54 = scmp.eq.s32.totalorder %s14, 0
    %p55 = por %p53, %p54
    %p56 = scmp.ne.s32.totalorder %s48, %s50
    %p57 = scmp.eq.s32.totalorder %s19, 1
    %p58 = por %p56, %p57
    %p59 = scmp.ne.s32.totalorder %s50, %s51
    %p60 = scmp.eq.s32.totalorder %s19, 0
    %p61 = por %p59, %p60
    %p62 = scmp.ne.s32.totalorder %s50, %s51
    %p63 = scmp.eq.s32.totalorder %s20, 1
    %p64 = por %p62, %p63
    %p66 = scmp.ne.s32.totalorder %s51, %s65
    %p67 = scmp.eq.s32.totalorder %s20, 0
    %p68 = por %p66, %p67
    %s70 = sadd.s32 %s69, 1
    %p73 = scmp.eq.s32.totalorder %s14, 1
    %p74 = scmp.ne.s32.totalorder %s69, %s71
    %p75 = scmp.eq.s32.totalorder %s14, 0
    %p76 = por %p74, %p75
    %p77 = scmp.ne.s32.totalorder %s69, %s71
    %p78 = scmp.eq.s32.totalorder %s19, 1
    %p79 = por %p77, %p78
    %p80 = scmp.ne.s32.totalorder %s71, %s72
    %p81 = scmp.eq.s32.totalorder %s19, 0
    %p82 = por %p80, %p81
    %p83 = scmp.ne.s32.totalorder %s71, %s72
    %p84 = scmp.eq.s32.totalorder %s20, 1
    %p85 = por %p83, %p84
    %p87 = scmp.ne.s32.totalorder %s72, %s86
    %p88 = scmp.eq.s32.totalorder %s20, 0
    %p89 = por %p87, %p88
    %s91 = sadd.s32 %s90, 1
    %p94 = scmp.eq.s32.totalorder %s14, 1
    %p95 = scmp.ne.s32.totalorder %s90, %s92
    %p96 = scmp.eq.s32.totalorder %s14, 0
    %p97 = por %p95, %p96
    %p98 = scmp.ne.s32.totalorder %s90, %s92
    %p99 = scmp.eq.s32.totalorder %s19, 1
    %p100 = por %p98, %p99
    %p101 = scmp.ne.s32.totalorder %s92, %s93
    %p102 = scmp.eq.s32.totalorder %s19, 0
    %p103 = por %p101, %p102
    %p104 = scmp.ne.s32.totalorder %s92, %s93
    %p105 = scmp.eq.s32.totalorder %s20, 1
    %p106 = por %p104, %p105
    %p108 = scmp.ne.s32.totalorder %s93, %s107
    %p109 = scmp.eq.s32.totalorder %s20, 0
    %p110 = por %p108, %p109
    %s112 = sadd.s32 %s111, 1
    %p115 = scmp.eq.s32.totalorder %s14, 1
    %p116 = scmp.ne.s32.totalorder %s111, %s113
    %p117 = scmp.eq.s32.totalorder %s14, 0
    %p118 = por %p116, %p117
    %p119 = scmp.ne.s32.totalorder %s111, %s113
    %p120 = scmp.eq.s32.totalorder %s19, 1
    %p121 = por %p119, %p120
    %p122 = scmp.ne.s32.totalorder %s113, %s114
    %p123 = scmp.eq.s32.totalorder %s19, 0
    %p124 = por %p122, %p123
    %p125 = scmp.ne.s32.totalorder %s113, %s114
    %p126 = scmp.eq.s32.totalorder %s20, 1
    %p127 = por %p125, %p126
    %p129 = scmp.ne.s32.totalorder %s114, %s128
    %p130 = scmp.eq.s32.totalorder %s20, 0
    %p131 = por %p129, %p130
    %s133 = sadd.s32 %s132, 1
    %p136 = scmp.eq.s32.totalorder %s14, 1
    %p137 = scmp.ne.s32.totalorder %s132, %s134
    %p138 = scmp.eq.s32.totalorder %s14, 0
    %p139 = por %p137, %p138
    %p140 = scmp.ne.s32.totalorder %s132, %s134
    %p141 = scmp.eq.s32.totalorder %s19, 1
    %p142 = por %p140, %p141
    %p143 = scmp.ne.s32.totalorder %s134, %s135
    %p144 = scmp.eq.s32.totalorder %s19, 0
    %p145 = por %p143, %p144
    %p146 = scmp.ne.s32.totalorder %s134, %s135
    %p147 = scmp.eq.s32.totalorder %s20, 1
    %p148 = por %p146, %p147
    %p150 = scmp.ne.s32.totalorder %s135, %s149
    %p151 = scmp.eq.s32.totalorder %s20, 0
    %p152 = por %p150, %p151
    %s154 = sadd.s32 %s153, 1
    %p157 = scmp.eq.s32.totalorder %s14, 1
    %p158 = scmp.ne.s32.totalorder %s153, %s155
    %p159 = scmp.eq.s32.totalorder %s14, 0
    %p160 = por %p158, %p159
    %p161 = scmp.ne.s32.totalorder %s153, %s155
    %p162 = scmp.eq.s32.totalorder %s19, 1
    %p163 = por %p161, %p162
    %p164 = scmp.ne.s32.totalorder %s155, %s156
    %p165 = scmp.eq.s32.totalorder %s19, 0
    %p166 = por %p164, %p165
    %p167 = scmp.ne.s32.totalorder %s155, %s156
    %p168 = scmp.eq.s32.totalorder %s20, 1
    %p169 = por %p167, %p168
    %p171 = scmp.ne.s32.totalorder %s156, %s170
    %p172 = scmp.eq.s32.totalorder %s20, 0
    %p173 = por %p171, %p172
    %s175 = sadd.s32 %s174, 1
    %p178 = scmp.eq.s32.totalorder %s14, 1
    %p179 = scmp.ne.s32.totalorder %s174, %s176
    %p180 = scmp.eq.s32.totalorder %s14, 0
    %p181 = por %p179, %p180
    %p182 = scmp.ne.s32.totalorder %s174, %s176
    %p183 = scmp.eq.s32.totalorder %s19, 1
    %p184 = por %p182, %p183
    %p185 = scmp.ne.s32.totalorder %s176, %s177
    %p186 = scmp.eq.s32.totalorder %s19, 0
    %p187 = por %p185, %p186
    %p188 = scmp.ne.s32.totalorder %s176, %s177
    %p189 = scmp.eq.s32.totalorder %s20, 1
    %p190 = por %p188, %p189
    %p192 = scmp.ne.s32.totalorder %s177, %s191
    %p193 = scmp.eq.s32.totalorder %s20, 0
    %p194 = por %p192, %p193
    %s195 = ssub.s32 %s14, %s21
    %p196 = scmp.eq.s32.totalorder %s195, 0
    %s198 = sadd.s32 %s197, 1
    %s199 = scalar_select %p196, %s197, %s198
    %p202 = pneg %p196
    %p203 = scmp.eq.s32.totalorder %s14, 1
    %p204 = por %p202, %p203
    %p205 = scmp.ne.s32.totalorder %s197, %s200
    %p206 = scmp.eq.s32.totalorder %s14, 0
    %p207 = por %p205, %p206
    %p208 = scmp.ne.s32.totalorder %s197, %s200
    %p209 = scmp.eq.s32.totalorder %s19, 1
    %p210 = por %p208, %p209
    %p211 = scmp.ne.s32.totalorder %s200, %s201
    %p212 = scmp.eq.s32.totalorder %s19, 0
    %p213 = por %p211, %p212
    %p214 = scmp.ne.s32.totalorder %s200, %s201
    %p215 = scmp.eq.s32.totalorder %s20, 1
    %p216 = por %p214, %p215
    %p218 = scmp.ne.s32.totalorder %s201, %s217
    %p219 = scmp.eq.s32.totalorder %s20, 0
    %p220 = por %p218, %p219
    %p221 = scmp.le.s32.totalorder 1, %s14
    %p222 = scmp.lt.s32.totalorder %s14, 3
    %p223 = pnand %p221, %p222
    %p224 = pneg %p223
    // Predicated region
    $region9: #{forward.2} parent=5 // pred_check
      _
    $region10: #{forward.2} parent=5 // pred_check_branch
      %226 = sbr.rel (%p223) target = $region12
    $region11: #{forward.2} parent=5 // pred_region
      %s227 = ssub.s32 %s14, 1
      // Predicated region
      $region13: #{forward.2} parent=11 // pred_check
        %p228 = pneg %p61
      $region14: #{forward.2} parent=11 // pred_check_branch
        %230 = sbr.rel (%p228) target = $region16
      $region15: #{forward.2} parent=11 // pred_region
        _
      $region16: #{forward.2} parent=11 // pred_fallthru
        _
      // Predicated region
      $region17: #{forward.2} parent=11 // pred_check
        %p231 = pneg %p82
      $region18: #{forward.2} parent=11 // pred_check_branch
        %233 = sbr.rel (%p231) target = $region20
      $region19: #{forward.2} parent=11 // pred_region
        _
      $region20: #{forward.2} parent=11 // pred_fallthru
        _
      // Predicated region
      $region21: #{forward.2} parent=11 // pred_check
        %p234 = pneg %p103
      $region22: #{forward.2} parent=11 // pred_check_branch
        %236 = sbr.rel (%p234) target = $region24
      $region23: #{forward.2} parent=11 // pred_region
        _
      $region24: #{forward.2} parent=11 // pred_fallthru
        _
      // Predicated region
      $region25: #{forward.2} parent=11 // pred_check
        %p237 = pneg %p124
      $region26: #{forward.2} parent=11 // pred_check_branch
        %239 = sbr.rel (%p237) target = $region28
      $region27: #{forward.2} parent=11 // pred_region
        _
      $region28: #{forward.2} parent=11 // pred_fallthru
        _
      // Predicated region
      $region29: #{forward.2} parent=11 // pred_check
        %p240 = pneg %p145
      $region30: #{forward.2} parent=11 // pred_check_branch
        %242 = sbr.rel (%p240) target = $region32
      $region31: #{forward.2} parent=11 // pred_region
        _
      $region32: #{forward.2} parent=11 // pred_fallthru
        _
      // Predicated region
      $region33: #{forward.2} parent=11 // pred_check
        %p243 = pneg %p166
      $region34: #{forward.2} parent=11 // pred_check_branch
        %245 = sbr.rel (%p243) target = $region36
      $region35: #{forward.2} parent=11 // pred_region
        _
      $region36: #{forward.2} parent=11 // pred_fallthru
        _
      // Predicated region
      $region37: #{forward.2} parent=11 // pred_check
        %p246 = pneg %p187
      $region38: #{forward.2} parent=11 // pred_check_branch
        %248 = sbr.rel (%p246) target = $region40
      $region39: #{forward.2} parent=11 // pred_region
        _
      $region40: #{forward.2} parent=11 // pred_fallthru
        _
    $region12: #{forward.2} parent=5 // pred_fallthru
      _
    %p249 = scmp.lt.s32.totalorder %s14, 2
    // Predicated region
    $region41: #{forward.2} parent=5 // pred_check
      %p250 = pneg %p249
    $region42: #{forward.2} parent=5 // pred_check_branch
      %252 = sbr.rel (%p250) target = $region44
    $region43: #{forward.2} parent=5 // pred_region
      // Predicated region
      $region45: #{forward.2} parent=43 // pred_check
        %p253 = pneg %p34
      $region46: #{forward.2} parent=43 // pred_check_branch
        %255 = sbr.rel (%p253) target = $region48
      $region47: #{forward.2} parent=43 // pred_region
        %p256 = scmp.lt.s32.totalorder %s14, 1
        %s257 = scalar_select %p256, %s14, 1
        %s258 = smul.addr %s257, 4
        %s259 = smul.addr %s258, 8
        %s260 = scalar_lea.vmem %s0, %s259
      $region48: #{forward.2} parent=43 // pred_fallthru
        _
    $region44: #{forward.2} parent=5 // pred_fallthru
      _
    %p261 = scmp.le.s32.totalorder 1, %s14
    %p262 = scmp.lt.s32.totalorder %s14, 3
    %p263 = pnand %p261, %p262
    %p264 = pneg %p263
    // Predicated region
    $region49: #{forward.2} parent=5 // pred_check
      _
    $region50: #{forward.2} parent=5 // pred_check_branch
      %266 = sbr.rel (%p263) target = $region52
    $region51: #{forward.2} parent=5 // pred_region
      %s267 = ssub.s32 %s14, 1
      %p268 = scmp.lt.s32.totalorder %s19, 1
      %s269 = scalar_select %p268, %s19, 1
      %s270 = smul.addr %s269, 4
      %s271 = smul.addr %s270, 8
      %s272 = scalar_lea.vmem %s0, %s271
      %p273 = pneg %p40
      %p274 = pneg %p37
      %p275 = pneg %p61
      %p276 = pneg %p58
      %p277 = pneg %p82
      %p278 = pneg %p79
      %p279 = pneg %p103
      %p280 = pneg %p100
      %p281 = pneg %p124
      %p282 = pneg %p121
      %p283 = pneg %p145
      %p284 = pneg %p142
      %p285 = pneg %p166
      %p286 = pneg %p163
      %p287 = pneg %p187
      %p288 = pneg %p184
      %p289 = pneg %p213
      %p290 = pneg %p210
      %p291 = scmp.lt.s32.totalorder %s19, 1
      %s292 = scalar_select %p291, %s19, 1
      %s293 = smul.addr %s292, 4
      %s294 = smul.addr %s293, 8
      %s295 = scalar_lea.vmem %s8, %s294
      %p296 = scmp.lt.s32.totalorder %s19, 1
      %s297 = scalar_select %p296, %s19, 1
      %s298 = smul.addr %s297, 4
      %s299 = smul.addr %s298, 8
      %s300 = scalar_lea.vmem %s0, %s299
      %p301 = scmp.lt.s32.totalorder %s19, 1
      %s302 = scalar_select %p301, %s19, 1
      %s303 = smul.addr %s302, 4
      %s304 = smul.addr %s303, 8
      %s305 = scalar_lea.vmem %s8, %s304
      %v307 = vld [vmem:[%s300] sm:$0xff]
      %v308 = vld [vmem:[%s300 + $0x8] sm:$0xff]
      %v309 = vld [vmem:[%s300 + $0x10] sm:$0xff]
      %v310 = vld [vmem:[%s300 + $0x18] sm:$0xff]
      %v311 = vpack.c.bf16 %v308, %v307
      %v312 = vpack.c.bf16 %v310, %v309
      %v313 = vld [vmem:[%s1] sm:$0x3]
      %v314 = vld [vmem:[%s2] sm:$0x1]
      %v316 = vlaneseq
      %v317 = vshrl.u32 %v316, 7
      %v318 = vsub.s32 0, %v317
      %v319 = vrot.slane %v314, %v318
      %vm321 = vcmask 31744
      %v323 = vsel %vm321, %v311, 0
      %v326 = vsel %vm321, %v312, 0
      %vm328 = vcmask 1041408
      %v330 = vsel %vm328, %v313, 0
      %332 = vmatprep.subr.bf16.mxu0 0
      %333 = vmatpush1.bf16.msra.mxu0 0
      %334 = vmatprep.subr.bf16.mxu0 0
      %335 = vmatpush1.bf16.msra.mxu0 0
      %336 = vmatprep.subr.bf16.mxu0 0
      %337 = vmatpush1.bf16.msra.mxu0 0
      %338 = vmatprep.subr.bf16.mxu0 0
      %339 = vmatpush1.bf16.msra.mxu0 0
      %340 = vmatprep.subr.bf16.mxu0 0
      %341 = vmatpush1.bf16.msra.mxu0 0
      %342 = vmatprep.subr.bf16.mxu0 0
      %343 = vmatpush1.bf16.msra.mxu0 0
      %344 = vmatprep.subr.bf16.mxu0 0
      %345 = vmatpush1.bf16.msra.mxu0 0
      %346 = vmatprep.subr.bf16.mxu0 0
      %347 = vmatpush1.bf16.msra.mxu0 %v330
      %348 = vmatprep.subr.bf16.mxu0 0
      %349 = vmatpush2.bf16.msra.mxu0 0
      %350 = vmatprep.subr.bf16.mxu0 0
      %351 = vmatpush2.bf16.msra.mxu0 0
      %352 = vmatprep.subr.bf16.mxu0 0
      %353 = vmatpush2.bf16.msra.mxu0 0
      %354 = vmatprep.subr.bf16.mxu0 0
      %355 = vmatpush2.bf16.msra.mxu0 0
      %356 = vmatprep.subr.bf16.mxu0 0
      %357 = vmatpush2.bf16.msra.mxu0 0
      %358 = vmatprep.subr.bf16.mxu0 0
      %359 = vmatpush2.bf16.msra.mxu0 0
      %360 = vmatprep.subr.bf16.mxu0 0
      %361 = vmatpush2.bf16.msra.mxu0 0
      %362 = vmatprep.subr.bf16.mxu0 0
      %363 = vmatpush2.bf16.msra.mxu0 0
      %364 = vmatprep.mubr.bf16.mxu0 0
      %365 = vmatmul.mubr.bf16.gmra.mxu0 %v323
      %v366 = vpop.f32.mrf.mxu0
      %v367 = vadd.f32 %v319, %v366
      %v368 = vpop.f32.mrf.mxu0
      %v369 = vpop.f32.mrf.mxu0
      %v370 = vadd.f32 %v319, %v369
      %v371 = vpop.f32.mrf.mxu0
      %372 = vmatprep.mubr.bf16.mxu0 0
      %373 = vmatmul.mubr.bf16.gmra.mxu0 %v326
      %v374 = vpop.f32.mrf.mxu0
      %v375 = vadd.f32 %v319, %v374
      %v376 = vpop.f32.mrf.mxu0
      %v377 = vpop.f32.mrf.mxu0
      %v378 = vadd.f32 %v319, %v377
      %v379 = vpop.f32.mrf.mxu0
      %380 = vdwg.mxu0
      %v381 = vld [vmem:[%s3] sm:$0xff]
      %v382 = vld [vmem:[%s3 + $0x8] sm:$0xff]
      %v383 = vld [vmem:[%s3 + $0x10] sm:$0xff]
      %v384 = vld [vmem:[%s3 + $0x18] sm:$0xff]
      %v385 = vadd.f32 %v367, %v381
      %v386 = vadd.f32 %v370, %v382
      %v387 = vadd.f32 %v375, %v383
      %v388 = vadd.f32 %v378, %v384
      %v389 = vpack.c.bf16 %v386, %v385
      %v390 = vpack.c.bf16 %v388, %v387
      %v391 = vld [vmem:[%s4] sm:$0xf]
      %v392 = vld [vmem:[%s4 + $0x4] sm:$0xf]
      %v393 = vld [vmem:[%s4 + $0x8] sm:$0xf]
      %v394 = vld [vmem:[%s4 + $0xc] sm:$0xf]
      %v395 = vld [vmem:[%s5] sm:$0x1]
      %v397 = vlaneseq
      %v398 = vshrl.u32 %v397, 7
      %v399 = vsub.s32 0, %v398
      %v400 = vrot.slane %v395, %v399
      %v406 = vunpack.c.l.b16 %v391
      %v407 = vunpack.c.l.b16 %v392
      %v408 = vunpack.c.l.b16 %v393
      %v409 = vunpack.c.l.b16 %v394
      %v410 = vpack.c.b16 %v407, %v406
      %v411 = vpack.c.b16 %v409, %v408
      %vm414 = vcmask 261120
      %v416 = vsel %vm414, %v389, 0
      %v419 = vsel %vm414, %v390, 0
      %421 = vmatprep.subr.bf16.mxu0 0
      %422 = vmatpush1.bf16.msra.mxu0 0
      %423 = vmatprep.subr.bf16.mxu0 0
      %424 = vmatpush1.bf16.msra.mxu0 0
      %425 = vmatprep.subr.bf16.mxu0 0
      %426 = vmatpush1.bf16.msra.mxu0 0
      %427 = vmatprep.subr.bf16.mxu0 0
      %428 = vmatpush1.bf16.msra.mxu0 0
      %429 = vmatprep.subr.bf16.mxu0 0
      %430 = vmatpush1.bf16.msra.mxu0 0
      %431 = vmatprep.subr.bf16.mxu0 0
      %432 = vmatpush1.bf16.msra.mxu0 0
      %433 = vmatprep.subr.bf16.mxu0 0
      %434 = vmatpush1.bf16.msra.mxu0 %v411
      %435 = vmatprep.subr.bf16.mxu0 0
      %436 = vmatpush1.bf16.msra.mxu0 %v410
      %437 = vmatprep.subr.bf16.mxu0 0
      %438 = vmatpush2.bf16.msra.mxu0 0
      %439 = vmatprep.subr.bf16.mxu0 0
      %440 = vmatpush2.bf16.msra.mxu0 0
      %441 = vmatprep.subr.bf16.mxu0 0
      %442 = vmatpush2.bf16.msra.mxu0 0
      %443 = vmatprep.subr.bf16.mxu0 0
      %444 = vmatpush2.bf16.msra.mxu0 0
      %445 = vmatprep.subr.bf16.mxu0 0
      %446 = vmatpush2.bf16.msra.mxu0 0
      %447 = vmatprep.subr.bf16.mxu0 0
      %448 = vmatpush2.bf16.msra.mxu0 0
      %449 = vmatprep.subr.bf16.mxu0 0
      %450 = vmatpush2.bf16.msra.mxu0 0
      %451 = vmatprep.subr.bf16.mxu0 0
      %452 = vmatpush2.bf16.msra.mxu0 0
      %453 = vmatprep.mubr.bf16.mxu0 0
      %454 = vmatmul.mubr.bf16.gmra.mxu0 %v416
      %v455 = vpop.f32.mrf.mxu0
      %v456 = vadd.f32 %v400, %v455
      %v457 = vpop.f32.mrf.mxu0
      %v458 = vpop.f32.mrf.mxu0
      %v459 = vadd.f32 %v400, %v458
      %v460 = vpop.f32.mrf.mxu0
      %461 = vmatprep.mubr.bf16.mxu0 0
      %462 = vmatmul.mubr.bf16.gmra.mxu0 %v419
      %v463 = vpop.f32.mrf.mxu0
      %v464 = vadd.f32 %v400, %v463
      %v465 = vpop.f32.mrf.mxu0
      %v466 = vpop.f32.mrf.mxu0
      %v467 = vadd.f32 %v400, %v466
      %v468 = vpop.f32.mrf.mxu0
      %469 = vdwg.mxu0
      %v470 = vpack.c.bf16 %v459, %v456
      %v471 = vpack.c.bf16 %v467, %v464
      %474 = vrot.lane.b32.xlu0 %v470, 120
      %v475 = vpop.permute.xlu0 %474
      %476 = vrot.lane.b32.xlu0 %v471, 120
      %v477 = vpop.permute.xlu0 %476
      %478 = vrot.lane.b32.xlu0 %v470, 112
      %v479 = vpop.permute.xlu0 %478
      %480 = vrot.lane.b32.xlu0 %v471, 112
      %v481 = vpop.permute.xlu0 %480
      %482 = vrot.lane.b32.xlu0 %v470, 104
      %v483 = vpop.permute.xlu0 %482
      %484 = vrot.lane.b32.xlu0 %v471, 104
      %v485 = vpop.permute.xlu0 %484
      %v486 = vcombine.high %v470, %v470
      %v488 = vunpack.c.l.s4 1983009808
      %v489 = vunpack.c.0.s8 %v488
      %v490 = vlaneseq
      %v491 = vshrl.u32 %v490, 7
      %v492 = vsub.s32 %v489, %v491
      %v493 = vrot.slane %v470, %v492
      %v495 = vunpack.c.l.s4 1983009808
      %v496 = vunpack.c.0.s8 %v495
      %v497 = vlaneseq
      %v498 = vshrl.u32 %v497, 7
      %v499 = vsub.s32 %v496, %v498
      %v500 = vrot.slane %v486, %v499
      %v501 = vcombine.high %v493, %v493
      %v502 = vcombine.high %v500, %v500
      %v503 = vcombine.high %v471, %v471
      %v505 = vunpack.c.l.s4 1983009808
      %v506 = vunpack.c.0.s8 %v505
      %v507 = vlaneseq
      %v508 = vshrl.u32 %v507, 7
      %v509 = vsub.s32 %v506, %v508
      %v510 = vrot.slane %v471, %v509
      %v512 = vunpack.c.l.s4 1983009808
      %v513 = vunpack.c.0.s8 %v512
      %v514 = vlaneseq
      %v515 = vshrl.u32 %v514, 7
      %v516 = vsub.s32 %v513, %v515
      %v517 = vrot.slane %v503, %v516
      %v518 = vcombine.high %v510, %v510
      %v519 = vcombine.high %v517, %v517
      %v520 = vcombine.high %v475, %v475
      %v522 = vunpack.c.l.s4 1983009808
      %v523 = vunpack.c.0.s8 %v522
      %v524 = vlaneseq
      %v525 = vshrl.u32 %v524, 7
      %v526 = vsub.s32 %v523, %v525
      %v527 = vrot.slane %v475, %v526
      %v529 = vunpack.c.l.s4 1983009808
      %v530 = vunpack.c.0.s8 %v529
      %v531 = vlaneseq
      %v532 = vshrl.u32 %v531, 7
      %v533 = vsub.s32 %v530, %v532
      %v534 = vrot.slane %v520, %v533
      %v535 = vcombine.high %v527, %v527
      %v536 = vcombine.high %v534, %v534
      %v537 = vcombine.high %v477, %v477
      %v539 = vunpack.c.l.s4 1983009808
      %v540 = vunpack.c.0.s8 %v539
      %v541 = vlaneseq
      %v542 = vshrl.u32 %v541, 7
      %v543 = vsub.s32 %v540, %v542
      %v544 = vrot.slane %v477, %v543
      %v546 = vunpack.c.l.s4 1983009808
      %v547 = vunpack.c.0.s8 %v546
      %v548 = vlaneseq
      %v549 = vshrl.u32 %v548, 7
      %v550 = vsub.s32 %v547, %v549
      %v551 = vrot.slane %v537, %v550
      %v552 = vcombine.high %v544, %v544
      %v553 = vcombine.high %v551, %v551
      %v554 = vcombine.high %v479, %v479
      %v556 = vunpack.c.l.s4 1983009808
      %v557 = vunpack.c.0.s8 %v556
      %v558 = vlaneseq
      %v559 = vshrl.u32 %v558, 7
      %v560 = vsub.s32 %v557, %v559
      %v561 = vrot.slane %v479, %v560
      %v563 = vunpack.c.l.s4 1983009808
      %v564 = vunpack.c.0.s8 %v563
      %v565 = vlaneseq
      %v566 = vshrl.u32 %v565, 7
      %v567 = vsub.s32 %v564, %v566
      %v568 = vrot.slane %v554, %v567
      %v569 = vcombine.high %v561, %v561
      %v570 = vcombine.high %v568, %v568
      %v571 = vcombine.high %v481, %v481
      %v573 = vunpack.c.l.s4 1983009808
      %v574 = vunpack.c.0.s8 %v573
      %v575 = vlaneseq
      %v576 = vshrl.u32 %v575, 7
      %v577 = vsub.s32 %v574, %v576
      %v578 = vrot.slane %v481, %v577
      %v580 = vunpack.c.l.s4 1983009808
      %v581 = vunpack.c.0.s8 %v580
      %v582 = vlaneseq
      %v583 = vshrl.u32 %v582, 7
      %v584 = vsub.s32 %v581, %v583
      %v585 = vrot.slane %v571, %v584
      %v586 = vcombine.high %v578, %v578
      %v587 = vcombine.high %v585, %v585
      %v588 = vcombine.high %v483, %v483
      %v590 = vunpack.c.l.s4 1983009808
      %v591 = vunpack.c.0.s8 %v590
      %v592 = vlaneseq
      %v593 = vshrl.u32 %v592, 7
      %v594 = vsub.s32 %v591, %v593
      %v595 = vrot.slane %v483, %v594
      %v597 = vunpack.c.l.s4 1983009808
      %v598 = vunpack.c.0.s8 %v597
      %v599 = vlaneseq
      %v600 = vshrl.u32 %v599, 7
      %v601 = vsub.s32 %v598, %v600
      %v602 = vrot.slane %v588, %v601
      %v603 = vcombine.high %v595, %v595
      %v604 = vcombine.high %v602, %v602
      %v605 = vcombine.high %v485, %v485
      %v607 = vunpack.c.l.s4 1983009808
      %v608 = vunpack.c.0.s8 %v607
      %v609 = vlaneseq
      %v610 = vshrl.u32 %v609, 7
      %v611 = vsub.s32 %v608, %v610
      %v612 = vrot.slane %v485, %v611
      %v614 = vunpack.c.l.s4 1983009808
      %v615 = vunpack.c.0.s8 %v614
      %v616 = vlaneseq
      %v617 = vshrl.u32 %v616, 7
      %v618 = vsub.s32 %v615, %v617
      %v619 = vrot.slane %v605, %v618
      %v620 = vcombine.high %v612, %v612
      %v621 = vcombine.high %v619, %v619
      %v623 = vunpack.c.l.s4 1983009808
      %v624 = vunpack.c.0.s8 %v623
      %v625 = vlaneseq
      %v626 = vshrl.u32 %v625, 7
      %v627 = vsub.s32 %v624, %v626
      %v628 = vrot.slane %v493, %v627
      %629 = vrot.lane.b32.xlu0 %v628, 96
      %v630 = vpop.permute.xlu0 %629
      %vm631 = vcmask 64512
      %v633 = vsel %vm631, %v493, 0
      %v636 = vsel %vm631, %v630, 0
      %638 = vmatprep.subr.bf16.mxu0 0
      %639 = vmatpush1.bf16.xpose.msra.mxu0 0
      %640 = vmatprep.subr.bf16.mxu0 0
      %641 = vmatpush1.bf16.xpose.msra.mxu0 0
      %642 = vmatprep.subr.bf16.mxu0 0
      %643 = vmatpush1.bf16.xpose.msra.mxu0 0
      %644 = vmatprep.subr.bf16.mxu0 0
      %645 = vmatpush1.bf16.xpose.msra.mxu0 0
      %646 = vmatprep.subr.bf16.mxu0 0
      %647 = vmatpush1.bf16.xpose.msra.mxu0 0
      %648 = vmatprep.subr.bf16.mxu0 0
      %649 = vmatpush1.bf16.xpose.msra.mxu0 0
      %650 = vmatprep.subr.bf16.mxu0 0
      %651 = vmatpush1.bf16.xpose.msra.mxu0 0
      %652 = vmatprep.subr.bf16.mxu0 0
      %653 = vmatpush1.bf16.xpose.msra.mxu0 %v636
      %654 = vmatprep.subr.bf16.mxu0 0
      %655 = vmatpush2.bf16.xpose.msra.mxu0 0
      %656 = vmatprep.subr.bf16.mxu0 0
      %657 = vmatpush2.bf16.xpose.msra.mxu0 0
      %658 = vmatprep.subr.bf16.mxu0 0
      %659 = vmatpush2.bf16.xpose.msra.mxu0 0
      %660 = vmatprep.subr.bf16.mxu0 0
      %661 = vmatpush2.bf16.xpose.msra.mxu0 0
      %662 = vmatprep.subr.bf16.mxu0 0
      %663 = vmatpush2.bf16.xpose.msra.mxu0 0
      %664 = vmatprep.subr.bf16.mxu0 0
      %665 = vmatpush2.bf16.xpose.msra.mxu0 0
      %666 = vmatprep.subr.bf16.mxu0 0
      %667 = vmatpush2.bf16.xpose.msra.mxu0 0
      %668 = vmatprep.subr.bf16.mxu0 0
      %669 = vmatpush2.bf16.xpose.msra.mxu0 0
      %670 = vmatprep.mubr.bf16.mxu0 0
      %671 = vmatmul.mubr.bf16.gmra.mxu0 %v633
      %v672 = vpop.f32.mrf.mxu0
      %v673 = vadd.f32 0.0, %v672
      %v674 = vpop.f32.mrf.mxu0
      %v675 = vpop.f32.mrf.mxu0
      %v676 = vpop.f32.mrf.mxu0
      %677 = vdwg.mxu0
      %v679 = vunpack.c.l.s4 1983009808
      %v680 = vunpack.c.0.s8 %v679
      %v681 = vlaneseq
      %v682 = vshrl.u32 %v681, 7
      %v683 = vsub.s32 %v680, %v682
      %v684 = vrot.slane %v501, %v683
      %685 = vrot.lane.b32.xlu0 %v684, 96
      %v686 = vpop.permute.xlu0 %685
      %v688 = vsel %vm631, %v501, 0
      %v691 = vsel %vm631, %v686, 0
      %693 = vmatprep.subr.bf16.mxu0 0
      %694 = vmatpush1.bf16.xpose.msra.mxu0 0
      %695 = vmatprep.subr.bf16.mxu0 0
      %696 = vmatpush1.bf16.xpose.msra.mxu0 0
      %697 = vmatprep.subr.bf16.mxu0 0
      %698 = vmatpush1.bf16.xpose.msra.mxu0 0
      %699 = vmatprep.subr.bf16.mxu0 0
      %700 = vmatpush1.bf16.xpose.msra.mxu0 0
      %701 = vmatprep.subr.bf16.mxu0 0
      %702 = vmatpush1.bf16.xpose.msra.mxu0 0
      %703 = vmatprep.subr.bf16.mxu0 0
      %704 = vmatpush1.bf16.xpose.msra.mxu0 0
      %705 = vmatprep.subr.bf16.mxu0 0
      %706 = vmatpush1.bf16.xpose.msra.mxu0 0
      %707 = vmatprep.subr.bf16.mxu0 0
      %708 = vmatpush1.bf16.xpose.msra.mxu0 %v691
      %709 = vmatprep.subr.bf16.mxu0 0
      %710 = vmatpush2.bf16.xpose.msra.mxu0 0
      %711 = vmatprep.subr.bf16.mxu0 0
      %712 = vmatpush2.bf16.xpose.msra.mxu0 0
      %713 = vmatprep.subr.bf16.mxu0 0
      %714 = vmatpush2.bf16.xpose.msra.mxu0 0
      %715 = vmatprep.subr.bf16.mxu0 0
      %716 = vmatpush2.bf16.xpose.msra.mxu0 0
      %717 = vmatprep.subr.bf16.mxu0 0
      %718 = vmatpush2.bf16.xpose.msra.mxu0 0
      %719 = vmatprep.subr.bf16.mxu0 0
      %720 = vmatpush2.bf16.xpose.msra.mxu0 0
      %721 = vmatprep.subr.bf16.mxu0 0
      %722 = vmatpush2.bf16.xpose.msra.mxu0 0
      %723 = vmatprep.subr.bf16.mxu0 0
      %724 = vmatpush2.bf16.xpose.msra.mxu0 0
      %725 = vmatprep.mubr.bf16.mxu0 0
      %726 = vmatmul.mubr.bf16.gmra.mxu0 %v688
      %v727 = vpop.f32.mrf.mxu0
      %v728 = vadd.f32 0.0, %v727
      %v729 = vpop.f32.mrf.mxu0
      %v730 = vpop.f32.mrf.mxu0
      %v731 = vpop.f32.mrf.mxu0
      %732 = vdwg.mxu0
      %v734 = vunpack.c.l.s4 1983009808
      %v735 = vunpack.c.0.s8 %v734
      %v736 = vlaneseq
      %v737 = vshrl.u32 %v736, 7
      %v738 = vsub.s32 %v735, %v737
      %v739 = vrot.slane %v500, %v738
      %740 = vrot.lane.b32.xlu0 %v739, 96
      %v741 = vpop.permute.xlu0 %740
      %v743 = vsel %vm631, %v500, 0
      %v746 = vsel %vm631, %v741, 0
      %748 = vmatprep.subr.bf16.mxu0 0
      %749 = vmatpush1.bf16.xpose.msra.mxu0 0
      %750 = vmatprep.subr.bf16.mxu0 0
      %751 = vmatpush1.bf16.xpose.msra.mxu0 0
      %752 = vmatprep.subr.bf16.mxu0 0
      %753 = vmatpush1.bf16.xpose.msra.mxu0 0
      %754 = vmatprep.subr.bf16.mxu0 0
      %755 = vmatpush1.bf16.xpose.msra.mxu0 0
      %756 = vmatprep.subr.bf16.mxu0 0
      %757 = vmatpush1.bf16.xpose.msra.mxu0 0
      %758 = vmatprep.subr.bf16.mxu0 0
      %759 = vmatpush1.bf16.xpose.msra.mxu0 0
      %760 = vmatprep.subr.bf16.mxu0 0
      %761 = vmatpush1.bf16.xpose.msra.mxu0 0
      %762 = vmatprep.subr.bf16.mxu0 0
      %763 = vmatpush1.bf16.xpose.msra.mxu0 %v746
      %764 = vmatprep.subr.bf16.mxu0 0
      %765 = vmatpush2.bf16.xpose.msra.mxu0 0
      %766 = vmatprep.subr.bf16.mxu0 0
      %767 = vmatpush2.bf16.xpose.msra.mxu0 0
      %768 = vmatprep.subr.bf16.mxu0 0
      %769 = vmatpush2.bf16.xpose.msra.mxu0 0
      %770 = vmatprep.subr.bf16.mxu0 0
      %771 = vmatpush2.bf16.xpose.msra.mxu0 0
      %772 = vmatprep.subr.bf16.mxu0 0
      %773 = vmatpush2.bf16.xpose.msra.mxu0 0
      %774 = vmatprep.subr.bf16.mxu0 0
      %775 = vmatpush2.bf16.xpose.msra.mxu0 0
      %776 = vmatprep.subr.bf16.mxu0 0
      %777 = vmatpush2.bf16.xpose.msra.mxu0 0
      %778 = vmatprep.subr.bf16.mxu0 0
      %779 = vmatpush2.bf16.xpose.msra.mxu0 0
      %780 = vmatprep.mubr.bf16.mxu0 0
      %781 = vmatmul.mubr.bf16.gmra.mxu0 %v743
      %v782 = vpop.f32.mrf.mxu0
      %v783 = vadd.f32 0.0, %v782
      %v784 = vpop.f32.mrf.mxu0
      %v785 = vpop.f32.mrf.mxu0
      %v786 = vpop.f32.mrf.mxu0
      %787 = vdwg.mxu0
      %v789 = vunpack.c.l.s4 1983009808
      %v790 = vunpack.c.0.s8 %v789
      %v791 = vlaneseq
      %v792 = vshrl.u32 %v791, 7
      %v793 = vsub.s32 %v790, %v792
      %v794 = vrot.slane %v502, %v793
      %795 = vrot.lane.b32.xlu0 %v794, 96
      %v796 = vpop.permute.xlu0 %795
      %v798 = vsel %vm631, %v502, 0
      %v801 = vsel %vm631, %v796, 0
      %803 = vmatprep.subr.bf16.mxu0 0
      %804 = vmatpush1.bf16.xpose.msra.mxu0 0
      %805 = vmatprep.subr.bf16.mxu0 0
      %806 = vmatpush1.bf16.xpose.msra.mxu0 0
      %807 = vmatprep.subr.bf16.mxu0 0
      %808 = vmatpush1.bf16.xpose.msra.mxu0 0
      %809 = vmatprep.subr.bf16.mxu0 0
      %810 = vmatpush1.bf16.xpose.msra.mxu0 0
      %811 = vmatprep.subr.bf16.mxu0 0
      %812 = vmatpush1.bf16.xpose.msra.mxu0 0
      %813 = vmatprep.subr.bf16.mxu0 0
      %814 = vmatpush1.bf16.xpose.msra.mxu0 0
      %815 = vmatprep.subr.bf16.mxu0 0
      %816 = vmatpush1.bf16.xpose.msra.mxu0 0
      %817 = vmatprep.subr.bf16.mxu0 0
      %818 = vmatpush1.bf16.xpose.msra.mxu0 %v801
      %819 = vmatprep.subr.bf16.mxu0 0
      %820 = vmatpush2.bf16.xpose.msra.mxu0 0
      %821 = vmatprep.subr.bf16.mxu0 0
      %822 = vmatpush2.bf16.xpose.msra.mxu0 0
      %823 = vmatprep.subr.bf16.mxu0 0
      %824 = vmatpush2.bf16.xpose.msra.mxu0 0
      %825 = vmatprep.subr.bf16.mxu0 0
      %826 = vmatpush2.bf16.xpose.msra.mxu0 0
      %827 = vmatprep.subr.bf16.mxu0 0
      %828 = vmatpush2.bf16.xpose.msra.mxu0 0
      %829 = vmatprep.subr.bf16.mxu0 0
      %830 = vmatpush2.bf16.xpose.msra.mxu0 0
      %831 = vmatprep.subr.bf16.mxu0 0
      %832 = vmatpush2.bf16.xpose.msra.mxu0 0
      %833 = vmatprep.subr.bf16.mxu0 0
      %834 = vmatpush2.bf16.xpose.msra.mxu0 0
      %835 = vmatprep.mubr.bf16.mxu0 0
      %836 = vmatmul.mubr.bf16.gmra.mxu0 %v798
      %v837 = vpop.f32.mrf.mxu0
      %v838 = vadd.f32 0.0, %v837
      %v839 = vpop.f32.mrf.mxu0
      %v840 = vpop.f32.mrf.mxu0
      %v841 = vpop.f32.mrf.mxu0
      %842 = vdwg.mxu0
      %v844 = vunpack.c.l.s4 1983009808
      %v845 = vunpack.c.0.s8 %v844
      %v846 = vlaneseq
      %v847 = vshrl.u32 %v846, 7
      %v848 = vsub.s32 %v845, %v847
      %v849 = vrot.slane %v510, %v848
      %850 = vrot.lane.b32.xlu0 %v849, 96
      %v851 = vpop.permute.xlu0 %850
      %v853 = vsel %vm631, %v510, 0
      %v856 = vsel %vm631, %v851, 0
      %858 = vmatprep.subr.bf16.mxu0 0
      %859 = vmatpush1.bf16.xpose.msra.mxu0 0
      %860 = vmatprep.subr.bf16.mxu0 0
      %861 = vmatpush1.bf16.xpose.msra.mxu0 0
      %862 = vmatprep.subr.bf16.mxu0 0
      %863 = vmatpush1.bf16.xpose.msra.mxu0 0
      %864 = vmatprep.subr.bf16.mxu0 0
      %865 = vmatpush1.bf16.xpose.msra.mxu0 0
      %866 = vmatprep.subr.bf16.mxu0 0
      %867 = vmatpush1.bf16.xpose.msra.mxu0 0
      %868 = vmatprep.subr.bf16.mxu0 0
      %869 = vmatpush1.bf16.xpose.msra.mxu0 0
      %870 = vmatprep.subr.bf16.mxu0 0
      %871 = vmatpush1.bf16.xpose.msra.mxu0 0
      %872 = vmatprep.subr.bf16.mxu0 0
      %873 = vmatpush1.bf16.xpose.msra.mxu0 %v856
      %874 = vmatprep.subr.bf16.mxu0 0
      %875 = vmatpush2.bf16.xpose.msra.mxu0 0
      %876 = vmatprep.subr.bf16.mxu0 0
      %877 = vmatpush2.bf16.xpose.msra.mxu0 0
      %878 = vmatprep.subr.bf16.mxu0 0
      %879 = vmatpush2.bf16.xpose.msra.mxu0 0
      %880 = vmatprep.subr.bf16.mxu0 0
      %881 = vmatpush2.bf16.xpose.msra.mxu0 0
      %882 = vmatprep.subr.bf16.mxu0 0
      %883 = vmatpush2.bf16.xpose.msra.mxu0 0
      %884 = vmatprep.subr.bf16.mxu0 0
      %885 = vmatpush2.bf16.xpose.msra.mxu0 0
      %886 = vmatprep.subr.bf16.mxu0 0
      %887 = vmatpush2.bf16.xpose.msra.mxu0 0
      %888 = vmatprep.subr.bf16.mxu0 0
      %889 = vmatpush2.bf16.xpose.msra.mxu0 0
      %890 = vmatprep.mubr.bf16.mxu0 0
      %891 = vmatmul.mubr.bf16.gmra.mxu0 %v853
      %v892 = vpop.f32.mrf.mxu0
      %v893 = vadd.f32 0.0, %v892
      %v894 = vpop.f32.mrf.mxu0
      %v895 = vpop.f32.mrf.mxu0
      %v896 = vpop.f32.mrf.mxu0
      %897 = vdwg.mxu0
      %v899 = vunpack.c.l.s4 1983009808
      %v900 = vunpack.c.0.s8 %v899
      %v901 = vlaneseq
      %v902 = vshrl.u32 %v901, 7
      %v903 = vsub.s32 %v900, %v902
      %v904 = vrot.slane %v518, %v903
      %905 = vrot.lane.b32.xlu0 %v904, 96
      %v906 = vpop.permute.xlu0 %905
      %v908 = vsel %vm631, %v518, 0
      %v911 = vsel %vm631, %v906, 0
      %913 = vmatprep.subr.bf16.mxu0 0
      %914 = vmatpush1.bf16.xpose.msra.mxu0 0
      %915 = vmatprep.subr.bf16.mxu0 0
      %916 = vmatpush1.bf16.xpose.msra.mxu0 0
      %917 = vmatprep.subr.bf16.mxu0 0
      %918 = vmatpush1.bf16.xpose.msra.mxu0 0
      %919 = vmatprep.subr.bf16.mxu0 0
      %920 = vmatpush1.bf16.xpose.msra.mxu0 0
      %921 = vmatprep.subr.bf16.mxu0 0
      %922 = vmatpush1.bf16.xpose.msra.mxu0 0
      %923 = vmatprep.subr.bf16.mxu0 0
      %924 = vmatpush1.bf16.xpose.msra.mxu0 0
      %925 = vmatprep.subr.bf16.mxu0 0
      %926 = vmatpush1.bf16.xpose.msra.mxu0 0
      %927 = vmatprep.subr.bf16.mxu0 0
      %928 = vmatpush1.bf16.xpose.msra.mxu0 %v911
      %929 = vmatprep.subr.bf16.mxu0 0
      %930 = vmatpush2.bf16.xpose.msra.mxu0 0
      %931 = vmatprep.subr.bf16.mxu0 0
      %932 = vmatpush2.bf16.xpose.msra.mxu0 0
      %933 = vmatprep.subr.bf16.mxu0 0
      %934 = vmatpush2.bf16.xpose.msra.mxu0 0
      %935 = vmatprep.subr.bf16.mxu0 0
      %936 = vmatpush2.bf16.xpose.msra.mxu0 0
      %937 = vmatprep.subr.bf16.mxu0 0
      %938 = vmatpush2.bf16.xpose.msra.mxu0 0
      %939 = vmatprep.subr.bf16.mxu0 0
      %940 = vmatpush2.bf16.xpose.msra.mxu0 0
      %941 = vmatprep.subr.bf16.mxu0 0
      %942 = vmatpush2.bf16.xpose.msra.mxu0 0
      %943 = vmatprep.subr.bf16.mxu0 0
      %944 = vmatpush2.bf16.xpose.msra.mxu0 0
      %945 = vmatprep.mubr.bf16.mxu0 0
      %946 = vmatmul.mubr.bf16.gmra.mxu0 %v908
      %v947 = vpop.f32.mrf.mxu0
      %v948 = vadd.f32 0.0, %v947
      %v949 = vpop.f32.mrf.mxu0
      %v950 = vpop.f32.mrf.mxu0
      %v951 = vpop.f32.mrf.mxu0
      %952 = vdwg.mxu0
      %v954 = vunpack.c.l.s4 1983009808
      %v955 = vunpack.c.0.s8 %v954
      %v956 = vlaneseq
      %v957 = vshrl.u32 %v956, 7
      %v958 = vsub.s32 %v955, %v957
      %v959 = vrot.slane %v517, %v958
      %960 = vrot.lane.b32.xlu0 %v959, 96
      %v961 = vpop.permute.xlu0 %960
      %v963 = vsel %vm631, %v517, 0
      %v966 = vsel %vm631, %v961, 0
      %968 = vmatprep.subr.bf16.mxu0 0
      %969 = vmatpush1.bf16.xpose.msra.mxu0 0
      %970 = vmatprep.subr.bf16.mxu0 0
      %971 = vmatpush1.bf16.xpose.msra.mxu0 0
      %972 = vmatprep.subr.bf16.mxu0 0
      %973 = vmatpush1.bf16.xpose.msra.mxu0 0
      %974 = vmatprep.subr.bf16.mxu0 0
      %975 = vmatpush1.bf16.xpose.msra.mxu0 0
      %976 = vmatprep.subr.bf16.mxu0 0
      %977 = vmatpush1.bf16.xpose.msra.mxu0 0
      %978 = vmatprep.subr.bf16.mxu0 0
      %979 = vmatpush1.bf16.xpose.msra.mxu0 0
      %980 = vmatprep.subr.bf16.mxu0 0
      %981 = vmatpush1.bf16.xpose.msra.mxu0 0
      %982 = vmatprep.subr.bf16.mxu0 0
      %983 = vmatpush1.bf16.xpose.msra.mxu0 %v966
      %984 = vmatprep.subr.bf16.mxu0 0
      %985 = vmatpush2.bf16.xpose.msra.mxu0 0
      %986 = vmatprep.subr.bf16.mxu0 0
      %987 = vmatpush2.bf16.xpose.msra.mxu0 0
      %988 = vmatprep.subr.bf16.mxu0 0
      %989 = vmatpush2.bf16.xpose.msra.mxu0 0
      %990 = vmatprep.subr.bf16.mxu0 0
      %991 = vmatpush2.bf16.xpose.msra.mxu0 0
      %992 = vmatprep.subr.bf16.mxu0 0
      %993 = vmatpush2.bf16.xpose.msra.mxu0 0
      %994 = vmatprep.subr.bf16.mxu0 0
      %995 = vmatpush2.bf16.xpose.msra.mxu0 0
      %996 = vmatprep.subr.bf16.mxu0 0
      %997 = vmatpush2.bf16.xpose.msra.mxu0 0
      %998 = vmatprep.subr.bf16.mxu0 0
      %999 = vmatpush2.bf16.xpose.msra.mxu0 0
      %1000 = vmatprep.mubr.bf16.mxu0 0
      %1001 = vmatmul.mubr.bf16.gmra.mxu0 %v963
      %v1002 = vpop.f32.mrf.mxu0
      %v1003 = vadd.f32 0.0, %v1002
      %v1004 = vpop.f32.mrf.mxu0
      %v1005 = vpop.f32.mrf.mxu0
      %v1006 = vpop.f32.mrf.mxu0
      %1007 = vdwg.mxu0
      %v1009 = vunpack.c.l.s4 1983009808
      %v1010 = vunpack.c.0.s8 %v1009
      %v1011 = vlaneseq
      %v1012 = vshrl.u32 %v1011, 7
      %v1013 = vsub.s32 %v1010, %v1012
      %v1014 = vrot.slane %v519, %v1013
      %1015 = vrot.lane.b32.xlu0 %v1014, 96
      %v1016 = vpop.permute.xlu0 %1015
      %v1018 = vsel %vm631, %v519, 0
      %v1021 = vsel %vm631, %v1016, 0
      %1023 = vmatprep.subr.bf16.mxu0 0
      %1024 = vmatpush1.bf16.xpose.msra.mxu0 0
      %1025 = vmatprep.subr.bf16.mxu0 0
      %1026 = vmatpush1.bf16.xpose.msra.mxu0 0
      %1027 = vmatprep.subr.bf16.mxu0 0
      %1028 = vmatpush1.bf16.xpose.msra.mxu0 0
      %1029 = vmatprep.subr.bf16.mxu0 0
      %1030 = vmatpush1.bf16.xpose.msra.mxu0 0
      %1031 = vmatprep.subr.bf16.mxu0 0
      %1032 = vmatpush1.bf16.xpose.msra.mxu0 0
      %1033 = vmatprep.subr.bf16.mxu0 0
      %1034 = vmatpush1.bf16.xpose.msra.mxu0 0
      %1035 = vmatprep.subr.bf16.mxu0 0
      %1036 = vmatpush1.bf16.xpose.msra.mxu0 0
      %1037 = vmatprep.subr.bf16.mxu0 0
      %1038 = vmatpush1.bf16.xpose.msra.mxu0 %v1021
      %1039 = vmatprep.subr.bf16.mxu0 0
      %1040 = vmatpush2.bf16.xpose.msra.mxu0 0
      %1041 = vmatprep.subr.bf16.mxu0 0
      %1042 = vmatpush2.bf16.xpose.msra.mxu0 0
      %1043 = vmatprep.subr.bf16.mxu0 0
      %1044 = vmatpush2.bf16.xpose.msra.mxu0 0
      %1045 = vmatprep.subr.bf16.mxu0 0
      %1046 = vmatpush2.bf16.xpose.msra.mxu0 0
      %1047 = vmatprep.subr.bf16.mxu0 0
      %1048 = vmatpush2.bf16.xpose.msra.mxu0 0
      %1049 = vmatprep.subr.bf16.mxu0 0
      %1050 = vmatpush2.bf16.xpose.msra.mxu0 0
      %1051 = vmatprep.subr.bf16.mxu0 0
      %1052 = vmatpush2.bf16.xpose.msra.mxu0 0
      %1053 = vmatprep.subr.bf16.mxu0 0
      %1054 = vmatpush2.bf16.xpose.msra.mxu0 0
      %1055 = vmatprep.mubr.bf16.mxu0 0
      %1056 = vmatmul.mubr.bf16.gmra.mxu0 %v1018
      %v1057 = vpop.f32.mrf.mxu0
      %v1058 = vadd.f32 0.0, %v1057
      %v1059 = vpop.f32.mrf.mxu0
      %v1060 = vpop.f32.mrf.mxu0
      %v1061 = vpop.f32.mrf.mxu0
      %1062 = vdwg.mxu0
      %v1064 = vunpack.c.l.s4 1983009808
      %v1065 = vunpack.c.0.s8 %v1064
      %v1066 = vlaneseq
      %v1067 = vshrl.u32 %v1066, 7
      %v1068 = vsub.s32 %v1065, %v1067
      %v1069 = vrot.slane %v527, %v1068
      %1070 = vrot.lane.b32.xlu0 %v1069, 96
      %v1071 = vpop.permute.xlu0 %1070
      %v1073 = vsel %vm631, %v527, 0
      %v1076 = vsel %vm631, %v1071, 0
      %1078 = vmatprep.subr.bf16.mxu0 0
      %1079 = vmatpush1.bf16.xpose.msra.mxu0 0
      %1080 = vmatprep.subr.bf16.mxu0 0
      %1081 = vmatpush1.bf16.xpose.msra.mxu0 0
      %1082 = vmatprep.subr.bf16.mxu0 0
      %1083 = vmatpush1.bf16.xpose.msra.mxu0 0
      %1084 = vmatprep.subr.bf16.mxu0 0
      %1085 = vmatpush1.bf16.xpose.msra.mxu0 0
      %1086 = vmatprep.subr.bf16.mxu0 0
      %1087 = vmatpush1.bf16.xpose.msra.mxu0 0
      %1088 = vmatprep.subr.bf16.mxu0 0
      %1089 = vmatpush1.bf16.xpose.msra.mxu0 0
      %1090 = vmatprep.subr.bf16.mxu0 0
      %1091 = vmatpush1.bf16.xpose.msra.mxu0 0
      %1092 = vmatprep.subr.bf16.mxu0 0
      %1093 = vmatpush1.bf16.xpose.msra.mxu0 %v1076
      %1094 = vmatprep.subr.bf16.mxu0 0
      %1095 = vmatpush2.bf16.xpose.msra.mxu0 0
      %1096 = vmatprep.subr.bf16.mxu0 0
      %1097 = vmatpush2.bf16.xpose.msra.mxu0 0
      %1098 = vmatprep.subr.bf16.mxu0 0
      %1099 = vmatpush2.bf16.xpose.msra.mxu0 0
      %1100 = vmatprep.subr.bf16.mxu0 0
      %1101 = vmatpush2.bf16.xpose.msra.mxu0 0
      %1102 = vmatprep.subr.bf16.mxu0 0
      %1103 = vmatpush2.bf16.xpose.msra.mxu0 0
      %1104 = vmatprep.subr.bf16.mxu0 0
      %1105 = vmatpush2.bf16.xpose.msra.mxu0 0
      %1106 = vmatprep.subr.bf16.mxu0 0
      %1107 = vmatpush2.bf16.xpose.msra.mxu0 0
      %1108 = vmatprep.subr.bf16.mxu0 0
      %1109 = vmatpush2.bf16.xpose.msra.mxu0 0
      %1110 = vmatprep.mubr.bf16.mxu0 0
      %1111 = vmatmul.mubr.bf16.gmra.mxu0 %v1073
      %v1112 = vpop.f32.mrf.mxu0
      %v1113 = vadd.f32 0.0, %v1112
      %v1114 = vpop.f32.mrf.mxu0
      %v1115 = vpop.f32.mrf.mxu0
      %v1116 = vpop.f32.mrf.mxu0
      %1117 = vdwg.mxu0
      %v1119 = vunpack.c.l.s4 1983009808
      %v1120 = vunpack.c.0.s8 %v1119
      %v1121 = vlaneseq
      %v1122 = vshrl.u32 %v1121, 7
      %v1123 = vsub.s32 %v1120, %v1122
      %v1124 = vrot.slane %v535, %v1123
      %1125 = vrot.lane.b32.xlu0 %v1124, 96
      %v1126 = vpop.permute.xlu0 %1125
      %v1128 = vsel %vm631, %v535, 0
      %v1131 = vsel %vm631, %v1126, 0
      %1133 = vmatprep.subr.bf16.mxu0 0
      %1134 = vmatpush1.bf16.xpose.msra.mxu0 0
      %1135 = vmatprep.subr.bf16.mxu0 0
      %1136 = vmatpush1.bf16.xpose.msra.mxu0 0
      %1137 = vmatprep.subr.bf16.mxu0 0
      %1138 = vmatpush1.bf16.xpose.msra.mxu0 0
      %1139 = vmatprep.subr.bf16.mxu0 0
      %1140 = vmatpush1.bf16.xpose.msra.mxu0 0
      %1141 = vmatprep.subr.bf16.mxu0 0
      %1142 = vmatpush1.bf16.xpose.msra.mxu0 0
      %1143 = vmatprep.subr.bf16.mxu0 0
      %1144 = vmatpush1.bf16.xpose.msra.mxu0 0
      %1145 = vmatprep.subr.bf16.mxu0 0
      %1146 = vmatpush1.bf16.xpose.msra.mxu0 0
      %1147 = vmatprep.subr.bf16.mxu0 0
      %1148 = vmatpush1.bf16.xpose.msra.mxu0 %v1131
      %1149 = vmatprep.subr.bf16.mxu0 0
      %1150 = vmatpush2.bf16.xpose.msra.mxu0 0
      %1151 = vmatprep.subr.bf16.mxu0 0
      %1152 = vmatpush2.bf16.xpose.msra.mxu0 0
      %1153 = vmatprep.subr.bf16.mxu0 0
      %1154 = vmatpush2.bf16.xpose.msra.mxu0 0
      %1155 = vmatprep.subr.bf16.mxu0 0
      %1156 = vmatpush2.bf16.xpose.msra.mxu0 0
      %1157 = vmatprep.subr.bf16.mxu0 0
      %1158 = vmatpush2.bf16.xpose.msra.mxu0 0
      %1159 = vmatprep.subr.bf16.mxu0 0
      %1160 = vmatpush2.bf16.xpose.msra.mxu0 0
      %1161 = vmatprep.subr.bf16.mxu0 0
      %1162 = vmatpush2.bf16.xpose.msra.mxu0 0
      %1163 = vmatprep.subr.bf16.mxu0 0
      %1164 = vmatpush2.bf16.xpose.msra.mxu0 0
      %1165 = vmatprep.mubr.bf16.mxu0 0
      %1166 = vmatmul.mubr.bf16.gmra.mxu0 %v1128
      %v1167 = vpop.f32.mrf.mxu0
      %v1168 = vadd.f32 0.0, %v1167
      %v1169 = vpop.f32.mrf.mxu0
      %v1170 = vpop.f32.mrf.mxu0
      %v1171 = vpop.f32.mrf.mxu0
      %1172 = vdwg.mxu0
      %v1174 = vunpack.c.l.s4 1983009808
      %v1175 = vunpack.c.0.s8 %v1174
      %v1176 = vlaneseq
      %v1177 = vshrl.u32 %v1176, 7
      %v1178 = vsub.s32 %v1175, %v1177
      %v1179 = vrot.slane %v534, %v1178
      %1180 = vrot.lane.b32.xlu0 %v1179, 96
      %v1181 = vpop.permute.xlu0 %1180
      %v1183 = vsel %vm631, %v534, 0
      %v1186 = vsel %vm631, %v1181, 0
      %1188 = vmatprep.subr.bf16.mxu0 0
      %1189 = vmatpush1.bf16.xpose.msra.mxu0 0
      %1190 = vmatprep.subr.bf16.mxu0 0
      %1191 = vmatpush1.bf16.xpose.msra.mxu0 0
      %1192 = vmatprep.subr.bf16.mxu0 0
      %1193 = vmatpush1.bf16.xpose.msra.mxu0 0
      %1194 = vmatprep.subr.bf16.mxu0 0
      %1195 = vmatpush1.bf16.xpose.msra.mxu0 0
      %1196 = vmatprep.subr.bf16.mxu0 0
      %1197 = vmatpush1.bf16.xpose.msra.mxu0 0
      %1198 = vmatprep.subr.bf16.mxu0 0
      %1199 = vmatpush1.bf16.xpose.msra.mxu0 0
      %1200 = vmatprep.subr.bf16.mxu0 0
      %1201 = vmatpush1.bf16.xpose.msra.mxu0 0
      %1202 = vmatprep.subr.bf16.mxu0 0
      %1203 = vmatpush1.bf16.xpose.msra.mxu0 %v1186
      %1204 = vmatprep.subr.bf16.mxu0 0
      %1205 = vmatpush2.bf16.xpose.msra.mxu0 0
      %1206 = vmatprep.subr.bf16.mxu0 0
      %1207 = vmatpush2.bf16.xpose.msra.mxu0 0
      %1208 = vmatprep.subr.bf16.mxu0 0
      %1209 = vmatpush2.bf16.xpose.msra.mxu0 0
      %1210 = vmatprep.subr.bf16.mxu0 0
      %1211 = vmatpush2.bf16.xpose.msra.mxu0 0
      %1212 = vmatprep.subr.bf16.mxu0 0
      %1213 = vmatpush2.bf16.xpose.msra.mxu0 0
      %1214 = vmatprep.subr.bf16.mxu0 0
      %1215 = vmatpush2.bf16.xpose.msra.mxu0 0
      %1216 = vmatprep.subr.bf16.mxu0 0
      %1217 = vmatpush2.bf16.xpose.msra.mxu0 0
      %1218 = vmatprep.subr.bf16.mxu0 0
      %1219 = vmatpush2.bf16.xpose.msra.mxu0 0
      %1220 = vmatprep.mubr.bf16.mxu0 0
      %1221 = vmatmul.mubr.bf16.gmra.mxu0 %v1183
      %v1222 = vpop.f32.mrf.mxu0
      %v1223 = vadd.f32 0.0, %v1222
      %v1224 = vpop.f32.mrf.mxu0
      %v1225 = vpop.f32.mrf.mxu0
      %v1226 = vpop.f32.mrf.mxu0
      %1227 = vdwg.mxu0
      %v1229 = vunpack.c.l.s4 1983009808
      %v1230 = vunpack.c.0.s8 %v1229
      %v1231 = vlaneseq
      %v1232 = vshrl.u32 %v1231, 7
      %v1233 = vsub.s32 %v1230, %v1232
      %v1234 = vrot.slane %v536, %v1233
      %1235 = vrot.lane.b32.xlu0 %v1234, 96
      %v1236 = vpop.permute.xlu0 %1235
      %v1238 = vsel %vm631, %v536, 0
      %v1241 = vsel %vm631, %v1236, 0
      %1243 = vmatprep.subr.bf16.mxu0 0
      %1244 = vmatpush1.bf16.xpose.msra.mxu0 0
      %1245 = vmatprep.subr.bf16.mxu0 0
      %1246 = vmatpush1.bf16.xpose.msra.mxu0 0
      %1247 = vmatprep.subr.bf16.mxu0 0
      %1248 = vmatpush1.bf16.xpose.msra.mxu0 0
      %1249 = vmatprep.subr.bf16.mxu0 0
      %1250 = vmatpush1.bf16.xpose.msra.mxu0 0
      %1251 = vmatprep.subr.bf16.mxu0 0
      %1252 = vmatpush1.bf16.xpose.msra.mxu0 0
      %1253 = vmatprep.subr.bf16.mxu0 0
      %1254 = vmatpush1.bf16.xpose.msra.mxu0 0
      %1255 = vmatprep.subr.bf16.mxu0 0
      %1256 = vmatpush1.bf16.xpose.msra.mxu0 0
      %1257 = vmatprep.subr.bf16.mxu0 0
      %1258 = vmatpush1.bf16.xpose.msra.mxu0 %v1241
      %1259 = vmatprep.subr.bf16.mxu0 0
      %1260 = vmatpush2.bf16.xpose.msra.mxu0 0
      %1261 = vmatprep.subr.bf16.mxu0 0
      %1262 = vmatpush2.bf16.xpose.msra.mxu0 0
      %1263 = vmatprep.subr.bf16.mxu0 0
      %1264 = vmatpush2.bf16.xpose.msra.mxu0 0
      %1265 = vmatprep.subr.bf16.mxu0 0
      %1266 = vmatpush2.bf16.xpose.msra.mxu0 0
      %1267 = vmatprep.subr.bf16.mxu0 0
      %1268 = vmatpush2.bf16.xpose.msra.mxu0 0
      %1269 = vmatprep.subr.bf16.mxu0 0
      %1270 = vmatpush2.bf16.xpose.msra.mxu0 0
      %1271 = vmatprep.subr.bf16.mxu0 0
      %1272 = vmatpush2.bf16.xpose.msra.mxu0 0
      %1273 = vmatprep.subr.bf16.mxu0 0
      %1274 = vmatpush2.bf16.xpose.msra.mxu0 0
      %1275 = vmatprep.mubr.bf16.mxu0 0
      %1276 = vmatmul.mubr.bf16.gmra.mxu0 %v1238
      %v1277 = vpop.f32.mrf.mxu0
      %v1278 = vadd.f32 0.0, %v1277
      %v1279 = vpop.f32.mrf.mxu0
      %v1280 = vpop.f32.mrf.mxu0
      %v1281 = vpop.f32.mrf.mxu0
      %1282 = vdwg.mxu0
      %v1284 = vunpack.c.l.s4 1983009808
      %v1285 = vunpack.c.0.s8 %v1284
      %v1286 = vlaneseq
      %v1287 = vshrl.u32 %v1286, 7
      %v1288 = vsub.s32 %v1285, %v1287
      %v1289 = vrot.slane %v544, %v1288
      %1290 = vrot.lane.b32.xlu0 %v1289, 96
      %v1291 = vpop.permute.xlu0 %1290
      %v1293 = vsel %vm631, %v544, 0
      %v1296 = vsel %vm631, %v1291, 0
      %1298 = vmatprep.subr.bf16.mxu0 0
      %1299 = vmatpush1.bf16.xpose.msra.mxu0 0
      %1300 = vmatprep.subr.bf16.mxu0 0
      %1301 = vmatpush1.bf16.xpose.msra.mxu0 0
      %1302 = vmatprep.subr.bf16.mxu0 0
      %1303 = vmatpush1.bf16.xpose.msra.mxu0 0
      %1304 = vmatprep.subr.bf16.mxu0 0
      %1305 = vmatpush1.bf16.xpose.msra.mxu0 0
      %1306 = vmatprep.subr.bf16.mxu0 0
      %1307 = vmatpush1.bf16.xpose.msra.mxu0 0
      %1308 = vmatprep.subr.bf16.mxu0 0
      %1309 = vmatpush1.bf16.xpose.msra.mxu0 0
      %1310 = vmatprep.subr.bf16.mxu0 0
      %1311 = vmatpush1.bf16.xpose.msra.mxu0 0
      %1312 = vmatprep.subr.bf16.mxu0 0
      %1313 = vmatpush1.bf16.xpose.msra.mxu0 %v1296
      %1314 = vmatprep.subr.bf16.mxu0 0
      %1315 = vmatpush2.bf16.xpose.msra.mxu0 0
      %1316 = vmatprep.subr.bf16.mxu0 0
      %1317 = vmatpush2.bf16.xpose.msra.mxu0 0
      %1318 = vmatprep.subr.bf16.mxu0 0
      %1319 = vmatpush2.bf16.xpose.msra.mxu0 0
      %1320 = vmatprep.subr.bf16.mxu0 0
      %1321 = vmatpush2.bf16.xpose.msra.mxu0 0
      %1322 = vmatprep.subr.bf16.mxu0 0
      %1323 = vmatpush2.bf16.xpose.msra.mxu0 0
      %1324 = vmatprep.subr.bf16.mxu0 0
      %1325 = vmatpush2.bf16.xpose.msra.mxu0 0
      %1326 = vmatprep.subr.bf16.mxu0 0
      %1327 = vmatpush2.bf16.xpose.msra.mxu0 0
      %1328 = vmatprep.subr.bf16.mxu0 0
      %1329 = vmatpush2.bf16.xpose.msra.mxu0 0
      %1330 = vmatprep.mubr.bf16.mxu0 0
      %1331 = vmatmul.mubr.bf16.gmra.mxu0 %v1293
      %v1332 = vpop.f32.mrf.mxu0
      %v1333 = vadd.f32 0.0, %v1332
      %v1334 = vpop.f32.mrf.mxu0
      %v1335 = vpop.f32.mrf.mxu0
      %v1336 = vpop.f32.mrf.mxu0
      %1337 = vdwg.mxu0
      %v1339 = vunpack.c.l.s4 1983009808
      %v1340 = vunpack.c.0.s8 %v1339
      %v1341 = vlaneseq
      %v1342 = vshrl.u32 %v1341, 7
      %v1343 = vsub.s32 %v1340, %v1342
      %v1344 = vrot.slane %v552, %v1343
      %1345 = vrot.lane.b32.xlu0 %v1344, 96
      %v1346 = vpop.permute.xlu0 %1345
      %v1348 = vsel %vm631, %v552, 0
      %v1351 = vsel %vm631, %v1346, 0
      %1353 = vmatprep.subr.bf16.mxu0 0
      %1354 = vmatpush1.bf16.xpose.msra.mxu0 0
      %1355 = vmatprep.subr.bf16.mxu0 0
      %1356 = vmatpush1.bf16.xpose.msra.mxu0 0
      %1357 = vmatprep.subr.bf16.mxu0 0
      %1358 = vmatpush1.bf16.xpose.msra.mxu0 0
      %1359 = vmatprep.subr.bf16.mxu0 0
      %1360 = vmatpush1.bf16.xpose.msra.mxu0 0
      %1361 = vmatprep.subr.bf16.mxu0 0
      %1362 = vmatpush1.bf16.xpose.msra.mxu0 0
      %1363 = vmatprep.subr.bf16.mxu0 0
      %1364 = vmatpush1.bf16.xpose.msra.mxu0 0
      %1365 = vmatprep.subr.bf16.mxu0 0
      %1366 = vmatpush1.bf16.xpose.msra.mxu0 0
      %1367 = vmatprep.subr.bf16.mxu0 0
      %1368 = vmatpush1.bf16.xpose.msra.mxu0 %v1351
      %1369 = vmatprep.subr.bf16.mxu0 0
      %1370 = vmatpush2.bf16.xpose.msra.mxu0 0
      %1371 = vmatprep.subr.bf16.mxu0 0
      %1372 = vmatpush2.bf16.xpose.msra.mxu0 0
      %1373 = vmatprep.subr.bf16.mxu0 0
      %1374 = vmatpush2.bf16.xpose.msra.mxu0 0
      %1375 = vmatprep.subr.bf16.mxu0 0
      %1376 = vmatpush2.bf16.xpose.msra.mxu0 0
      %1377 = vmatprep.subr.bf16.mxu0 0
      %1378 = vmatpush2.bf16.xpose.msra.mxu0 0
      %1379 = vmatprep.subr.bf16.mxu0 0
      %1380 = vmatpush2.bf16.xpose.msra.mxu0 0
      %1381 = vmatprep.subr.bf16.mxu0 0
      %1382 = vmatpush2.bf16.xpose.msra.mxu0 0
      %1383 = vmatprep.subr.bf16.mxu0 0
      %1384 = vmatpush2.bf16.xpose.msra.mxu0 0
      %1385 = vmatprep.mubr.bf16.mxu0 0
      %1386 = vmatmul.mubr.bf16.gmra.mxu0 %v1348
      %v1387 = vpop.f32.mrf.mxu0
      %v1388 = vadd.f32 0.0, %v1387
      %v1389 = vpop.f32.mrf.mxu0
      %v1390 = vpop.f32.mrf.mxu0
      %v1391 = vpop.f32.mrf.mxu0
      %1392 = vdwg.mxu0
      %v1394 = vunpack.c.l.s4 1983009808
      %v1395 = vunpack.c.0.s8 %v1394
      %v1396 = vlaneseq
      %v1397 = vshrl.u32 %v1396, 7
      %v1398 = vsub.s32 %v1395, %v1397
      %v1399 = vrot.slane %v551, %v1398
      %1400 = vrot.lane.b32.xlu0 %v1399, 96
      %v1401 = vpop.permute.xlu0 %1400
      %v1403 = vsel %vm631, %v551, 0
      %v1406 = vsel %vm631, %v1401, 0
      %1408 = vmatprep.subr.bf16.mxu0 0
      %1409 = vmatpush1.bf16.xpose.msra.mxu0 0
      %1410 = vmatprep.subr.bf16.mxu0 0
      %1411 = vmatpush1.bf16.xpose.msra.mxu0 0
      %1412 = vmatprep.subr.bf16.mxu0 0
      %1413 = vmatpush1.bf16.xpose.msra.mxu0 0
      %1414 = vmatprep.subr.bf16.mxu0 0
      %1415 = vmatpush1.bf16.xpose.msra.mxu0 0
      %1416 = vmatprep.subr.bf16.mxu0 0
      %1417 = vmatpush1.bf16.xpose.msra.mxu0 0
      %1418 = vmatprep.subr.bf16.mxu0 0
      %1419 = vmatpush1.bf16.xpose.msra.mxu0 0
      %1420 = vmatprep.subr.bf16.mxu0 0
      %1421 = vmatpush1.bf16.xpose.msra.mxu0 0
      %1422 = vmatprep.subr.bf16.mxu0 0
      %1423 = vmatpush1.bf16.xpose.msra.mxu0 %v1406
      %1424 = vmatprep.subr.bf16.mxu0 0
      %1425 = vmatpush2.bf16.xpose.msra.mxu0 0
      %1426 = vmatprep.subr.bf16.mxu0 0
      %1427 = vmatpush2.bf16.xpose.msra.mxu0 0
      %1428 = vmatprep.subr.bf16.mxu0 0
      %1429 = vmatpush2.bf16.xpose.msra.mxu0 0
      %1430 = vmatprep.subr.bf16.mxu0 0
      %1431 = vmatpush2.bf16.xpose.msra.mxu0 0
      %1432 = vmatprep.subr.bf16.mxu0 0
      %1433 = vmatpush2.bf16.xpose.msra.mxu0 0
      %1434 = vmatprep.subr.bf16.mxu0 0
      %1435 = vmatpush2.bf16.xpose.msra.mxu0 0
      %1436 = vmatprep.subr.bf16.mxu0 0
      %1437 = vmatpush2.bf16.xpose.msra.mxu0 0
      %1438 = vmatprep.subr.bf16.mxu0 0
      %1439 = vmatpush2.bf16.xpose.msra.mxu0 0
      %1440 = vmatprep.mubr.bf16.mxu0 0
      %1441 = vmatmul.mubr.bf16.gmra.mxu0 %v1403
      %v1442 = vpop.f32.mrf.mxu0
      %v1443 = vadd.f32 0.0, %v1442
      %v1444 = vpop.f32.mrf.mxu0
      %v1445 = vpop.f32.mrf.mxu0
      %v1446 = vpop.f32.mrf.mxu0
      %1447 = vdwg.mxu0
      %v1449 = vunpack.c.l.s4 1983009808
      %v1450 = vunpack.c.0.s8 %v1449
      %v1451 = vlaneseq
      %v1452 = vshrl.u32 %v1451, 7
      %v1453 = vsub.s32 %v1450, %v1452
      %v1454 = vrot.slane %v553, %v1453
      %1455 = vrot.lane.b32.xlu0 %v1454, 96
      %v1456 = vpop.permute.xlu0 %1455
      %v1458 = vsel %vm631, %v553, 0
      %v1461 = vsel %vm631, %v1456, 0
      %1463 = vmatprep.subr.bf16.mxu0 0
      %1464 = vmatpush1.bf16.xpose.msra.mxu0 0
      %1465 = vmatprep.subr.bf16.mxu0 0
      %1466 = vmatpush1.bf16.xpose.msra.mxu0 0
      %1467 = vmatprep.subr.bf16.mxu0 0
      %1468 = vmatpush1.bf16.xpose.msra.mxu0 0
      %1469 = vmatprep.subr.bf16.mxu0 0
      %1470 = vmatpush1.bf16.xpose.msra.mxu0 0
      %1471 = vmatprep.subr.bf16.mxu0 0
      %1472 = vmatpush1.bf16.xpose.msra.mxu0 0
      %1473 = vmatprep.subr.bf16.mxu0 0
      %1474 = vmatpush1.bf16.xpose.msra.mxu0 0
      %1475 = vmatprep.subr.bf16.mxu0 0
      %1476 = vmatpush1.bf16.xpose.msra.mxu0 0
      %1477 = vmatprep.subr.bf16.mxu0 0
      %1478 = vmatpush1.bf16.xpose.msra.mxu0 %v1461
      %1479 = vmatprep.subr.bf16.mxu0 0
      %1480 = vmatpush2.bf16.xpose.msra.mxu0 0
      %1481 = vmatprep.subr.bf16.mxu0 0
      %1482 = vmatpush2.bf16.xpose.msra.mxu0 0
      %1483 = vmatprep.subr.bf16.mxu0 0
      %1484 = vmatpush2.bf16.xpose.msra.mxu0 0
      %1485 = vmatprep.subr.bf16.mxu0 0
      %1486 = vmatpush2.bf16.xpose.msra.mxu0 0
      %1487 = vmatprep.subr.bf16.mxu0 0
      %1488 = vmatpush2.bf16.xpose.msra.mxu0 0
      %1489 = vmatprep.subr.bf16.mxu0 0
      %1490 = vmatpush2.bf16.xpose.msra.mxu0 0
      %1491 = vmatprep.subr.bf16.mxu0 0
      %1492 = vmatpush2.bf16.xpose.msra.mxu0 0
      %1493 = vmatprep.subr.bf16.mxu0 0
      %1494 = vmatpush2.bf16.xpose.msra.mxu0 0
      %1495 = vmatprep.mubr.bf16.mxu0 0
      %1496 = vmatmul.mubr.bf16.gmra.mxu0 %v1458
      %v1497 = vpop.f32.mrf.mxu0
      %v1498 = vadd.f32 0.0, %v1497
      %v1499 = vpop.f32.mrf.mxu0
      %v1500 = vpop.f32.mrf.mxu0
      %v1501 = vpop.f32.mrf.mxu0
      %1502 = vdwg.mxu0
      %v1504 = vunpack.c.l.s4 1983009808
      %v1505 = vunpack.c.0.s8 %v1504
      %v1506 = vlaneseq
      %v1507 = vshrl.u32 %v1506, 7
      %v1508 = vsub.s32 %v1505, %v1507
      %v1509 = vrot.slane %v561, %v1508
      %1510 = vrot.lane.b32.xlu0 %v1509, 96
      %v1511 = vpop.permute.xlu0 %1510
      %v1513 = vsel %vm631, %v561, 0
      %v1516 = vsel %vm631, %v1511, 0
      %1518 = vmatprep.subr.bf16.mxu0 0
      %1519 = vmatpush1.bf16.xpose.msra.mxu0 0
      %1520 = vmatprep.subr.bf16.mxu0 0
      %1521 = vmatpush1.bf16.xpose.msra.mxu0 0
      %1522 = vmatprep.subr.bf16.mxu0 0
      %1523 = vmatpush1.bf16.xpose.msra.mxu0 0
      %1524 = vmatprep.subr.bf16.mxu0 0
      %1525 = vmatpush1.bf16.xpose.msra.mxu0 0
      %1526 = vmatprep.subr.bf16.mxu0 0
      %1527 = vmatpush1.bf16.xpose.msra.mxu0 0
      %1528 = vmatprep.subr.bf16.mxu0 0
      %1529 = vmatpush1.bf16.xpose.msra.mxu0 0
      %1530 = vmatprep.subr.bf16.mxu0 0
      %1531 = vmatpush1.bf16.xpose.msra.mxu0 0
      %1532 = vmatprep.subr.bf16.mxu0 0
      %1533 = vmatpush1.bf16.xpose.msra.mxu0 %v1516
      %1534 = vmatprep.subr.bf16.mxu0 0
      %1535 = vmatpush2.bf16.xpose.msra.mxu0 0
      %1536 = vmatprep.subr.bf16.mxu0 0
      %1537 = vmatpush2.bf16.xpose.msra.mxu0 0
      %1538 = vmatprep.subr.bf16.mxu0 0
      %1539 = vmatpush2.bf16.xpose.msra.mxu0 0
      %1540 = vmatprep.subr.bf16.mxu0 0
      %1541 = vmatpush2.bf16.xpose.msra.mxu0 0
      %1542 = vmatprep.subr.bf16.mxu0 0
      %1543 = vmatpush2.bf16.xpose.msra.mxu0 0
      %1544 = vmatprep.subr.bf16.mxu0 0
      %1545 = vmatpush2.bf16.xpose.msra.mxu0 0
      %1546 = vmatprep.subr.bf16.mxu0 0
      %1547 = vmatpush2.bf16.xpose.msra.mxu0 0
      %1548 = vmatprep.subr.bf16.mxu0 0
      %1549 = vmatpush2.bf16.xpose.msra.mxu0 0
      %1550 = vmatprep.mubr.bf16.mxu0 0
      %1551 = vmatmul.mubr.bf16.gmra.mxu0 %v1513
      %v1552 = vpop.f32.mrf.mxu0
      %v1553 = vadd.f32 0.0, %v1552
      %v1554 = vpop.f32.mrf.mxu0
      %v1555 = vpop.f32.mrf.mxu0
      %v1556 = vpop.f32.mrf.mxu0
      %1557 = vdwg.mxu0
      %v1559 = vunpack.c.l.s4 1983009808
      %v1560 = vunpack.c.0.s8 %v1559
      %v1561 = vlaneseq
      %v1562 = vshrl.u32 %v1561, 7
      %v1563 = vsub.s32 %v1560, %v1562
      %v1564 = vrot.slane %v569, %v1563
      %1565 = vrot.lane.b32.xlu0 %v1564, 96
      %v1566 = vpop.permute.xlu0 %1565
      %v1568 = vsel %vm631, %v569, 0
      %v1571 = vsel %vm631, %v1566, 0
      %1573 = vmatprep.subr.bf16.mxu0 0
      %1574 = vmatpush1.bf16.xpose.msra.mxu0 0
      %1575 = vmatprep.subr.bf16.mxu0 0
      %1576 = vmatpush1.bf16.xpose.msra.mxu0 0
      %1577 = vmatprep.subr.bf16.mxu0 0
      %1578 = vmatpush1.bf16.xpose.msra.mxu0 0
      %1579 = vmatprep.subr.bf16.mxu0 0
      %1580 = vmatpush1.bf16.xpose.msra.mxu0 0
      %1581 = vmatprep.subr.bf16.mxu0 0
      %1582 = vmatpush1.bf16.xpose.msra.mxu0 0
      %1583 = vmatprep.subr.bf16.mxu0 0
      %1584 = vmatpush1.bf16.xpose.msra.mxu0 0
      %1585 = vmatprep.subr.bf16.mxu0 0
      %1586 = vmatpush1.bf16.xpose.msra.mxu0 0
      %1587 = vmatprep.subr.bf16.mxu0 0
      %1588 = vmatpush1.bf16.xpose.msra.mxu0 %v1571
      %1589 = vmatprep.subr.bf16.mxu0 0
      %1590 = vmatpush2.bf16.xpose.msra.mxu0 0
      %1591 = vmatprep.subr.bf16.mxu0 0
      %1592 = vmatpush2.bf16.xpose.msra.mxu0 0
      %1593 = vmatprep.subr.bf16.mxu0 0
      %1594 = vmatpush2.bf16.xpose.msra.mxu0 0
      %1595 = vmatprep.subr.bf16.mxu0 0
      %1596 = vmatpush2.bf16.xpose.msra.mxu0 0
      %1597 = vmatprep.subr.bf16.mxu0 0
      %1598 = vmatpush2.bf16.xpose.msra.mxu0 0
      %1599 = vmatprep.subr.bf16.mxu0 0
      %1600 = vmatpush2.bf16.xpose.msra.mxu0 0
      %1601 = vmatprep.subr.bf16.mxu0 0
      %1602 = vmatpush2.bf16.xpose.msra.mxu0 0
      %1603 = vmatprep.subr.bf16.mxu0 0
      %1604 = vmatpush2.bf16.xpose.msra.mxu0 0
      %1605 = vmatprep.mubr.bf16.mxu0 0
      %1606 = vmatmul.mubr.bf16.gmra.mxu0 %v1568
      %v1607 = vpop.f32.mrf.mxu0
      %v1608 = vadd.f32 0.0, %v1607
      %v1609 = vpop.f32.mrf.mxu0
      %v1610 = vpop.f32.mrf.mxu0
      %v1611 = vpop.f32.mrf.mxu0
      %1612 = vdwg.mxu0
      %v1614 = vunpack.c.l.s4 1983009808
      %v1615 = vunpack.c.0.s8 %v1614
      %v1616 = vlaneseq
      %v1617 = vshrl.u32 %v1616, 7
      %v1618 = vsub.s32 %v1615, %v1617
      %v1619 = vrot.slane %v568, %v1618
      %1620 = vrot.lane.b32.xlu0 %v1619, 96
      %v1621 = vpop.permute.xlu0 %1620
      %v1623 = vsel %vm631, %v568, 0
      %v1626 = vsel %vm631, %v1621, 0
      %1628 = vmatprep.subr.bf16.mxu0 0
      %1629 = vmatpush1.bf16.xpose.msra.mxu0 0
      %1630 = vmatprep.subr.bf16.mxu0 0
      %1631 = vmatpush1.bf16.xpose.msra.mxu0 0
      %1632 = vmatprep.subr.bf16.mxu0 0
      %1633 = vmatpush1.bf16.xpose.msra.mxu0 0
      %1634 = vmatprep.subr.bf16.mxu0 0
      %1635 = vmatpush1.bf16.xpose.msra.mxu0 0
      %1636 = vmatprep.subr.bf16.mxu0 0
      %1637 = vmatpush1.bf16.xpose.msra.mxu0 0
      %1638 = vmatprep.subr.bf16.mxu0 0
      %1639 = vmatpush1.bf16.xpose.msra.mxu0 0
      %1640 = vmatprep.subr.bf16.mxu0 0
      %1641 = vmatpush1.bf16.xpose.msra.mxu0 0
      %1642 = vmatprep.subr.bf16.mxu0 0
      %1643 = vmatpush1.bf16.xpose.msra.mxu0 %v1626
      %1644 = vmatprep.subr.bf16.mxu0 0
      %1645 = vmatpush2.bf16.xpose.msra.mxu0 0
      %1646 = vmatprep.subr.bf16.mxu0 0
      %1647 = vmatpush2.bf16.xpose.msra.mxu0 0
      %1648 = vmatprep.subr.bf16.mxu0 0
      %1649 = vmatpush2.bf16.xpose.msra.mxu0 0
      %1650 = vmatprep.subr.bf16.mxu0 0
      %1651 = vmatpush2.bf16.xpose.msra.mxu0 0
      %1652 = vmatprep.subr.bf16.mxu0 0
      %1653 = vmatpush2.bf16.xpose.msra.mxu0 0
      %1654 = vmatprep.subr.bf16.mxu0 0
      %1655 = vmatpush2.bf16.xpose.msra.mxu0 0
      %1656 = vmatprep.subr.bf16.mxu0 0
      %1657 = vmatpush2.bf16.xpose.msra.mxu0 0
      %1658 = vmatprep.subr.bf16.mxu0 0
      %1659 = vmatpush2.bf16.xpose.msra.mxu0 0
      %1660 = vmatprep.mubr.bf16.mxu0 0
      %1661 = vmatmul.mubr.bf16.gmra.mxu0 %v1623
      %v1662 = vpop.f32.mrf.mxu0
      %v1663 = vadd.f32 0.0, %v1662
      %v1664 = vpop.f32.mrf.mxu0
      %v1665 = vpop.f32.mrf.mxu0
      %v1666 = vpop.f32.mrf.mxu0
      %1667 = vdwg.mxu0
      %v1669 = vunpack.c.l.s4 1983009808
      %v1670 = vunpack.c.0.s8 %v1669
      %v1671 = vlaneseq
      %v1672 = vshrl.u32 %v1671, 7
      %v1673 = vsub.s32 %v1670, %v1672
      %v1674 = vrot.slane %v570, %v1673
      %1675 = vrot.lane.b32.xlu0 %v1674, 96
      %v1676 = vpop.permute.xlu0 %1675
      %v1678 = vsel %vm631, %v570, 0
      %v1681 = vsel %vm631, %v1676, 0
      %1683 = vmatprep.subr.bf16.mxu0 0
      %1684 = vmatpush1.bf16.xpose.msra.mxu0 0
      %1685 = vmatprep.subr.bf16.mxu0 0
      %1686 = vmatpush1.bf16.xpose.msra.mxu0 0
      %1687 = vmatprep.subr.bf16.mxu0 0
      %1688 = vmatpush1.bf16.xpose.msra.mxu0 0
      %1689 = vmatprep.subr.bf16.mxu0 0
      %1690 = vmatpush1.bf16.xpose.msra.mxu0 0
      %1691 = vmatprep.subr.bf16.mxu0 0
      %1692 = vmatpush1.bf16.xpose.msra.mxu0 0
      %1693 = vmatprep.subr.bf16.mxu0 0
      %1694 = vmatpush1.bf16.xpose.msra.mxu0 0
      %1695 = vmatprep.subr.bf16.mxu0 0
      %1696 = vmatpush1.bf16.xpose.msra.mxu0 0
      %1697 = vmatprep.subr.bf16.mxu0 0
      %1698 = vmatpush1.bf16.xpose.msra.mxu0 %v1681
      %1699 = vmatprep.subr.bf16.mxu0 0
      %1700 = vmatpush2.bf16.xpose.msra.mxu0 0
      %1701 = vmatprep.subr.bf16.mxu0 0
      %1702 = vmatpush2.bf16.xpose.msra.mxu0 0
      %1703 = vmatprep.subr.bf16.mxu0 0
      %1704 = vmatpush2.bf16.xpose.msra.mxu0 0
      %1705 = vmatprep.subr.bf16.mxu0 0
      %1706 = vmatpush2.bf16.xpose.msra.mxu0 0
      %1707 = vmatprep.subr.bf16.mxu0 0
      %1708 = vmatpush2.bf16.xpose.msra.mxu0 0
      %1709 = vmatprep.subr.bf16.mxu0 0
      %1710 = vmatpush2.bf16.xpose.msra.mxu0 0
      %1711 = vmatprep.subr.bf16.mxu0 0
      %1712 = vmatpush2.bf16.xpose.msra.mxu0 0
      %1713 = vmatprep.subr.bf16.mxu0 0
      %1714 = vmatpush2.bf16.xpose.msra.mxu0 0
      %1715 = vmatprep.mubr.bf16.mxu0 0
      %1716 = vmatmul.mubr.bf16.gmra.mxu0 %v1678
      %v1717 = vpop.f32.mrf.mxu0
      %v1718 = vadd.f32 0.0, %v1717
      %v1719 = vpop.f32.mrf.mxu0
      %v1720 = vpop.f32.mrf.mxu0
      %v1721 = vpop.f32.mrf.mxu0
      %1722 = vdwg.mxu0
      %v1724 = vunpack.c.l.s4 1983009808
      %v1725 = vunpack.c.0.s8 %v1724
      %v1726 = vlaneseq
      %v1727 = vshrl.u32 %v1726, 7
      %v1728 = vsub.s32 %v1725, %v1727
      %v1729 = vrot.slane %v578, %v1728
      %1730 = vrot.lane.b32.xlu0 %v1729, 96
      %v1731 = vpop.permute.xlu0 %1730
      %v1733 = vsel %vm631, %v578, 0
      %v1736 = vsel %vm631, %v1731, 0
      %1738 = vmatprep.subr.bf16.mxu0 0
      %1739 = vmatpush1.bf16.xpose.msra.mxu0 0
      %1740 = vmatprep.subr.bf16.mxu0 0
      %1741 = vmatpush1.bf16.xpose.msra.mxu0 0
      %1742 = vmatprep.subr.bf16.mxu0 0
      %1743 = vmatpush1.bf16.xpose.msra.mxu0 0
      %1744 = vmatprep.subr.bf16.mxu0 0
      %1745 = vmatpush1.bf16.xpose.msra.mxu0 0
      %1746 = vmatprep.subr.bf16.mxu0 0
      %1747 = vmatpush1.bf16.xpose.msra.mxu0 0
      %1748 = vmatprep.subr.bf16.mxu0 0
      %1749 = vmatpush1.bf16.xpose.msra.mxu0 0
      %1750 = vmatprep.subr.bf16.mxu0 0
      %1751 = vmatpush1.bf16.xpose.msra.mxu0 0
      %1752 = vmatprep.subr.bf16.mxu0 0
      %1753 = vmatpush1.bf16.xpose.msra.mxu0 %v1736
      %1754 = vmatprep.subr.bf16.mxu0 0
      %1755 = vmatpush2.bf16.xpose.msra.mxu0 0
      %1756 = vmatprep.subr.bf16.mxu0 0
      %1757 = vmatpush2.bf16.xpose.msra.mxu0 0
      %1758 = vmatprep.subr.bf16.mxu0 0
      %1759 = vmatpush2.bf16.xpose.msra.mxu0 0
      %1760 = vmatprep.subr.bf16.mxu0 0
      %1761 = vmatpush2.bf16.xpose.msra.mxu0 0
      %1762 = vmatprep.subr.bf16.mxu0 0
      %1763 = vmatpush2.bf16.xpose.msra.mxu0 0
      %1764 = vmatprep.subr.bf16.mxu0 0
      %1765 = vmatpush2.bf16.xpose.msra.mxu0 0
      %1766 = vmatprep.subr.bf16.mxu0 0
      %1767 = vmatpush2.bf16.xpose.msra.mxu0 0
      %1768 = vmatprep.subr.bf16.mxu0 0
      %1769 = vmatpush2.bf16.xpose.msra.mxu0 0
      %1770 = vmatprep.mubr.bf16.mxu0 0
      %1771 = vmatmul.mubr.bf16.gmra.mxu0 %v1733
      %v1772 = vpop.f32.mrf.mxu0
      %v1773 = vadd.f32 0.0, %v1772
      %v1774 = vpop.f32.mrf.mxu0
      %v1775 = vpop.f32.mrf.mxu0
      %v1776 = vpop.f32.mrf.mxu0
      %1777 = vdwg.mxu0
      %v1779 = vunpack.c.l.s4 1983009808
      %v1780 = vunpack.c.0.s8 %v1779
      %v1781 = vlaneseq
      %v1782 = vshrl.u32 %v1781, 7
      %v1783 = vsub.s32 %v1780, %v1782
      %v1784 = vrot.slane %v586, %v1783
      %1785 = vrot.lane.b32.xlu0 %v1784, 96
      %v1786 = vpop.permute.xlu0 %1785
      %v1788 = vsel %vm631, %v586, 0
      %v1791 = vsel %vm631, %v1786, 0
      %1793 = vmatprep.subr.bf16.mxu0 0
      %1794 = vmatpush1.bf16.xpose.msra.mxu0 0
      %1795 = vmatprep.subr.bf16.mxu0 0
      %1796 = vmatpush1.bf16.xpose.msra.mxu0 0
      %1797 = vmatprep.subr.bf16.mxu0 0
      %1798 = vmatpush1.bf16.xpose.msra.mxu0 0
      %1799 = vmatprep.subr.bf16.mxu0 0
      %1800 = vmatpush1.bf16.xpose.msra.mxu0 0
      %1801 = vmatprep.subr.bf16.mxu0 0
      %1802 = vmatpush1.bf16.xpose.msra.mxu0 0
      %1803 = vmatprep.subr.bf16.mxu0 0
      %1804 = vmatpush1.bf16.xpose.msra.mxu0 0
      %1805 = vmatprep.subr.bf16.mxu0 0
      %1806 = vmatpush1.bf16.xpose.msra.mxu0 0
      %1807 = vmatprep.subr.bf16.mxu0 0
      %1808 = vmatpush1.bf16.xpose.msra.mxu0 %v1791
      %1809 = vmatprep.subr.bf16.mxu0 0
      %1810 = vmatpush2.bf16.xpose.msra.mxu0 0
      %1811 = vmatprep.subr.bf16.mxu0 0
      %1812 = vmatpush2.bf16.xpose.msra.mxu0 0
      %1813 = vmatprep.subr.bf16.mxu0 0
      %1814 = vmatpush2.bf16.xpose.msra.mxu0 0
      %1815 = vmatprep.subr.bf16.mxu0 0
      %1816 = vmatpush2.bf16.xpose.msra.mxu0 0
      %1817 = vmatprep.subr.bf16.mxu0 0
      %1818 = vmatpush2.bf16.xpose.msra.mxu0 0
      %1819 = vmatprep.subr.bf16.mxu0 0
      %1820 = vmatpush2.bf16.xpose.msra.mxu0 0
      %1821 = vmatprep.subr.bf16.mxu0 0
      %1822 = vmatpush2.bf16.xpose.msra.mxu0 0
      %1823 = vmatprep.subr.bf16.mxu0 0
      %1824 = vmatpush2.bf16.xpose.msra.mxu0 0
      %1825 = vmatprep.mubr.bf16.mxu0 0
      %1826 = vmatmul.mubr.bf16.gmra.mxu0 %v1788
      %v1827 = vpop.f32.mrf.mxu0
      %v1828 = vadd.f32 0.0, %v1827
      %v1829 = vpop.f32.mrf.mxu0
      %v1830 = vpop.f32.mrf.mxu0
      %v1831 = vpop.f32.mrf.mxu0
      %1832 = vdwg.mxu0
      %v1834 = vunpack.c.l.s4 1983009808
      %v1835 = vunpack.c.0.s8 %v1834
      %v1836 = vlaneseq
      %v1837 = vshrl.u32 %v1836, 7
      %v1838 = vsub.s32 %v1835, %v1837
      %v1839 = vrot.slane %v585, %v1838
      %1840 = vrot.lane.b32.xlu0 %v1839, 96
      %v1841 = vpop.permute.xlu0 %1840
      %v1843 = vsel %vm631, %v585, 0
      %v1846 = vsel %vm631, %v1841, 0
      %1848 = vmatprep.subr.bf16.mxu0 0
      %1849 = vmatpush1.bf16.xpose.msra.mxu0 0
      %1850 = vmatprep.subr.bf16.mxu0 0
      %1851 = vmatpush1.bf16.xpose.msra.mxu0 0
      %1852 = vmatprep.subr.bf16.mxu0 0
      %1853 = vmatpush1.bf16.xpose.msra.mxu0 0
      %1854 = vmatprep.subr.bf16.mxu0 0
      %1855 = vmatpush1.bf16.xpose.msra.mxu0 0
      %1856 = vmatprep.subr.bf16.mxu0 0
      %1857 = vmatpush1.bf16.xpose.msra.mxu0 0
      %1858 = vmatprep.subr.bf16.mxu0 0
      %1859 = vmatpush1.bf16.xpose.msra.mxu0 0
      %1860 = vmatprep.subr.bf16.mxu0 0
      %1861 = vmatpush1.bf16.xpose.msra.mxu0 0
      %1862 = vmatprep.subr.bf16.mxu0 0
      %1863 = vmatpush1.bf16.xpose.msra.mxu0 %v1846
      %1864 = vmatprep.subr.bf16.mxu0 0
      %1865 = vmatpush2.bf16.xpose.msra.mxu0 0
      %1866 = vmatprep.subr.bf16.mxu0 0
      %1867 = vmatpush2.bf16.xpose.msra.mxu0 0
      %1868 = vmatprep.subr.bf16.mxu0 0
      %1869 = vmatpush2.bf16.xpose.msra.mxu0 0
      %1870 = vmatprep.subr.bf16.mxu0 0
      %1871 = vmatpush2.bf16.xpose.msra.mxu0 0
      %1872 = vmatprep.subr.bf16.mxu0 0
      %1873 = vmatpush2.bf16.xpose.msra.mxu0 0
      %1874 = vmatprep.subr.bf16.mxu0 0
      %1875 = vmatpush2.bf16.xpose.msra.mxu0 0
      %1876 = vmatprep.subr.bf16.mxu0 0
      %1877 = vmatpush2.bf16.xpose.msra.mxu0 0
      %1878 = vmatprep.subr.bf16.mxu0 0
      %1879 = vmatpush2.bf16.xpose.msra.mxu0 0
      %1880 = vmatprep.mubr.bf16.mxu0 0
      %1881 = vmatmul.mubr.bf16.gmra.mxu0 %v1843
      %v1882 = vpop.f32.mrf.mxu0
      %v1883 = vadd.f32 0.0, %v1882
      %v1884 = vpop.f32.mrf.mxu0
      %v1885 = vpop.f32.mrf.mxu0
      %v1886 = vpop.f32.mrf.mxu0
      %1887 = vdwg.mxu0
      %v1889 = vunpack.c.l.s4 1983009808
      %v1890 = vunpack.c.0.s8 %v1889
      %v1891 = vlaneseq
      %v1892 = vshrl.u32 %v1891, 7
      %v1893 = vsub.s32 %v1890, %v1892
      %v1894 = vrot.slane %v587, %v1893
      %1895 = vrot.lane.b32.xlu0 %v1894, 96
      %v1896 = vpop.permute.xlu0 %1895
      %v1898 = vsel %vm631, %v587, 0
      %v1901 = vsel %vm631, %v1896, 0
      %1903 = vmatprep.subr.bf16.mxu0 0
      %1904 = vmatpush1.bf16.xpose.msra.mxu0 0
      %1905 = vmatprep.subr.bf16.mxu0 0
      %1906 = vmatpush1.bf16.xpose.msra.mxu0 0
      %1907 = vmatprep.subr.bf16.mxu0 0
      %1908 = vmatpush1.bf16.xpose.msra.mxu0 0
      %1909 = vmatprep.subr.bf16.mxu0 0
      %1910 = vmatpush1.bf16.xpose.msra.mxu0 0
      %1911 = vmatprep.subr.bf16.mxu0 0
      %1912 = vmatpush1.bf16.xpose.msra.mxu0 0
      %1913 = vmatprep.subr.bf16.mxu0 0
      %1914 = vmatpush1.bf16.xpose.msra.mxu0 0
      %1915 = vmatprep.subr.bf16.mxu0 0
      %1916 = vmatpush1.bf16.xpose.msra.mxu0 0
      %1917 = vmatprep.subr.bf16.mxu0 0
      %1918 = vmatpush1.bf16.xpose.msra.mxu0 %v1901
      %1919 = vmatprep.subr.bf16.mxu0 0
      %1920 = vmatpush2.bf16.xpose.msra.mxu0 0
      %1921 = vmatprep.subr.bf16.mxu0 0
      %1922 = vmatpush2.bf16.xpose.msra.mxu0 0
      %1923 = vmatprep.subr.bf16.mxu0 0
      %1924 = vmatpush2.bf16.xpose.msra.mxu0 0
      %1925 = vmatprep.subr.bf16.mxu0 0
      %1926 = vmatpush2.bf16.xpose.msra.mxu0 0
      %1927 = vmatprep.subr.bf16.mxu0 0
      %1928 = vmatpush2.bf16.xpose.msra.mxu0 0
      %1929 = vmatprep.subr.bf16.mxu0 0
      %1930 = vmatpush2.bf16.xpose.msra.mxu0 0
      %1931 = vmatprep.subr.bf16.mxu0 0
      %1932 = vmatpush2.bf16.xpose.msra.mxu0 0
      %1933 = vmatprep.subr.bf16.mxu0 0
      %1934 = vmatpush2.bf16.xpose.msra.mxu0 0
      %1935 = vmatprep.mubr.bf16.mxu0 0
      %1936 = vmatmul.mubr.bf16.gmra.mxu0 %v1898
      %v1937 = vpop.f32.mrf.mxu0
      %v1938 = vadd.f32 0.0, %v1937
      %v1939 = vpop.f32.mrf.mxu0
      %v1940 = vpop.f32.mrf.mxu0
      %v1941 = vpop.f32.mrf.mxu0
      %1942 = vdwg.mxu0
      %v1944 = vunpack.c.l.s4 1983009808
      %v1945 = vunpack.c.0.s8 %v1944
      %v1946 = vlaneseq
      %v1947 = vshrl.u32 %v1946, 7
      %v1948 = vsub.s32 %v1945, %v1947
      %v1949 = vrot.slane %v595, %v1948
      %1950 = vrot.lane.b32.xlu0 %v1949, 96
      %v1951 = vpop.permute.xlu0 %1950
      %v1953 = vsel %vm631, %v595, 0
      %v1956 = vsel %vm631, %v1951, 0
      %1958 = vmatprep.subr.bf16.mxu0 0
      %1959 = vmatpush1.bf16.xpose.msra.mxu0 0
      %1960 = vmatprep.subr.bf16.mxu0 0
      %1961 = vmatpush1.bf16.xpose.msra.mxu0 0
      %1962 = vmatprep.subr.bf16.mxu0 0
      %1963 = vmatpush1.bf16.xpose.msra.mxu0 0
      %1964 = vmatprep.subr.bf16.mxu0 0
      %1965 = vmatpush1.bf16.xpose.msra.mxu0 0
      %1966 = vmatprep.subr.bf16.mxu0 0
      %1967 = vmatpush1.bf16.xpose.msra.mxu0 0
      %1968 = vmatprep.subr.bf16.mxu0 0
      %1969 = vmatpush1.bf16.xpose.msra.mxu0 0
      %1970 = vmatprep.subr.bf16.mxu0 0
      %1971 = vmatpush1.bf16.xpose.msra.mxu0 0
      %1972 = vmatprep.subr.bf16.mxu0 0
      %1973 = vmatpush1.bf16.xpose.msra.mxu0 %v1956
      %1974 = vmatprep.subr.bf16.mxu0 0
      %1975 = vmatpush2.bf16.xpose.msra.mxu0 0
      %1976 = vmatprep.subr.bf16.mxu0 0
      %1977 = vmatpush2.bf16.xpose.msra.mxu0 0
      %1978 = vmatprep.subr.bf16.mxu0 0
      %1979 = vmatpush2.bf16.xpose.msra.mxu0 0
      %1980 = vmatprep.subr.bf16.mxu0 0
      %1981 = vmatpush2.bf16.xpose.msra.mxu0 0
      %1982 = vmatprep.subr.bf16.mxu0 0
      %1983 = vmatpush2.bf16.xpose.msra.mxu0 0
      %1984 = vmatprep.subr.bf16.mxu0 0
      %1985 = vmatpush2.bf16.xpose.msra.mxu0 0
      %1986 = vmatprep.subr.bf16.mxu0 0
      %1987 = vmatpush2.bf16.xpose.msra.mxu0 0
      %1988 = vmatprep.subr.bf16.mxu0 0
      %1989 = vmatpush2.bf16.xpose.msra.mxu0 0
      %1990 = vmatprep.mubr.bf16.mxu0 0
      %1991 = vmatmul.mubr.bf16.gmra.mxu0 %v1953
      %v1992 = vpop.f32.mrf.mxu0
      %v1993 = vadd.f32 0.0, %v1992
      %v1994 = vpop.f32.mrf.mxu0
      %v1995 = vpop.f32.mrf.mxu0
      %v1996 = vpop.f32.mrf.mxu0
      %1997 = vdwg.mxu0
      %v1999 = vunpack.c.l.s4 1983009808
      %v2000 = vunpack.c.0.s8 %v1999
      %v2001 = vlaneseq
      %v2002 = vshrl.u32 %v2001, 7
      %v2003 = vsub.s32 %v2000, %v2002
      %v2004 = vrot.slane %v603, %v2003
      %2005 = vrot.lane.b32.xlu0 %v2004, 96
      %v2006 = vpop.permute.xlu0 %2005
      %v2008 = vsel %vm631, %v603, 0
      %v2011 = vsel %vm631, %v2006, 0
      %2013 = vmatprep.subr.bf16.mxu0 0
      %2014 = vmatpush1.bf16.xpose.msra.mxu0 0
      %2015 = vmatprep.subr.bf16.mxu0 0
      %2016 = vmatpush1.bf16.xpose.msra.mxu0 0
      %2017 = vmatprep.subr.bf16.mxu0 0
      %2018 = vmatpush1.bf16.xpose.msra.mxu0 0
      %2019 = vmatprep.subr.bf16.mxu0 0
      %2020 = vmatpush1.bf16.xpose.msra.mxu0 0
      %2021 = vmatprep.subr.bf16.mxu0 0
      %2022 = vmatpush1.bf16.xpose.msra.mxu0 0
      %2023 = vmatprep.subr.bf16.mxu0 0
      %2024 = vmatpush1.bf16.xpose.msra.mxu0 0
      %2025 = vmatprep.subr.bf16.mxu0 0
      %2026 = vmatpush1.bf16.xpose.msra.mxu0 0
      %2027 = vmatprep.subr.bf16.mxu0 0
      %2028 = vmatpush1.bf16.xpose.msra.mxu0 %v2011
      %2029 = vmatprep.subr.bf16.mxu0 0
      %2030 = vmatpush2.bf16.xpose.msra.mxu0 0
      %2031 = vmatprep.subr.bf16.mxu0 0
      %2032 = vmatpush2.bf16.xpose.msra.mxu0 0
      %2033 = vmatprep.subr.bf16.mxu0 0
      %2034 = vmatpush2.bf16.xpose.msra.mxu0 0
      %2035 = vmatprep.subr.bf16.mxu0 0
      %2036 = vmatpush2.bf16.xpose.msra.mxu0 0
      %2037 = vmatprep.subr.bf16.mxu0 0
      %2038 = vmatpush2.bf16.xpose.msra.mxu0 0
      %2039 = vmatprep.subr.bf16.mxu0 0
      %2040 = vmatpush2.bf16.xpose.msra.mxu0 0
      %2041 = vmatprep.subr.bf16.mxu0 0
      %2042 = vmatpush2.bf16.xpose.msra.mxu0 0
      %2043 = vmatprep.subr.bf16.mxu0 0
      %2044 = vmatpush2.bf16.xpose.msra.mxu0 0
      %2045 = vmatprep.mubr.bf16.mxu0 0
      %2046 = vmatmul.mubr.bf16.gmra.mxu0 %v2008
      %v2047 = vpop.f32.mrf.mxu0
      %v2048 = vadd.f32 0.0, %v2047
      %v2049 = vpop.f32.mrf.mxu0
      %v2050 = vpop.f32.mrf.mxu0
      %v2051 = vpop.f32.mrf.mxu0
      %2052 = vdwg.mxu0
      %v2054 = vunpack.c.l.s4 1983009808
      %v2055 = vunpack.c.0.s8 %v2054
      %v2056 = vlaneseq
      %v2057 = vshrl.u32 %v2056, 7
      %v2058 = vsub.s32 %v2055, %v2057
      %v2059 = vrot.slane %v602, %v2058
      %2060 = vrot.lane.b32.xlu0 %v2059, 96
      %v2061 = vpop.permute.xlu0 %2060
      %v2063 = vsel %vm631, %v602, 0
      %v2066 = vsel %vm631, %v2061, 0
      %2068 = vmatprep.subr.bf16.mxu0 0
      %2069 = vmatpush1.bf16.xpose.msra.mxu0 0
      %2070 = vmatprep.subr.bf16.mxu0 0
      %2071 = vmatpush1.bf16.xpose.msra.mxu0 0
      %2072 = vmatprep.subr.bf16.mxu0 0
      %2073 = vmatpush1.bf16.xpose.msra.mxu0 0
      %2074 = vmatprep.subr.bf16.mxu0 0
      %2075 = vmatpush1.bf16.xpose.msra.mxu0 0
      %2076 = vmatprep.subr.bf16.mxu0 0
      %2077 = vmatpush1.bf16.xpose.msra.mxu0 0
      %2078 = vmatprep.subr.bf16.mxu0 0
      %2079 = vmatpush1.bf16.xpose.msra.mxu0 0
      %2080 = vmatprep.subr.bf16.mxu0 0
      %2081 = vmatpush1.bf16.xpose.msra.mxu0 0
      %2082 = vmatprep.subr.bf16.mxu0 0
      %2083 = vmatpush1.bf16.xpose.msra.mxu0 %v2066
      %2084 = vmatprep.subr.bf16.mxu0 0
      %2085 = vmatpush2.bf16.xpose.msra.mxu0 0
      %2086 = vmatprep.subr.bf16.mxu0 0
      %2087 = vmatpush2.bf16.xpose.msra.mxu0 0
      %2088 = vmatprep.subr.bf16.mxu0 0
      %2089 = vmatpush2.bf16.xpose.msra.mxu0 0
      %2090 = vmatprep.subr.bf16.mxu0 0
      %2091 = vmatpush2.bf16.xpose.msra.mxu0 0
      %2092 = vmatprep.subr.bf16.mxu0 0
      %2093 = vmatpush2.bf16.xpose.msra.mxu0 0
      %2094 = vmatprep.subr.bf16.mxu0 0
      %2095 = vmatpush2.bf16.xpose.msra.mxu0 0
      %2096 = vmatprep.subr.bf16.mxu0 0
      %2097 = vmatpush2.bf16.xpose.msra.mxu0 0
      %2098 = vmatprep.subr.bf16.mxu0 0
      %2099 = vmatpush2.bf16.xpose.msra.mxu0 0
      %2100 = vmatprep.mubr.bf16.mxu0 0
      %2101 = vmatmul.mubr.bf16.gmra.mxu0 %v2063
      %v2102 = vpop.f32.mrf.mxu0
      %v2103 = vadd.f32 0.0, %v2102
      %v2104 = vpop.f32.mrf.mxu0
      %v2105 = vpop.f32.mrf.mxu0
      %v2106 = vpop.f32.mrf.mxu0
      %2107 = vdwg.mxu0
      %v2109 = vunpack.c.l.s4 1983009808
      %v2110 = vunpack.c.0.s8 %v2109
      %v2111 = vlaneseq
      %v2112 = vshrl.u32 %v2111, 7
      %v2113 = vsub.s32 %v2110, %v2112
      %v2114 = vrot.slane %v604, %v2113
      %2115 = vrot.lane.b32.xlu0 %v2114, 96
      %v2116 = vpop.permute.xlu0 %2115
      %v2118 = vsel %vm631, %v604, 0
      %v2121 = vsel %vm631, %v2116, 0
      %2123 = vmatprep.subr.bf16.mxu0 0
      %2124 = vmatpush1.bf16.xpose.msra.mxu0 0
      %2125 = vmatprep.subr.bf16.mxu0 0
      %2126 = vmatpush1.bf16.xpose.msra.mxu0 0
      %2127 = vmatprep.subr.bf16.mxu0 0
      %2128 = vmatpush1.bf16.xpose.msra.mxu0 0
      %2129 = vmatprep.subr.bf16.mxu0 0
      %2130 = vmatpush1.bf16.xpose.msra.mxu0 0
      %2131 = vmatprep.subr.bf16.mxu0 0
      %2132 = vmatpush1.bf16.xpose.msra.mxu0 0
      %2133 = vmatprep.subr.bf16.mxu0 0
      %2134 = vmatpush1.bf16.xpose.msra.mxu0 0
      %2135 = vmatprep.subr.bf16.mxu0 0
      %2136 = vmatpush1.bf16.xpose.msra.mxu0 0
      %2137 = vmatprep.subr.bf16.mxu0 0
      %2138 = vmatpush1.bf16.xpose.msra.mxu0 %v2121
      %2139 = vmatprep.subr.bf16.mxu0 0
      %2140 = vmatpush2.bf16.xpose.msra.mxu0 0
      %2141 = vmatprep.subr.bf16.mxu0 0
      %2142 = vmatpush2.bf16.xpose.msra.mxu0 0
      %2143 = vmatprep.subr.bf16.mxu0 0
      %2144 = vmatpush2.bf16.xpose.msra.mxu0 0
      %2145 = vmatprep.subr.bf16.mxu0 0
      %2146 = vmatpush2.bf16.xpose.msra.mxu0 0
      %2147 = vmatprep.subr.bf16.mxu0 0
      %2148 = vmatpush2.bf16.xpose.msra.mxu0 0
      %2149 = vmatprep.subr.bf16.mxu0 0
      %2150 = vmatpush2.bf16.xpose.msra.mxu0 0
      %2151 = vmatprep.subr.bf16.mxu0 0
      %2152 = vmatpush2.bf16.xpose.msra.mxu0 0
      %2153 = vmatprep.subr.bf16.mxu0 0
      %2154 = vmatpush2.bf16.xpose.msra.mxu0 0
      %2155 = vmatprep.mubr.bf16.mxu0 0
      %2156 = vmatmul.mubr.bf16.gmra.mxu0 %v2118
      %v2157 = vpop.f32.mrf.mxu0
      %v2158 = vadd.f32 0.0, %v2157
      %v2159 = vpop.f32.mrf.mxu0
      %v2160 = vpop.f32.mrf.mxu0
      %v2161 = vpop.f32.mrf.mxu0
      %2162 = vdwg.mxu0
      %v2164 = vunpack.c.l.s4 1983009808
      %v2165 = vunpack.c.0.s8 %v2164
      %v2166 = vlaneseq
      %v2167 = vshrl.u32 %v2166, 7
      %v2168 = vsub.s32 %v2165, %v2167
      %v2169 = vrot.slane %v612, %v2168
      %2170 = vrot.lane.b32.xlu0 %v2169, 96
      %v2171 = vpop.permute.xlu0 %2170
      %v2173 = vsel %vm631, %v612, 0
      %v2176 = vsel %vm631, %v2171, 0
      %2178 = vmatprep.subr.bf16.mxu0 0
      %2179 = vmatpush1.bf16.xpose.msra.mxu0 0
      %2180 = vmatprep.subr.bf16.mxu0 0
      %2181 = vmatpush1.bf16.xpose.msra.mxu0 0
      %2182 = vmatprep.subr.bf16.mxu0 0
      %2183 = vmatpush1.bf16.xpose.msra.mxu0 0
      %2184 = vmatprep.subr.bf16.mxu0 0
      %2185 = vmatpush1.bf16.xpose.msra.mxu0 0
      %2186 = vmatprep.subr.bf16.mxu0 0
      %2187 = vmatpush1.bf16.xpose.msra.mxu0 0
      %2188 = vmatprep.subr.bf16.mxu0 0
      %2189 = vmatpush1.bf16.xpose.msra.mxu0 0
      %2190 = vmatprep.subr.bf16.mxu0 0
      %2191 = vmatpush1.bf16.xpose.msra.mxu0 0
      %2192 = vmatprep.subr.bf16.mxu0 0
      %2193 = vmatpush1.bf16.xpose.msra.mxu0 %v2176
      %2194 = vmatprep.subr.bf16.mxu0 0
      %2195 = vmatpush2.bf16.xpose.msra.mxu0 0
      %2196 = vmatprep.subr.bf16.mxu0 0
      %2197 = vmatpush2.bf16.xpose.msra.mxu0 0
      %2198 = vmatprep.subr.bf16.mxu0 0
      %2199 = vmatpush2.bf16.xpose.msra.mxu0 0
      %2200 = vmatprep.subr.bf16.mxu0 0
      %2201 = vmatpush2.bf16.xpose.msra.mxu0 0
      %2202 = vmatprep.subr.bf16.mxu0 0
      %2203 = vmatpush2.bf16.xpose.msra.mxu0 0
      %2204 = vmatprep.subr.bf16.mxu0 0
      %2205 = vmatpush2.bf16.xpose.msra.mxu0 0
      %2206 = vmatprep.subr.bf16.mxu0 0
      %2207 = vmatpush2.bf16.xpose.msra.mxu0 0
      %2208 = vmatprep.subr.bf16.mxu0 0
      %2209 = vmatpush2.bf16.xpose.msra.mxu0 0
      %2210 = vmatprep.mubr.bf16.mxu0 0
      %2211 = vmatmul.mubr.bf16.gmra.mxu0 %v2173
      %v2212 = vpop.f32.mrf.mxu0
      %v2213 = vadd.f32 0.0, %v2212
      %v2214 = vpop.f32.mrf.mxu0
      %v2215 = vpop.f32.mrf.mxu0
      %v2216 = vpop.f32.mrf.mxu0
      %2217 = vdwg.mxu0
      %v2219 = vunpack.c.l.s4 1983009808
      %v2220 = vunpack.c.0.s8 %v2219
      %v2221 = vlaneseq
      %v2222 = vshrl.u32 %v2221, 7
      %v2223 = vsub.s32 %v2220, %v2222
      %v2224 = vrot.slane %v620, %v2223
      %2225 = vrot.lane.b32.xlu0 %v2224, 96
      %v2226 = vpop.permute.xlu0 %2225
      %v2228 = vsel %vm631, %v620, 0
      %v2231 = vsel %vm631, %v2226, 0
      %2233 = vmatprep.subr.bf16.mxu0 0
      %2234 = vmatpush1.bf16.xpose.msra.mxu0 0
      %2235 = vmatprep.subr.bf16.mxu0 0
      %2236 = vmatpush1.bf16.xpose.msra.mxu0 0
      %2237 = vmatprep.subr.bf16.mxu0 0
      %2238 = vmatpush1.bf16.xpose.msra.mxu0 0
      %2239 = vmatprep.subr.bf16.mxu0 0
      %2240 = vmatpush1.bf16.xpose.msra.mxu0 0
      %2241 = vmatprep.subr.bf16.mxu0 0
      %2242 = vmatpush1.bf16.xpose.msra.mxu0 0
      %2243 = vmatprep.subr.bf16.mxu0 0
      %2244 = vmatpush1.bf16.xpose.msra.mxu0 0
      %2245 = vmatprep.subr.bf16.mxu0 0
      %2246 = vmatpush1.bf16.xpose.msra.mxu0 0
      %2247 = vmatprep.subr.bf16.mxu0 0
      %2248 = vmatpush1.bf16.xpose.msra.mxu0 %v2231
      %2249 = vmatprep.subr.bf16.mxu0 0
      %2250 = vmatpush2.bf16.xpose.msra.mxu0 0
      %2251 = vmatprep.subr.bf16.mxu0 0
      %2252 = vmatpush2.bf16.xpose.msra.mxu0 0
      %2253 = vmatprep.subr.bf16.mxu0 0
      %2254 = vmatpush2.bf16.xpose.msra.mxu0 0
      %2255 = vmatprep.subr.bf16.mxu0 0
      %2256 = vmatpush2.bf16.xpose.msra.mxu0 0
      %2257 = vmatprep.subr.bf16.mxu0 0
      %2258 = vmatpush2.bf16.xpose.msra.mxu0 0
      %2259 = vmatprep.subr.bf16.mxu0 0
      %2260 = vmatpush2.bf16.xpose.msra.mxu0 0
      %2261 = vmatprep.subr.bf16.mxu0 0
      %2262 = vmatpush2.bf16.xpose.msra.mxu0 0
      %2263 = vmatprep.subr.bf16.mxu0 0
      %2264 = vmatpush2.bf16.xpose.msra.mxu0 0
      %2265 = vmatprep.mubr.bf16.mxu0 0
      %2266 = vmatmul.mubr.bf16.gmra.mxu0 %v2228
      %v2267 = vpop.f32.mrf.mxu0
      %v2268 = vadd.f32 0.0, %v2267
      %v2269 = vpop.f32.mrf.mxu0
      %v2270 = vpop.f32.mrf.mxu0
      %v2271 = vpop.f32.mrf.mxu0
      %2272 = vdwg.mxu0
      %v2274 = vunpack.c.l.s4 1983009808
      %v2275 = vunpack.c.0.s8 %v2274
      %v2276 = vlaneseq
      %v2277 = vshrl.u32 %v2276, 7
      %v2278 = vsub.s32 %v2275, %v2277
      %v2279 = vrot.slane %v619, %v2278
      %2280 = vrot.lane.b32.xlu0 %v2279, 96
      %v2281 = vpop.permute.xlu0 %2280
      %v2283 = vsel %vm631, %v619, 0
      %v2286 = vsel %vm631, %v2281, 0
      %2288 = vmatprep.subr.bf16.mxu0 0
      %2289 = vmatpush1.bf16.xpose.msra.mxu0 0
      %2290 = vmatprep.subr.bf16.mxu0 0
      %2291 = vmatpush1.bf16.xpose.msra.mxu0 0
      %2292 = vmatprep.subr.bf16.mxu0 0
      %2293 = vmatpush1.bf16.xpose.msra.mxu0 0
      %2294 = vmatprep.subr.bf16.mxu0 0
      %2295 = vmatpush1.bf16.xpose.msra.mxu0 0
      %2296 = vmatprep.subr.bf16.mxu0 0
      %2297 = vmatpush1.bf16.xpose.msra.mxu0 0
      %2298 = vmatprep.subr.bf16.mxu0 0
      %2299 = vmatpush1.bf16.xpose.msra.mxu0 0
      %2300 = vmatprep.subr.bf16.mxu0 0
      %2301 = vmatpush1.bf16.xpose.msra.mxu0 0
      %2302 = vmatprep.subr.bf16.mxu0 0
      %2303 = vmatpush1.bf16.xpose.msra.mxu0 %v2286
      %2304 = vmatprep.subr.bf16.mxu0 0
      %2305 = vmatpush2.bf16.xpose.msra.mxu0 0
      %2306 = vmatprep.subr.bf16.mxu0 0
      %2307 = vmatpush2.bf16.xpose.msra.mxu0 0
      %2308 = vmatprep.subr.bf16.mxu0 0
      %2309 = vmatpush2.bf16.xpose.msra.mxu0 0
      %2310 = vmatprep.subr.bf16.mxu0 0
      %2311 = vmatpush2.bf16.xpose.msra.mxu0 0
      %2312 = vmatprep.subr.bf16.mxu0 0
      %2313 = vmatpush2.bf16.xpose.msra.mxu0 0
      %2314 = vmatprep.subr.bf16.mxu0 0
      %2315 = vmatpush2.bf16.xpose.msra.mxu0 0
      %2316 = vmatprep.subr.bf16.mxu0 0
      %2317 = vmatpush2.bf16.xpose.msra.mxu0 0
      %2318 = vmatprep.subr.bf16.mxu0 0
      %2319 = vmatpush2.bf16.xpose.msra.mxu0 0
      %2320 = vmatprep.mubr.bf16.mxu0 0
      %2321 = vmatmul.mubr.bf16.gmra.mxu0 %v2283
      %v2322 = vpop.f32.mrf.mxu0
      %v2323 = vadd.f32 0.0, %v2322
      %v2324 = vpop.f32.mrf.mxu0
      %v2325 = vpop.f32.mrf.mxu0
      %v2326 = vpop.f32.mrf.mxu0
      %2327 = vdwg.mxu0
      %v2329 = vunpack.c.l.s4 1983009808
      %v2330 = vunpack.c.0.s8 %v2329
      %v2331 = vlaneseq
      %v2332 = vshrl.u32 %v2331, 7
      %v2333 = vsub.s32 %v2330, %v2332
      %v2334 = vrot.slane %v621, %v2333
      %2335 = vrot.lane.b32.xlu0 %v2334, 96
      %v2336 = vpop.permute.xlu0 %2335
      %v2338 = vsel %vm631, %v621, 0
      %v2341 = vsel %vm631, %v2336, 0
      %2343 = vmatprep.subr.bf16.mxu0 0
      %2344 = vmatpush1.bf16.xpose.msra.mxu0 0
      %2345 = vmatprep.subr.bf16.mxu0 0
      %2346 = vmatpush1.bf16.xpose.msra.mxu0 0
      %2347 = vmatprep.subr.bf16.mxu0 0
      %2348 = vmatpush1.bf16.xpose.msra.mxu0 0
      %2349 = vmatprep.subr.bf16.mxu0 0
      %2350 = vmatpush1.bf16.xpose.msra.mxu0 0
      %2351 = vmatprep.subr.bf16.mxu0 0
      %2352 = vmatpush1.bf16.xpose.msra.mxu0 0
      %2353 = vmatprep.subr.bf16.mxu0 0
      %2354 = vmatpush1.bf16.xpose.msra.mxu0 0
      %2355 = vmatprep.subr.bf16.mxu0 0
      %2356 = vmatpush1.bf16.xpose.msra.mxu0 0
      %2357 = vmatprep.subr.bf16.mxu0 0
      %2358 = vmatpush1.bf16.xpose.msra.mxu0 %v2341
      %2359 = vmatprep.subr.bf16.mxu0 0
      %2360 = vmatpush2.bf16.xpose.msra.mxu0 0
      %2361 = vmatprep.subr.bf16.mxu0 0
      %2362 = vmatpush2.bf16.xpose.msra.mxu0 0
      %2363 = vmatprep.subr.bf16.mxu0 0
      %2364 = vmatpush2.bf16.xpose.msra.mxu0 0
      %2365 = vmatprep.subr.bf16.mxu0 0
      %2366 = vmatpush2.bf16.xpose.msra.mxu0 0
      %2367 = vmatprep.subr.bf16.mxu0 0
      %2368 = vmatpush2.bf16.xpose.msra.mxu0 0
      %2369 = vmatprep.subr.bf16.mxu0 0
      %2370 = vmatpush2.bf16.xpose.msra.mxu0 0
      %2371 = vmatprep.subr.bf16.mxu0 0
      %2372 = vmatpush2.bf16.xpose.msra.mxu0 0
      %2373 = vmatprep.subr.bf16.mxu0 0
      %2374 = vmatpush2.bf16.xpose.msra.mxu0 0
      %2375 = vmatprep.mubr.bf16.mxu0 0
      %2376 = vmatmul.mubr.bf16.gmra.mxu0 %v2338
      %v2377 = vpop.f32.mrf.mxu0
      %v2378 = vadd.f32 0.0, %v2377
      %v2379 = vpop.f32.mrf.mxu0
      %v2380 = vpop.f32.mrf.mxu0
      %v2381 = vpop.f32.mrf.mxu0
      %2382 = vdwg.mxu0
      %v2383 = vmul.f32 %v673, 0.35355338
      %v2384 = vmul.f32 %v728, 0.35355338
      %v2385 = vmul.f32 %v783, 0.35355338
      %v2386 = vmul.f32 %v838, 0.35355338
      %v2387 = vmul.f32 %v893, 0.35355338
      %v2388 = vmul.f32 %v948, 0.35355338
      %v2389 = vmul.f32 %v1003, 0.35355338
      %v2390 = vmul.f32 %v1058, 0.35355338
      %v2391 = vmul.f32 %v1113, 0.35355338
      %v2392 = vmul.f32 %v1168, 0.35355338
      %v2393 = vmul.f32 %v1223, 0.35355338
      %v2394 = vmul.f32 %v1278, 0.35355338
      %v2395 = vmul.f32 %v1333, 0.35355338
      %v2396 = vmul.f32 %v1388, 0.35355338
      %v2397 = vmul.f32 %v1443, 0.35355338
      %v2398 = vmul.f32 %v1498, 0.35355338
      %v2399 = vmul.f32 %v1553, 0.35355338
      %v2400 = vmul.f32 %v1608, 0.35355338
      %v2401 = vmul.f32 %v1663, 0.35355338
      %v2402 = vmul.f32 %v1718, 0.35355338
      %v2403 = vmul.f32 %v1773, 0.35355338
      %v2404 = vmul.f32 %v1828, 0.35355338
      %v2405 = vmul.f32 %v1883, 0.35355338
      %v2406 = vmul.f32 %v1938, 0.35355338
      %v2407 = vmul.f32 %v1993, 0.35355338
      %v2408 = vmul.f32 %v2048, 0.35355338
      %v2409 = vmul.f32 %v2103, 0.35355338
      %v2410 = vmul.f32 %v2158, 0.35355338
      %v2411 = vmul.f32 %v2213, 0.35355338
      %v2412 = vmul.f32 %v2268, 0.35355338
      %v2413 = vmul.f32 %v2323, 0.35355338
      %v2414 = vmul.f32 %v2378, 0.35355338
      %vm2415 = vcmask 27648
      %v2416 = vsel %vm2415, %v2383, -inf
      %2417 = vmax.xlane.f32.xlu0 %v2416
      %v2418 = vpop.xlane.xlu0 %2417
      %v2419 = vsel %vm2415, %v2384, -inf
      %2420 = vmax.xlane.f32.xlu0 %v2419
      %v2421 = vpop.xlane.xlu0 %2420
      %v2422 = vsel %vm2415, %v2385, -inf
      %2423 = vmax.xlane.f32.xlu0 %v2422
      %v2424 = vpop.xlane.xlu0 %2423
      %v2425 = vsel %vm2415, %v2386, -inf
      %2426 = vmax.xlane.f32.xlu0 %v2425
      %v2427 = vpop.xlane.xlu0 %2426
      %v2428 = vsel %vm2415, %v2387, -inf
      %2429 = vmax.xlane.f32.xlu0 %v2428
      %v2430 = vpop.xlane.xlu0 %2429
      %v2431 = vsel %vm2415, %v2388, -inf
      %2432 = vmax.xlane.f32.xlu0 %v2431
      %v2433 = vpop.xlane.xlu0 %2432
      %v2434 = vsel %vm2415, %v2389, -inf
      %2435 = vmax.xlane.f32.xlu0 %v2434
      %v2436 = vpop.xlane.xlu0 %2435
      %v2437 = vsel %vm2415, %v2390, -inf
      %2438 = vmax.xlane.f32.xlu0 %v2437
      %v2439 = vpop.xlane.xlu0 %2438
      %v2440 = vsel %vm2415, %v2391, -inf
      %2441 = vmax.xlane.f32.xlu0 %v2440
      %v2442 = vpop.xlane.xlu0 %2441
      %v2443 = vsel %vm2415, %v2392, -inf
      %2444 = vmax.xlane.f32.xlu0 %v2443
      %v2445 = vpop.xlane.xlu0 %2444
      %v2446 = vsel %vm2415, %v2393, -inf
      %2447 = vmax.xlane.f32.xlu0 %v2446
      %v2448 = vpop.xlane.xlu0 %2447
      %v2449 = vsel %vm2415, %v2394, -inf
      %2450 = vmax.xlane.f32.xlu0 %v2449
      %v2451 = vpop.xlane.xlu0 %2450
      %v2452 = vsel %vm2415, %v2395, -inf
      %2453 = vmax.xlane.f32.xlu0 %v2452
      %v2454 = vpop.xlane.xlu0 %2453
      %v2455 = vsel %vm2415, %v2396, -inf
      %2456 = vmax.xlane.f32.xlu0 %v2455
      %v2457 = vpop.xlane.xlu0 %2456
      %v2458 = vsel %vm2415, %v2397, -inf
      %2459 = vmax.xlane.f32.xlu0 %v2458
      %v2460 = vpop.xlane.xlu0 %2459
      %v2461 = vsel %vm2415, %v2398, -inf
      %2462 = vmax.xlane.f32.xlu0 %v2461
      %v2463 = vpop.xlane.xlu0 %2462
      %v2464 = vsel %vm2415, %v2399, -inf
      %2465 = vmax.xlane.f32.xlu0 %v2464
      %v2466 = vpop.xlane.xlu0 %2465
      %v2467 = vsel %vm2415, %v2400, -inf
      %2468 = vmax.xlane.f32.xlu0 %v2467
      %v2469 = vpop.xlane.xlu0 %2468
      %v2470 = vsel %vm2415, %v2401, -inf
      %2471 = vmax.xlane.f32.xlu0 %v2470
      %v2472 = vpop.xlane.xlu0 %2471
      %v2473 = vsel %vm2415, %v2402, -inf
      %2474 = vmax.xlane.f32.xlu0 %v2473
      %v2475 = vpop.xlane.xlu0 %2474
      %v2476 = vsel %vm2415, %v2403, -inf
      %2477 = vmax.xlane.f32.xlu0 %v2476
      %v2478 = vpop.xlane.xlu0 %2477
      %v2479 = vsel %vm2415, %v2404, -inf
      %2480 = vmax.xlane.f32.xlu0 %v2479
      %v2481 = vpop.xlane.xlu0 %2480
      %v2482 = vsel %vm2415, %v2405, -inf
      %2483 = vmax.xlane.f32.xlu0 %v2482
      %v2484 = vpop.xlane.xlu0 %2483
      %v2485 = vsel %vm2415, %v2406, -inf
      %2486 = vmax.xlane.f32.xlu0 %v2485
      %v2487 = vpop.xlane.xlu0 %2486
      %v2488 = vsel %vm2415, %v2407, -inf
      %2489 = vmax.xlane.f32.xlu0 %v2488
      %v2490 = vpop.xlane.xlu0 %2489
      %v2491 = vsel %vm2415, %v2408, -inf
      %2492 = vmax.xlane.f32.xlu0 %v2491
      %v2493 = vpop.xlane.xlu0 %2492
      %v2494 = vsel %vm2415, %v2409, -inf
      %2495 = vmax.xlane.f32.xlu0 %v2494
      %v2496 = vpop.xlane.xlu0 %2495
      %v2497 = vsel %vm2415, %v2410, -inf
      %2498 = vmax.xlane.f32.xlu0 %v2497
      %v2499 = vpop.xlane.xlu0 %2498
      %v2500 = vsel %vm2415, %v2411, -inf
      %2501 = vmax.xlane.f32.xlu0 %v2500
      %v2502 = vpop.xlane.xlu0 %2501
      %v2503 = vsel %vm2415, %v2412, -inf
      %2504 = vmax.xlane.f32.xlu0 %v2503
      %v2505 = vpop.xlane.xlu0 %2504
      %v2506 = vsel %vm2415, %v2413, -inf
      %2507 = vmax.xlane.f32.xlu0 %v2506
      %v2508 = vpop.xlane.xlu0 %2507
      %v2509 = vsel %vm2415, %v2414, -inf
      %2510 = vmax.xlane.f32.xlu0 %v2509
      %v2511 = vpop.xlane.xlu0 %2510
      %v2512 = vsub.f32 %v2383, %v2418
      %v2513 = vsub.f32 %v2384, %v2421
      %v2514 = vsub.f32 %v2385, %v2424
      %v2515 = vsub.f32 %v2386, %v2427
      %v2516 = vsub.f32 %v2387, %v2430
      %v2517 = vsub.f32 %v2388, %v2433
      %v2518 = vsub.f32 %v2389, %v2436
      %v2519 = vsub.f32 %v2390, %v2439
      %v2520 = vsub.f32 %v2391, %v2442
      %v2521 = vsub.f32 %v2392, %v2445
      %v2522 = vsub.f32 %v2393, %v2448
      %v2523 = vsub.f32 %v2394, %v2451
      %v2524 = vsub.f32 %v2395, %v2454
      %v2525 = vsub.f32 %v2396, %v2457
      %v2526 = vsub.f32 %v2397, %v2460
      %v2527 = vsub.f32 %v2398, %v2463
      %v2528 = vsub.f32 %v2399, %v2466
      %v2529 = vsub.f32 %v2400, %v2469
      %v2530 = vsub.f32 %v2401, %v2472
      %v2531 = vsub.f32 %v2402, %v2475
      %v2532 = vsub.f32 %v2403, %v2478
      %v2533 = vsub.f32 %v2404, %v2481
      %v2534 = vsub.f32 %v2405, %v2484
      %v2535 = vsub.f32 %v2406, %v2487
      %v2536 = vsub.f32 %v2407, %v2490
      %v2537 = vsub.f32 %v2408, %v2493
      %v2538 = vsub.f32 %v2409, %v2496
      %v2539 = vsub.f32 %v2410, %v2499
      %v2540 = vsub.f32 %v2411, %v2502
      %v2541 = vsub.f32 %v2412, %v2505
      %v2542 = vsub.f32 %v2413, %v2508
      %v2543 = vsub.f32 %v2414, %v2511
      %v2544 = vmul.f32 %v2512, 1.442695
      %v2545 = vpow.pop %v2544
      %v2546 = vmul.f32 %v2513, 1.442695
      %v2547 = vpow.pop %v2546
      %v2548 = vmul.f32 %v2514, 1.442695
      %v2549 = vpow.pop %v2548
      %v2550 = vmul.f32 %v2515, 1.442695
      %v2551 = vpow.pop %v2550
      %v2552 = vmul.f32 %v2516, 1.442695
      %v2553 = vpow.pop %v2552
      %v2554 = vmul.f32 %v2517, 1.442695
      %v2555 = vpow.pop %v2554
      %v2556 = vmul.f32 %v2518, 1.442695
      %v2557 = vpow.pop %v2556
      %v2558 = vmul.f32 %v2519, 1.442695
      %v2559 = vpow.pop %v2558
      %v2560 = vmul.f32 %v2520, 1.442695
      %v2561 = vpow.pop %v2560
      %v2562 = vmul.f32 %v2521, 1.442695
      %v2563 = vpow.pop %v2562
      %v2564 = vmul.f32 %v2522, 1.442695
      %v2565 = vpow.pop %v2564
      %v2566 = vmul.f32 %v2523, 1.442695
      %v2567 = vpow.pop %v2566
      %v2568 = vmul.f32 %v2524, 1.442695
      %v2569 = vpow.pop %v2568
      %v2570 = vmul.f32 %v2525, 1.442695
      %v2571 = vpow.pop %v2570
      %v2572 = vmul.f32 %v2526, 1.442695
      %v2573 = vpow.pop %v2572
      %v2574 = vmul.f32 %v2527, 1.442695
      %v2575 = vpow.pop %v2574
      %v2576 = vmul.f32 %v2528, 1.442695
      %v2577 = vpow.pop %v2576
      %v2578 = vmul.f32 %v2529, 1.442695
      %v2579 = vpow.pop %v2578
      %v2580 = vmul.f32 %v2530, 1.442695
      %v2581 = vpow.pop %v2580
      %v2582 = vmul.f32 %v2531, 1.442695
      %v2583 = vpow.pop %v2582
      %v2584 = vmul.f32 %v2532, 1.442695
      %v2585 = vpow.pop %v2584
      %v2586 = vmul.f32 %v2533, 1.442695
      %v2587 = vpow.pop %v2586
      %v2588 = vmul.f32 %v2534, 1.442695
      %v2589 = vpow.pop %v2588
      %v2590 = vmul.f32 %v2535, 1.442695
      %v2591 = vpow.pop %v2590
      %v2592 = vmul.f32 %v2536, 1.442695
      %v2593 = vpow.pop %v2592
      %v2594 = vmul.f32 %v2537, 1.442695
      %v2595 = vpow.pop %v2594
      %v2596 = vmul.f32 %v2538, 1.442695
      %v2597 = vpow.pop %v2596
      %v2598 = vmul.f32 %v2539, 1.442695
      %v2599 = vpow.pop %v2598
      %v2600 = vmul.f32 %v2540, 1.442695
      %v2601 = vpow.pop %v2600
      %v2602 = vmul.f32 %v2541, 1.442695
      %v2603 = vpow.pop %v2602
      %v2604 = vmul.f32 %v2542, 1.442695
      %v2605 = vpow.pop %v2604
      %v2606 = vmul.f32 %v2543, 1.442695
      %v2607 = vpow.pop %v2606
      %v2608 = vsel %vm2415, %v2545, 0.0
      %2609 = vadd.xlane.f32.xlu0 %v2608
      %v2610 = vpop.xlane.xlu0 %2609
      %v2611 = vsel %vm2415, %v2547, 0.0
      %2612 = vadd.xlane.f32.xlu0 %v2611
      %v2613 = vpop.xlane.xlu0 %2612
      %v2614 = vsel %vm2415, %v2549, 0.0
      %2615 = vadd.xlane.f32.xlu0 %v2614
      %v2616 = vpop.xlane.xlu0 %2615
      %v2617 = vsel %vm2415, %v2551, 0.0
      %2618 = vadd.xlane.f32.xlu0 %v2617
      %v2619 = vpop.xlane.xlu0 %2618
      %v2620 = vsel %vm2415, %v2553, 0.0
      %2621 = vadd.xlane.f32.xlu0 %v2620
      %v2622 = vpop.xlane.xlu0 %2621
      %v2623 = vsel %vm2415, %v2555, 0.0
      %2624 = vadd.xlane.f32.xlu0 %v2623
      %v2625 = vpop.xlane.xlu0 %2624
      %v2626 = vsel %vm2415, %v2557, 0.0
      %2627 = vadd.xlane.f32.xlu0 %v2626
      %v2628 = vpop.xlane.xlu0 %2627
      %v2629 = vsel %vm2415, %v2559, 0.0
      %2630 = vadd.xlane.f32.xlu0 %v2629
      %v2631 = vpop.xlane.xlu0 %2630
      %v2632 = vsel %vm2415, %v2561, 0.0
      %2633 = vadd.xlane.f32.xlu0 %v2632
      %v2634 = vpop.xlane.xlu0 %2633
      %v2635 = vsel %vm2415, %v2563, 0.0
      %2636 = vadd.xlane.f32.xlu0 %v2635
      %v2637 = vpop.xlane.xlu0 %2636
      %v2638 = vsel %vm2415, %v2565, 0.0
      %2639 = vadd.xlane.f32.xlu0 %v2638
      %v2640 = vpop.xlane.xlu0 %2639
      %v2641 = vsel %vm2415, %v2567, 0.0
      %2642 = vadd.xlane.f32.xlu0 %v2641
      %v2643 = vpop.xlane.xlu0 %2642
      %v2644 = vsel %vm2415, %v2569, 0.0
      %2645 = vadd.xlane.f32.xlu0 %v2644
      %v2646 = vpop.xlane.xlu0 %2645
      %v2647 = vsel %vm2415, %v2571, 0.0
      %2648 = vadd.xlane.f32.xlu0 %v2647
      %v2649 = vpop.xlane.xlu0 %2648
      %v2650 = vsel %vm2415, %v2573, 0.0
      %2651 = vadd.xlane.f32.xlu0 %v2650
      %v2652 = vpop.xlane.xlu0 %2651
      %v2653 = vsel %vm2415, %v2575, 0.0
      %2654 = vadd.xlane.f32.xlu0 %v2653
      %v2655 = vpop.xlane.xlu0 %2654
      %v2656 = vsel %vm2415, %v2577, 0.0
      %2657 = vadd.xlane.f32.xlu0 %v2656
      %v2658 = vpop.xlane.xlu0 %2657
      %v2659 = vsel %vm2415, %v2579, 0.0
      %2660 = vadd.xlane.f32.xlu0 %v2659
      %v2661 = vpop.xlane.xlu0 %2660
      %v2662 = vsel %vm2415, %v2581, 0.0
      %2663 = vadd.xlane.f32.xlu0 %v2662
      %v2664 = vpop.xlane.xlu0 %2663
      %v2665 = vsel %vm2415, %v2583, 0.0
      %2666 = vadd.xlane.f32.xlu0 %v2665
      %v2667 = vpop.xlane.xlu0 %2666
      %v2668 = vsel %vm2415, %v2585, 0.0
      %2669 = vadd.xlane.f32.xlu0 %v2668
      %v2670 = vpop.xlane.xlu0 %2669
      %v2671 = vsel %vm2415, %v2587, 0.0
      %2672 = vadd.xlane.f32.xlu0 %v2671
      %v2673 = vpop.xlane.xlu0 %2672
      %v2674 = vsel %vm2415, %v2589, 0.0
      %2675 = vadd.xlane.f32.xlu0 %v2674
      %v2676 = vpop.xlane.xlu0 %2675
      %v2677 = vsel %vm2415, %v2591, 0.0
      %2678 = vadd.xlane.f32.xlu0 %v2677
      %v2679 = vpop.xlane.xlu0 %2678
      %v2680 = vsel %vm2415, %v2593, 0.0
      %2681 = vadd.xlane.f32.xlu0 %v2680
      %v2682 = vpop.xlane.xlu0 %2681
      %v2683 = vsel %vm2415, %v2595, 0.0
      %2684 = vadd.xlane.f32.xlu0 %v2683
      %v2685 = vpop.xlane.xlu0 %2684
      %v2686 = vsel %vm2415, %v2597, 0.0
      %2687 = vadd.xlane.f32.xlu0 %v2686
      %v2688 = vpop.xlane.xlu0 %2687
      %v2689 = vsel %vm2415, %v2599, 0.0
      %2690 = vadd.xlane.f32.xlu0 %v2689
      %v2691 = vpop.xlane.xlu0 %2690
      %v2692 = vsel %vm2415, %v2601, 0.0
      %2693 = vadd.xlane.f32.xlu0 %v2692
      %v2694 = vpop.xlane.xlu0 %2693
      %v2695 = vsel %vm2415, %v2603, 0.0
      %2696 = vadd.xlane.f32.xlu0 %v2695
      %v2697 = vpop.xlane.xlu0 %2696
      %v2698 = vsel %vm2415, %v2605, 0.0
      %2699 = vadd.xlane.f32.xlu0 %v2698
      %v2700 = vpop.xlane.xlu0 %2699
      %v2701 = vsel %vm2415, %v2607, 0.0
      %2702 = vadd.xlane.f32.xlu0 %v2701
      %v2703 = vpop.xlane.xlu0 %2702
      %v2704 = vrcp.pop %v2610
      %v2705 = vrcp.pop %v2613
      %v2706 = vrcp.pop %v2616
      %v2707 = vrcp.pop %v2619
      %v2708 = vrcp.pop %v2622
      %v2709 = vrcp.pop %v2625
      %v2710 = vrcp.pop %v2628
      %v2711 = vrcp.pop %v2631
      %v2712 = vrcp.pop %v2634
      %v2713 = vrcp.pop %v2637
      %v2714 = vrcp.pop %v2640
      %v2715 = vrcp.pop %v2643
      %v2716 = vrcp.pop %v2646
      %v2717 = vrcp.pop %v2649
      %v2718 = vrcp.pop %v2652
      %v2719 = vrcp.pop %v2655
      %v2720 = vrcp.pop %v2658
      %v2721 = vrcp.pop %v2661
      %v2722 = vrcp.pop %v2664
      %v2723 = vrcp.pop %v2667
      %v2724 = vrcp.pop %v2670
      %v2725 = vrcp.pop %v2673
      %v2726 = vrcp.pop %v2676
      %v2727 = vrcp.pop %v2679
      %v2728 = vrcp.pop %v2682
      %v2729 = vrcp.pop %v2685
      %v2730 = vrcp.pop %v2688
      %v2731 = vrcp.pop %v2691
      %v2732 = vrcp.pop %v2694
      %v2733 = vrcp.pop %v2697
      %v2734 = vrcp.pop %v2700
      %v2735 = vrcp.pop %v2703
      %v2736 = vmul.f32 %v2545, %v2704
      %v2737 = vmul.f32 %v2547, %v2705
      %v2738 = vmul.f32 %v2549, %v2706
      %v2739 = vmul.f32 %v2551, %v2707
      %v2740 = vmul.f32 %v2553, %v2708
      %v2741 = vmul.f32 %v2555, %v2709
      %v2742 = vmul.f32 %v2557, %v2710
      %v2743 = vmul.f32 %v2559, %v2711
      %v2744 = vmul.f32 %v2561, %v2712
      %v2745 = vmul.f32 %v2563, %v2713
      %v2746 = vmul.f32 %v2565, %v2714
      %v2747 = vmul.f32 %v2567, %v2715
      %v2748 = vmul.f32 %v2569, %v2716
      %v2749 = vmul.f32 %v2571, %v2717
      %v2750 = vmul.f32 %v2573, %v2718
      %v2751 = vmul.f32 %v2575, %v2719
      %v2752 = vmul.f32 %v2577, %v2720
      %v2753 = vmul.f32 %v2579, %v2721
      %v2754 = vmul.f32 %v2581, %v2722
      %v2755 = vmul.f32 %v2583, %v2723
      %v2756 = vmul.f32 %v2585, %v2724
      %v2757 = vmul.f32 %v2587, %v2725
      %v2758 = vmul.f32 %v2589, %v2726
      %v2759 = vmul.f32 %v2591, %v2727
      %v2760 = vmul.f32 %v2593, %v2728
      %v2761 = vmul.f32 %v2595, %v2729
      %v2762 = vmul.f32 %v2597, %v2730
      %v2763 = vmul.f32 %v2599, %v2731
      %v2764 = vmul.f32 %v2601, %v2732
      %v2765 = vmul.f32 %v2603, %v2733
      %v2766 = vmul.f32 %v2605, %v2734
      %v2767 = vmul.f32 %v2607, %v2735
      %v2768 = vpack.c.bf16 %v2736, %v2736
      %v2769 = vpack.c.bf16 %v2737, %v2737
      %v2770 = vpack.c.bf16 %v2738, %v2738
      %v2771 = vpack.c.bf16 %v2739, %v2739
      %v2772 = vpack.c.bf16 %v2740, %v2740
      %v2773 = vpack.c.bf16 %v2741, %v2741
      %v2774 = vpack.c.bf16 %v2742, %v2742
      %v2775 = vpack.c.bf16 %v2743, %v2743
      %v2776 = vpack.c.bf16 %v2744, %v2744
      %v2777 = vpack.c.bf16 %v2745, %v2745
      %v2778 = vpack.c.bf16 %v2746, %v2746
      %v2779 = vpack.c.bf16 %v2747, %v2747
      %v2780 = vpack.c.bf16 %v2748, %v2748
      %v2781 = vpack.c.bf16 %v2749, %v2749
      %v2782 = vpack.c.bf16 %v2750, %v2750
      %v2783 = vpack.c.bf16 %v2751, %v2751
      %v2784 = vpack.c.bf16 %v2752, %v2752
      %v2785 = vpack.c.bf16 %v2753, %v2753
      %v2786 = vpack.c.bf16 %v2754, %v2754
      %v2787 = vpack.c.bf16 %v2755, %v2755
      %v2788 = vpack.c.bf16 %v2756, %v2756
      %v2789 = vpack.c.bf16 %v2757, %v2757
      %v2790 = vpack.c.bf16 %v2758, %v2758
      %v2791 = vpack.c.bf16 %v2759, %v2759
      %v2792 = vpack.c.bf16 %v2760, %v2760
      %v2793 = vpack.c.bf16 %v2761, %v2761
      %v2794 = vpack.c.bf16 %v2762, %v2762
      %v2795 = vpack.c.bf16 %v2763, %v2763
      %v2796 = vpack.c.bf16 %v2764, %v2764
      %v2797 = vpack.c.bf16 %v2765, %v2765
      %v2798 = vpack.c.bf16 %v2766, %v2766
      %v2799 = vpack.c.bf16 %v2767, %v2767
      %2800 = vrot.lane.b32.xlu0 %v628, 64
      %v2801 = vpop.permute.xlu0 %2800
      %v2803 = vsel %vm321, %v2768, 0
      %v2806 = vsel %vm328, %v2801, 0
      %2808 = vmatprep.subr.bf16.mxu0 0
      %2809 = vmatpush1.bf16.msra.mxu0 0
      %2810 = vmatprep.subr.bf16.mxu0 0
      %2811 = vmatpush1.bf16.msra.mxu0 0
      %2812 = vmatprep.subr.bf16.mxu0 0
      %2813 = vmatpush1.bf16.msra.mxu0 0
      %2814 = vmatprep.subr.bf16.mxu0 0
      %2815 = vmatpush1.bf16.msra.mxu0 0
      %2816 = vmatprep.subr.bf16.mxu0 0
      %2817 = vmatpush1.bf16.msra.mxu0 0
      %2818 = vmatprep.subr.bf16.mxu0 0
      %2819 = vmatpush1.bf16.msra.mxu0 0
      %2820 = vmatprep.subr.bf16.mxu0 0
      %2821 = vmatpush1.bf16.msra.mxu0 0
      %2822 = vmatprep.subr.bf16.mxu0 0
      %2823 = vmatpush1.bf16.msra.mxu0 %v2806
      %2824 = vmatprep.subr.bf16.mxu0 0
      %2825 = vmatpush2.bf16.msra.mxu0 0
      %2826 = vmatprep.subr.bf16.mxu0 0
      %2827 = vmatpush2.bf16.msra.mxu0 0
      %2828 = vmatprep.subr.bf16.mxu0 0
      %2829 = vmatpush2.bf16.msra.mxu0 0
      %2830 = vmatprep.subr.bf16.mxu0 0
      %2831 = vmatpush2.bf16.msra.mxu0 0
      %2832 = vmatprep.subr.bf16.mxu0 0
      %2833 = vmatpush2.bf16.msra.mxu0 0
      %2834 = vmatprep.subr.bf16.mxu0 0
      %2835 = vmatpush2.bf16.msra.mxu0 0
      %2836 = vmatprep.subr.bf16.mxu0 0
      %2837 = vmatpush2.bf16.msra.mxu0 0
      %2838 = vmatprep.subr.bf16.mxu0 0
      %2839 = vmatpush2.bf16.msra.mxu0 0
      %2840 = vmatprep.mubr.bf16.mxu0 0
      %2841 = vmatmul.mubr.bf16.gmra.mxu0 %v2803
      %v2842 = vpop.f32.mrf.mxu0
      %v2843 = vadd.f32 0.0, %v2842
      %v2844 = vpop.f32.mrf.mxu0
      %v2845 = vpop.f32.mrf.mxu0
      %v2846 = vpop.f32.mrf.mxu0
      %2847 = vdwg.mxu0
      %2848 = vrot.lane.b32.xlu0 %v684, 64
      %v2849 = vpop.permute.xlu0 %2848
      %v2851 = vsel %vm321, %v2769, 0
      %v2854 = vsel %vm328, %v2849, 0
      %2856 = vmatprep.subr.bf16.mxu0 0
      %2857 = vmatpush1.bf16.msra.mxu0 0
      %2858 = vmatprep.subr.bf16.mxu0 0
      %2859 = vmatpush1.bf16.msra.mxu0 0
      %2860 = vmatprep.subr.bf16.mxu0 0
      %2861 = vmatpush1.bf16.msra.mxu0 0
      %2862 = vmatprep.subr.bf16.mxu0 0
      %2863 = vmatpush1.bf16.msra.mxu0 0
      %2864 = vmatprep.subr.bf16.mxu0 0
      %2865 = vmatpush1.bf16.msra.mxu0 0
      %2866 = vmatprep.subr.bf16.mxu0 0
      %2867 = vmatpush1.bf16.msra.mxu0 0
      %2868 = vmatprep.subr.bf16.mxu0 0
      %2869 = vmatpush1.bf16.msra.mxu0 0
      %2870 = vmatprep.subr.bf16.mxu0 0
      %2871 = vmatpush1.bf16.msra.mxu0 %v2854
      %2872 = vmatprep.subr.bf16.mxu0 0
      %2873 = vmatpush2.bf16.msra.mxu0 0
      %2874 = vmatprep.subr.bf16.mxu0 0
      %2875 = vmatpush2.bf16.msra.mxu0 0
      %2876 = vmatprep.subr.bf16.mxu0 0
      %2877 = vmatpush2.bf16.msra.mxu0 0
      %2878 = vmatprep.subr.bf16.mxu0 0
      %2879 = vmatpush2.bf16.msra.mxu0 0
      %2880 = vmatprep.subr.bf16.mxu0 0
      %2881 = vmatpush2.bf16.msra.mxu0 0
      %2882 = vmatprep.subr.bf16.mxu0 0
      %2883 = vmatpush2.bf16.msra.mxu0 0
      %2884 = vmatprep.subr.bf16.mxu0 0
      %2885 = vmatpush2.bf16.msra.mxu0 0
      %2886 = vmatprep.subr.bf16.mxu0 0
      %2887 = vmatpush2.bf16.msra.mxu0 0
      %2888 = vmatprep.mubr.bf16.mxu0 0
      %2889 = vmatmul.mubr.bf16.gmra.mxu0 %v2851
      %v2890 = vpop.f32.mrf.mxu0
      %v2891 = vadd.f32 0.0, %v2890
      %v2892 = vpop.f32.mrf.mxu0
      %v2893 = vpop.f32.mrf.mxu0
      %v2894 = vpop.f32.mrf.mxu0
      %2895 = vdwg.mxu0
      %2896 = vrot.lane.b32.xlu0 %v739, 64
      %v2897 = vpop.permute.xlu0 %2896
      %v2899 = vsel %vm321, %v2770, 0
      %v2902 = vsel %vm328, %v2897, 0
      %2904 = vmatprep.subr.bf16.mxu0 0
      %2905 = vmatpush1.bf16.msra.mxu0 0
      %2906 = vmatprep.subr.bf16.mxu0 0
      %2907 = vmatpush1.bf16.msra.mxu0 0
      %2908 = vmatprep.subr.bf16.mxu0 0
      %2909 = vmatpush1.bf16.msra.mxu0 0
      %2910 = vmatprep.subr.bf16.mxu0 0
      %2911 = vmatpush1.bf16.msra.mxu0 0
      %2912 = vmatprep.subr.bf16.mxu0 0
      %2913 = vmatpush1.bf16.msra.mxu0 0
      %2914 = vmatprep.subr.bf16.mxu0 0
      %2915 = vmatpush1.bf16.msra.mxu0 0
      %2916 = vmatprep.subr.bf16.mxu0 0
      %2917 = vmatpush1.bf16.msra.mxu0 0
      %2918 = vmatprep.subr.bf16.mxu0 0
      %2919 = vmatpush1.bf16.msra.mxu0 %v2902
      %2920 = vmatprep.subr.bf16.mxu0 0
      %2921 = vmatpush2.bf16.msra.mxu0 0
      %2922 = vmatprep.subr.bf16.mxu0 0
      %2923 = vmatpush2.bf16.msra.mxu0 0
      %2924 = vmatprep.subr.bf16.mxu0 0
      %2925 = vmatpush2.bf16.msra.mxu0 0
      %2926 = vmatprep.subr.bf16.mxu0 0
      %2927 = vmatpush2.bf16.msra.mxu0 0
      %2928 = vmatprep.subr.bf16.mxu0 0
      %2929 = vmatpush2.bf16.msra.mxu0 0
      %2930 = vmatprep.subr.bf16.mxu0 0
      %2931 = vmatpush2.bf16.msra.mxu0 0
      %2932 = vmatprep.subr.bf16.mxu0 0
      %2933 = vmatpush2.bf16.msra.mxu0 0
      %2934 = vmatprep.subr.bf16.mxu0 0
      %2935 = vmatpush2.bf16.msra.mxu0 0
      %2936 = vmatprep.mubr.bf16.mxu0 0
      %2937 = vmatmul.mubr.bf16.gmra.mxu0 %v2899
      %v2938 = vpop.f32.mrf.mxu0
      %v2939 = vadd.f32 0.0, %v2938
      %v2940 = vpop.f32.mrf.mxu0
      %v2941 = vpop.f32.mrf.mxu0
      %v2942 = vpop.f32.mrf.mxu0
      %2943 = vdwg.mxu0
      %2944 = vrot.lane.b32.xlu0 %v794, 64
      %v2945 = vpop.permute.xlu0 %2944
      %v2947 = vsel %vm321, %v2771, 0
      %v2950 = vsel %vm328, %v2945, 0
      %2952 = vmatprep.subr.bf16.mxu0 0
      %2953 = vmatpush1.bf16.msra.mxu0 0
      %2954 = vmatprep.subr.bf16.mxu0 0
      %2955 = vmatpush1.bf16.msra.mxu0 0
      %2956 = vmatprep.subr.bf16.mxu0 0
      %2957 = vmatpush1.bf16.msra.mxu0 0
      %2958 = vmatprep.subr.bf16.mxu0 0
      %2959 = vmatpush1.bf16.msra.mxu0 0
      %2960 = vmatprep.subr.bf16.mxu0 0
      %2961 = vmatpush1.bf16.msra.mxu0 0
      %2962 = vmatprep.subr.bf16.mxu0 0
      %2963 = vmatpush1.bf16.msra.mxu0 0
      %2964 = vmatprep.subr.bf16.mxu0 0
      %2965 = vmatpush1.bf16.msra.mxu0 0
      %2966 = vmatprep.subr.bf16.mxu0 0
      %2967 = vmatpush1.bf16.msra.mxu0 %v2950
      %2968 = vmatprep.subr.bf16.mxu0 0
      %2969 = vmatpush2.bf16.msra.mxu0 0
      %2970 = vmatprep.subr.bf16.mxu0 0
      %2971 = vmatpush2.bf16.msra.mxu0 0
      %2972 = vmatprep.subr.bf16.mxu0 0
      %2973 = vmatpush2.bf16.msra.mxu0 0
      %2974 = vmatprep.subr.bf16.mxu0 0
      %2975 = vmatpush2.bf16.msra.mxu0 0
      %2976 = vmatprep.subr.bf16.mxu0 0
      %2977 = vmatpush2.bf16.msra.mxu0 0
      %2978 = vmatprep.subr.bf16.mxu0 0
      %2979 = vmatpush2.bf16.msra.mxu0 0
      %2980 = vmatprep.subr.bf16.mxu0 0
      %2981 = vmatpush2.bf16.msra.mxu0 0
      %2982 = vmatprep.subr.bf16.mxu0 0
      %2983 = vmatpush2.bf16.msra.mxu0 0
      %2984 = vmatprep.mubr.bf16.mxu0 0
      %2985 = vmatmul.mubr.bf16.gmra.mxu0 %v2947
      %v2986 = vpop.f32.mrf.mxu0
      %v2987 = vadd.f32 0.0, %v2986
      %v2988 = vpop.f32.mrf.mxu0
      %v2989 = vpop.f32.mrf.mxu0
      %v2990 = vpop.f32.mrf.mxu0
      %2991 = vdwg.mxu0
      %2992 = vrot.lane.b32.xlu0 %v849, 64
      %v2993 = vpop.permute.xlu0 %2992
      %v2995 = vsel %vm321, %v2772, 0
      %v2998 = vsel %vm328, %v2993, 0
      %3000 = vmatprep.subr.bf16.mxu0 0
      %3001 = vmatpush1.bf16.msra.mxu0 0
      %3002 = vmatprep.subr.bf16.mxu0 0
      %3003 = vmatpush1.bf16.msra.mxu0 0
      %3004 = vmatprep.subr.bf16.mxu0 0
      %3005 = vmatpush1.bf16.msra.mxu0 0
      %3006 = vmatprep.subr.bf16.mxu0 0
      %3007 = vmatpush1.bf16.msra.mxu0 0
      %3008 = vmatprep.subr.bf16.mxu0 0
      %3009 = vmatpush1.bf16.msra.mxu0 0
      %3010 = vmatprep.subr.bf16.mxu0 0
      %3011 = vmatpush1.bf16.msra.mxu0 0
      %3012 = vmatprep.subr.bf16.mxu0 0
      %3013 = vmatpush1.bf16.msra.mxu0 0
      %3014 = vmatprep.subr.bf16.mxu0 0
      %3015 = vmatpush1.bf16.msra.mxu0 %v2998
      %3016 = vmatprep.subr.bf16.mxu0 0
      %3017 = vmatpush2.bf16.msra.mxu0 0
      %3018 = vmatprep.subr.bf16.mxu0 0
      %3019 = vmatpush2.bf16.msra.mxu0 0
      %3020 = vmatprep.subr.bf16.mxu0 0
      %3021 = vmatpush2.bf16.msra.mxu0 0
      %3022 = vmatprep.subr.bf16.mxu0 0
      %3023 = vmatpush2.bf16.msra.mxu0 0
      %3024 = vmatprep.subr.bf16.mxu0 0
      %3025 = vmatpush2.bf16.msra.mxu0 0
      %3026 = vmatprep.subr.bf16.mxu0 0
      %3027 = vmatpush2.bf16.msra.mxu0 0
      %3028 = vmatprep.subr.bf16.mxu0 0
      %3029 = vmatpush2.bf16.msra.mxu0 0
      %3030 = vmatprep.subr.bf16.mxu0 0
      %3031 = vmatpush2.bf16.msra.mxu0 0
      %3032 = vmatprep.mubr.bf16.mxu0 0
      %3033 = vmatmul.mubr.bf16.gmra.mxu0 %v2995
      %v3034 = vpop.f32.mrf.mxu0
      %v3035 = vadd.f32 0.0, %v3034
      %v3036 = vpop.f32.mrf.mxu0
      %v3037 = vpop.f32.mrf.mxu0
      %v3038 = vpop.f32.mrf.mxu0
      %3039 = vdwg.mxu0
      %3040 = vrot.lane.b32.xlu0 %v904, 64
      %v3041 = vpop.permute.xlu0 %3040
      %v3043 = vsel %vm321, %v2773, 0
      %v3046 = vsel %vm328, %v3041, 0
      %3048 = vmatprep.subr.bf16.mxu0 0
      %3049 = vmatpush1.bf16.msra.mxu0 0
      %3050 = vmatprep.subr.bf16.mxu0 0
      %3051 = vmatpush1.bf16.msra.mxu0 0
      %3052 = vmatprep.subr.bf16.mxu0 0
      %3053 = vmatpush1.bf16.msra.mxu0 0
      %3054 = vmatprep.subr.bf16.mxu0 0
      %3055 = vmatpush1.bf16.msra.mxu0 0
      %3056 = vmatprep.subr.bf16.mxu0 0
      %3057 = vmatpush1.bf16.msra.mxu0 0
      %3058 = vmatprep.subr.bf16.mxu0 0
      %3059 = vmatpush1.bf16.msra.mxu0 0
      %3060 = vmatprep.subr.bf16.mxu0 0
      %3061 = vmatpush1.bf16.msra.mxu0 0
      %3062 = vmatprep.subr.bf16.mxu0 0
      %3063 = vmatpush1.bf16.msra.mxu0 %v3046
      %3064 = vmatprep.subr.bf16.mxu0 0
      %3065 = vmatpush2.bf16.msra.mxu0 0
      %3066 = vmatprep.subr.bf16.mxu0 0
      %3067 = vmatpush2.bf16.msra.mxu0 0
      %3068 = vmatprep.subr.bf16.mxu0 0
      %3069 = vmatpush2.bf16.msra.mxu0 0
      %3070 = vmatprep.subr.bf16.mxu0 0
      %3071 = vmatpush2.bf16.msra.mxu0 0
      %3072 = vmatprep.subr.bf16.mxu0 0
      %3073 = vmatpush2.bf16.msra.mxu0 0
      %3074 = vmatprep.subr.bf16.mxu0 0
      %3075 = vmatpush2.bf16.msra.mxu0 0
      %3076 = vmatprep.subr.bf16.mxu0 0
      %3077 = vmatpush2.bf16.msra.mxu0 0
      %3078 = vmatprep.subr.bf16.mxu0 0
      %3079 = vmatpush2.bf16.msra.mxu0 0
      %3080 = vmatprep.mubr.bf16.mxu0 0
      %3081 = vmatmul.mubr.bf16.gmra.mxu0 %v3043
      %v3082 = vpop.f32.mrf.mxu0
      %v3083 = vadd.f32 0.0, %v3082
      %v3084 = vpop.f32.mrf.mxu0
      %v3085 = vpop.f32.mrf.mxu0
      %v3086 = vpop.f32.mrf.mxu0
      %3087 = vdwg.mxu0
      %3088 = vrot.lane.b32.xlu0 %v959, 64
      %v3089 = vpop.permute.xlu0 %3088
      %v3091 = vsel %vm321, %v2774, 0
      %v3094 = vsel %vm328, %v3089, 0
      %3096 = vmatprep.subr.bf16.mxu0 0
      %3097 = vmatpush1.bf16.msra.mxu0 0
      %3098 = vmatprep.subr.bf16.mxu0 0
      %3099 = vmatpush1.bf16.msra.mxu0 0
      %3100 = vmatprep.subr.bf16.mxu0 0
      %3101 = vmatpush1.bf16.msra.mxu0 0
      %3102 = vmatprep.subr.bf16.mxu0 0
      %3103 = vmatpush1.bf16.msra.mxu0 0
      %3104 = vmatprep.subr.bf16.mxu0 0
      %3105 = vmatpush1.bf16.msra.mxu0 0
      %3106 = vmatprep.subr.bf16.mxu0 0
      %3107 = vmatpush1.bf16.msra.mxu0 0
      %3108 = vmatprep.subr.bf16.mxu0 0
      %3109 = vmatpush1.bf16.msra.mxu0 0
      %3110 = vmatprep.subr.bf16.mxu0 0
      %3111 = vmatpush1.bf16.msra.mxu0 %v3094
      %3112 = vmatprep.subr.bf16.mxu0 0
      %3113 = vmatpush2.bf16.msra.mxu0 0
      %3114 = vmatprep.subr.bf16.mxu0 0
      %3115 = vmatpush2.bf16.msra.mxu0 0
      %3116 = vmatprep.subr.bf16.mxu0 0
      %3117 = vmatpush2.bf16.msra.mxu0 0
      %3118 = vmatprep.subr.bf16.mxu0 0
      %3119 = vmatpush2.bf16.msra.mxu0 0
      %3120 = vmatprep.subr.bf16.mxu0 0
      %3121 = vmatpush2.bf16.msra.mxu0 0
      %3122 = vmatprep.subr.bf16.mxu0 0
      %3123 = vmatpush2.bf16.msra.mxu0 0
      %3124 = vmatprep.subr.bf16.mxu0 0
      %3125 = vmatpush2.bf16.msra.mxu0 0
      %3126 = vmatprep.subr.bf16.mxu0 0
      %3127 = vmatpush2.bf16.msra.mxu0 0
      %3128 = vmatprep.mubr.bf16.mxu0 0
      %3129 = vmatmul.mubr.bf16.gmra.mxu0 %v3091
      %v3130 = vpop.f32.mrf.mxu0
      %v3131 = vadd.f32 0.0, %v3130
      %v3132 = vpop.f32.mrf.mxu0
      %v3133 = vpop.f32.mrf.mxu0
      %v3134 = vpop.f32.mrf.mxu0
      %3135 = vdwg.mxu0
      %3136 = vrot.lane.b32.xlu0 %v1014, 64
      %v3137 = vpop.permute.xlu0 %3136
      %v3139 = vsel %vm321, %v2775, 0
      %v3142 = vsel %vm328, %v3137, 0
      %3144 = vmatprep.subr.bf16.mxu0 0
      %3145 = vmatpush1.bf16.msra.mxu0 0
      %3146 = vmatprep.subr.bf16.mxu0 0
      %3147 = vmatpush1.bf16.msra.mxu0 0
      %3148 = vmatprep.subr.bf16.mxu0 0
      %3149 = vmatpush1.bf16.msra.mxu0 0
      %3150 = vmatprep.subr.bf16.mxu0 0
      %3151 = vmatpush1.bf16.msra.mxu0 0
      %3152 = vmatprep.subr.bf16.mxu0 0
      %3153 = vmatpush1.bf16.msra.mxu0 0
      %3154 = vmatprep.subr.bf16.mxu0 0
      %3155 = vmatpush1.bf16.msra.mxu0 0
      %3156 = vmatprep.subr.bf16.mxu0 0
      %3157 = vmatpush1.bf16.msra.mxu0 0
      %3158 = vmatprep.subr.bf16.mxu0 0
      %3159 = vmatpush1.bf16.msra.mxu0 %v3142
      %3160 = vmatprep.subr.bf16.mxu0 0
      %3161 = vmatpush2.bf16.msra.mxu0 0
      %3162 = vmatprep.subr.bf16.mxu0 0
      %3163 = vmatpush2.bf16.msra.mxu0 0
      %3164 = vmatprep.subr.bf16.mxu0 0
      %3165 = vmatpush2.bf16.msra.mxu0 0
      %3166 = vmatprep.subr.bf16.mxu0 0
      %3167 = vmatpush2.bf16.msra.mxu0 0
      %3168 = vmatprep.subr.bf16.mxu0 0
      %3169 = vmatpush2.bf16.msra.mxu0 0
      %3170 = vmatprep.subr.bf16.mxu0 0
      %3171 = vmatpush2.bf16.msra.mxu0 0
      %3172 = vmatprep.subr.bf16.mxu0 0
      %3173 = vmatpush2.bf16.msra.mxu0 0
      %3174 = vmatprep.subr.bf16.mxu0 0
      %3175 = vmatpush2.bf16.msra.mxu0 0
      %3176 = vmatprep.mubr.bf16.mxu0 0
      %3177 = vmatmul.mubr.bf16.gmra.mxu0 %v3139
      %v3178 = vpop.f32.mrf.mxu0
      %v3179 = vadd.f32 0.0, %v3178
      %v3180 = vpop.f32.mrf.mxu0
      %v3181 = vpop.f32.mrf.mxu0
      %v3182 = vpop.f32.mrf.mxu0
      %3183 = vdwg.mxu0
      %3184 = vrot.lane.b32.xlu0 %v1069, 64
      %v3185 = vpop.permute.xlu0 %3184
      %v3187 = vsel %vm321, %v2776, 0
      %v3190 = vsel %vm328, %v3185, 0
      %3192 = vmatprep.subr.bf16.mxu0 0
      %3193 = vmatpush1.bf16.msra.mxu0 0
      %3194 = vmatprep.subr.bf16.mxu0 0
      %3195 = vmatpush1.bf16.msra.mxu0 0
      %3196 = vmatprep.subr.bf16.mxu0 0
      %3197 = vmatpush1.bf16.msra.mxu0 0
      %3198 = vmatprep.subr.bf16.mxu0 0
      %3199 = vmatpush1.bf16.msra.mxu0 0
      %3200 = vmatprep.subr.bf16.mxu0 0
      %3201 = vmatpush1.bf16.msra.mxu0 0
      %3202 = vmatprep.subr.bf16.mxu0 0
      %3203 = vmatpush1.bf16.msra.mxu0 0
      %3204 = vmatprep.subr.bf16.mxu0 0
      %3205 = vmatpush1.bf16.msra.mxu0 0
      %3206 = vmatprep.subr.bf16.mxu0 0
      %3207 = vmatpush1.bf16.msra.mxu0 %v3190
      %3208 = vmatprep.subr.bf16.mxu0 0
      %3209 = vmatpush2.bf16.msra.mxu0 0
      %3210 = vmatprep.subr.bf16.mxu0 0
      %3211 = vmatpush2.bf16.msra.mxu0 0
      %3212 = vmatprep.subr.bf16.mxu0 0
      %3213 = vmatpush2.bf16.msra.mxu0 0
      %3214 = vmatprep.subr.bf16.mxu0 0
      %3215 = vmatpush2.bf16.msra.mxu0 0
      %3216 = vmatprep.subr.bf16.mxu0 0
      %3217 = vmatpush2.bf16.msra.mxu0 0
      %3218 = vmatprep.subr.bf16.mxu0 0
      %3219 = vmatpush2.bf16.msra.mxu0 0
      %3220 = vmatprep.subr.bf16.mxu0 0
      %3221 = vmatpush2.bf16.msra.mxu0 0
      %3222 = vmatprep.subr.bf16.mxu0 0
      %3223 = vmatpush2.bf16.msra.mxu0 0
      %3224 = vmatprep.mubr.bf16.mxu0 0
      %3225 = vmatmul.mubr.bf16.gmra.mxu0 %v3187
      %v3226 = vpop.f32.mrf.mxu0
      %v3227 = vadd.f32 0.0, %v3226
      %v3228 = vpop.f32.mrf.mxu0
      %v3229 = vpop.f32.mrf.mxu0
      %v3230 = vpop.f32.mrf.mxu0
      %3231 = vdwg.mxu0
      %3232 = vrot.lane.b32.xlu0 %v1124, 64
      %v3233 = vpop.permute.xlu0 %3232
      %v3235 = vsel %vm321, %v2777, 0
      %v3238 = vsel %vm328, %v3233, 0
      %3240 = vmatprep.subr.bf16.mxu0 0
      %3241 = vmatpush1.bf16.msra.mxu0 0
      %3242 = vmatprep.subr.bf16.mxu0 0
      %3243 = vmatpush1.bf16.msra.mxu0 0
      %3244 = vmatprep.subr.bf16.mxu0 0
      %3245 = vmatpush1.bf16.msra.mxu0 0
      %3246 = vmatprep.subr.bf16.mxu0 0
      %3247 = vmatpush1.bf16.msra.mxu0 0
      %3248 = vmatprep.subr.bf16.mxu0 0
      %3249 = vmatpush1.bf16.msra.mxu0 0
      %3250 = vmatprep.subr.bf16.mxu0 0
      %3251 = vmatpush1.bf16.msra.mxu0 0
      %3252 = vmatprep.subr.bf16.mxu0 0
      %3253 = vmatpush1.bf16.msra.mxu0 0
      %3254 = vmatprep.subr.bf16.mxu0 0
      %3255 = vmatpush1.bf16.msra.mxu0 %v3238
      %3256 = vmatprep.subr.bf16.mxu0 0
      %3257 = vmatpush2.bf16.msra.mxu0 0
      %3258 = vmatprep.subr.bf16.mxu0 0
      %3259 = vmatpush2.bf16.msra.mxu0 0
      %3260 = vmatprep.subr.bf16.mxu0 0
      %3261 = vmatpush2.bf16.msra.mxu0 0
      %3262 = vmatprep.subr.bf16.mxu0 0
      %3263 = vmatpush2.bf16.msra.mxu0 0
      %3264 = vmatprep.subr.bf16.mxu0 0
      %3265 = vmatpush2.bf16.msra.mxu0 0
      %3266 = vmatprep.subr.bf16.mxu0 0
      %3267 = vmatpush2.bf16.msra.mxu0 0
      %3268 = vmatprep.subr.bf16.mxu0 0
      %3269 = vmatpush2.bf16.msra.mxu0 0
      %3270 = vmatprep.subr.bf16.mxu0 0
      %3271 = vmatpush2.bf16.msra.mxu0 0
      %3272 = vmatprep.mubr.bf16.mxu0 0
      %3273 = vmatmul.mubr.bf16.gmra.mxu0 %v3235
      %v3274 = vpop.f32.mrf.mxu0
      %v3275 = vadd.f32 0.0, %v3274
      %v3276 = vpop.f32.mrf.mxu0
      %v3277 = vpop.f32.mrf.mxu0
      %v3278 = vpop.f32.mrf.mxu0
      %3279 = vdwg.mxu0
      %3280 = vrot.lane.b32.xlu0 %v1179, 64
      %v3281 = vpop.permute.xlu0 %3280
      %v3283 = vsel %vm321, %v2778, 0
      %v3286 = vsel %vm328, %v3281, 0
      %3288 = vmatprep.subr.bf16.mxu0 0
      %3289 = vmatpush1.bf16.msra.mxu0 0
      %3290 = vmatprep.subr.bf16.mxu0 0
      %3291 = vmatpush1.bf16.msra.mxu0 0
      %3292 = vmatprep.subr.bf16.mxu0 0
      %3293 = vmatpush1.bf16.msra.mxu0 0
      %3294 = vmatprep.subr.bf16.mxu0 0
      %3295 = vmatpush1.bf16.msra.mxu0 0
      %3296 = vmatprep.subr.bf16.mxu0 0
      %3297 = vmatpush1.bf16.msra.mxu0 0
      %3298 = vmatprep.subr.bf16.mxu0 0
      %3299 = vmatpush1.bf16.msra.mxu0 0
      %3300 = vmatprep.subr.bf16.mxu0 0
      %3301 = vmatpush1.bf16.msra.mxu0 0
      %3302 = vmatprep.subr.bf16.mxu0 0
      %3303 = vmatpush1.bf16.msra.mxu0 %v3286
      %3304 = vmatprep.subr.bf16.mxu0 0
      %3305 = vmatpush2.bf16.msra.mxu0 0
      %3306 = vmatprep.subr.bf16.mxu0 0
      %3307 = vmatpush2.bf16.msra.mxu0 0
      %3308 = vmatprep.subr.bf16.mxu0 0
      %3309 = vmatpush2.bf16.msra.mxu0 0
      %3310 = vmatprep.subr.bf16.mxu0 0
      %3311 = vmatpush2.bf16.msra.mxu0 0
      %3312 = vmatprep.subr.bf16.mxu0 0
      %3313 = vmatpush2.bf16.msra.mxu0 0
      %3314 = vmatprep.subr.bf16.mxu0 0
      %3315 = vmatpush2.bf16.msra.mxu0 0
      %3316 = vmatprep.subr.bf16.mxu0 0
      %3317 = vmatpush2.bf16.msra.mxu0 0
      %3318 = vmatprep.subr.bf16.mxu0 0
      %3319 = vmatpush2.bf16.msra.mxu0 0
      %3320 = vmatprep.mubr.bf16.mxu0 0
      %3321 = vmatmul.mubr.bf16.gmra.mxu0 %v3283
      %v3322 = vpop.f32.mrf.mxu0
      %v3323 = vadd.f32 0.0, %v3322
      %v3324 = vpop.f32.mrf.mxu0
      %v3325 = vpop.f32.mrf.mxu0
      %v3326 = vpop.f32.mrf.mxu0
      %3327 = vdwg.mxu0
      %3328 = vrot.lane.b32.xlu0 %v1234, 64
      %v3329 = vpop.permute.xlu0 %3328
      %v3331 = vsel %vm321, %v2779, 0
      %v3334 = vsel %vm328, %v3329, 0
      %3336 = vmatprep.subr.bf16.mxu0 0
      %3337 = vmatpush1.bf16.msra.mxu0 0
      %3338 = vmatprep.subr.bf16.mxu0 0
      %3339 = vmatpush1.bf16.msra.mxu0 0
      %3340 = vmatprep.subr.bf16.mxu0 0
      %3341 = vmatpush1.bf16.msra.mxu0 0
      %3342 = vmatprep.subr.bf16.mxu0 0
      %3343 = vmatpush1.bf16.msra.mxu0 0
      %3344 = vmatprep.subr.bf16.mxu0 0
      %3345 = vmatpush1.bf16.msra.mxu0 0
      %3346 = vmatprep.subr.bf16.mxu0 0
      %3347 = vmatpush1.bf16.msra.mxu0 0
      %3348 = vmatprep.subr.bf16.mxu0 0
      %3349 = vmatpush1.bf16.msra.mxu0 0
      %3350 = vmatprep.subr.bf16.mxu0 0
      %3351 = vmatpush1.bf16.msra.mxu0 %v3334
      %3352 = vmatprep.subr.bf16.mxu0 0
      %3353 = vmatpush2.bf16.msra.mxu0 0
      %3354 = vmatprep.subr.bf16.mxu0 0
      %3355 = vmatpush2.bf16.msra.mxu0 0
      %3356 = vmatprep.subr.bf16.mxu0 0
      %3357 = vmatpush2.bf16.msra.mxu0 0
      %3358 = vmatprep.subr.bf16.mxu0 0
      %3359 = vmatpush2.bf16.msra.mxu0 0
      %3360 = vmatprep.subr.bf16.mxu0 0
      %3361 = vmatpush2.bf16.msra.mxu0 0
      %3362 = vmatprep.subr.bf16.mxu0 0
      %3363 = vmatpush2.bf16.msra.mxu0 0
      %3364 = vmatprep.subr.bf16.mxu0 0
      %3365 = vmatpush2.bf16.msra.mxu0 0
      %3366 = vmatprep.subr.bf16.mxu0 0
      %3367 = vmatpush2.bf16.msra.mxu0 0
      %3368 = vmatprep.mubr.bf16.mxu0 0
      %3369 = vmatmul.mubr.bf16.gmra.mxu0 %v3331
      %v3370 = vpop.f32.mrf.mxu0
      %v3371 = vadd.f32 0.0, %v3370
      %v3372 = vpop.f32.mrf.mxu0
      %v3373 = vpop.f32.mrf.mxu0
      %v3374 = vpop.f32.mrf.mxu0
      %3375 = vdwg.mxu0
      %3376 = vrot.lane.b32.xlu0 %v1289, 64
      %v3377 = vpop.permute.xlu0 %3376
      %v3379 = vsel %vm321, %v2780, 0
      %v3382 = vsel %vm328, %v3377, 0
      %3384 = vmatprep.subr.bf16.mxu0 0
      %3385 = vmatpush1.bf16.msra.mxu0 0
      %3386 = vmatprep.subr.bf16.mxu0 0
      %3387 = vmatpush1.bf16.msra.mxu0 0
      %3388 = vmatprep.subr.bf16.mxu0 0
      %3389 = vmatpush1.bf16.msra.mxu0 0
      %3390 = vmatprep.subr.bf16.mxu0 0
      %3391 = vmatpush1.bf16.msra.mxu0 0
      %3392 = vmatprep.subr.bf16.mxu0 0
      %3393 = vmatpush1.bf16.msra.mxu0 0
      %3394 = vmatprep.subr.bf16.mxu0 0
      %3395 = vmatpush1.bf16.msra.mxu0 0
      %3396 = vmatprep.subr.bf16.mxu0 0
      %3397 = vmatpush1.bf16.msra.mxu0 0
      %3398 = vmatprep.subr.bf16.mxu0 0
      %3399 = vmatpush1.bf16.msra.mxu0 %v3382
      %3400 = vmatprep.subr.bf16.mxu0 0
      %3401 = vmatpush2.bf16.msra.mxu0 0
      %3402 = vmatprep.subr.bf16.mxu0 0
      %3403 = vmatpush2.bf16.msra.mxu0 0
      %3404 = vmatprep.subr.bf16.mxu0 0
      %3405 = vmatpush2.bf16.msra.mxu0 0
      %3406 = vmatprep.subr.bf16.mxu0 0
      %3407 = vmatpush2.bf16.msra.mxu0 0
      %3408 = vmatprep.subr.bf16.mxu0 0
      %3409 = vmatpush2.bf16.msra.mxu0 0
      %3410 = vmatprep.subr.bf16.mxu0 0
      %3411 = vmatpush2.bf16.msra.mxu0 0
      %3412 = vmatprep.subr.bf16.mxu0 0
      %3413 = vmatpush2.bf16.msra.mxu0 0
      %3414 = vmatprep.subr.bf16.mxu0 0
      %3415 = vmatpush2.bf16.msra.mxu0 0
      %3416 = vmatprep.mubr.bf16.mxu0 0
      %3417 = vmatmul.mubr.bf16.gmra.mxu0 %v3379
      %v3418 = vpop.f32.mrf.mxu0
      %v3419 = vadd.f32 0.0, %v3418
      %v3420 = vpop.f32.mrf.mxu0
      %v3421 = vpop.f32.mrf.mxu0
      %v3422 = vpop.f32.mrf.mxu0
      %3423 = vdwg.mxu0
      %3424 = vrot.lane.b32.xlu0 %v1344, 64
      %v3425 = vpop.permute.xlu0 %3424
      %v3427 = vsel %vm321, %v2781, 0
      %v3430 = vsel %vm328, %v3425, 0
      %3432 = vmatprep.subr.bf16.mxu0 0
      %3433 = vmatpush1.bf16.msra.mxu0 0
      %3434 = vmatprep.subr.bf16.mxu0 0
      %3435 = vmatpush1.bf16.msra.mxu0 0
      %3436 = vmatprep.subr.bf16.mxu0 0
      %3437 = vmatpush1.bf16.msra.mxu0 0
      %3438 = vmatprep.subr.bf16.mxu0 0
      %3439 = vmatpush1.bf16.msra.mxu0 0
      %3440 = vmatprep.subr.bf16.mxu0 0
      %3441 = vmatpush1.bf16.msra.mxu0 0
      %3442 = vmatprep.subr.bf16.mxu0 0
      %3443 = vmatpush1.bf16.msra.mxu0 0
      %3444 = vmatprep.subr.bf16.mxu0 0
      %3445 = vmatpush1.bf16.msra.mxu0 0
      %3446 = vmatprep.subr.bf16.mxu0 0
      %3447 = vmatpush1.bf16.msra.mxu0 %v3430
      %3448 = vmatprep.subr.bf16.mxu0 0
      %3449 = vmatpush2.bf16.msra.mxu0 0
      %3450 = vmatprep.subr.bf16.mxu0 0
      %3451 = vmatpush2.bf16.msra.mxu0 0
      %3452 = vmatprep.subr.bf16.mxu0 0
      %3453 = vmatpush2.bf16.msra.mxu0 0
      %3454 = vmatprep.subr.bf16.mxu0 0
      %3455 = vmatpush2.bf16.msra.mxu0 0
      %3456 = vmatprep.subr.bf16.mxu0 0
      %3457 = vmatpush2.bf16.msra.mxu0 0
      %3458 = vmatprep.subr.bf16.mxu0 0
      %3459 = vmatpush2.bf16.msra.mxu0 0
      %3460 = vmatprep.subr.bf16.mxu0 0
      %3461 = vmatpush2.bf16.msra.mxu0 0
      %3462 = vmatprep.subr.bf16.mxu0 0
      %3463 = vmatpush2.bf16.msra.mxu0 0
      %3464 = vmatprep.mubr.bf16.mxu0 0
      %3465 = vmatmul.mubr.bf16.gmra.mxu0 %v3427
      %v3466 = vpop.f32.mrf.mxu0
      %v3467 = vadd.f32 0.0, %v3466
      %v3468 = vpop.f32.mrf.mxu0
      %v3469 = vpop.f32.mrf.mxu0
      %v3470 = vpop.f32.mrf.mxu0
      %3471 = vdwg.mxu0
      %3472 = vrot.lane.b32.xlu0 %v1399, 64
      %v3473 = vpop.permute.xlu0 %3472
      %v3475 = vsel %vm321, %v2782, 0
      %v3478 = vsel %vm328, %v3473, 0
      %3480 = vmatprep.subr.bf16.mxu0 0
      %3481 = vmatpush1.bf16.msra.mxu0 0
      %3482 = vmatprep.subr.bf16.mxu0 0
      %3483 = vmatpush1.bf16.msra.mxu0 0
      %3484 = vmatprep.subr.bf16.mxu0 0
      %3485 = vmatpush1.bf16.msra.mxu0 0
      %3486 = vmatprep.subr.bf16.mxu0 0
      %3487 = vmatpush1.bf16.msra.mxu0 0
      %3488 = vmatprep.subr.bf16.mxu0 0
      %3489 = vmatpush1.bf16.msra.mxu0 0
      %3490 = vmatprep.subr.bf16.mxu0 0
      %3491 = vmatpush1.bf16.msra.mxu0 0
      %3492 = vmatprep.subr.bf16.mxu0 0
      %3493 = vmatpush1.bf16.msra.mxu0 0
      %3494 = vmatprep.subr.bf16.mxu0 0
      %3495 = vmatpush1.bf16.msra.mxu0 %v3478
      %3496 = vmatprep.subr.bf16.mxu0 0
      %3497 = vmatpush2.bf16.msra.mxu0 0
      %3498 = vmatprep.subr.bf16.mxu0 0
      %3499 = vmatpush2.bf16.msra.mxu0 0
      %3500 = vmatprep.subr.bf16.mxu0 0
      %3501 = vmatpush2.bf16.msra.mxu0 0
      %3502 = vmatprep.subr.bf16.mxu0 0
      %3503 = vmatpush2.bf16.msra.mxu0 0
      %3504 = vmatprep.subr.bf16.mxu0 0
      %3505 = vmatpush2.bf16.msra.mxu0 0
      %3506 = vmatprep.subr.bf16.mxu0 0
      %3507 = vmatpush2.bf16.msra.mxu0 0
      %3508 = vmatprep.subr.bf16.mxu0 0
      %3509 = vmatpush2.bf16.msra.mxu0 0
      %3510 = vmatprep.subr.bf16.mxu0 0
      %3511 = vmatpush2.bf16.msra.mxu0 0
      %3512 = vmatprep.mubr.bf16.mxu0 0
      %3513 = vmatmul.mubr.bf16.gmra.mxu0 %v3475
      %v3514 = vpop.f32.mrf.mxu0
      %v3515 = vadd.f32 0.0, %v3514
      %v3516 = vpop.f32.mrf.mxu0
      %v3517 = vpop.f32.mrf.mxu0
      %v3518 = vpop.f32.mrf.mxu0
      %3519 = vdwg.mxu0
      %3520 = vrot.lane.b32.xlu0 %v1454, 64
      %v3521 = vpop.permute.xlu0 %3520
      %v3523 = vsel %vm321, %v2783, 0
      %v3526 = vsel %vm328, %v3521, 0
      %3528 = vmatprep.subr.bf16.mxu0 0
      %3529 = vmatpush1.bf16.msra.mxu0 0
      %3530 = vmatprep.subr.bf16.mxu0 0
      %3531 = vmatpush1.bf16.msra.mxu0 0
      %3532 = vmatprep.subr.bf16.mxu0 0
      %3533 = vmatpush1.bf16.msra.mxu0 0
      %3534 = vmatprep.subr.bf16.mxu0 0
      %3535 = vmatpush1.bf16.msra.mxu0 0
      %3536 = vmatprep.subr.bf16.mxu0 0
      %3537 = vmatpush1.bf16.msra.mxu0 0
      %3538 = vmatprep.subr.bf16.mxu0 0
      %3539 = vmatpush1.bf16.msra.mxu0 0
      %3540 = vmatprep.subr.bf16.mxu0 0
      %3541 = vmatpush1.bf16.msra.mxu0 0
      %3542 = vmatprep.subr.bf16.mxu0 0
      %3543 = vmatpush1.bf16.msra.mxu0 %v3526
      %3544 = vmatprep.subr.bf16.mxu0 0
      %3545 = vmatpush2.bf16.msra.mxu0 0
      %3546 = vmatprep.subr.bf16.mxu0 0
      %3547 = vmatpush2.bf16.msra.mxu0 0
      %3548 = vmatprep.subr.bf16.mxu0 0
      %3549 = vmatpush2.bf16.msra.mxu0 0
      %3550 = vmatprep.subr.bf16.mxu0 0
      %3551 = vmatpush2.bf16.msra.mxu0 0
      %3552 = vmatprep.subr.bf16.mxu0 0
      %3553 = vmatpush2.bf16.msra.mxu0 0
      %3554 = vmatprep.subr.bf16.mxu0 0
      %3555 = vmatpush2.bf16.msra.mxu0 0
      %3556 = vmatprep.subr.bf16.mxu0 0
      %3557 = vmatpush2.bf16.msra.mxu0 0
      %3558 = vmatprep.subr.bf16.mxu0 0
      %3559 = vmatpush2.bf16.msra.mxu0 0
      %3560 = vmatprep.mubr.bf16.mxu0 0
      %3561 = vmatmul.mubr.bf16.gmra.mxu0 %v3523
      %v3562 = vpop.f32.mrf.mxu0
      %v3563 = vadd.f32 0.0, %v3562
      %v3564 = vpop.f32.mrf.mxu0
      %v3565 = vpop.f32.mrf.mxu0
      %v3566 = vpop.f32.mrf.mxu0
      %3567 = vdwg.mxu0
      %3568 = vrot.lane.b32.xlu0 %v1509, 64
      %v3569 = vpop.permute.xlu0 %3568
      %v3571 = vsel %vm321, %v2784, 0
      %v3574 = vsel %vm328, %v3569, 0
      %3576 = vmatprep.subr.bf16.mxu0 0
      %3577 = vmatpush1.bf16.msra.mxu0 0
      %3578 = vmatprep.subr.bf16.mxu0 0
      %3579 = vmatpush1.bf16.msra.mxu0 0
      %3580 = vmatprep.subr.bf16.mxu0 0
      %3581 = vmatpush1.bf16.msra.mxu0 0
      %3582 = vmatprep.subr.bf16.mxu0 0
      %3583 = vmatpush1.bf16.msra.mxu0 0
      %3584 = vmatprep.subr.bf16.mxu0 0
      %3585 = vmatpush1.bf16.msra.mxu0 0
      %3586 = vmatprep.subr.bf16.mxu0 0
      %3587 = vmatpush1.bf16.msra.mxu0 0
      %3588 = vmatprep.subr.bf16.mxu0 0
      %3589 = vmatpush1.bf16.msra.mxu0 0
      %3590 = vmatprep.subr.bf16.mxu0 0
      %3591 = vmatpush1.bf16.msra.mxu0 %v3574
      %3592 = vmatprep.subr.bf16.mxu0 0
      %3593 = vmatpush2.bf16.msra.mxu0 0
      %3594 = vmatprep.subr.bf16.mxu0 0
      %3595 = vmatpush2.bf16.msra.mxu0 0
      %3596 = vmatprep.subr.bf16.mxu0 0
      %3597 = vmatpush2.bf16.msra.mxu0 0
      %3598 = vmatprep.subr.bf16.mxu0 0
      %3599 = vmatpush2.bf16.msra.mxu0 0
      %3600 = vmatprep.subr.bf16.mxu0 0
      %3601 = vmatpush2.bf16.msra.mxu0 0
      %3602 = vmatprep.subr.bf16.mxu0 0
      %3603 = vmatpush2.bf16.msra.mxu0 0
      %3604 = vmatprep.subr.bf16.mxu0 0
      %3605 = vmatpush2.bf16.msra.mxu0 0
      %3606 = vmatprep.subr.bf16.mxu0 0
      %3607 = vmatpush2.bf16.msra.mxu0 0
      %3608 = vmatprep.mubr.bf16.mxu0 0
      %3609 = vmatmul.mubr.bf16.gmra.mxu0 %v3571
      %v3610 = vpop.f32.mrf.mxu0
      %v3611 = vadd.f32 0.0, %v3610
      %v3612 = vpop.f32.mrf.mxu0
      %v3613 = vpop.f32.mrf.mxu0
      %v3614 = vpop.f32.mrf.mxu0
      %3615 = vdwg.mxu0
      %3616 = vrot.lane.b32.xlu0 %v1564, 64
      %v3617 = vpop.permute.xlu0 %3616
      %v3619 = vsel %vm321, %v2785, 0
      %v3622 = vsel %vm328, %v3617, 0
      %3624 = vmatprep.subr.bf16.mxu0 0
      %3625 = vmatpush1.bf16.msra.mxu0 0
      %3626 = vmatprep.subr.bf16.mxu0 0
      %3627 = vmatpush1.bf16.msra.mxu0 0
      %3628 = vmatprep.subr.bf16.mxu0 0
      %3629 = vmatpush1.bf16.msra.mxu0 0
      %3630 = vmatprep.subr.bf16.mxu0 0
      %3631 = vmatpush1.bf16.msra.mxu0 0
      %3632 = vmatprep.subr.bf16.mxu0 0
      %3633 = vmatpush1.bf16.msra.mxu0 0
      %3634 = vmatprep.subr.bf16.mxu0 0
      %3635 = vmatpush1.bf16.msra.mxu0 0
      %3636 = vmatprep.subr.bf16.mxu0 0
      %3637 = vmatpush1.bf16.msra.mxu0 0
      %3638 = vmatprep.subr.bf16.mxu0 0
      %3639 = vmatpush1.bf16.msra.mxu0 %v3622
      %3640 = vmatprep.subr.bf16.mxu0 0
      %3641 = vmatpush2.bf16.msra.mxu0 0
      %3642 = vmatprep.subr.bf16.mxu0 0
      %3643 = vmatpush2.bf16.msra.mxu0 0
      %3644 = vmatprep.subr.bf16.mxu0 0
      %3645 = vmatpush2.bf16.msra.mxu0 0
      %3646 = vmatprep.subr.bf16.mxu0 0
      %3647 = vmatpush2.bf16.msra.mxu0 0
      %3648 = vmatprep.subr.bf16.mxu0 0
      %3649 = vmatpush2.bf16.msra.mxu0 0
      %3650 = vmatprep.subr.bf16.mxu0 0
      %3651 = vmatpush2.bf16.msra.mxu0 0
      %3652 = vmatprep.subr.bf16.mxu0 0
      %3653 = vmatpush2.bf16.msra.mxu0 0
      %3654 = vmatprep.subr.bf16.mxu0 0
      %3655 = vmatpush2.bf16.msra.mxu0 0
      %3656 = vmatprep.mubr.bf16.mxu0 0
      %3657 = vmatmul.mubr.bf16.gmra.mxu0 %v3619
      %v3658 = vpop.f32.mrf.mxu0
      %v3659 = vadd.f32 0.0, %v3658
      %v3660 = vpop.f32.mrf.mxu0
      %v3661 = vpop.f32.mrf.mxu0
      %v3662 = vpop.f32.mrf.mxu0
      %3663 = vdwg.mxu0
      %3664 = vrot.lane.b32.xlu0 %v1619, 64
      %v3665 = vpop.permute.xlu0 %3664
      %v3667 = vsel %vm321, %v2786, 0
      %v3670 = vsel %vm328, %v3665, 0
      %3672 = vmatprep.subr.bf16.mxu0 0
      %3673 = vmatpush1.bf16.msra.mxu0 0
      %3674 = vmatprep.subr.bf16.mxu0 0
      %3675 = vmatpush1.bf16.msra.mxu0 0
      %3676 = vmatprep.subr.bf16.mxu0 0
      %3677 = vmatpush1.bf16.msra.mxu0 0
      %3678 = vmatprep.subr.bf16.mxu0 0
      %3679 = vmatpush1.bf16.msra.mxu0 0
      %3680 = vmatprep.subr.bf16.mxu0 0
      %3681 = vmatpush1.bf16.msra.mxu0 0
      %3682 = vmatprep.subr.bf16.mxu0 0
      %3683 = vmatpush1.bf16.msra.mxu0 0
      %3684 = vmatprep.subr.bf16.mxu0 0
      %3685 = vmatpush1.bf16.msra.mxu0 0
      %3686 = vmatprep.subr.bf16.mxu0 0
      %3687 = vmatpush1.bf16.msra.mxu0 %v3670
      %3688 = vmatprep.subr.bf16.mxu0 0
      %3689 = vmatpush2.bf16.msra.mxu0 0
      %3690 = vmatprep.subr.bf16.mxu0 0
      %3691 = vmatpush2.bf16.msra.mxu0 0
      %3692 = vmatprep.subr.bf16.mxu0 0
      %3693 = vmatpush2.bf16.msra.mxu0 0
      %3694 = vmatprep.subr.bf16.mxu0 0
      %3695 = vmatpush2.bf16.msra.mxu0 0
      %3696 = vmatprep.subr.bf16.mxu0 0
      %3697 = vmatpush2.bf16.msra.mxu0 0
      %3698 = vmatprep.subr.bf16.mxu0 0
      %3699 = vmatpush2.bf16.msra.mxu0 0
      %3700 = vmatprep.subr.bf16.mxu0 0
      %3701 = vmatpush2.bf16.msra.mxu0 0
      %3702 = vmatprep.subr.bf16.mxu0 0
      %3703 = vmatpush2.bf16.msra.mxu0 0
      %3704 = vmatprep.mubr.bf16.mxu0 0
      %3705 = vmatmul.mubr.bf16.gmra.mxu0 %v3667
      %v3706 = vpop.f32.mrf.mxu0
      %v3707 = vadd.f32 0.0, %v3706
      %v3708 = vpop.f32.mrf.mxu0
      %v3709 = vpop.f32.mrf.mxu0
      %v3710 = vpop.f32.mrf.mxu0
      %3711 = vdwg.mxu0
      %3712 = vrot.lane.b32.xlu0 %v1674, 64
      %v3713 = vpop.permute.xlu0 %3712
      %v3715 = vsel %vm321, %v2787, 0
      %v3718 = vsel %vm328, %v3713, 0
      %3720 = vmatprep.subr.bf16.mxu0 0
      %3721 = vmatpush1.bf16.msra.mxu0 0
      %3722 = vmatprep.subr.bf16.mxu0 0
      %3723 = vmatpush1.bf16.msra.mxu0 0
      %3724 = vmatprep.subr.bf16.mxu0 0
      %3725 = vmatpush1.bf16.msra.mxu0 0
      %3726 = vmatprep.subr.bf16.mxu0 0
      %3727 = vmatpush1.bf16.msra.mxu0 0
      %3728 = vmatprep.subr.bf16.mxu0 0
      %3729 = vmatpush1.bf16.msra.mxu0 0
      %3730 = vmatprep.subr.bf16.mxu0 0
      %3731 = vmatpush1.bf16.msra.mxu0 0
      %3732 = vmatprep.subr.bf16.mxu0 0
      %3733 = vmatpush1.bf16.msra.mxu0 0
      %3734 = vmatprep.subr.bf16.mxu0 0
      %3735 = vmatpush1.bf16.msra.mxu0 %v3718
      %3736 = vmatprep.subr.bf16.mxu0 0
      %3737 = vmatpush2.bf16.msra.mxu0 0
      %3738 = vmatprep.subr.bf16.mxu0 0
      %3739 = vmatpush2.bf16.msra.mxu0 0
      %3740 = vmatprep.subr.bf16.mxu0 0
      %3741 = vmatpush2.bf16.msra.mxu0 0
      %3742 = vmatprep.subr.bf16.mxu0 0
      %3743 = vmatpush2.bf16.msra.mxu0 0
      %3744 = vmatprep.subr.bf16.mxu0 0
      %3745 = vmatpush2.bf16.msra.mxu0 0
      %3746 = vmatprep.subr.bf16.mxu0 0
      %3747 = vmatpush2.bf16.msra.mxu0 0
      %3748 = vmatprep.subr.bf16.mxu0 0
      %3749 = vmatpush2.bf16.msra.mxu0 0
      %3750 = vmatprep.subr.bf16.mxu0 0
      %3751 = vmatpush2.bf16.msra.mxu0 0
      %3752 = vmatprep.mubr.bf16.mxu0 0
      %3753 = vmatmul.mubr.bf16.gmra.mxu0 %v3715
      %v3754 = vpop.f32.mrf.mxu0
      %v3755 = vadd.f32 0.0, %v3754
      %v3756 = vpop.f32.mrf.mxu0
      %v3757 = vpop.f32.mrf.mxu0
      %v3758 = vpop.f32.mrf.mxu0
      %3759 = vdwg.mxu0
      %3760 = vrot.lane.b32.xlu0 %v1729, 64
      %v3761 = vpop.permute.xlu0 %3760
      %v3763 = vsel %vm321, %v2788, 0
      %v3766 = vsel %vm328, %v3761, 0
      %3768 = vmatprep.subr.bf16.mxu0 0
      %3769 = vmatpush1.bf16.msra.mxu0 0
      %3770 = vmatprep.subr.bf16.mxu0 0
      %3771 = vmatpush1.bf16.msra.mxu0 0
      %3772 = vmatprep.subr.bf16.mxu0 0
      %3773 = vmatpush1.bf16.msra.mxu0 0
      %3774 = vmatprep.subr.bf16.mxu0 0
      %3775 = vmatpush1.bf16.msra.mxu0 0
      %3776 = vmatprep.subr.bf16.mxu0 0
      %3777 = vmatpush1.bf16.msra.mxu0 0
      %3778 = vmatprep.subr.bf16.mxu0 0
      %3779 = vmatpush1.bf16.msra.mxu0 0
      %3780 = vmatprep.subr.bf16.mxu0 0
      %3781 = vmatpush1.bf16.msra.mxu0 0
      %3782 = vmatprep.subr.bf16.mxu0 0
      %3783 = vmatpush1.bf16.msra.mxu0 %v3766
      %3784 = vmatprep.subr.bf16.mxu0 0
      %3785 = vmatpush2.bf16.msra.mxu0 0
      %3786 = vmatprep.subr.bf16.mxu0 0
      %3787 = vmatpush2.bf16.msra.mxu0 0
      %3788 = vmatprep.subr.bf16.mxu0 0
      %3789 = vmatpush2.bf16.msra.mxu0 0
      %3790 = vmatprep.subr.bf16.mxu0 0
      %3791 = vmatpush2.bf16.msra.mxu0 0
      %3792 = vmatprep.subr.bf16.mxu0 0
      %3793 = vmatpush2.bf16.msra.mxu0 0
      %3794 = vmatprep.subr.bf16.mxu0 0
      %3795 = vmatpush2.bf16.msra.mxu0 0
      %3796 = vmatprep.subr.bf16.mxu0 0
      %3797 = vmatpush2.bf16.msra.mxu0 0
      %3798 = vmatprep.subr.bf16.mxu0 0
      %3799 = vmatpush2.bf16.msra.mxu0 0
      %3800 = vmatprep.mubr.bf16.mxu0 0
      %3801 = vmatmul.mubr.bf16.gmra.mxu0 %v3763
      %v3802 = vpop.f32.mrf.mxu0
      %v3803 = vadd.f32 0.0, %v3802
      %v3804 = vpop.f32.mrf.mxu0
      %v3805 = vpop.f32.mrf.mxu0
      %v3806 = vpop.f32.mrf.mxu0
      %3807 = vdwg.mxu0
      %3808 = vrot.lane.b32.xlu0 %v1784, 64
      %v3809 = vpop.permute.xlu0 %3808
      %v3811 = vsel %vm321, %v2789, 0
      %v3814 = vsel %vm328, %v3809, 0
      %3816 = vmatprep.subr.bf16.mxu0 0
      %3817 = vmatpush1.bf16.msra.mxu0 0
      %3818 = vmatprep.subr.bf16.mxu0 0
      %3819 = vmatpush1.bf16.msra.mxu0 0
      %3820 = vmatprep.subr.bf16.mxu0 0
      %3821 = vmatpush1.bf16.msra.mxu0 0
      %3822 = vmatprep.subr.bf16.mxu0 0
      %3823 = vmatpush1.bf16.msra.mxu0 0
      %3824 = vmatprep.subr.bf16.mxu0 0
      %3825 = vmatpush1.bf16.msra.mxu0 0
      %3826 = vmatprep.subr.bf16.mxu0 0
      %3827 = vmatpush1.bf16.msra.mxu0 0
      %3828 = vmatprep.subr.bf16.mxu0 0
      %3829 = vmatpush1.bf16.msra.mxu0 0
      %3830 = vmatprep.subr.bf16.mxu0 0
      %3831 = vmatpush1.bf16.msra.mxu0 %v3814
      %3832 = vmatprep.subr.bf16.mxu0 0
      %3833 = vmatpush2.bf16.msra.mxu0 0
      %3834 = vmatprep.subr.bf16.mxu0 0
      %3835 = vmatpush2.bf16.msra.mxu0 0
      %3836 = vmatprep.subr.bf16.mxu0 0
      %3837 = vmatpush2.bf16.msra.mxu0 0
      %3838 = vmatprep.subr.bf16.mxu0 0
      %3839 = vmatpush2.bf16.msra.mxu0 0
      %3840 = vmatprep.subr.bf16.mxu0 0
      %3841 = vmatpush2.bf16.msra.mxu0 0
      %3842 = vmatprep.subr.bf16.mxu0 0
      %3843 = vmatpush2.bf16.msra.mxu0 0
      %3844 = vmatprep.subr.bf16.mxu0 0
      %3845 = vmatpush2.bf16.msra.mxu0 0
      %3846 = vmatprep.subr.bf16.mxu0 0
      %3847 = vmatpush2.bf16.msra.mxu0 0
      %3848 = vmatprep.mubr.bf16.mxu0 0
      %3849 = vmatmul.mubr.bf16.gmra.mxu0 %v3811
      %v3850 = vpop.f32.mrf.mxu0
      %v3851 = vadd.f32 0.0, %v3850
      %v3852 = vpop.f32.mrf.mxu0
      %v3853 = vpop.f32.mrf.mxu0
      %v3854 = vpop.f32.mrf.mxu0
      %3855 = vdwg.mxu0
      %3856 = vrot.lane.b32.xlu0 %v1839, 64
      %v3857 = vpop.permute.xlu0 %3856
      %v3859 = vsel %vm321, %v2790, 0
      %v3862 = vsel %vm328, %v3857, 0
      %3864 = vmatprep.subr.bf16.mxu0 0
      %3865 = vmatpush1.bf16.msra.mxu0 0
      %3866 = vmatprep.subr.bf16.mxu0 0
      %3867 = vmatpush1.bf16.msra.mxu0 0
      %3868 = vmatprep.subr.bf16.mxu0 0
      %3869 = vmatpush1.bf16.msra.mxu0 0
      %3870 = vmatprep.subr.bf16.mxu0 0
      %3871 = vmatpush1.bf16.msra.mxu0 0
      %3872 = vmatprep.subr.bf16.mxu0 0
      %3873 = vmatpush1.bf16.msra.mxu0 0
      %3874 = vmatprep.subr.bf16.mxu0 0
      %3875 = vmatpush1.bf16.msra.mxu0 0
      %3876 = vmatprep.subr.bf16.mxu0 0
      %3877 = vmatpush1.bf16.msra.mxu0 0
      %3878 = vmatprep.subr.bf16.mxu0 0
      %3879 = vmatpush1.bf16.msra.mxu0 %v3862
      %3880 = vmatprep.subr.bf16.mxu0 0
      %3881 = vmatpush2.bf16.msra.mxu0 0
      %3882 = vmatprep.subr.bf16.mxu0 0
      %3883 = vmatpush2.bf16.msra.mxu0 0
      %3884 = vmatprep.subr.bf16.mxu0 0
      %3885 = vmatpush2.bf16.msra.mxu0 0
      %3886 = vmatprep.subr.bf16.mxu0 0
      %3887 = vmatpush2.bf16.msra.mxu0 0
      %3888 = vmatprep.subr.bf16.mxu0 0
      %3889 = vmatpush2.bf16.msra.mxu0 0
      %3890 = vmatprep.subr.bf16.mxu0 0
      %3891 = vmatpush2.bf16.msra.mxu0 0
      %3892 = vmatprep.subr.bf16.mxu0 0
      %3893 = vmatpush2.bf16.msra.mxu0 0
      %3894 = vmatprep.subr.bf16.mxu0 0
      %3895 = vmatpush2.bf16.msra.mxu0 0
      %3896 = vmatprep.mubr.bf16.mxu0 0
      %3897 = vmatmul.mubr.bf16.gmra.mxu0 %v3859
      %v3898 = vpop.f32.mrf.mxu0
      %v3899 = vadd.f32 0.0, %v3898
      %v3900 = vpop.f32.mrf.mxu0
      %v3901 = vpop.f32.mrf.mxu0
      %v3902 = vpop.f32.mrf.mxu0
      %3903 = vdwg.mxu0
      %3904 = vrot.lane.b32.xlu0 %v1894, 64
      %v3905 = vpop.permute.xlu0 %3904
      %v3907 = vsel %vm321, %v2791, 0
      %v3910 = vsel %vm328, %v3905, 0
      %3912 = vmatprep.subr.bf16.mxu0 0
      %3913 = vmatpush1.bf16.msra.mxu0 0
      %3914 = vmatprep.subr.bf16.mxu0 0
      %3915 = vmatpush1.bf16.msra.mxu0 0
      %3916 = vmatprep.subr.bf16.mxu0 0
      %3917 = vmatpush1.bf16.msra.mxu0 0
      %3918 = vmatprep.subr.bf16.mxu0 0
      %3919 = vmatpush1.bf16.msra.mxu0 0
      %3920 = vmatprep.subr.bf16.mxu0 0
      %3921 = vmatpush1.bf16.msra.mxu0 0
      %3922 = vmatprep.subr.bf16.mxu0 0
      %3923 = vmatpush1.bf16.msra.mxu0 0
      %3924 = vmatprep.subr.bf16.mxu0 0
      %3925 = vmatpush1.bf16.msra.mxu0 0
      %3926 = vmatprep.subr.bf16.mxu0 0
      %3927 = vmatpush1.bf16.msra.mxu0 %v3910
      %3928 = vmatprep.subr.bf16.mxu0 0
      %3929 = vmatpush2.bf16.msra.mxu0 0
      %3930 = vmatprep.subr.bf16.mxu0 0
      %3931 = vmatpush2.bf16.msra.mxu0 0
      %3932 = vmatprep.subr.bf16.mxu0 0
      %3933 = vmatpush2.bf16.msra.mxu0 0
      %3934 = vmatprep.subr.bf16.mxu0 0
      %3935 = vmatpush2.bf16.msra.mxu0 0
      %3936 = vmatprep.subr.bf16.mxu0 0
      %3937 = vmatpush2.bf16.msra.mxu0 0
      %3938 = vmatprep.subr.bf16.mxu0 0
      %3939 = vmatpush2.bf16.msra.mxu0 0
      %3940 = vmatprep.subr.bf16.mxu0 0
      %3941 = vmatpush2.bf16.msra.mxu0 0
      %3942 = vmatprep.subr.bf16.mxu0 0
      %3943 = vmatpush2.bf16.msra.mxu0 0
      %3944 = vmatprep.mubr.bf16.mxu0 0
      %3945 = vmatmul.mubr.bf16.gmra.mxu0 %v3907
      %v3946 = vpop.f32.mrf.mxu0
      %v3947 = vadd.f32 0.0, %v3946
      %v3948 = vpop.f32.mrf.mxu0
      %v3949 = vpop.f32.mrf.mxu0
      %v3950 = vpop.f32.mrf.mxu0
      %3951 = vdwg.mxu0
      %3952 = vrot.lane.b32.xlu0 %v1949, 64
      %v3953 = vpop.permute.xlu0 %3952
      %v3955 = vsel %vm321, %v2792, 0
      %v3958 = vsel %vm328, %v3953, 0
      %3960 = vmatprep.subr.bf16.mxu0 0
      %3961 = vmatpush1.bf16.msra.mxu0 0
      %3962 = vmatprep.subr.bf16.mxu0 0
      %3963 = vmatpush1.bf16.msra.mxu0 0
      %3964 = vmatprep.subr.bf16.mxu0 0
      %3965 = vmatpush1.bf16.msra.mxu0 0
      %3966 = vmatprep.subr.bf16.mxu0 0
      %3967 = vmatpush1.bf16.msra.mxu0 0
      %3968 = vmatprep.subr.bf16.mxu0 0
      %3969 = vmatpush1.bf16.msra.mxu0 0
      %3970 = vmatprep.subr.bf16.mxu0 0
      %3971 = vmatpush1.bf16.msra.mxu0 0
      %3972 = vmatprep.subr.bf16.mxu0 0
      %3973 = vmatpush1.bf16.msra.mxu0 0
      %3974 = vmatprep.subr.bf16.mxu0 0
      %3975 = vmatpush1.bf16.msra.mxu0 %v3958
      %3976 = vmatprep.subr.bf16.mxu0 0
      %3977 = vmatpush2.bf16.msra.mxu0 0
      %3978 = vmatprep.subr.bf16.mxu0 0
      %3979 = vmatpush2.bf16.msra.mxu0 0
      %3980 = vmatprep.subr.bf16.mxu0 0
      %3981 = vmatpush2.bf16.msra.mxu0 0
      %3982 = vmatprep.subr.bf16.mxu0 0
      %3983 = vmatpush2.bf16.msra.mxu0 0
      %3984 = vmatprep.subr.bf16.mxu0 0
      %3985 = vmatpush2.bf16.msra.mxu0 0
      %3986 = vmatprep.subr.bf16.mxu0 0
      %3987 = vmatpush2.bf16.msra.mxu0 0
      %3988 = vmatprep.subr.bf16.mxu0 0
      %3989 = vmatpush2.bf16.msra.mxu0 0
      %3990 = vmatprep.subr.bf16.mxu0 0
      %3991 = vmatpush2.bf16.msra.mxu0 0
      %3992 = vmatprep.mubr.bf16.mxu0 0
      %3993 = vmatmul.mubr.bf16.gmra.mxu0 %v3955
      %v3994 = vpop.f32.mrf.mxu0
      %v3995 = vadd.f32 0.0, %v3994
      %v3996 = vpop.f32.mrf.mxu0
      %v3997 = vpop.f32.mrf.mxu0
      %v3998 = vpop.f32.mrf.mxu0
      %3999 = vdwg.mxu0
      %4000 = vrot.lane.b32.xlu0 %v2004, 64
      %v4001 = vpop.permute.xlu0 %4000
      %v4003 = vsel %vm321, %v2793, 0
      %v4006 = vsel %vm328, %v4001, 0
      %4008 = vmatprep.subr.bf16.mxu0 0
      %4009 = vmatpush1.bf16.msra.mxu0 0
      %4010 = vmatprep.subr.bf16.mxu0 0
      %4011 = vmatpush1.bf16.msra.mxu0 0
      %4012 = vmatprep.subr.bf16.mxu0 0
      %4013 = vmatpush1.bf16.msra.mxu0 0
      %4014 = vmatprep.subr.bf16.mxu0 0
      %4015 = vmatpush1.bf16.msra.mxu0 0
      %4016 = vmatprep.subr.bf16.mxu0 0
      %4017 = vmatpush1.bf16.msra.mxu0 0
      %4018 = vmatprep.subr.bf16.mxu0 0
      %4019 = vmatpush1.bf16.msra.mxu0 0
      %4020 = vmatprep.subr.bf16.mxu0 0
      %4021 = vmatpush1.bf16.msra.mxu0 0
      %4022 = vmatprep.subr.bf16.mxu0 0
      %4023 = vmatpush1.bf16.msra.mxu0 %v4006
      %4024 = vmatprep.subr.bf16.mxu0 0
      %4025 = vmatpush2.bf16.msra.mxu0 0
      %4026 = vmatprep.subr.bf16.mxu0 0
      %4027 = vmatpush2.bf16.msra.mxu0 0
      %4028 = vmatprep.subr.bf16.mxu0 0
      %4029 = vmatpush2.bf16.msra.mxu0 0
      %4030 = vmatprep.subr.bf16.mxu0 0
      %4031 = vmatpush2.bf16.msra.mxu0 0
      %4032 = vmatprep.subr.bf16.mxu0 0
      %4033 = vmatpush2.bf16.msra.mxu0 0
      %4034 = vmatprep.subr.bf16.mxu0 0
      %4035 = vmatpush2.bf16.msra.mxu0 0
      %4036 = vmatprep.subr.bf16.mxu0 0
      %4037 = vmatpush2.bf16.msra.mxu0 0
      %4038 = vmatprep.subr.bf16.mxu0 0
      %4039 = vmatpush2.bf16.msra.mxu0 0
      %4040 = vmatprep.mubr.bf16.mxu0 0
      %4041 = vmatmul.mubr.bf16.gmra.mxu0 %v4003
      %v4042 = vpop.f32.mrf.mxu0
      %v4043 = vadd.f32 0.0, %v4042
      %v4044 = vpop.f32.mrf.mxu0
      %v4045 = vpop.f32.mrf.mxu0
      %v4046 = vpop.f32.mrf.mxu0
      %4047 = vdwg.mxu0
      %4048 = vrot.lane.b32.xlu0 %v2059, 64
      %v4049 = vpop.permute.xlu0 %4048
      %v4051 = vsel %vm321, %v2794, 0
      %v4054 = vsel %vm328, %v4049, 0
      %4056 = vmatprep.subr.bf16.mxu0 0
      %4057 = vmatpush1.bf16.msra.mxu0 0
      %4058 = vmatprep.subr.bf16.mxu0 0
      %4059 = vmatpush1.bf16.msra.mxu0 0
      %4060 = vmatprep.subr.bf16.mxu0 0
      %4061 = vmatpush1.bf16.msra.mxu0 0
      %4062 = vmatprep.subr.bf16.mxu0 0
      %4063 = vmatpush1.bf16.msra.mxu0 0
      %4064 = vmatprep.subr.bf16.mxu0 0
      %4065 = vmatpush1.bf16.msra.mxu0 0
      %4066 = vmatprep.subr.bf16.mxu0 0
      %4067 = vmatpush1.bf16.msra.mxu0 0
      %4068 = vmatprep.subr.bf16.mxu0 0
      %4069 = vmatpush1.bf16.msra.mxu0 0
      %4070 = vmatprep.subr.bf16.mxu0 0
      %4071 = vmatpush1.bf16.msra.mxu0 %v4054
      %4072 = vmatprep.subr.bf16.mxu0 0
      %4073 = vmatpush2.bf16.msra.mxu0 0
      %4074 = vmatprep.subr.bf16.mxu0 0
      %4075 = vmatpush2.bf16.msra.mxu0 0
      %4076 = vmatprep.subr.bf16.mxu0 0
      %4077 = vmatpush2.bf16.msra.mxu0 0
      %4078 = vmatprep.subr.bf16.mxu0 0
      %4079 = vmatpush2.bf16.msra.mxu0 0
      %4080 = vmatprep.subr.bf16.mxu0 0
      %4081 = vmatpush2.bf16.msra.mxu0 0
      %4082 = vmatprep.subr.bf16.mxu0 0
      %4083 = vmatpush2.bf16.msra.mxu0 0
      %4084 = vmatprep.subr.bf16.mxu0 0
      %4085 = vmatpush2.bf16.msra.mxu0 0
      %4086 = vmatprep.subr.bf16.mxu0 0
      %4087 = vmatpush2.bf16.msra.mxu0 0
      %4088 = vmatprep.mubr.bf16.mxu0 0
      %4089 = vmatmul.mubr.bf16.gmra.mxu0 %v4051
      %v4090 = vpop.f32.mrf.mxu0
      %v4091 = vadd.f32 0.0, %v4090
      %v4092 = vpop.f32.mrf.mxu0
      %v4093 = vpop.f32.mrf.mxu0
      %v4094 = vpop.f32.mrf.mxu0
      %4095 = vdwg.mxu0
      %4096 = vrot.lane.b32.xlu0 %v2114, 64
      %v4097 = vpop.permute.xlu0 %4096
      %v4099 = vsel %vm321, %v2795, 0
      %v4102 = vsel %vm328, %v4097, 0
      %4104 = vmatprep.subr.bf16.mxu0 0
      %4105 = vmatpush1.bf16.msra.mxu0 0
      %4106 = vmatprep.subr.bf16.mxu0 0
      %4107 = vmatpush1.bf16.msra.mxu0 0
      %4108 = vmatprep.subr.bf16.mxu0 0
      %4109 = vmatpush1.bf16.msra.mxu0 0
      %4110 = vmatprep.subr.bf16.mxu0 0
      %4111 = vmatpush1.bf16.msra.mxu0 0
      %4112 = vmatprep.subr.bf16.mxu0 0
      %4113 = vmatpush1.bf16.msra.mxu0 0
      %4114 = vmatprep.subr.bf16.mxu0 0
      %4115 = vmatpush1.bf16.msra.mxu0 0
      %4116 = vmatprep.subr.bf16.mxu0 0
      %4117 = vmatpush1.bf16.msra.mxu0 0
      %4118 = vmatprep.subr.bf16.mxu0 0
      %4119 = vmatpush1.bf16.msra.mxu0 %v4102
      %4120 = vmatprep.subr.bf16.mxu0 0
      %4121 = vmatpush2.bf16.msra.mxu0 0
      %4122 = vmatprep.subr.bf16.mxu0 0
      %4123 = vmatpush2.bf16.msra.mxu0 0
      %4124 = vmatprep.subr.bf16.mxu0 0
      %4125 = vmatpush2.bf16.msra.mxu0 0
      %4126 = vmatprep.subr.bf16.mxu0 0
      %4127 = vmatpush2.bf16.msra.mxu0 0
      %4128 = vmatprep.subr.bf16.mxu0 0
      %4129 = vmatpush2.bf16.msra.mxu0 0
      %4130 = vmatprep.subr.bf16.mxu0 0
      %4131 = vmatpush2.bf16.msra.mxu0 0
      %4132 = vmatprep.subr.bf16.mxu0 0
      %4133 = vmatpush2.bf16.msra.mxu0 0
      %4134 = vmatprep.subr.bf16.mxu0 0
      %4135 = vmatpush2.bf16.msra.mxu0 0
      %4136 = vmatprep.mubr.bf16.mxu0 0
      %4137 = vmatmul.mubr.bf16.gmra.mxu0 %v4099
      %v4138 = vpop.f32.mrf.mxu0
      %v4139 = vadd.f32 0.0, %v4138
      %v4140 = vpop.f32.mrf.mxu0
      %v4141 = vpop.f32.mrf.mxu0
      %v4142 = vpop.f32.mrf.mxu0
      %4143 = vdwg.mxu0
      %4144 = vrot.lane.b32.xlu0 %v2169, 64
      %v4145 = vpop.permute.xlu0 %4144
      %v4147 = vsel %vm321, %v2796, 0
      %v4150 = vsel %vm328, %v4145, 0
      %4152 = vmatprep.subr.bf16.mxu0 0
      %4153 = vmatpush1.bf16.msra.mxu0 0
      %4154 = vmatprep.subr.bf16.mxu0 0
      %4155 = vmatpush1.bf16.msra.mxu0 0
      %4156 = vmatprep.subr.bf16.mxu0 0
      %4157 = vmatpush1.bf16.msra.mxu0 0
      %4158 = vmatprep.subr.bf16.mxu0 0
      %4159 = vmatpush1.bf16.msra.mxu0 0
      %4160 = vmatprep.subr.bf16.mxu0 0
      %4161 = vmatpush1.bf16.msra.mxu0 0
      %4162 = vmatprep.subr.bf16.mxu0 0
      %4163 = vmatpush1.bf16.msra.mxu0 0
      %4164 = vmatprep.subr.bf16.mxu0 0
      %4165 = vmatpush1.bf16.msra.mxu0 0
      %4166 = vmatprep.subr.bf16.mxu0 0
      %4167 = vmatpush1.bf16.msra.mxu0 %v4150
      %4168 = vmatprep.subr.bf16.mxu0 0
      %4169 = vmatpush2.bf16.msra.mxu0 0
      %4170 = vmatprep.subr.bf16.mxu0 0
      %4171 = vmatpush2.bf16.msra.mxu0 0
      %4172 = vmatprep.subr.bf16.mxu0 0
      %4173 = vmatpush2.bf16.msra.mxu0 0
      %4174 = vmatprep.subr.bf16.mxu0 0
      %4175 = vmatpush2.bf16.msra.mxu0 0
      %4176 = vmatprep.subr.bf16.mxu0 0
      %4177 = vmatpush2.bf16.msra.mxu0 0
      %4178 = vmatprep.subr.bf16.mxu0 0
      %4179 = vmatpush2.bf16.msra.mxu0 0
      %4180 = vmatprep.subr.bf16.mxu0 0
      %4181 = vmatpush2.bf16.msra.mxu0 0
      %4182 = vmatprep.subr.bf16.mxu0 0
      %4183 = vmatpush2.bf16.msra.mxu0 0
      %4184 = vmatprep.mubr.bf16.mxu0 0
      %4185 = vmatmul.mubr.bf16.gmra.mxu0 %v4147
      %v4186 = vpop.f32.mrf.mxu0
      %v4187 = vadd.f32 0.0, %v4186
      %v4188 = vpop.f32.mrf.mxu0
      %v4189 = vpop.f32.mrf.mxu0
      %v4190 = vpop.f32.mrf.mxu0
      %4191 = vdwg.mxu0
      %4192 = vrot.lane.b32.xlu0 %v2224, 64
      %v4193 = vpop.permute.xlu0 %4192
      %v4195 = vsel %vm321, %v2797, 0
      %v4198 = vsel %vm328, %v4193, 0
      %4200 = vmatprep.subr.bf16.mxu0 0
      %4201 = vmatpush1.bf16.msra.mxu0 0
      %4202 = vmatprep.subr.bf16.mxu0 0
      %4203 = vmatpush1.bf16.msra.mxu0 0
      %4204 = vmatprep.subr.bf16.mxu0 0
      %4205 = vmatpush1.bf16.msra.mxu0 0
      %4206 = vmatprep.subr.bf16.mxu0 0
      %4207 = vmatpush1.bf16.msra.mxu0 0
      %4208 = vmatprep.subr.bf16.mxu0 0
      %4209 = vmatpush1.bf16.msra.mxu0 0
      %4210 = vmatprep.subr.bf16.mxu0 0
      %4211 = vmatpush1.bf16.msra.mxu0 0
      %4212 = vmatprep.subr.bf16.mxu0 0
      %4213 = vmatpush1.bf16.msra.mxu0 0
      %4214 = vmatprep.subr.bf16.mxu0 0
      %4215 = vmatpush1.bf16.msra.mxu0 %v4198
      %4216 = vmatprep.subr.bf16.mxu0 0
      %4217 = vmatpush2.bf16.msra.mxu0 0
      %4218 = vmatprep.subr.bf16.mxu0 0
      %4219 = vmatpush2.bf16.msra.mxu0 0
      %4220 = vmatprep.subr.bf16.mxu0 0
      %4221 = vmatpush2.bf16.msra.mxu0 0
      %4222 = vmatprep.subr.bf16.mxu0 0
      %4223 = vmatpush2.bf16.msra.mxu0 0
      %4224 = vmatprep.subr.bf16.mxu0 0
      %4225 = vmatpush2.bf16.msra.mxu0 0
      %4226 = vmatprep.subr.bf16.mxu0 0
      %4227 = vmatpush2.bf16.msra.mxu0 0
      %4228 = vmatprep.subr.bf16.mxu0 0
      %4229 = vmatpush2.bf16.msra.mxu0 0
      %4230 = vmatprep.subr.bf16.mxu0 0
      %4231 = vmatpush2.bf16.msra.mxu0 0
      %4232 = vmatprep.mubr.bf16.mxu0 0
      %4233 = vmatmul.mubr.bf16.gmra.mxu0 %v4195
      %v4234 = vpop.f32.mrf.mxu0
      %v4235 = vadd.f32 0.0, %v4234
      %v4236 = vpop.f32.mrf.mxu0
      %v4237 = vpop.f32.mrf.mxu0
      %v4238 = vpop.f32.mrf.mxu0
      %4239 = vdwg.mxu0
      %4240 = vrot.lane.b32.xlu0 %v2279, 64
      %v4241 = vpop.permute.xlu0 %4240
      %v4243 = vsel %vm321, %v2798, 0
      %v4246 = vsel %vm328, %v4241, 0
      %4248 = vmatprep.subr.bf16.mxu0 0
      %4249 = vmatpush1.bf16.msra.mxu0 0
      %4250 = vmatprep.subr.bf16.mxu0 0
      %4251 = vmatpush1.bf16.msra.mxu0 0
      %4252 = vmatprep.subr.bf16.mxu0 0
      %4253 = vmatpush1.bf16.msra.mxu0 0
      %4254 = vmatprep.subr.bf16.mxu0 0
      %4255 = vmatpush1.bf16.msra.mxu0 0
      %4256 = vmatprep.subr.bf16.mxu0 0
      %4257 = vmatpush1.bf16.msra.mxu0 0
      %4258 = vmatprep.subr.bf16.mxu0 0
      %4259 = vmatpush1.bf16.msra.mxu0 0
      %4260 = vmatprep.subr.bf16.mxu0 0
      %4261 = vmatpush1.bf16.msra.mxu0 0
      %4262 = vmatprep.subr.bf16.mxu0 0
      %4263 = vmatpush1.bf16.msra.mxu0 %v4246
      %4264 = vmatprep.subr.bf16.mxu0 0
      %4265 = vmatpush2.bf16.msra.mxu0 0
      %4266 = vmatprep.subr.bf16.mxu0 0
      %4267 = vmatpush2.bf16.msra.mxu0 0
      %4268 = vmatprep.subr.bf16.mxu0 0
      %4269 = vmatpush2.bf16.msra.mxu0 0
      %4270 = vmatprep.subr.bf16.mxu0 0
      %4271 = vmatpush2.bf16.msra.mxu0 0
      %4272 = vmatprep.subr.bf16.mxu0 0
      %4273 = vmatpush2.bf16.msra.mxu0 0
      %4274 = vmatprep.subr.bf16.mxu0 0
      %4275 = vmatpush2.bf16.msra.mxu0 0
      %4276 = vmatprep.subr.bf16.mxu0 0
      %4277 = vmatpush2.bf16.msra.mxu0 0
      %4278 = vmatprep.subr.bf16.mxu0 0
      %4279 = vmatpush2.bf16.msra.mxu0 0
      %4280 = vmatprep.mubr.bf16.mxu0 0
      %4281 = vmatmul.mubr.bf16.gmra.mxu0 %v4243
      %v4282 = vpop.f32.mrf.mxu0
      %v4283 = vadd.f32 0.0, %v4282
      %v4284 = vpop.f32.mrf.mxu0
      %v4285 = vpop.f32.mrf.mxu0
      %v4286 = vpop.f32.mrf.mxu0
      %4287 = vdwg.mxu0
      %4288 = vrot.lane.b32.xlu0 %v2334, 64
      %v4289 = vpop.permute.xlu0 %4288
      %v4291 = vsel %vm321, %v2799, 0
      %v4294 = vsel %vm328, %v4289, 0
      %4296 = vmatprep.subr.bf16.mxu0 0
      %4297 = vmatpush1.bf16.msra.mxu0 0
      %4298 = vmatprep.subr.bf16.mxu0 0
      %4299 = vmatpush1.bf16.msra.mxu0 0
      %4300 = vmatprep.subr.bf16.mxu0 0
      %4301 = vmatpush1.bf16.msra.mxu0 0
      %4302 = vmatprep.subr.bf16.mxu0 0
      %4303 = vmatpush1.bf16.msra.mxu0 0
      %4304 = vmatprep.subr.bf16.mxu0 0
      %4305 = vmatpush1.bf16.msra.mxu0 0
      %4306 = vmatprep.subr.bf16.mxu0 0
      %4307 = vmatpush1.bf16.msra.mxu0 0
      %4308 = vmatprep.subr.bf16.mxu0 0
      %4309 = vmatpush1.bf16.msra.mxu0 0
      %4310 = vmatprep.subr.bf16.mxu0 0
      %4311 = vmatpush1.bf16.msra.mxu0 %v4294
      %4312 = vmatprep.subr.bf16.mxu0 0
      %4313 = vmatpush2.bf16.msra.mxu0 0
      %4314 = vmatprep.subr.bf16.mxu0 0
      %4315 = vmatpush2.bf16.msra.mxu0 0
      %4316 = vmatprep.subr.bf16.mxu0 0
      %4317 = vmatpush2.bf16.msra.mxu0 0
      %4318 = vmatprep.subr.bf16.mxu0 0
      %4319 = vmatpush2.bf16.msra.mxu0 0
      %4320 = vmatprep.subr.bf16.mxu0 0
      %4321 = vmatpush2.bf16.msra.mxu0 0
      %4322 = vmatprep.subr.bf16.mxu0 0
      %4323 = vmatpush2.bf16.msra.mxu0 0
      %4324 = vmatprep.subr.bf16.mxu0 0
      %4325 = vmatpush2.bf16.msra.mxu0 0
      %4326 = vmatprep.subr.bf16.mxu0 0
      %4327 = vmatpush2.bf16.msra.mxu0 0
      %4328 = vmatprep.mubr.bf16.mxu0 0
      %4329 = vmatmul.mubr.bf16.gmra.mxu0 %v4291
      %v4330 = vpop.f32.mrf.mxu0
      %v4331 = vadd.f32 0.0, %v4330
      %v4332 = vpop.f32.mrf.mxu0
      %v4333 = vpop.f32.mrf.mxu0
      %v4334 = vpop.f32.mrf.mxu0
      %4335 = vdwg.mxu0
      %v4344 = vcombine.low %v2843, %v2891
      %v4345 = vcombine.low %v2939, %v2987
      %v4346 = vcombine.low %v3035, %v3083
      %v4347 = vcombine.low %v3131, %v3179
      %v4360 = vcombine.low %v3227, %v3275
      %v4361 = vcombine.low %v3323, %v3371
      %v4362 = vcombine.low %v3419, %v3467
      %v4363 = vcombine.low %v3515, %v3563
      %4364 = vrot.lane.b32.xlu0 %v4360, 8
      %v4365 = vpop.permute.xlu0 %4364
      %4366 = vrot.lane.b32.xlu0 %v4361, 8
      %v4367 = vpop.permute.xlu0 %4366
      %4368 = vrot.lane.b32.xlu0 %v4362, 8
      %v4369 = vpop.permute.xlu0 %4368
      %4370 = vrot.lane.b32.xlu0 %v4363, 8
      %v4371 = vpop.permute.xlu0 %4370
      %v4384 = vcombine.low %v3611, %v3659
      %v4385 = vcombine.low %v3707, %v3755
      %v4386 = vcombine.low %v3803, %v3851
      %v4387 = vcombine.low %v3899, %v3947
      %4388 = vrot.lane.b32.xlu0 %v4384, 16
      %v4389 = vpop.permute.xlu0 %4388
      %4390 = vrot.lane.b32.xlu0 %v4385, 16
      %v4391 = vpop.permute.xlu0 %4390
      %4392 = vrot.lane.b32.xlu0 %v4386, 16
      %v4393 = vpop.permute.xlu0 %4392
      %4394 = vrot.lane.b32.xlu0 %v4387, 16
      %v4395 = vpop.permute.xlu0 %4394
      %v4408 = vcombine.low %v3995, %v4043
      %v4409 = vcombine.low %v4091, %v4139
      %v4410 = vcombine.low %v4187, %v4235
      %v4411 = vcombine.low %v4283, %v4331
      %4412 = vrot.lane.b32.xlu0 %v4408, 24
      %v4413 = vpop.permute.xlu0 %4412
      %4414 = vrot.lane.b32.xlu0 %v4409, 24
      %v4415 = vpop.permute.xlu0 %4414
      %4416 = vrot.lane.b32.xlu0 %v4410, 24
      %v4417 = vpop.permute.xlu0 %4416
      %4418 = vrot.lane.b32.xlu0 %v4411, 24
      %v4419 = vpop.permute.xlu0 %4418
      %v4424 = vsel %vm631, %v4344, %v4365
      %v4425 = vsel %vm631, %v4345, %v4367
      %v4426 = vsel %vm631, %v4346, %v4369
      %v4427 = vsel %vm631, %v4347, %v4371
      %vm4428 = vcmask 130048
      %v4429 = vsel %vm4428, %v4424, %v4389
      %v4430 = vsel %vm4428, %v4425, %v4391
      %v4431 = vsel %vm4428, %v4426, %v4393
      %v4432 = vsel %vm4428, %v4427, %v4395
      %vm4433 = vcmask 195584
      %v4434 = vsel %vm4433, %v4429, %v4413
      %v4435 = vsel %vm4433, %v4430, %v4415
      %v4436 = vsel %vm4433, %v4431, %v4417
      %v4437 = vsel %vm4433, %v4432, %v4419
      %v4438 = vpack.c.bf16 %v4435, %v4434
      %v4439 = vpack.c.bf16 %v4437, %v4436
      %v4440 = vld [vmem:[%s6] sm:$0xf]
      %v4441 = vld [vmem:[%s6 + $0x4] sm:$0xf]
      %v4442 = vld [vmem:[%s6 + $0x8] sm:$0xf]
      %v4443 = vld [vmem:[%s6 + $0xc] sm:$0xf]
      %v4444 = vld [vmem:[%s7] sm:$0x1]
      %v4446 = vlaneseq
      %v4447 = vshrl.u32 %v4446, 7
      %v4448 = vsub.s32 0, %v4447
      %v4449 = vrot.slane %v4444, %v4448
      %v4455 = vunpack.c.l.b16 %v4440
      %v4456 = vunpack.c.l.b16 %v4441
      %v4457 = vunpack.c.l.b16 %v4442
      %v4458 = vunpack.c.l.b16 %v4443
      %v4459 = vpack.c.b16 %v4456, %v4455
      %v4460 = vpack.c.b16 %v4458, %v4457
      %v4464 = vsel %vm414, %v4438, 0
      %v4467 = vsel %vm414, %v4439, 0
      %4469 = vmatprep.subr.bf16.mxu0 0
      %4470 = vmatpush1.bf16.msra.mxu0 0
      %4471 = vmatprep.subr.bf16.mxu0 0
      %4472 = vmatpush1.bf16.msra.mxu0 0
      %4473 = vmatprep.subr.bf16.mxu0 0
      %4474 = vmatpush1.bf16.msra.mxu0 0
      %4475 = vmatprep.subr.bf16.mxu0 0
      %4476 = vmatpush1.bf16.msra.mxu0 0
      %4477 = vmatprep.subr.bf16.mxu0 0
      %4478 = vmatpush1.bf16.msra.mxu0 0
      %4479 = vmatprep.subr.bf16.mxu0 0
      %4480 = vmatpush1.bf16.msra.mxu0 0
      %4481 = vmatprep.subr.bf16.mxu0 0
      %4482 = vmatpush1.bf16.msra.mxu0 %v4460
      %4483 = vmatprep.subr.bf16.mxu0 0
      %4484 = vmatpush1.bf16.msra.mxu0 %v4459
      %4485 = vmatprep.subr.bf16.mxu0 0
      %4486 = vmatpush2.bf16.msra.mxu0 0
      %4487 = vmatprep.subr.bf16.mxu0 0
      %4488 = vmatpush2.bf16.msra.mxu0 0
      %4489 = vmatprep.subr.bf16.mxu0 0
      %4490 = vmatpush2.bf16.msra.mxu0 0
      %4491 = vmatprep.subr.bf16.mxu0 0
      %4492 = vmatpush2.bf16.msra.mxu0 0
      %4493 = vmatprep.subr.bf16.mxu0 0
      %4494 = vmatpush2.bf16.msra.mxu0 0
      %4495 = vmatprep.subr.bf16.mxu0 0
      %4496 = vmatpush2.bf16.msra.mxu0 0
      %4497 = vmatprep.subr.bf16.mxu0 0
      %4498 = vmatpush2.bf16.msra.mxu0 0
      %4499 = vmatprep.subr.bf16.mxu0 0
      %4500 = vmatpush2.bf16.msra.mxu0 0
      %4501 = vmatprep.mubr.bf16.mxu0 0
      %4502 = vmatmul.mubr.bf16.gmra.mxu0 %v4464
      %v4503 = vpop.f32.mrf.mxu0
      %v4504 = vadd.f32 %v4449, %v4503
      %v4505 = vpop.f32.mrf.mxu0
      %v4506 = vpop.f32.mrf.mxu0
      %v4507 = vadd.f32 %v4449, %v4506
      %v4508 = vpop.f32.mrf.mxu0
      %4509 = vmatprep.mubr.bf16.mxu0 0
      %4510 = vmatmul.mubr.bf16.gmra.mxu0 %v4467
      %v4511 = vpop.f32.mrf.mxu0
      %v4512 = vadd.f32 %v4449, %v4511
      %v4513 = vpop.f32.mrf.mxu0
      %v4514 = vpop.f32.mrf.mxu0
      %v4515 = vadd.f32 %v4449, %v4514
      %v4516 = vpop.f32.mrf.mxu0
      %4517 = vdwg.mxu0
      %v4522 = vcombine.high %v4504, %v4504
      %v4523 = vcombine.high %v4507, %v4507
      %v4524 = vcombine.high %v4512, %v4512
      %v4525 = vcombine.high %v4515, %v4515
      %v4530 = vcombine.low %v4504, %v4507
      %v4532 = vunpack.c.l.s4 1983009808
      %v4533 = vunpack.c.0.s8 %v4532
      %v4534 = vlaneseq
      %v4535 = vshrl.u32 %v4534, 7
      %v4536 = vsub.s32 %v4533, %v4535
      %v4537 = vrot.slane %v4530, %v4536
      %v4538 = vcombine.low %v4522, %v4523
      %v4540 = vunpack.c.l.s4 1983009808
      %v4541 = vunpack.c.0.s8 %v4540
      %v4542 = vlaneseq
      %v4543 = vshrl.u32 %v4542, 7
      %v4544 = vsub.s32 %v4541, %v4543
      %v4545 = vrot.slane %v4538, %v4544
      %v4546 = vcombine.low %v4537, %v4545
      %v4547 = vcombine.high %v4537, %v4545
      %v4549 = vunpack.c.l.s4 1934713408
      %v4550 = vunpack.c.0.s8 %v4549
      %v4551 = vlaneseq
      %v4552 = vshrl.u32 %v4551, 7
      %v4553 = vsub.s32 %v4550, %v4552
      %v4554 = vrot.slane %v4546, %v4553
      %v4556 = vunpack.c.l.s4 1934713408
      %v4557 = vunpack.c.0.s8 %v4556
      %v4558 = vlaneseq
      %v4559 = vshrl.u32 %v4558, 7
      %v4560 = vsub.s32 %v4557, %v4559
      %v4561 = vrot.slane %v4547, %v4560
      %v4562 = vcombine.high %v4554, 0.0
      %v4563 = vcombine.high %v4561, 0.0
      %v4564 = vcombine.low %v4512, %v4515
      %v4566 = vunpack.c.l.s4 1983009808
      %v4567 = vunpack.c.0.s8 %v4566
      %v4568 = vlaneseq
      %v4569 = vshrl.u32 %v4568, 7
      %v4570 = vsub.s32 %v4567, %v4569
      %v4571 = vrot.slane %v4564, %v4570
      %v4572 = vcombine.low %v4524, %v4525
      %v4574 = vunpack.c.l.s4 1983009808
      %v4575 = vunpack.c.0.s8 %v4574
      %v4576 = vlaneseq
      %v4577 = vshrl.u32 %v4576, 7
      %v4578 = vsub.s32 %v4575, %v4577
      %v4579 = vrot.slane %v4572, %v4578
      %v4580 = vcombine.low %v4571, %v4579
      %v4581 = vcombine.high %v4571, %v4579
      %v4583 = vunpack.c.l.s4 1934713408
      %v4584 = vunpack.c.0.s8 %v4583
      %v4585 = vlaneseq
      %v4586 = vshrl.u32 %v4585, 7
      %v4587 = vsub.s32 %v4584, %v4586
      %v4588 = vrot.slane %v4580, %v4587
      %v4590 = vunpack.c.l.s4 1934713408
      %v4591 = vunpack.c.0.s8 %v4590
      %v4592 = vlaneseq
      %v4593 = vshrl.u32 %v4592, 7
      %v4594 = vsub.s32 %v4591, %v4593
      %v4595 = vrot.slane %v4581, %v4594
      %v4596 = vcombine.high %v4588, 0.0
      %v4597 = vcombine.high %v4595, 0.0
      %v4606 = vcombine.low %v4554, %v4588
      %v4607 = vcombine.low %v4562, %v4596
      %v4608 = vcombine.low %v4561, %v4595
      %v4609 = vcombine.low %v4563, %v4597
      %4614 = vst.msk [vmem:[%s305] sm:$0xff] %vm414, %v4606
      %4615 = vst.msk [vmem:[%s305 + $0x8] sm:$0xff] %vm414, %v4607
      %4616 = vst.msk [vmem:[%s305 + $0x10] sm:$0xff] %vm414, %v4608
      %4617 = vst.msk [vmem:[%s305 + $0x18] sm:$0xff] %vm414, %v4609
      %p4618 = scmp.lt.s32.totalorder %s19, 1
      %s4619 = scalar_select %p4618, %s19, 1
      %s4620 = smul.addr %s4619, 4
      %s4621 = smul.addr %s4620, 8
      %s4622 = scalar_lea.vmem %s8, %s4621
      // Predicated region
      $region53: #{forward.2} parent=51 // pred_check
        %p4623 = pneg %p210
      $region54: #{forward.2} parent=51 // pred_check_branch
        %4625 = sbr.rel (%p4623) target = $region56
      $region55: #{forward.2} parent=51 // pred_region
        _
      $region56: #{forward.2} parent=51 // pred_fallthru
        _
    $region52: #{forward.2} parent=5 // pred_fallthru
      _
    %p4626 = scmp.le.s32.totalorder 2, %s14
    // Predicated region
    $region57: #{forward.2} parent=5 // pred_check
      %p4627 = pneg %p4626
    $region58: #{forward.2} parent=5 // pred_check_branch
      %4629 = sbr.rel (%p4627) target = $region60
    $region59: #{forward.2} parent=5 // pred_region
      %s4630 = ssub.s32 %s14, 2
      // Predicated region
      $region61: #{forward.2} parent=59 // pred_check
        %p4631 = pneg %p216
      $region62: #{forward.2} parent=59 // pred_check_branch
        %4633 = sbr.rel (%p4631) target = $region64
      $region63: #{forward.2} parent=59 // pred_region
        %p4634 = scmp.lt.s32.totalorder %s20, 1
        %s4635 = scalar_select %p4634, %s20, 1
        %s4636 = smul.addr %s4635, 4
        %s4637 = smul.addr %s4636, 8
        %s4638 = scalar_lea.vmem %s8, %s4637
      $region64: #{forward.2} parent=59 // pred_fallthru
        _
    $region60: #{forward.2} parent=5 // pred_fallthru
      _
  $region6: #{forward.2} parent=0 // loop_footer
    %s18 = sadd.s32 1, %s14
  $region7: #{forward.2} parent=0 // loop_footer_branch
    %13 = sbr.rel target = $region3
  $region8: #{forward.2} parent=0 // loop_exit
    _

</llo_original>
